<compile_context>
chip_gen: v7x
topology: tpu7x:2x2x1
jax: 0.10.0
libtpu: 0.0.40
codegen_flags: <defaults>
</compile_context>

<pallas_src>
import functools

import numpy as np
import jax
import jax.numpy as jnp
from jax.experimental import pallas as pl
from jax.experimental.pallas import tpu as pltpu

LEAKY_SLOPE = 0.01   # torch.nn.LeakyReLU default
BN_EPS = 1e-5        # torch.nn.BatchNorm2d default


def _lane_pad(n):
    return ((n + 127) // 128) * 128


def generate_architecture(input_shape, output_shape):
    """Exact port of GenModel.generate_architecture."""
    flag_end = False
    shape_multiplyer = 2
    c, h, w = input_shape
    c2, h2, w2 = output_shape
    cl, hl, wl = [c], [h], [w]
    flag_compress = False
    c_before_compress = 100
    while not flag_end:
        if not flag_compress:
            if cl[-1] * 10 < c_before_compress:
                cl.append(int(cl[-1] * 10))
            else:
                cl.append(int(c_before_compress))
                flag_compress = True
        elif not cl[-1] // shape_multiplyer < c2:
            cl.append(int(cl[-1] // shape_multiplyer))
        else:
            cl.append(int(c2))
        if hl[-1] // shape_multiplyer > h2:
            hl.append(int(hl[-1] // shape_multiplyer))
        else:
            hl.append(int(h2))
        if wl[-1] // shape_multiplyer > w2:
            wl.append(int(wl[-1] // shape_multiplyer))
        else:
            wl.append(int(w2))
        if cl[-2] == c2 and wl[-1] == w2 and hl[-1] == h2:
            flag_end = True
    return cl, hl, wl


def _adaptive_pool_matrix(in_size, out_size):
    """1-D adaptive-average-pool as an (out, in) matrix (PyTorch bin edges)."""
    P = np.zeros((out_size, in_size), np.float32)
    for o in range(out_size):
        start = (o * in_size) // out_size
        end = -((-(o + 1) * in_size) // out_size)   # ceil((o+1)*in/out)
        P[o, start:end] = 1.0 / (end - start)
    return P


def _transfer_matrix(H, W, Ho, Wo, next_padded):
    """Fused per-layer post-conv linear map.

    Columns index the OVERSIZED conv output rows m = r*(W+2) + c with
    r in [0,H), c in [0,W+2); only c < W columns carry valid conv results.
    The matrix (a) strips the junk rows, (b) applies AdaptiveAvgPool2d((Ho,Wo))
    and (c) if `next_padded`, embeds the result into the next layer's
    zero-padded flattened layout of (Ho+2)*(Wo+2)+2 rows (zero rows == halo).
    """
    Wp = W + 2
    ph = _adaptive_pool_matrix(H, Ho)
    pw = _adaptive_pool_matrix(W, Wo)
    rows = (Ho + 2) * (Wo + 2) + 2 if next_padded else Ho * Wo
    T = np.zeros((rows, H * Wp), np.float32)
    for ro in range(Ho):
        for co in range(Wo):
            q = ((ro + 1) * (Wo + 2) + (co + 1)) if next_padded else (ro * Wo + co)
            for r in range(H):
                if ph[ro, r] == 0.0:
                    continue
                for c in range(W):
                    if pw[co, c] == 0.0:
                        continue
                    T[q, r * Wp + c] = ph[ro, r] * pw[co, c]
    return T


# ---------------------------------------------------------------------------
# Fused Pallas kernel: one grid step == one batch element, whole network.
# Everything stays in VMEM/vregs as values; no scratch, no in-kernel memsets.
# ---------------------------------------------------------------------------
def _fused_kernel(*refs, layer_hw):
    n_layers = len(layer_hw)
    x_ref = refs[0]
    wf_ref, bf_ref = refs[-3], refs[-2]
    o_ref = refs[-1]

    # Padded-flat activation: ((H+2)*(W+2)+2, 128) bf16, zeros on the halo.
    act = x_ref[0]
    for i, (H, W) in enumerate(layer_hw):
        w_ref = refs[1 + 3 * i]
        b_ref = refs[2 + 3 * i]
        t_ref = refs[3 + 3 * i]
        Wp = W + 2
        M = H * Wp                       # oversized row count (junk stripped by T)

        # im2col from 9 CONTIGUOUS sublane windows; lane-aligned concat
        # (each tap occupies a full 128-lane block).
        offsets = [dy * Wp + dx for dy in range(3) for dx in range(3)]
        patches = jnp.concatenate([act[k:k + M, :] for k in offsets], axis=1)

        # One MXU matmul per layer: (M, 9*128) x (9*128, 128), f32 accumulation.
        y = jnp.dot(patches, w_ref[...], preferred_element_type=jnp.float32)
        y = y + b_ref[...]                       # conv bias (BatchNorm folded in)
        y = jnp.maximum(y, LEAKY_SLOPE * y)      # LeakyReLU, 2 VPU ops

        # Strip junk rows + adaptive avg pool + zero-pad for the next layer,
        # all as one matmul with the precomputed transfer matrix.
        t = t_ref[...]
        act = jnp.dot(t, y.astype(t.dtype),
                      preferred_element_type=jnp.float32).astype(jnp.bfloat16)

    # Tail: AdaptiveAvgPool2d((H_last, W_last)) is identity here (the last
    # block already has that size); 1x1 conv == per-pixel matmul.
    out = jnp.dot(act, wf_ref[...], preferred_element_type=jnp.float32) + bf_ref[...]
    o_ref[0] = out


# ---------------------------------------------------------------------------
# Wrapper: single pallas_call for the whole forward.
# ---------------------------------------------------------------------------
def _const_spec(arr):
    nd = arr.ndim
    return pl.BlockSpec(arr.shape, lambda n, _nd=nd: (0,) * _nd)


def gen_model_forward(x_nchw, block_params, final_params, cl, hl, wl):
    n_layers = len(cl) - 1
    N, C0, H0, W0 = x_nchw.shape
    cpad = _lane_pad(max(cl))
    P0 = (H0 + 2) * (W0 + 2) + 2

    # One boundary transpose + one zero pad (spatial halo, 2 tail rows, lane pad).
    x = jnp.transpose(x_nchw, (0, 2, 3, 1))                      # NHWC
    x = jnp.pad(x, ((0, 0), (1, 1), (1, 1), (0, cpad - C0)))     # spatial + lane pad
    x = x.reshape(N, (H0 + 2) * (W0 + 2), cpad)
    x = jnp.pad(x, ((0, 0), (0, 2), (0, 0))).astype(jnp.bfloat16)

    inputs = [x]
    in_specs = [pl.BlockSpec((1, P0, cpad), lambda n: (n, 0, 0))]
    layer_hw = []
    for i in range(n_layers):
        p = block_params[i]
        inputs += [p["w"], p["b"], p["t"]]
        in_specs += [_const_spec(p["w"]), _const_spec(p["b"]), _const_spec(p["t"])]
        layer_hw.append((hl[i], wl[i]))
    wf_p, bf_p = final_params
    inputs += [wf_p, bf_p]
    in_specs += [_const_spec(wf_p), _const_spec(bf_p)]

    Hl, Wl, Cl = hl[-1], wl[-1], cl[-1]
    kern = functools.partial(_fused_kernel, layer_hw=tuple(layer_hw))
    y = pl.pallas_call(
        kern,
        out_shape=jax.ShapeDtypeStruct((N, Hl * Wl, cpad), jnp.float32),
        grid=(N,),
        in_specs=in_specs,
        out_specs=pl.BlockSpec((1, Hl * Wl, cpad), lambda n: (n, 0, 0)),
        compiler_params=pltpu.CompilerParams(
            dimension_semantics=("parallel",),        # one block per TC on v7x
            vmem_limit_bytes=32 * 1024 * 1024),
    )(*inputs)
    # Strip lane padding; back to PyTorch NCHW once, at the boundary.
    y = y[:, :, :Cl].reshape(N, Hl, Wl, Cl)
    return jnp.transpose(y, (0, 3, 1, 2))


# ---------------------------------------------------------------------------
# Parameter init (PyTorch-style uniform fan-in bounds), BN folded at init.
# Returns both the kernel-layout params and raw f32 params for the reference.
# ---------------------------------------------------------------------------
def init_params(key, cl, hl, wl):
    n_layers = len(cl) - 1
    cpad = _lane_pad(max(cl))
    bn_scale = 1.0 / np.sqrt(1.0 + BN_EPS)   # gamma=1, beta=0, mean=0, var=1
    blocks_k, blocks_ref = [], []
    for i in range(n_layers):
        cin, cout = cl[i], cl[i + 1]
        H, W, Ho, Wo = hl[i], wl[i], hl[i + 1], wl[i + 1]
        key, k_w, k_b = jax.random.split(key, 3)
        bound = 1.0 / (cin * 9) ** 0.5
        w9 = jax.random.uniform(k_w, (9, cin, cout), jnp.float32, -bound, bound)
        b = jax.random.uniform(k_b, (cout,), jnp.float32, -bound, bound)
        w9 = w9 * bn_scale            # BatchNorm2d (inference, default stats) folded
        b = b * bn_scale
        blocks_ref.append((w9, b))

        # Kernel form: im2col weights, lane-padded to 128, bf16 for the MXU.
        w_p = jnp.pad(w9, ((0, 0), (0, cpad - cin), (0, cpad - cout)))
        w_p = w_p.reshape(9 * cpad, cpad).astype(jnp.bfloat16)
        b_p = jnp.pad(b, (0, cpad - cout)).reshape(1, cpad)

        T = _transfer_matrix(H, W, Ho, Wo, next_padded=(i < n_layers - 1))
        T_rt = np.asarray(jnp.asarray(T, jnp.bfloat16).astype(jnp.float32))
        t_dtype = jnp.bfloat16 if np.array_equal(T_rt, T) else jnp.float32
        blocks_k.append(dict(w=w_p, b=b_p, t=jnp.asarray(T, t_dtype)))

    c = cl[-1]
    key, k_w, k_b = jax.random.split(key, 3)
    bound = 1.0 / c ** 0.5
    wf = jax.random.uniform(k_w, (c, c), jnp.float32, -bound, bound)
    bf = jax.random.uniform(k_b, (c,), jnp.float32, -bound, bound)
    final_ref = (wf, bf)
    wf_p = jnp.pad(wf, ((0, cpad - c), (0, cpad - c))).astype(jnp.bfloat16)
    bf_p = jnp.pad(bf, (0, cpad - c)).reshape(1, cpad)
    final_k = (wf_p, bf_p)
    return blocks_k, final_k, blocks_ref, final_ref


# ---------------------------------------------------------------------------
# Pure-JAX f32 reference (independent of the kernel's transfer-matrix scheme).
# ---------------------------------------------------------------------------
def _reference_forward(x_nchw, blocks_ref, final_ref, cl, hl, wl):
    x = jnp.transpose(x_nchw, (0, 2, 3, 1)).astype(jnp.float32)   # NHWC
    n_layers = len(cl) - 1
    for i in range(n_layers):
        w9, b = blocks_ref[i]
        H, W, Ho, Wo = hl[i], wl[i], hl[i + 1], wl[i + 1]
        xp = jnp.pad(x, ((0, 0), (1, 1), (1, 1), (0, 0)))
        y = b.reshape(1, 1, 1, -1) + sum(
            jnp.einsum('nhwc,cd->nhwd',
                       xp[:, dy:dy + H, dx:dx + W, :], w9[dy * 3 + dx])
            for dy in range(3) for dx in range(3))
        y = jnp.where(y > 0, y, LEAKY_SLOPE * y)
        ph = jnp.asarray(_adaptive_pool_matrix(H, Ho))
        pw = jnp.asarray(_adaptive_pool_matrix(W, Wo))
        y = jnp.einsum('oh,nhwc->nowc', ph, y)
        y = jnp.einsum('pw,nowc->nopc', pw, y)
        x = y
    wf, bf = final_ref
    out = jnp.einsum('nhwc,cd->nhwd', x, wf) + bf.reshape(1, 1, 1, -1)
    return jnp.transpose(out, (0, 3, 1, 2))


if __name__ == "__main__":
    input_shape = (4, 16, 16)    # (C, H, W)
    output_shape = (25, 4, 4)    # (C2, H2, W2)
    batch = 2

    cl, hl, wl = generate_architecture(input_shape, output_shape)
    # cl=[4,40,100,50,25,25], hl=wl=[16,8,4,4,4,4]

    key = jax.random.PRNGKey(0)
    key, k_x = jax.random.split(key)
    x = jax.random.normal(k_x, (batch,) + input_shape, jnp.float32)   # NCHW

    blocks_k, final_k, blocks_ref, final_ref = init_params(key, cl, hl, wl)

    fwd = jax.jit(functools.partial(gen_model_forward, cl=cl, hl=hl, wl=wl))
    out = jax.block_until_ready(fwd(x, blocks_k, final_k))

    expected = (batch, cl[-1], hl[-1], wl[-1])
    assert out.shape == expected, (out.shape, expected)
    assert bool(jnp.all(jnp.isfinite(out)))

    # Numerical cross-check vs an independent f32 XLA reference (loose
    # tolerance covers the kernel's bf16 MXU inputs).
    ref = _reference_forward(x, blocks_ref, final_ref, cl, hl, wl)
    max_err = float(jnp.max(jnp.abs(out - ref)))
    assert bool(jnp.allclose(out, ref, rtol=5e-2, atol=5e-2)), max_err

    print("KERNEL_OK")
</pallas_src>

<mosaic_0001>
module attributes {stable_mosaic.version = 11 : i64} {
  func.func @_fused_kernel(%arg0: i32, %arg1: memref<1x326x128xbf16, #tpu.memory_space<vmem>>, %arg2: memref<1152x128xbf16, #tpu.memory_space<vmem>>, %arg3: memref<1x128xf32, #tpu.memory_space<vmem>>, %arg4: memref<102x288xbf16, #tpu.memory_space<vmem>>, %arg5: memref<1152x128xbf16, #tpu.memory_space<vmem>>, %arg6: memref<1x128xf32, #tpu.memory_space<vmem>>, %arg7: memref<38x80xbf16, #tpu.memory_space<vmem>>, %arg8: memref<1152x128xbf16, #tpu.memory_space<vmem>>, %arg9: memref<1x128xf32, #tpu.memory_space<vmem>>, %arg10: memref<38x24xbf16, #tpu.memory_space<vmem>>, %arg11: memref<1152x128xbf16, #tpu.memory_space<vmem>>, %arg12: memref<1x128xf32, #tpu.memory_space<vmem>>, %arg13: memref<38x24xbf16, #tpu.memory_space<vmem>>, %arg14: memref<1152x128xbf16, #tpu.memory_space<vmem>>, %arg15: memref<1x128xf32, #tpu.memory_space<vmem>>, %arg16: memref<16x24xbf16, #tpu.memory_space<vmem>>, %arg17: memref<128x128xbf16, #tpu.memory_space<vmem>>, %arg18: memref<1x128xf32, #tpu.memory_space<vmem>>, %arg19: memref<1x16x128xf32, #tpu.memory_space<vmem>>) attributes {dimension_semantics = [#tpu.dimension_semantics<parallel>], iteration_bounds = array<i64: 2>, scalar_prefetch = 0 : i64, scratch_operands = 0 : i64, tpu.core_type = #tpu.core_type<tc>, window_params = [{transform_indices = @transform_0, window_bounds = array<i64: 1, 326, 128>}, {pipeline_mode = #tpu.pipeline_mode<synchronous>, transform_indices = @transform_1, window_bounds = array<i64: 1152, 128>}, {pipeline_mode = #tpu.pipeline_mode<synchronous>, transform_indices = @transform_2, window_bounds = array<i64: 1, 128>}, {pipeline_mode = #tpu.pipeline_mode<synchronous>, transform_indices = @transform_3, window_bounds = array<i64: 102, 288>}, {pipeline_mode = #tpu.pipeline_mode<synchronous>, transform_indices = @transform_4, window_bounds = array<i64: 1152, 128>}, {pipeline_mode = #tpu.pipeline_mode<synchronous>, transform_indices = @transform_5, window_bounds = array<i64: 1, 128>}, {pipeline_mode = #tpu.pipeline_mode<synchronous>, transform_indices = @transform_6, window_bounds = array<i64: 38, 80>}, {pipeline_mode = #tpu.pipeline_mode<synchronous>, transform_indices = @transform_7, window_bounds = array<i64: 1152, 128>}, {pipeline_mode = #tpu.pipeline_mode<synchronous>, transform_indices = @transform_8, window_bounds = array<i64: 1, 128>}, {pipeline_mode = #tpu.pipeline_mode<synchronous>, transform_indices = @transform_9, window_bounds = array<i64: 38, 24>}, {pipeline_mode = #tpu.pipeline_mode<synchronous>, transform_indices = @transform_10, window_bounds = array<i64: 1152, 128>}, {pipeline_mode = #tpu.pipeline_mode<synchronous>, transform_indices = @transform_11, window_bounds = array<i64: 1, 128>}, {pipeline_mode = #tpu.pipeline_mode<synchronous>, transform_indices = @transform_12, window_bounds = array<i64: 38, 24>}, {pipeline_mode = #tpu.pipeline_mode<synchronous>, transform_indices = @transform_13, window_bounds = array<i64: 1152, 128>}, {pipeline_mode = #tpu.pipeline_mode<synchronous>, transform_indices = @transform_14, window_bounds = array<i64: 1, 128>}, {pipeline_mode = #tpu.pipeline_mode<synchronous>, transform_indices = @transform_15, window_bounds = array<i64: 16, 24>}, {pipeline_mode = #tpu.pipeline_mode<synchronous>, transform_indices = @transform_16, window_bounds = array<i64: 128, 128>}, {pipeline_mode = #tpu.pipeline_mode<synchronous>, transform_indices = @transform_17, window_bounds = array<i64: 1, 128>}, {transform_indices = @transform_18, window_bounds = array<i64: 1, 16, 128>}]} {
    %c0 = arith.constant 0 : index
    %c0_0 = arith.constant 0 : index
    %c0_1 = arith.constant 0 : index
    %0 = vector.load %arg1[%c0, %c0_0, %c0_1] : memref<1x326x128xbf16, #tpu.memory_space<vmem>>, vector<1x326x128xbf16>
    %1 = vector.shape_cast %0 : vector<1x326x128xbf16> to vector<326x128xbf16>
    %2 = vector.extract_strided_slice %1 {offsets = [0, 0], sizes = [288, 128], strides = [1, 1]} : vector<326x128xbf16> to vector<288x128xbf16>
    %3 = vector.extract_strided_slice %1 {offsets = [1, 0], sizes = [288, 128], strides = [1, 1]} : vector<326x128xbf16> to vector<288x128xbf16>
    %4 = vector.extract_strided_slice %1 {offsets = [2, 0], sizes = [288, 128], strides = [1, 1]} : vector<326x128xbf16> to vector<288x128xbf16>
    %5 = vector.extract_strided_slice %1 {offsets = [18, 0], sizes = [288, 128], strides = [1, 1]} : vector<326x128xbf16> to vector<288x128xbf16>
    %6 = vector.extract_strided_slice %1 {offsets = [19, 0], sizes = [288, 128], strides = [1, 1]} : vector<326x128xbf16> to vector<288x128xbf16>
    %7 = vector.extract_strided_slice %1 {offsets = [20, 0], sizes = [288, 128], strides = [1, 1]} : vector<326x128xbf16> to vector<288x128xbf16>
    %8 = vector.extract_strided_slice %1 {offsets = [36, 0], sizes = [288, 128], strides = [1, 1]} : vector<326x128xbf16> to vector<288x128xbf16>
    %9 = vector.extract_strided_slice %1 {offsets = [37, 0], sizes = [288, 128], strides = [1, 1]} : vector<326x128xbf16> to vector<288x128xbf16>
    %10 = vector.extract_strided_slice %1 {offsets = [38, 0], sizes = [288, 128], strides = [1, 1]} : vector<326x128xbf16> to vector<288x128xbf16>
    %11 = tpu.concatenate %2, %3, %4, %5, %6, %7, %8, %9, %10 in 1 : vector<288x128xbf16>, vector<288x128xbf16>, vector<288x128xbf16>, vector<288x128xbf16>, vector<288x128xbf16>, vector<288x128xbf16>, vector<288x128xbf16>, vector<288x128xbf16>, vector<288x128xbf16> -> vector<288x1152xbf16>
    %c0_2 = arith.constant 0 : index
    %c0_3 = arith.constant 0 : index
    %12 = vector.load %arg2[%c0_2, %c0_3] : memref<1152x128xbf16, #tpu.memory_space<vmem>>, vector<1152x128xbf16>
    %cst = arith.constant dense<0.000000e+00> : vector<288x128xf32>
    %13 = tpu.matmul %11, %12, %cst {dimension_numbers = #tpu.dot_dimension_numbers<[1], [0], [0], [1], [0, 0, 1, 1], [], []>} : vector<288x1152xbf16>, vector<1152x128xbf16>, vector<288x128xf32> -> vector<288x128xf32>
    %c0_4 = arith.constant 0 : index
    %c0_5 = arith.constant 0 : index
    %14 = vector.load %arg3[%c0_4, %c0_5] : memref<1x128xf32, #tpu.memory_space<vmem>>, vector<1x128xf32>
    %15 = vector.broadcast %14 : vector<1x128xf32> to vector<288x128xf32>
    %16 = arith.addf %13, %15 : vector<288x128xf32>
    %cst_6 = arith.constant 0.00999999977 : f32
    %17 = vector.broadcast %cst_6 : f32 to vector<288x128xf32>
    %18 = arith.mulf %17, %16 : vector<288x128xf32>
    %19 = arith.maximumf %16, %18 : vector<288x128xf32>
    %c0_7 = arith.constant 0 : index
    %c0_8 = arith.constant 0 : index
    %20 = vector.load %arg4[%c0_7, %c0_8] : memref<102x288xbf16, #tpu.memory_space<vmem>>, vector<102x288xbf16>
    %21 = arith.truncf %19 : vector<288x128xf32> to vector<288x128xbf16>
    %cst_9 = arith.constant dense<0.000000e+00> : vector<102x128xf32>
    %22 = tpu.matmul %20, %21, %cst_9 {dimension_numbers = #tpu.dot_dimension_numbers<[1], [0], [0], [1], [0, 0, 1, 1], [], []>} : vector<102x288xbf16>, vector<288x128xbf16>, vector<102x128xf32> -> vector<102x128xf32>
    %23 = arith.truncf %22 : vector<102x128xf32> to vector<102x128xbf16>
    %24 = vector.extract_strided_slice %23 {offsets = [0, 0], sizes = [80, 128], strides = [1, 1]} : vector<102x128xbf16> to vector<80x128xbf16>
    %25 = vector.extract_strided_slice %23 {offsets = [1, 0], sizes = [80, 128], strides = [1, 1]} : vector<102x128xbf16> to vector<80x128xbf16>
    %26 = vector.extract_strided_slice %23 {offsets = [2, 0], sizes = [80, 128], strides = [1, 1]} : vector<102x128xbf16> to vector<80x128xbf16>
    %27 = vector.extract_strided_slice %23 {offsets = [10, 0], sizes = [80, 128], strides = [1, 1]} : vector<102x128xbf16> to vector<80x128xbf16>
    %28 = vector.extract_strided_slice %23 {offsets = [11, 0], sizes = [80, 128], strides = [1, 1]} : vector<102x128xbf16> to vector<80x128xbf16>
    %29 = vector.extract_strided_slice %23 {offsets = [12, 0], sizes = [80, 128], strides = [1, 1]} : vector<102x128xbf16> to vector<80x128xbf16>
    %30 = vector.extract_strided_slice %23 {offsets = [20, 0], sizes = [80, 128], strides = [1, 1]} : vector<102x128xbf16> to vector<80x128xbf16>
    %31 = vector.extract_strided_slice %23 {offsets = [21, 0], sizes = [80, 128], strides = [1, 1]} : vector<102x128xbf16> to vector<80x128xbf16>
    %32 = vector.extract_strided_slice %23 {offsets = [22, 0], sizes = [80, 128], strides = [1, 1]} : vector<102x128xbf16> to vector<80x128xbf16>
    %33 = tpu.concatenate %24, %25, %26, %27, %28, %29, %30, %31, %32 in 1 : vector<80x128xbf16>, vector<80x128xbf16>, vector<80x128xbf16>, vector<80x128xbf16>, vector<80x128xbf16>, vector<80x128xbf16>, vector<80x128xbf16>, vector<80x128xbf16>, vector<80x128xbf16> -> vector<80x1152xbf16>
    %c0_10 = arith.constant 0 : index
    %c0_11 = arith.constant 0 : index
    %34 = vector.load %arg5[%c0_10, %c0_11] : memref<1152x128xbf16, #tpu.memory_space<vmem>>, vector<1152x128xbf16>
    %cst_12 = arith.constant dense<0.000000e+00> : vector<80x128xf32>
    %35 = tpu.matmul %33, %34, %cst_12 {dimension_numbers = #tpu.dot_dimension_numbers<[1], [0], [0], [1], [0, 0, 1, 1], [], []>} : vector<80x1152xbf16>, vector<1152x128xbf16>, vector<80x128xf32> -> vector<80x128xf32>
    %c0_13 = arith.constant 0 : index
    %c0_14 = arith.constant 0 : index
    %36 = vector.load %arg6[%c0_13, %c0_14] : memref<1x128xf32, #tpu.memory_space<vmem>>, vector<1x128xf32>
    %37 = vector.broadcast %36 : vector<1x128xf32> to vector<80x128xf32>
    %38 = arith.addf %35, %37 : vector<80x128xf32>
    %cst_15 = arith.constant 0.00999999977 : f32
    %39 = vector.broadcast %cst_15 : f32 to vector<80x128xf32>
    %40 = arith.mulf %39, %38 : vector<80x128xf32>
    %41 = arith.maximumf %38, %40 : vector<80x128xf32>
    %c0_16 = arith.constant 0 : index
    %c0_17 = arith.constant 0 : index
    %42 = vector.load %arg7[%c0_16, %c0_17] : memref<38x80xbf16, #tpu.memory_space<vmem>>, vector<38x80xbf16>
    %43 = arith.truncf %41 : vector<80x128xf32> to vector<80x128xbf16>
    %cst_18 = arith.constant dense<0.000000e+00> : vector<38x128xf32>
    %44 = tpu.matmul %42, %43, %cst_18 {dimension_numbers = #tpu.dot_dimension_numbers<[1], [0], [0], [1], [0, 0, 1, 1], [], []>} : vector<38x80xbf16>, vector<80x128xbf16>, vector<38x128xf32> -> vector<38x128xf32>
    %45 = arith.truncf %44 : vector<38x128xf32> to vector<38x128xbf16>
    %46 = vector.extract_strided_slice %45 {offsets = [0, 0], sizes = [24, 128], strides = [1, 1]} : vector<38x128xbf16> to vector<24x128xbf16>
    %47 = vector.extract_strided_slice %45 {offsets = [1, 0], sizes = [24, 128], strides = [1, 1]} : vector<38x128xbf16> to vector<24x128xbf16>
    %48 = vector.extract_strided_slice %45 {offsets = [2, 0], sizes = [24, 128], strides = [1, 1]} : vector<38x128xbf16> to vector<24x128xbf16>
    %49 = vector.extract_strided_slice %45 {offsets = [6, 0], sizes = [24, 128], strides = [1, 1]} : vector<38x128xbf16> to vector<24x128xbf16>
    %50 = vector.extract_strided_slice %45 {offsets = [7, 0], sizes = [24, 128], strides = [1, 1]} : vector<38x128xbf16> to vector<24x128xbf16>
    %51 = vector.extract_strided_slice %45 {offsets = [8, 0], sizes = [24, 128], strides = [1, 1]} : vector<38x128xbf16> to vector<24x128xbf16>
    %52 = vector.extract_strided_slice %45 {offsets = [12, 0], sizes = [24, 128], strides = [1, 1]} : vector<38x128xbf16> to vector<24x128xbf16>
    %53 = vector.extract_strided_slice %45 {offsets = [13, 0], sizes = [24, 128], strides = [1, 1]} : vector<38x128xbf16> to vector<24x128xbf16>
    %54 = vector.extract_strided_slice %45 {offsets = [14, 0], sizes = [24, 128], strides = [1, 1]} : vector<38x128xbf16> to vector<24x128xbf16>
    %55 = tpu.concatenate %46, %47, %48, %49, %50, %51, %52, %53, %54 in 1 : vector<24x128xbf16>, vector<24x128xbf16>, vector<24x128xbf16>, vector<24x128xbf16>, vector<24x128xbf16>, vector<24x128xbf16>, vector<24x128xbf16>, vector<24x128xbf16>, vector<24x128xbf16> -> vector<24x1152xbf16>
    %c0_19 = arith.constant 0 : index
    %c0_20 = arith.constant 0 : index
    %56 = vector.load %arg8[%c0_19, %c0_20] : memref<1152x128xbf16, #tpu.memory_space<vmem>>, vector<1152x128xbf16>
    %cst_21 = arith.constant dense<0.000000e+00> : vector<24x128xf32>
    %57 = tpu.matmul %55, %56, %cst_21 {dimension_numbers = #tpu.dot_dimension_numbers<[1], [0], [0], [1], [0, 0, 1, 1], [], []>} : vector<24x1152xbf16>, vector<1152x128xbf16>, vector<24x128xf32> -> vector<24x128xf32>
    %c0_22 = arith.constant 0 : index
    %c0_23 = arith.constant 0 : index
    %58 = vector.load %arg9[%c0_22, %c0_23] : memref<1x128xf32, #tpu.memory_space<vmem>>, vector<1x128xf32>
    %59 = vector.broadcast %58 : vector<1x128xf32> to vector<24x128xf32>
    %60 = arith.addf %57, %59 : vector<24x128xf32>
    %cst_24 = arith.constant 0.00999999977 : f32
    %61 = vector.broadcast %cst_24 : f32 to vector<24x128xf32>
    %62 = arith.mulf %61, %60 : vector<24x128xf32>
    %63 = arith.maximumf %60, %62 : vector<24x128xf32>
    %c0_25 = arith.constant 0 : index
    %c0_26 = arith.constant 0 : index
    %64 = vector.load %arg10[%c0_25, %c0_26] : memref<38x24xbf16, #tpu.memory_space<vmem>>, vector<38x24xbf16>
    %65 = arith.truncf %63 : vector<24x128xf32> to vector<24x128xbf16>
    %cst_27 = arith.constant dense<0.000000e+00> : vector<38x128xf32>
    %66 = tpu.matmul %64, %65, %cst_27 {dimension_numbers = #tpu.dot_dimension_numbers<[1], [0], [0], [1], [0, 0, 1, 1], [], []>} : vector<38x24xbf16>, vector<24x128xbf16>, vector<38x128xf32> -> vector<38x128xf32>
    %67 = arith.truncf %66 : vector<38x128xf32> to vector<38x128xbf16>
    %68 = vector.extract_strided_slice %67 {offsets = [0, 0], sizes = [24, 128], strides = [1, 1]} : vector<38x128xbf16> to vector<24x128xbf16>
    %69 = vector.extract_strided_slice %67 {offsets = [1, 0], sizes = [24, 128], strides = [1, 1]} : vector<38x128xbf16> to vector<24x128xbf16>
    %70 = vector.extract_strided_slice %67 {offsets = [2, 0], sizes = [24, 128], strides = [1, 1]} : vector<38x128xbf16> to vector<24x128xbf16>
    %71 = vector.extract_strided_slice %67 {offsets = [6, 0], sizes = [24, 128], strides = [1, 1]} : vector<38x128xbf16> to vector<24x128xbf16>
    %72 = vector.extract_strided_slice %67 {offsets = [7, 0], sizes = [24, 128], strides = [1, 1]} : vector<38x128xbf16> to vector<24x128xbf16>
    %73 = vector.extract_strided_slice %67 {offsets = [8, 0], sizes = [24, 128], strides = [1, 1]} : vector<38x128xbf16> to vector<24x128xbf16>
    %74 = vector.extract_strided_slice %67 {offsets = [12, 0], sizes = [24, 128], strides = [1, 1]} : vector<38x128xbf16> to vector<24x128xbf16>
    %75 = vector.extract_strided_slice %67 {offsets = [13, 0], sizes = [24, 128], strides = [1, 1]} : vector<38x128xbf16> to vector<24x128xbf16>
    %76 = vector.extract_strided_slice %67 {offsets = [14, 0], sizes = [24, 128], strides = [1, 1]} : vector<38x128xbf16> to vector<24x128xbf16>
    %77 = tpu.concatenate %68, %69, %70, %71, %72, %73, %74, %75, %76 in 1 : vector<24x128xbf16>, vector<24x128xbf16>, vector<24x128xbf16>, vector<24x128xbf16>, vector<24x128xbf16>, vector<24x128xbf16>, vector<24x128xbf16>, vector<24x128xbf16>, vector<24x128xbf16> -> vector<24x1152xbf16>
    %c0_28 = arith.constant 0 : index
    %c0_29 = arith.constant 0 : index
    %78 = vector.load %arg11[%c0_28, %c0_29] : memref<1152x128xbf16, #tpu.memory_space<vmem>>, vector<1152x128xbf16>
    %cst_30 = arith.constant dense<0.000000e+00> : vector<24x128xf32>
    %79 = tpu.matmul %77, %78, %cst_30 {dimension_numbers = #tpu.dot_dimension_numbers<[1], [0], [0], [1], [0, 0, 1, 1], [], []>} : vector<24x1152xbf16>, vector<1152x128xbf16>, vector<24x128xf32> -> vector<24x128xf32>
    %c0_31 = arith.constant 0 : index
    %c0_32 = arith.constant 0 : index
    %80 = vector.load %arg12[%c0_31, %c0_32] : memref<1x128xf32, #tpu.memory_space<vmem>>, vector<1x128xf32>
    %81 = vector.broadcast %80 : vector<1x128xf32> to vector<24x128xf32>
    %82 = arith.addf %79, %81 : vector<24x128xf32>
    %cst_33 = arith.constant 0.00999999977 : f32
    %83 = vector.broadcast %cst_33 : f32 to vector<24x128xf32>
    %84 = arith.mulf %83, %82 : vector<24x128xf32>
    %85 = arith.maximumf %82, %84 : vector<24x128xf32>
    %c0_34 = arith.constant 0 : index
    %c0_35 = arith.constant 0 : index
    %86 = vector.load %arg13[%c0_34, %c0_35] : memref<38x24xbf16, #tpu.memory_space<vmem>>, vector<38x24xbf16>
    %87 = arith.truncf %85 : vector<24x128xf32> to vector<24x128xbf16>
    %cst_36 = arith.constant dense<0.000000e+00> : vector<38x128xf32>
    %88 = tpu.matmul %86, %87, %cst_36 {dimension_numbers = #tpu.dot_dimension_numbers<[1], [0], [0], [1], [0, 0, 1, 1], [], []>} : vector<38x24xbf16>, vector<24x128xbf16>, vector<38x128xf32> -> vector<38x128xf32>
    %89 = arith.truncf %88 : vector<38x128xf32> to vector<38x128xbf16>
    %90 = vector.extract_strided_slice %89 {offsets = [0, 0], sizes = [24, 128], strides = [1, 1]} : vector<38x128xbf16> to vector<24x128xbf16>
    %91 = vector.extract_strided_slice %89 {offsets = [1, 0], sizes = [24, 128], strides = [1, 1]} : vector<38x128xbf16> to vector<24x128xbf16>
    %92 = vector.extract_strided_slice %89 {offsets = [2, 0], sizes = [24, 128], strides = [1, 1]} : vector<38x128xbf16> to vector<24x128xbf16>
    %93 = vector.extract_strided_slice %89 {offsets = [6, 0], sizes = [24, 128], strides = [1, 1]} : vector<38x128xbf16> to vector<24x128xbf16>
    %94 = vector.extract_strided_slice %89 {offsets = [7, 0], sizes = [24, 128], strides = [1, 1]} : vector<38x128xbf16> to vector<24x128xbf16>
    %95 = vector.extract_strided_slice %89 {offsets = [8, 0], sizes = [24, 128], strides = [1, 1]} : vector<38x128xbf16> to vector<24x128xbf16>
    %96 = vector.extract_strided_slice %89 {offsets = [12, 0], sizes = [24, 128], strides = [1, 1]} : vector<38x128xbf16> to vector<24x128xbf16>
    %97 = vector.extract_strided_slice %89 {offsets = [13, 0], sizes = [24, 128], strides = [1, 1]} : vector<38x128xbf16> to vector<24x128xbf16>
    %98 = vector.extract_strided_slice %89 {offsets = [14, 0], sizes = [24, 128], strides = [1, 1]} : vector<38x128xbf16> to vector<24x128xbf16>
    %99 = tpu.concatenate %90, %91, %92, %93, %94, %95, %96, %97, %98 in 1 : vector<24x128xbf16>, vector<24x128xbf16>, vector<24x128xbf16>, vector<24x128xbf16>, vector<24x128xbf16>, vector<24x128xbf16>, vector<24x128xbf16>, vector<24x128xbf16>, vector<24x128xbf16> -> vector<24x1152xbf16>
    %c0_37 = arith.constant 0 : index
    %c0_38 = arith.constant 0 : index
    %100 = vector.load %arg14[%c0_37, %c0_38] : memref<1152x128xbf16, #tpu.memory_space<vmem>>, vector<1152x128xbf16>
    %cst_39 = arith.constant dense<0.000000e+00> : vector<24x128xf32>
    %101 = tpu.matmul %99, %100, %cst_39 {dimension_numbers = #tpu.dot_dimension_numbers<[1], [0], [0], [1], [0, 0, 1, 1], [], []>} : vector<24x1152xbf16>, vector<1152x128xbf16>, vector<24x128xf32> -> vector<24x128xf32>
    %c0_40 = arith.constant 0 : index
    %c0_41 = arith.constant 0 : index
    %102 = vector.load %arg15[%c0_40, %c0_41] : memref<1x128xf32, #tpu.memory_space<vmem>>, vector<1x128xf32>
    %103 = vector.broadcast %102 : vector<1x128xf32> to vector<24x128xf32>
    %104 = arith.addf %101, %103 : vector<24x128xf32>
    %cst_42 = arith.constant 0.00999999977 : f32
    %105 = vector.broadcast %cst_42 : f32 to vector<24x128xf32>
    %106 = arith.mulf %105, %104 : vector<24x128xf32>
    %107 = arith.maximumf %104, %106 : vector<24x128xf32>
    %c0_43 = arith.constant 0 : index
    %c0_44 = arith.constant 0 : index
    %108 = vector.load %arg16[%c0_43, %c0_44] : memref<16x24xbf16, #tpu.memory_space<vmem>>, vector<16x24xbf16>
    %109 = arith.truncf %107 : vector<24x128xf32> to vector<24x128xbf16>
    %cst_45 = arith.constant dense<0.000000e+00> : vector<16x128xf32>
    %110 = tpu.matmul %108, %109, %cst_45 {dimension_numbers = #tpu.dot_dimension_numbers<[1], [0], [0], [1], [0, 0, 1, 1], [], []>} : vector<16x24xbf16>, vector<24x128xbf16>, vector<16x128xf32> -> vector<16x128xf32>
    %111 = arith.truncf %110 : vector<16x128xf32> to vector<16x128xbf16>
    %c0_46 = arith.constant 0 : index
    %c0_47 = arith.constant 0 : index
    %112 = vector.load %arg17[%c0_46, %c0_47] : memref<128x128xbf16, #tpu.memory_space<vmem>>, vector<128x128xbf16>
    %cst_48 = arith.constant dense<0.000000e+00> : vector<16x128xf32>
    %113 = tpu.matmul %111, %112, %cst_48 {dimension_numbers = #tpu.dot_dimension_numbers<[1], [0], [0], [1], [0, 0, 1, 1], [], []>} : vector<16x128xbf16>, vector<128x128xbf16>, vector<16x128xf32> -> vector<16x128xf32>
    %c0_49 = arith.constant 0 : index
    %c0_50 = arith.constant 0 : index
    %114 = vector.load %arg18[%c0_49, %c0_50] : memref<1x128xf32, #tpu.memory_space<vmem>>, vector<1x128xf32>
    %115 = vector.broadcast %114 : vector<1x128xf32> to vector<16x128xf32>
    %116 = arith.addf %113, %115 : vector<16x128xf32>
    %c0_51 = arith.constant 0 : index
    %c0_52 = arith.constant 0 : index
    %c0_53 = arith.constant 0 : index
    %117 = vector.load %arg19[%c0_51, %c0_52, %c0_53] : memref<1x16x128xf32, #tpu.memory_space<vmem>>, vector<1x16x128xf32>
    %118 = vector.shape_cast %117 : vector<1x16x128xf32> to vector<16x128xf32>
    %119 = vector.shape_cast %116 : vector<16x128xf32> to vector<1x16x128xf32>
    tpu.vector_store %arg19[%c0_51, %c0_52, %c0_53], %119 {strides = array<i32>} : memref<1x16x128xf32, #tpu.memory_space<vmem>>, vector<1x16x128xf32>,
    return
  }
  func.func @transform_0(%arg0: i32) -> (i32, i32, i32) {
    %c0_i32 = arith.constant 0 : i32
    %c0_i32_0 = arith.constant 0 : i32
    %c0_i32_1 = arith.constant 0 : i32
    return %arg0, %c0_i32, %c0_i32_0 : i32, i32, i32
  }
  func.func @transform_1(%arg0: i32) -> (i32, i32) {
    %c0_i32 = arith.constant 0 : i32
    %c0_i32_0 = arith.constant 0 : i32
    %c0_i32_1 = arith.constant 0 : i32
    return %c0_i32, %c0_i32_0 : i32, i32
  }
  func.func @transform_2(%arg0: i32) -> (i32, i32) {
    %c0_i32 = arith.constant 0 : i32
    %c0_i32_0 = arith.constant 0 : i32
    %c0_i32_1 = arith.constant 0 : i32
    return %c0_i32, %c0_i32_0 : i32, i32
  }
  func.func @transform_3(%arg0: i32) -> (i32, i32) {
    %c0_i32 = arith.constant 0 : i32
    %c0_i32_0 = arith.constant 0 : i32
    %c0_i32_1 = arith.constant 0 : i32
    return %c0_i32, %c0_i32_0 : i32, i32
  }
  func.func @transform_4(%arg0: i32) -> (i32, i32) {
    %c0_i32 = arith.constant 0 : i32
    %c0_i32_0 = arith.constant 0 : i32
    %c0_i32_1 = arith.constant 0 : i32
    return %c0_i32, %c0_i32_0 : i32, i32
  }
  func.func @transform_5(%arg0: i32) -> (i32, i32) {
    %c0_i32 = arith.constant 0 : i32
    %c0_i32_0 = arith.constant 0 : i32
    %c0_i32_1 = arith.constant 0 : i32
    return %c0_i32, %c0_i32_0 : i32, i32
  }
  func.func @transform_6(%arg0: i32) -> (i32, i32) {
    %c0_i32 = arith.constant 0 : i32
    %c0_i32_0 = arith.constant 0 : i32
    %c0_i32_1 = arith.constant 0 : i32
    return %c0_i32, %c0_i32_0 : i32, i32
  }
  func.func @transform_7(%arg0: i32) -> (i32, i32) {
    %c0_i32 = arith.constant 0 : i32
    %c0_i32_0 = arith.constant 0 : i32
    %c0_i32_1 = arith.constant 0 : i32
    return %c0_i32, %c0_i32_0 : i32, i32
  }
  func.func @transform_8(%arg0: i32) -> (i32, i32) {
    %c0_i32 = arith.constant 0 : i32
    %c0_i32_0 = arith.constant 0 : i32
    %c0_i32_1 = arith.constant 0 : i32
    return %c0_i32, %c0_i32_0 : i32, i32
  }
  func.func @transform_9(%arg0: i32) -> (i32, i32) {
    %c0_i32 = arith.constant 0 : i32
    %c0_i32_0 = arith.constant 0 : i32
    %c0_i32_1 = arith.constant 0 : i32
    return %c0_i32, %c0_i32_0 : i32, i32
  }
  func.func @transform_10(%arg0: i32) -> (i32, i32) {
    %c0_i32 = arith.constant 0 : i32
    %c0_i32_0 = arith.constant 0 : i32
    %c0_i32_1 = arith.constant 0 : i32
    return %c0_i32, %c0_i32_0 : i32, i32
  }
  func.func @transform_11(%arg0: i32) -> (i32, i32) {
    %c0_i32 = arith.constant 0 : i32
    %c0_i32_0 = arith.constant 0 : i32
    %c0_i32_1 = arith.constant 0 : i32
    return %c0_i32, %c0_i32_0 : i32, i32
  }
  func.func @transform_12(%arg0: i32) -> (i32, i32) {
    %c0_i32 = arith.constant 0 : i32
    %c0_i32_0 = arith.constant 0 : i32
    %c0_i32_1 = arith.constant 0 : i32
    return %c0_i32, %c0_i32_0 : i32, i32
  }
  func.func @transform_13(%arg0: i32) -> (i32, i32) {
    %c0_i32 = arith.constant 0 : i32
    %c0_i32_0 = arith.constant 0 : i32
    %c0_i32_1 = arith.constant 0 : i32
    return %c0_i32, %c0_i32_0 : i32, i32
  }
  func.func @transform_14(%arg0: i32) -> (i32, i32) {
    %c0_i32 = arith.constant 0 : i32
    %c0_i32_0 = arith.constant 0 : i32
    %c0_i32_1 = arith.constant 0 : i32
    return %c0_i32, %c0_i32_0 : i32, i32
  }
  func.func @transform_15(%arg0: i32) -> (i32, i32) {
    %c0_i32 = arith.constant 0 : i32
    %c0_i32_0 = arith.constant 0 : i32
    %c0_i32_1 = arith.constant 0 : i32
    return %c0_i32, %c0_i32_0 : i32, i32
  }
  func.func @transform_16(%arg0: i32) -> (i32, i32) {
    %c0_i32 = arith.constant 0 : i32
    %c0_i32_0 = arith.constant 0 : i32
    %c0_i32_1 = arith.constant 0 : i32
    return %c0_i32, %c0_i32_0 : i32, i32
  }
  func.func @transform_17(%arg0: i32) -> (i32, i32) {
    %c0_i32 = arith.constant 0 : i32
    %c0_i32_0 = arith.constant 0 : i32
    %c0_i32_1 = arith.constant 0 : i32
    return %c0_i32, %c0_i32_0 : i32, i32
  }
  func.func @transform_18(%arg0: i32) -> (i32, i32, i32) {
    %c0_i32 = arith.constant 0 : i32
    %c0_i32_0 = arith.constant 0 : i32
    %c0_i32_1 = arith.constant 0 : i32
    return %arg0, %c0_i32, %c0_i32_0 : i32, i32, i32
  }
}

</mosaic_0001>

<llo_original>
// kernel: gen_model_forward.1
$region0: #{gen_model_forward.1}
  #allocation0 [shape = 'u32[]', space=smem, size = 0x4, offset = 0x4, fixed_abs, tag = 'smem constant byte address 0x4 - core index']
  #allocation1 [shape = 'u32[144,128]{1,0:T(1,128)}', space=vmem, size = 0x12000, scoped, tag = 'internal scratch']
  %s0 = inlined_call_operand.vmem [shape: bf16[2,326,128], index: 0, kind: input, shape index: {}]
  %s1 = inlined_call_operand.vmem [shape: bf16[1152,128], index: 1, kind: input, shape index: {}]
  %s2 = inlined_call_operand.vmem [shape: f32[1,128], index: 2, kind: input, shape index: {}]
  %s3 = inlined_call_operand.vmem [shape: bf16[102,288], index: 3, kind: input, shape index: {}]
  %s4 = inlined_call_operand.vmem [shape: bf16[1152,128], index: 4, kind: input, shape index: {}]
  %s5 = inlined_call_operand.vmem [shape: f32[1,128], index: 5, kind: input, shape index: {}]
  %s6 = inlined_call_operand.vmem [shape: bf16[38,80], index: 6, kind: input, shape index: {}]
  %s7 = inlined_call_operand.vmem [shape: bf16[1152,128], index: 7, kind: input, shape index: {}]
  %s8 = inlined_call_operand.vmem [shape: f32[1,128], index: 8, kind: input, shape index: {}]
  %s9 = inlined_call_operand.vmem [shape: bf16[38,24], index: 9, kind: input, shape index: {}]
  %s10 = inlined_call_operand.vmem [shape: bf16[1152,128], index: 10, kind: input, shape index: {}]
  %s11 = inlined_call_operand.vmem [shape: f32[1,128], index: 11, kind: input, shape index: {}]
  %s12 = inlined_call_operand.vmem [shape: bf16[38,24], index: 12, kind: input, shape index: {}]
  %s13 = inlined_call_operand.hbm [shape: bf16[1152,128], index: 13, kind: input, shape index: {}]
  %s14 = inlined_call_operand.vmem [shape: f32[1,128], index: 14, kind: input, shape index: {}]
  %s15 = inlined_call_operand.vmem [shape: bf16[16,24], index: 15, kind: input, shape index: {}]
  %s16 = inlined_call_operand.vmem [shape: bf16[128,128], index: 16, kind: input, shape index: {}]
  %s17 = inlined_call_operand.vmem [shape: f32[1,128], index: 17, kind: input, shape index: {}]
  %s18 = inlined_call_operand.hbm [shape: f32[2,16,128], index: 18, kind: output, shape index: {}]
  %s19 = sld [smem:[#allocation0]]
  $region109: #{gen_model_forward.1} parent=0
    _
  %s21 = ssub.s32 1, %s19
  %s22 = scalar_select 0, %s21, %s19
  $region1: #{gen_model_forward.1} parent=0
    #allocation2 [shape = 'u8[294912]{0}', space=vmem, size = 0x48000, scoped, tag = 'input window, operand 13, single buffered']
    #allocation3 [shape = 's32[2]{0}', space=sflag, size = 0x8, scoped, tag = 'scoped memory for gen_model_forward.1']
    #allocation4 [shape = 's32[2]{0}', space=sflag, size = 0x8, scoped, tag = 'scoped memory for gen_model_forward.1']
    #allocation5 [shape = 'u8[16384]{0}', space=vmem, size = 0x4000, scoped, tag = 'output window, operand 0']
    %23 = vsyncpa [#allocation3], 0
    %24 = vsyncpa [#allocation4], 0
    %s25 = scalar_lea.sflag [#allocation4], 1
    %26 = vsyncpa %s25, 0
    loop: start=0, step=1, limit=4
    $region2: #{gen_model_forward.1} parent=1 // loop_pre_header
      _
    $region3: #{gen_model_forward.1} parent=1 // loop_header
      %s28 = sphi 0, %s32
      %p29 = scmp.ge.s32.totalorder %s28, 4
      %s38 = sphi 0, %s40
      %s41 = sphi 0, %s38
      %s42 = sphi 0, %s41
      %s58 = sphi 0, %s42
      %s62 = sphi 0, %s62
      %s64 = sphi 0, %s62
      %s65 = sphi 0, %s64
      %s79 = sphi 0, %s65
      %s83 = sphi 0, %s83
      %s85 = sphi 0, %s83
      %s86 = sphi 0, %s85
      %s100 = sphi 0, %s86
      %s104 = sphi 0, %s104
      %s106 = sphi 0, %s104
      %s107 = sphi 0, %s106
      %s121 = sphi 0, %s107
      %s125 = sphi 0, %s125
      %s127 = sphi 0, %s125
      %s128 = sphi 0, %s127
      %s142 = sphi 0, %s128
      %s146 = sphi 0, %s146
      %s148 = sphi 0, %s146
      %s149 = sphi 0, %s148
      %s163 = sphi 0, %s149
      %s167 = sphi 0, %s167
      %s169 = sphi 0, %s167
      %s170 = sphi 0, %s169
      %s184 = sphi 0, %s170
      %s188 = sphi 0, %s188
      %s190 = sphi 0, %s188
      %s191 = sphi 0, %s190
      %s205 = sphi 0, %s191
      %s209 = sphi 0, %s209
      %s211 = sphi 0, %s209
      %s212 = sphi 0, %s211
      %s226 = sphi 0, %s212
      %s230 = sphi 0, %s230
      %s232 = sphi 0, %s230
      %s233 = sphi 0, %s232
      %s247 = sphi 0, %s233
      %s251 = sphi 0, %s251
      %s253 = sphi 0, %s251
      %s254 = sphi 0, %s253
      %s268 = sphi 0, %s254
      %s272 = sphi 0, %s272
      %s274 = sphi 0, %s272
      %s275 = sphi 0, %s274
      %s289 = sphi 0, %s275
      %s293 = sphi 0, %s293
      %s295 = sphi 0, %s293
      %s296 = sphi 0, %s295
      %s310 = sphi 0, %s296
      %s314 = sphi 0, %s314
      %s316 = sphi 0, %s314
      %s317 = sphi 0, %s316
      %s331 = sphi 0, %s317
      %s335 = sphi 0, %s335
      %s337 = sphi 0, %s335
      %s338 = sphi 0, %s337
      %s352 = sphi 0, %s338
      %s356 = sphi 0, %s356
      %s358 = sphi 0, %s356
      %s359 = sphi 0, %s358
      %s373 = sphi 0, %s359
      %s377 = sphi 0, %s377
      %s379 = sphi 0, %s377
      %s380 = sphi 0, %s379
      %s394 = sphi 0, %s380
      %s398 = sphi 0, %s398
      %s400 = sphi 0, %s398
      %s401 = sphi 0, %s400
      %s415 = sphi 0, %s401
      %s421 = sphi 0, %s423
      %s424 = sphi 0, %s421
      %s425 = sphi 0, %s424
      %s441 = sphi 0, %s425
    $region4: #{gen_model_forward.1} parent=1 // loop_header_branch
      %31 = sbr.rel (%p29) target = $region8
    $region5: #{gen_model_forward.1} parent=1 // loop_body
      %s33 = ssub.s32 %s28, 1
      %s34 = ssub.s32 %s28, 2
      %s35 = sadd.s32 %s28, 1
      %s36 = ssub.s32 %s28, %s35
      %p37 = scmp.eq.s32.totalorder %s36, 0
      %s39 = sadd.s32 %s38, 1
      %s40 = scalar_select %p37, %s38, %s39
      %p43 = pneg %p37
      %p44 = scmp.eq.s32.totalorder %s28, 1
      %p45 = por %p43, %p44
      %p46 = scmp.ne.s32.totalorder %s38, %s41
      %p47 = scmp.eq.s32.totalorder %s28, 0
      %p48 = por %p46, %p47
      %p49 = scmp.ne.s32.totalorder %s38, %s41
      %p50 = scmp.eq.s32.totalorder %s33, 1
      %p51 = por %p49, %p50
      %p52 = scmp.ne.s32.totalorder %s41, %s42
      %p53 = scmp.eq.s32.totalorder %s33, 0
      %p54 = por %p52, %p53
      %p55 = scmp.ne.s32.totalorder %s41, %s42
      %p56 = scmp.eq.s32.totalorder %s34, 1
      %p57 = por %p55, %p56
      %p59 = scmp.ne.s32.totalorder %s42, %s58
      %p60 = scmp.eq.s32.totalorder %s34, 0
      %p61 = por %p59, %p60
      %s63 = sadd.s32 %s62, 1
      %p66 = scmp.eq.s32.totalorder %s28, 1
      %p67 = scmp.ne.s32.totalorder %s62, %s64
      %p68 = scmp.eq.s32.totalorder %s28, 0
      %p69 = por %p67, %p68
      %p70 = scmp.ne.s32.totalorder %s62, %s64
      %p71 = scmp.eq.s32.totalorder %s33, 1
      %p72 = por %p70, %p71
      %p73 = scmp.ne.s32.totalorder %s64, %s65
      %p74 = scmp.eq.s32.totalorder %s33, 0
      %p75 = por %p73, %p74
      %p76 = scmp.ne.s32.totalorder %s64, %s65
      %p77 = scmp.eq.s32.totalorder %s34, 1
      %p78 = por %p76, %p77
      %p80 = scmp.ne.s32.totalorder %s65, %s79
      %p81 = scmp.eq.s32.totalorder %s34, 0
      %p82 = por %p80, %p81
      %s84 = sadd.s32 %s83, 1
      %p87 = scmp.eq.s32.totalorder %s28, 1
      %p88 = scmp.ne.s32.totalorder %s83, %s85
      %p89 = scmp.eq.s32.totalorder %s28, 0
      %p90 = por %p88, %p89
      %p91 = scmp.ne.s32.totalorder %s83, %s85
      %p92 = scmp.eq.s32.totalorder %s33, 1
      %p93 = por %p91, %p92
      %p94 = scmp.ne.s32.totalorder %s85, %s86
      %p95 = scmp.eq.s32.totalorder %s33, 0
      %p96 = por %p94, %p95
      %p97 = scmp.ne.s32.totalorder %s85, %s86
      %p98 = scmp.eq.s32.totalorder %s34, 1
      %p99 = por %p97, %p98
      %p101 = scmp.ne.s32.totalorder %s86, %s100
      %p102 = scmp.eq.s32.totalorder %s34, 0
      %p103 = por %p101, %p102
      %s105 = sadd.s32 %s104, 1
      %p108 = scmp.eq.s32.totalorder %s28, 1
      %p109 = scmp.ne.s32.totalorder %s104, %s106
      %p110 = scmp.eq.s32.totalorder %s28, 0
      %p111 = por %p109, %p110
      %p112 = scmp.ne.s32.totalorder %s104, %s106
      %p113 = scmp.eq.s32.totalorder %s33, 1
      %p114 = por %p112, %p113
      %p115 = scmp.ne.s32.totalorder %s106, %s107
      %p116 = scmp.eq.s32.totalorder %s33, 0
      %p117 = por %p115, %p116
      %p118 = scmp.ne.s32.totalorder %s106, %s107
      %p119 = scmp.eq.s32.totalorder %s34, 1
      %p120 = por %p118, %p119
      %p122 = scmp.ne.s32.totalorder %s107, %s121
      %p123 = scmp.eq.s32.totalorder %s34, 0
      %p124 = por %p122, %p123
      %s126 = sadd.s32 %s125, 1
      %p129 = scmp.eq.s32.totalorder %s28, 1
      %p130 = scmp.ne.s32.totalorder %s125, %s127
      %p131 = scmp.eq.s32.totalorder %s28, 0
      %p132 = por %p130, %p131
      %p133 = scmp.ne.s32.totalorder %s125, %s127
      %p134 = scmp.eq.s32.totalorder %s33, 1
      %p135 = por %p133, %p134
      %p136 = scmp.ne.s32.totalorder %s127, %s128
      %p137 = scmp.eq.s32.totalorder %s33, 0
      %p138 = por %p136, %p137
      %p139 = scmp.ne.s32.totalorder %s127, %s128
      %p140 = scmp.eq.s32.totalorder %s34, 1
      %p141 = por %p139, %p140
      %p143 = scmp.ne.s32.totalorder %s128, %s142
      %p144 = scmp.eq.s32.totalorder %s34, 0
      %p145 = por %p143, %p144
      %s147 = sadd.s32 %s146, 1
      %p150 = scmp.eq.s32.totalorder %s28, 1
      %p151 = scmp.ne.s32.totalorder %s146, %s148
      %p152 = scmp.eq.s32.totalorder %s28, 0
      %p153 = por %p151, %p152
      %p154 = scmp.ne.s32.totalorder %s146, %s148
      %p155 = scmp.eq.s32.totalorder %s33, 1
      %p156 = por %p154, %p155
      %p157 = scmp.ne.s32.totalorder %s148, %s149
      %p158 = scmp.eq.s32.totalorder %s33, 0
      %p159 = por %p157, %p158
      %p160 = scmp.ne.s32.totalorder %s148, %s149
      %p161 = scmp.eq.s32.totalorder %s34, 1
      %p162 = por %p160, %p161
      %p164 = scmp.ne.s32.totalorder %s149, %s163
      %p165 = scmp.eq.s32.totalorder %s34, 0
      %p166 = por %p164, %p165
      %s168 = sadd.s32 %s167, 1
      %p171 = scmp.eq.s32.totalorder %s28, 1
      %p172 = scmp.ne.s32.totalorder %s167, %s169
      %p173 = scmp.eq.s32.totalorder %s28, 0
      %p174 = por %p172, %p173
      %p175 = scmp.ne.s32.totalorder %s167, %s169
      %p176 = scmp.eq.s32.totalorder %s33, 1
      %p177 = por %p175, %p176
      %p178 = scmp.ne.s32.totalorder %s169, %s170
      %p179 = scmp.eq.s32.totalorder %s33, 0
      %p180 = por %p178, %p179
      %p181 = scmp.ne.s32.totalorder %s169, %s170
      %p182 = scmp.eq.s32.totalorder %s34, 1
      %p183 = por %p181, %p182
      %p185 = scmp.ne.s32.totalorder %s170, %s184
      %p186 = scmp.eq.s32.totalorder %s34, 0
      %p187 = por %p185, %p186
      %s189 = sadd.s32 %s188, 1
      %p192 = scmp.eq.s32.totalorder %s28, 1
      %p193 = scmp.ne.s32.totalorder %s188, %s190
      %p194 = scmp.eq.s32.totalorder %s28, 0
      %p195 = por %p193, %p194
      %p196 = scmp.ne.s32.totalorder %s188, %s190
      %p197 = scmp.eq.s32.totalorder %s33, 1
      %p198 = por %p196, %p197
      %p199 = scmp.ne.s32.totalorder %s190, %s191
      %p200 = scmp.eq.s32.totalorder %s33, 0
      %p201 = por %p199, %p200
      %p202 = scmp.ne.s32.totalorder %s190, %s191
      %p203 = scmp.eq.s32.totalorder %s34, 1
      %p204 = por %p202, %p203
      %p206 = scmp.ne.s32.totalorder %s191, %s205
      %p207 = scmp.eq.s32.totalorder %s34, 0
      %p208 = por %p206, %p207
      %s210 = sadd.s32 %s209, 1
      %p213 = scmp.eq.s32.totalorder %s28, 1
      %p214 = scmp.ne.s32.totalorder %s209, %s211
      %p215 = scmp.eq.s32.totalorder %s28, 0
      %p216 = por %p214, %p215
      %p217 = scmp.ne.s32.totalorder %s209, %s211
      %p218 = scmp.eq.s32.totalorder %s33, 1
      %p219 = por %p217, %p218
      %p220 = scmp.ne.s32.totalorder %s211, %s212
      %p221 = scmp.eq.s32.totalorder %s33, 0
      %p222 = por %p220, %p221
      %p223 = scmp.ne.s32.totalorder %s211, %s212
      %p224 = scmp.eq.s32.totalorder %s34, 1
      %p225 = por %p223, %p224
      %p227 = scmp.ne.s32.totalorder %s212, %s226
      %p228 = scmp.eq.s32.totalorder %s34, 0
      %p229 = por %p227, %p228
      %s231 = sadd.s32 %s230, 1
      %p234 = scmp.eq.s32.totalorder %s28, 1
      %p235 = scmp.ne.s32.totalorder %s230, %s232
      %p236 = scmp.eq.s32.totalorder %s28, 0
      %p237 = por %p235, %p236
      %p238 = scmp.ne.s32.totalorder %s230, %s232
      %p239 = scmp.eq.s32.totalorder %s33, 1
      %p240 = por %p238, %p239
      %p241 = scmp.ne.s32.totalorder %s232, %s233
      %p242 = scmp.eq.s32.totalorder %s33, 0
      %p243 = por %p241, %p242
      %p244 = scmp.ne.s32.totalorder %s232, %s233
      %p245 = scmp.eq.s32.totalorder %s34, 1
      %p246 = por %p244, %p245
      %p248 = scmp.ne.s32.totalorder %s233, %s247
      %p249 = scmp.eq.s32.totalorder %s34, 0
      %p250 = por %p248, %p249
      %s252 = sadd.s32 %s251, 1
      %p255 = scmp.eq.s32.totalorder %s28, 1
      %p256 = scmp.ne.s32.totalorder %s251, %s253
      %p257 = scmp.eq.s32.totalorder %s28, 0
      %p258 = por %p256, %p257
      %p259 = scmp.ne.s32.totalorder %s251, %s253
      %p260 = scmp.eq.s32.totalorder %s33, 1
      %p261 = por %p259, %p260
      %p262 = scmp.ne.s32.totalorder %s253, %s254
      %p263 = scmp.eq.s32.totalorder %s33, 0
      %p264 = por %p262, %p263
      %p265 = scmp.ne.s32.totalorder %s253, %s254
      %p266 = scmp.eq.s32.totalorder %s34, 1
      %p267 = por %p265, %p266
      %p269 = scmp.ne.s32.totalorder %s254, %s268
      %p270 = scmp.eq.s32.totalorder %s34, 0
      %p271 = por %p269, %p270
      %s273 = sadd.s32 %s272, 1
      %p276 = scmp.eq.s32.totalorder %s28, 1
      %p277 = scmp.ne.s32.totalorder %s272, %s274
      %p278 = scmp.eq.s32.totalorder %s28, 0
      %p279 = por %p277, %p278
      %p280 = scmp.ne.s32.totalorder %s272, %s274
      %p281 = scmp.eq.s32.totalorder %s33, 1
      %p282 = por %p280, %p281
      %p283 = scmp.ne.s32.totalorder %s274, %s275
      %p284 = scmp.eq.s32.totalorder %s33, 0
      %p285 = por %p283, %p284
      %p286 = scmp.ne.s32.totalorder %s274, %s275
      %p287 = scmp.eq.s32.totalorder %s34, 1
      %p288 = por %p286, %p287
      %p290 = scmp.ne.s32.totalorder %s275, %s289
      %p291 = scmp.eq.s32.totalorder %s34, 0
      %p292 = por %p290, %p291
      %s294 = sadd.s32 %s293, 1
      %p297 = scmp.eq.s32.totalorder %s28, 1
      %p298 = scmp.ne.s32.totalorder %s293, %s295
      %p299 = scmp.eq.s32.totalorder %s28, 0
      %p300 = por %p298, %p299
      %p301 = scmp.ne.s32.totalorder %s293, %s295
      %p302 = scmp.eq.s32.totalorder %s33, 1
      %p303 = por %p301, %p302
      %p304 = scmp.ne.s32.totalorder %s295, %s296
      %p305 = scmp.eq.s32.totalorder %s33, 0
      %p306 = por %p304, %p305
      %p307 = scmp.ne.s32.totalorder %s295, %s296
      %p308 = scmp.eq.s32.totalorder %s34, 1
      %p309 = por %p307, %p308
      %p311 = scmp.ne.s32.totalorder %s296, %s310
      %p312 = scmp.eq.s32.totalorder %s34, 0
      %p313 = por %p311, %p312
      %s315 = sadd.s32 %s314, 1
      %p318 = scmp.eq.s32.totalorder %s28, 1
      %p319 = scmp.ne.s32.totalorder %s314, %s316
      %p320 = scmp.eq.s32.totalorder %s28, 0
      %p321 = por %p319, %p320
      %p322 = scmp.ne.s32.totalorder %s314, %s316
      %p323 = scmp.eq.s32.totalorder %s33, 1
      %p324 = por %p322, %p323
      %p325 = scmp.ne.s32.totalorder %s316, %s317
      %p326 = scmp.eq.s32.totalorder %s33, 0
      %p327 = por %p325, %p326
      %p328 = scmp.ne.s32.totalorder %s316, %s317
      %p329 = scmp.eq.s32.totalorder %s34, 1
      %p330 = por %p328, %p329
      %p332 = scmp.ne.s32.totalorder %s317, %s331
      %p333 = scmp.eq.s32.totalorder %s34, 0
      %p334 = por %p332, %p333
      %s336 = sadd.s32 %s335, 1
      %p339 = scmp.eq.s32.totalorder %s28, 1
      %p340 = scmp.ne.s32.totalorder %s335, %s337
      %p341 = scmp.eq.s32.totalorder %s28, 0
      %p342 = por %p340, %p341
      %p343 = scmp.ne.s32.totalorder %s335, %s337
      %p344 = scmp.eq.s32.totalorder %s33, 1
      %p345 = por %p343, %p344
      %p346 = scmp.ne.s32.totalorder %s337, %s338
      %p347 = scmp.eq.s32.totalorder %s33, 0
      %p348 = por %p346, %p347
      %p349 = scmp.ne.s32.totalorder %s337, %s338
      %p350 = scmp.eq.s32.totalorder %s34, 1
      %p351 = por %p349, %p350
      %p353 = scmp.ne.s32.totalorder %s338, %s352
      %p354 = scmp.eq.s32.totalorder %s34, 0
      %p355 = por %p353, %p354
      %s357 = sadd.s32 %s356, 1
      %p360 = scmp.eq.s32.totalorder %s28, 1
      %p361 = scmp.ne.s32.totalorder %s356, %s358
      %p362 = scmp.eq.s32.totalorder %s28, 0
      %p363 = por %p361, %p362
      %p364 = scmp.ne.s32.totalorder %s356, %s358
      %p365 = scmp.eq.s32.totalorder %s33, 1
      %p366 = por %p364, %p365
      %p367 = scmp.ne.s32.totalorder %s358, %s359
      %p368 = scmp.eq.s32.totalorder %s33, 0
      %p369 = por %p367, %p368
      %p370 = scmp.ne.s32.totalorder %s358, %s359
      %p371 = scmp.eq.s32.totalorder %s34, 1
      %p372 = por %p370, %p371
      %p374 = scmp.ne.s32.totalorder %s359, %s373
      %p375 = scmp.eq.s32.totalorder %s34, 0
      %p376 = por %p374, %p375
      %s378 = sadd.s32 %s377, 1
      %p381 = scmp.eq.s32.totalorder %s28, 1
      %p382 = scmp.ne.s32.totalorder %s377, %s379
      %p383 = scmp.eq.s32.totalorder %s28, 0
      %p384 = por %p382, %p383
      %p385 = scmp.ne.s32.totalorder %s377, %s379
      %p386 = scmp.eq.s32.totalorder %s33, 1
      %p387 = por %p385, %p386
      %p388 = scmp.ne.s32.totalorder %s379, %s380
      %p389 = scmp.eq.s32.totalorder %s33, 0
      %p390 = por %p388, %p389
      %p391 = scmp.ne.s32.totalorder %s379, %s380
      %p392 = scmp.eq.s32.totalorder %s34, 1
      %p393 = por %p391, %p392
      %p395 = scmp.ne.s32.totalorder %s380, %s394
      %p396 = scmp.eq.s32.totalorder %s34, 0
      %p397 = por %p395, %p396
      %s399 = sadd.s32 %s398, 1
      %p402 = scmp.eq.s32.totalorder %s28, 1
      %p403 = scmp.ne.s32.totalorder %s398, %s400
      %p404 = scmp.eq.s32.totalorder %s28, 0
      %p405 = por %p403, %p404
      %p406 = scmp.ne.s32.totalorder %s398, %s400
      %p407 = scmp.eq.s32.totalorder %s33, 1
      %p408 = por %p406, %p407
      %p409 = scmp.ne.s32.totalorder %s400, %s401
      %p410 = scmp.eq.s32.totalorder %s33, 0
      %p411 = por %p409, %p410
      %p412 = scmp.ne.s32.totalorder %s400, %s401
      %p413 = scmp.eq.s32.totalorder %s34, 1
      %p414 = por %p412, %p413
      %p416 = scmp.ne.s32.totalorder %s401, %s415
      %p417 = scmp.eq.s32.totalorder %s34, 0
      %p418 = por %p416, %p417
      %s419 = ssub.s32 %s28, %s35
      %p420 = scmp.eq.s32.totalorder %s419, 0
      %s422 = sadd.s32 %s421, 1
      %s423 = scalar_select %p420, %s421, %s422
      %p426 = pneg %p420
      %p427 = scmp.eq.s32.totalorder %s28, 1
      %p428 = por %p426, %p427
      %p429 = scmp.ne.s32.totalorder %s421, %s424
      %p430 = scmp.eq.s32.totalorder %s28, 0
      %p431 = por %p429, %p430
      %p432 = scmp.ne.s32.totalorder %s421, %s424
      %p433 = scmp.eq.s32.totalorder %s33, 1
      %p434 = por %p432, %p433
      %p435 = scmp.ne.s32.totalorder %s424, %s425
      %p436 = scmp.eq.s32.totalorder %s33, 0
      %p437 = por %p435, %p436
      %p438 = scmp.ne.s32.totalorder %s424, %s425
      %p439 = scmp.eq.s32.totalorder %s34, 1
      %p440 = por %p438, %p439
      %p442 = scmp.ne.s32.totalorder %s425, %s441
      %p443 = scmp.eq.s32.totalorder %s34, 0
      %p444 = por %p442, %p443
      %p445 = scmp.le.s32.totalorder 1, %s28
      %p446 = scmp.lt.s32.totalorder %s28, 3
      %p447 = pnand %p445, %p446
      %p448 = pneg %p447
      // Predicated region
      $region9: #{gen_model_forward.1} parent=5 // pred_check
        _
      $region10: #{gen_model_forward.1} parent=5 // pred_check_branch
        %450 = sbr.rel (%p447) target = $region12
      $region11: #{gen_model_forward.1} parent=5 // pred_region
        %s451 = ssub.s32 %s28, 1
        // Predicated region
        $region13: #{gen_model_forward.1} parent=11 // pred_check
          %p452 = pneg %p75
        $region14: #{gen_model_forward.1} parent=11 // pred_check_branch
          %454 = sbr.rel (%p452) target = $region16
        $region15: #{gen_model_forward.1} parent=11 // pred_region
          _
        $region16: #{gen_model_forward.1} parent=11 // pred_fallthru
          _
        // Predicated region
        $region17: #{gen_model_forward.1} parent=11 // pred_check
          %p455 = pneg %p96
        $region18: #{gen_model_forward.1} parent=11 // pred_check_branch
          %457 = sbr.rel (%p455) target = $region20
        $region19: #{gen_model_forward.1} parent=11 // pred_region
          _
        $region20: #{gen_model_forward.1} parent=11 // pred_fallthru
          _
        // Predicated region
        $region21: #{gen_model_forward.1} parent=11 // pred_check
          %p458 = pneg %p117
        $region22: #{gen_model_forward.1} parent=11 // pred_check_branch
          %460 = sbr.rel (%p458) target = $region24
        $region23: #{gen_model_forward.1} parent=11 // pred_region
          _
        $region24: #{gen_model_forward.1} parent=11 // pred_fallthru
          _
        // Predicated region
        $region25: #{gen_model_forward.1} parent=11 // pred_check
          %p461 = pneg %p138
        $region26: #{gen_model_forward.1} parent=11 // pred_check_branch
          %463 = sbr.rel (%p461) target = $region28
        $region27: #{gen_model_forward.1} parent=11 // pred_region
          _
        $region28: #{gen_model_forward.1} parent=11 // pred_fallthru
          _
        // Predicated region
        $region29: #{gen_model_forward.1} parent=11 // pred_check
          %p464 = pneg %p159
        $region30: #{gen_model_forward.1} parent=11 // pred_check_branch
          %466 = sbr.rel (%p464) target = $region32
        $region31: #{gen_model_forward.1} parent=11 // pred_region
          _
        $region32: #{gen_model_forward.1} parent=11 // pred_fallthru
          _
        // Predicated region
        $region33: #{gen_model_forward.1} parent=11 // pred_check
          %p467 = pneg %p180
        $region34: #{gen_model_forward.1} parent=11 // pred_check_branch
          %469 = sbr.rel (%p467) target = $region36
        $region35: #{gen_model_forward.1} parent=11 // pred_region
          _
        $region36: #{gen_model_forward.1} parent=11 // pred_fallthru
          _
        // Predicated region
        $region37: #{gen_model_forward.1} parent=11 // pred_check
          %p470 = pneg %p201
        $region38: #{gen_model_forward.1} parent=11 // pred_check_branch
          %472 = sbr.rel (%p470) target = $region40
        $region39: #{gen_model_forward.1} parent=11 // pred_region
          _
        $region40: #{gen_model_forward.1} parent=11 // pred_fallthru
          _
        // Predicated region
        $region41: #{gen_model_forward.1} parent=11 // pred_check
          %p473 = pneg %p222
        $region42: #{gen_model_forward.1} parent=11 // pred_check_branch
          %475 = sbr.rel (%p473) target = $region44
        $region43: #{gen_model_forward.1} parent=11 // pred_region
          _
        $region44: #{gen_model_forward.1} parent=11 // pred_fallthru
          _
        // Predicated region
        $region45: #{gen_model_forward.1} parent=11 // pred_check
          %p476 = pneg %p243
        $region46: #{gen_model_forward.1} parent=11 // pred_check_branch
          %478 = sbr.rel (%p476) target = $region48
        $region47: #{gen_model_forward.1} parent=11 // pred_region
          _
        $region48: #{gen_model_forward.1} parent=11 // pred_fallthru
          _
        // Predicated region
        $region49: #{gen_model_forward.1} parent=11 // pred_check
          %p479 = pneg %p264
        $region50: #{gen_model_forward.1} parent=11 // pred_check_branch
          %481 = sbr.rel (%p479) target = $region52
        $region51: #{gen_model_forward.1} parent=11 // pred_region
          _
        $region52: #{gen_model_forward.1} parent=11 // pred_fallthru
          _
        // Predicated region
        $region53: #{gen_model_forward.1} parent=11 // pred_check
          %p482 = pneg %p285
        $region54: #{gen_model_forward.1} parent=11 // pred_check_branch
          %484 = sbr.rel (%p482) target = $region56
        $region55: #{gen_model_forward.1} parent=11 // pred_region
          _
        $region56: #{gen_model_forward.1} parent=11 // pred_fallthru
          _
        // Predicated region
        $region57: #{gen_model_forward.1} parent=11 // pred_check
          %p485 = pneg %p306
        $region58: #{gen_model_forward.1} parent=11 // pred_check_branch
          %487 = sbr.rel (%p485) target = $region60
        $region59: #{gen_model_forward.1} parent=11 // pred_region
          _
        $region60: #{gen_model_forward.1} parent=11 // pred_fallthru
          _
        // Predicated region
        $region61: #{gen_model_forward.1} parent=11 // pred_check
          %p488 = pneg %p327
        $region62: #{gen_model_forward.1} parent=11 // pred_check_branch
          %490 = sbr.rel (%p488) target = $region64
        $region63: #{gen_model_forward.1} parent=11 // pred_region
          %s492 = ssub.s32 9216, 9216
          %493 = vsyncadd [#allocation3], %s492
          %s494 = sshll.u32 [#allocation2], 4
          %s495 = int_to_ptr.vmem [resolvable:$true] %s494
          %500 = dma.hbm_to_vmem [thread:$0]  %s13, 9216, %s495, [#allocation3], 64, 64, 4
        $region64: #{gen_model_forward.1} parent=11 // pred_fallthru
          _
        // Predicated region
        $region65: #{gen_model_forward.1} parent=11 // pred_check
          %p501 = pneg %p348
        $region66: #{gen_model_forward.1} parent=11 // pred_check_branch
          %503 = sbr.rel (%p501) target = $region68
        $region67: #{gen_model_forward.1} parent=11 // pred_region
          _
        $region68: #{gen_model_forward.1} parent=11 // pred_fallthru
          _
        // Predicated region
        $region69: #{gen_model_forward.1} parent=11 // pred_check
          %p504 = pneg %p369
        $region70: #{gen_model_forward.1} parent=11 // pred_check_branch
          %506 = sbr.rel (%p504) target = $region72
        $region71: #{gen_model_forward.1} parent=11 // pred_region
          _
        $region72: #{gen_model_forward.1} parent=11 // pred_fallthru
          _
        // Predicated region
        $region73: #{gen_model_forward.1} parent=11 // pred_check
          %p507 = pneg %p390
        $region74: #{gen_model_forward.1} parent=11 // pred_check_branch
          %509 = sbr.rel (%p507) target = $region76
        $region75: #{gen_model_forward.1} parent=11 // pred_region
          _
        $region76: #{gen_model_forward.1} parent=11 // pred_fallthru
          _
        // Predicated region
        $region77: #{gen_model_forward.1} parent=11 // pred_check
          %p510 = pneg %p411
        $region78: #{gen_model_forward.1} parent=11 // pred_check_branch
          %512 = sbr.rel (%p510) target = $region80
        $region79: #{gen_model_forward.1} parent=11 // pred_region
          _
        $region80: #{gen_model_forward.1} parent=11 // pred_fallthru
          _
      $region12: #{gen_model_forward.1} parent=5 // pred_fallthru
        _
      %p513 = scmp.lt.s32.totalorder %s28, 2
      // Predicated region
      $region81: #{gen_model_forward.1} parent=5 // pred_check
        %p514 = pneg %p513
      $region82: #{gen_model_forward.1} parent=5 // pred_check_branch
        %516 = sbr.rel (%p514) target = $region84
      $region83: #{gen_model_forward.1} parent=5 // pred_region
        // Predicated region
        $region85: #{gen_model_forward.1} parent=83 // pred_check
          %p517 = pneg %p48
        $region86: #{gen_model_forward.1} parent=83 // pred_check_branch
          %519 = sbr.rel (%p517) target = $region88
        $region87: #{gen_model_forward.1} parent=83 // pred_region
          %p520 = scmp.lt.s32.totalorder %s28, 1
          %s521 = scalar_select %p520, %s28, 1
          %s522 = smul.addr %s521, 41
          %s523 = smul.addr %s522, 4
          %s524 = scalar_lea.vmem %s0, %s523
        $region88: #{gen_model_forward.1} parent=83 // pred_fallthru
          _
      $region84: #{gen_model_forward.1} parent=5 // pred_fallthru
        _
      %p525 = scmp.le.s32.totalorder 1, %s28
      %p526 = scmp.lt.s32.totalorder %s28, 3
      %p527 = pnand %p525, %p526
      %p528 = pneg %p527
      // Predicated region
      $region89: #{gen_model_forward.1} parent=5 // pred_check
        _
      $region90: #{gen_model_forward.1} parent=5 // pred_check_branch
        %530 = sbr.rel (%p527) target = $region92
      $region91: #{gen_model_forward.1} parent=5 // pred_region
        %s531 = ssub.s32 %s28, 1
        // Predicated region
        $region93: #{gen_model_forward.1} parent=91 // pred_check
          %p532 = pneg %p327
        $region94: #{gen_model_forward.1} parent=91 // pred_check_branch
          %534 = sbr.rel (%p532) target = $region96
        $region95: #{gen_model_forward.1} parent=91 // pred_region
          %535 = dma.done [#allocation3], 9216
        $region96: #{gen_model_forward.1} parent=91 // pred_fallthru
          _
        %p536 = scmp.lt.s32.totalorder %s33, 1
        %s537 = scalar_select %p536, %s33, 1
        %s538 = smul.addr %s537, 41
        %s539 = smul.addr %s538, 4
        %s540 = scalar_lea.vmem %s0, %s539
        %p541 = pneg %p54
        %p542 = pneg %p51
        %p543 = pneg %p75
        %p544 = pneg %p72
        %p545 = pneg %p96
        %p546 = pneg %p93
        %p547 = pneg %p117
        %p548 = pneg %p114
        %p549 = pneg %p138
        %p550 = pneg %p135
        %p551 = pneg %p159
        %p552 = pneg %p156
        %p553 = pneg %p180
        %p554 = pneg %p177
        %p555 = pneg %p201
        %p556 = pneg %p198
        %p557 = pneg %p222
        %p558 = pneg %p219
        %p559 = pneg %p243
        %p560 = pneg %p240
        %p561 = pneg %p264
        %p562 = pneg %p261
        %p563 = pneg %p285
        %p564 = pneg %p282
        %p565 = pneg %p306
        %p566 = pneg %p303
        %p567 = pneg %p327
        %p568 = pneg %p324
        %p569 = pneg %p348
        %p570 = pneg %p345
        %p571 = pneg %p369
        %p572 = pneg %p366
        %p573 = pneg %p390
        %p574 = pneg %p387
        %p575 = pneg %p411
        %p576 = pneg %p408
        %p577 = pneg %p437
        %p578 = pneg %p434
        %s579 = sand.u32 %s424, 1
        %s580 = scalar_lea.sflag [#allocation4], %s579
        %s581 = sand.u32 %s424, 1
        %s582 = smul.addr %s581, 16
        %s583 = scalar_lea.vmem [#allocation5], %s582
        %p584 = scmp.lt.s32.totalorder %s33, 1
        %s585 = scalar_select %p584, %s33, 1
        %s586 = smul.addr %s585, 41
        %s587 = smul.addr %s586, 4
        %s588 = scalar_lea.vmem %s0, %s587
        %v590 = vld [vmem:[%s588] sm:$0xf]
        %v591 = vld [vmem:[%s588 + $0x4] sm:$0xf]
        %v592 = vld [vmem:[%s588 + $0x8] sm:$0xf]
        %v593 = vld [vmem:[%s588 + $0xc] sm:$0xf]
        %v594 = vld [vmem:[%s588 + $0x10] sm:$0xf]
        %v595 = vld [vmem:[%s588 + $0x14] sm:$0xf]
        %v596 = vld [vmem:[%s588 + $0x18] sm:$0xf]
        %v597 = vld [vmem:[%s588 + $0x1c] sm:$0xf]
        %v598 = vld [vmem:[%s588 + $0x20] sm:$0xf]
        %v599 = vld [vmem:[%s588 + $0x24] sm:$0xf]
        %v600 = vld [vmem:[%s588 + $0x28] sm:$0xf]
        %v601 = vld [vmem:[%s588 + $0x2c] sm:$0xf]
        %v602 = vld [vmem:[%s588 + $0x30] sm:$0xf]
        %v603 = vld [vmem:[%s588 + $0x34] sm:$0xf]
        %v604 = vld [vmem:[%s588 + $0x38] sm:$0xf]
        %v605 = vld [vmem:[%s588 + $0x3c] sm:$0xf]
        %v606 = vld [vmem:[%s588 + $0x40] sm:$0xf]
        %v607 = vld [vmem:[%s588 + $0x44] sm:$0xf]
        %v608 = vld [vmem:[%s588 + $0x48] sm:$0xf]
        %v609 = vld [vmem:[%s588 + $0x4c] sm:$0xf]
        %v610 = vld [vmem:[%s588 + $0x50] sm:$0xf]
        %v611 = vld [vmem:[%s588 + $0x54] sm:$0xf]
        %v612 = vld [vmem:[%s588 + $0x58] sm:$0xf]
        %v613 = vld [vmem:[%s588 + $0x5c] sm:$0xf]
        %v614 = vld [vmem:[%s588 + $0x60] sm:$0xf]
        %v615 = vld [vmem:[%s588 + $0x64] sm:$0xf]
        %v616 = vld [vmem:[%s588 + $0x68] sm:$0xf]
        %v617 = vld [vmem:[%s588 + $0x6c] sm:$0xf]
        %v618 = vld [vmem:[%s588 + $0x70] sm:$0xf]
        %v619 = vld [vmem:[%s588 + $0x74] sm:$0xf]
        %v620 = vld [vmem:[%s588 + $0x78] sm:$0xf]
        %v621 = vld [vmem:[%s588 + $0x7c] sm:$0xf]
        %v622 = vld [vmem:[%s588 + $0x80] sm:$0xf]
        %v623 = vld [vmem:[%s588 + $0x84] sm:$0xf]
        %v624 = vld [vmem:[%s588 + $0x88] sm:$0xf]
        %v625 = vld [vmem:[%s588 + $0x8c] sm:$0xf]
        %v626 = vld [vmem:[%s588 + $0x90] sm:$0xf]
        %v627 = vld [vmem:[%s588 + $0x94] sm:$0xf]
        %v628 = vld [vmem:[%s588 + $0x98] sm:$0xf]
        %v629 = vld [vmem:[%s588 + $0x9c] sm:$0xf]
        %v630 = vld [vmem:[%s588 + $0xa0] sm:$0x7]
        %v667 = vunpack.c.l.b16 %v590
        %v668 = vunpack.c.l.b16 %v591
        %v669 = vunpack.c.l.b16 %v592
        %v670 = vunpack.c.l.b16 %v593
        %v671 = vunpack.c.l.b16 %v594
        %v672 = vunpack.c.l.b16 %v595
        %v673 = vunpack.c.l.b16 %v596
        %v674 = vunpack.c.l.b16 %v597
        %v675 = vunpack.c.l.b16 %v598
        %v676 = vunpack.c.l.b16 %v599
        %v677 = vunpack.c.l.b16 %v600
        %v678 = vunpack.c.l.b16 %v601
        %v679 = vunpack.c.l.b16 %v602
        %v680 = vunpack.c.l.b16 %v603
        %v681 = vunpack.c.l.b16 %v604
        %v682 = vunpack.c.l.b16 %v605
        %v683 = vunpack.c.l.b16 %v606
        %v684 = vunpack.c.l.b16 %v607
        %v685 = vunpack.c.l.b16 %v608
        %v686 = vunpack.c.l.b16 %v609
        %v687 = vunpack.c.l.b16 %v610
        %v688 = vunpack.c.l.b16 %v611
        %v689 = vunpack.c.l.b16 %v612
        %v690 = vunpack.c.l.b16 %v613
        %v691 = vunpack.c.l.b16 %v614
        %v692 = vunpack.c.l.b16 %v615
        %v693 = vunpack.c.l.b16 %v616
        %v694 = vunpack.c.l.b16 %v617
        %v695 = vunpack.c.l.b16 %v618
        %v696 = vunpack.c.l.b16 %v619
        %v697 = vunpack.c.l.b16 %v620
        %v698 = vunpack.c.l.b16 %v621
        %v699 = vunpack.c.l.b16 %v622
        %v700 = vunpack.c.l.b16 %v623
        %v701 = vunpack.c.l.b16 %v624
        %v702 = vunpack.c.l.b16 %v625
        %v703 = vpack.c.b16 %v668, %v667
        %v704 = vpack.c.b16 %v670, %v669
        %v705 = vpack.c.b16 %v672, %v671
        %v706 = vpack.c.b16 %v674, %v673
        %v707 = vpack.c.b16 %v676, %v675
        %v708 = vpack.c.b16 %v678, %v677
        %v709 = vpack.c.b16 %v680, %v679
        %v710 = vpack.c.b16 %v682, %v681
        %v711 = vpack.c.b16 %v684, %v683
        %v712 = vpack.c.b16 %v686, %v685
        %v713 = vpack.c.b16 %v688, %v687
        %v714 = vpack.c.b16 %v690, %v689
        %v715 = vpack.c.b16 %v692, %v691
        %v716 = vpack.c.b16 %v694, %v693
        %v717 = vpack.c.b16 %v696, %v695
        %v718 = vpack.c.b16 %v698, %v697
        %v719 = vpack.c.b16 %v700, %v699
        %v720 = vpack.c.b16 %v702, %v701
        %v740 = vunpack.c.l.b16 %v626
        %v741 = vpack.c.b16 %v740, %v740
        %vm742 = vsmask.f32 7424
        %v744 = vshrl.u32 %v703, 16
        %v746 = vshll.u32 %v703, 16
        %v748 = vrot.slane %v746, 1
        %v749 = vor.u32 %v744, %v748
        %v751 = vshll.u32 %v704, 16
        %v753 = vrot.slane %v751, 1
        %v754 = vsel %vm742, %v749, %v753
        %v755 = vshrl.u32 %v704, 16
        %v757 = vor.u32 %v755, %v753
        %v759 = vshll.u32 %v705, 16
        %v761 = vrot.slane %v759, 1
        %v762 = vsel %vm742, %v757, %v761
        %v763 = vshrl.u32 %v705, 16
        %v765 = vor.u32 %v763, %v761
        %v767 = vshll.u32 %v706, 16
        %v769 = vrot.slane %v767, 1
        %v770 = vsel %vm742, %v765, %v769
        %v771 = vshrl.u32 %v706, 16
        %v773 = vor.u32 %v771, %v769
        %v775 = vshll.u32 %v707, 16
        %v777 = vrot.slane %v775, 1
        %v778 = vsel %vm742, %v773, %v777
        %v779 = vshrl.u32 %v707, 16
        %v781 = vor.u32 %v779, %v777
        %v783 = vshll.u32 %v708, 16
        %v785 = vrot.slane %v783, 1
        %v786 = vsel %vm742, %v781, %v785
        %v787 = vshrl.u32 %v708, 16
        %v789 = vor.u32 %v787, %v785
        %v791 = vshll.u32 %v709, 16
        %v793 = vrot.slane %v791, 1
        %v794 = vsel %vm742, %v789, %v793
        %v795 = vshrl.u32 %v709, 16
        %v797 = vor.u32 %v795, %v793
        %v799 = vshll.u32 %v710, 16
        %v801 = vrot.slane %v799, 1
        %v802 = vsel %vm742, %v797, %v801
        %v803 = vshrl.u32 %v710, 16
        %v805 = vor.u32 %v803, %v801
        %v807 = vshll.u32 %v711, 16
        %v809 = vrot.slane %v807, 1
        %v810 = vsel %vm742, %v805, %v809
        %v811 = vshrl.u32 %v711, 16
        %v813 = vor.u32 %v811, %v809
        %v815 = vshll.u32 %v712, 16
        %v817 = vrot.slane %v815, 1
        %v818 = vsel %vm742, %v813, %v817
        %v819 = vshrl.u32 %v712, 16
        %v821 = vor.u32 %v819, %v817
        %v823 = vshll.u32 %v713, 16
        %v825 = vrot.slane %v823, 1
        %v826 = vsel %vm742, %v821, %v825
        %v827 = vshrl.u32 %v713, 16
        %v829 = vor.u32 %v827, %v825
        %v831 = vshll.u32 %v714, 16
        %v833 = vrot.slane %v831, 1
        %v834 = vsel %vm742, %v829, %v833
        %v835 = vshrl.u32 %v714, 16
        %v837 = vor.u32 %v835, %v833
        %v839 = vshll.u32 %v715, 16
        %v841 = vrot.slane %v839, 1
        %v842 = vsel %vm742, %v837, %v841
        %v843 = vshrl.u32 %v715, 16
        %v845 = vor.u32 %v843, %v841
        %v847 = vshll.u32 %v716, 16
        %v849 = vrot.slane %v847, 1
        %v850 = vsel %vm742, %v845, %v849
        %v851 = vshrl.u32 %v716, 16
        %v853 = vor.u32 %v851, %v849
        %v855 = vshll.u32 %v717, 16
        %v857 = vrot.slane %v855, 1
        %v858 = vsel %vm742, %v853, %v857
        %v859 = vshrl.u32 %v717, 16
        %v861 = vor.u32 %v859, %v857
        %v863 = vshll.u32 %v718, 16
        %v865 = vrot.slane %v863, 1
        %v866 = vsel %vm742, %v861, %v865
        %v867 = vshrl.u32 %v718, 16
        %v869 = vor.u32 %v867, %v865
        %v871 = vshll.u32 %v719, 16
        %v873 = vrot.slane %v871, 1
        %v874 = vsel %vm742, %v869, %v873
        %v875 = vshrl.u32 %v719, 16
        %v877 = vor.u32 %v875, %v873
        %v879 = vshll.u32 %v720, 16
        %v881 = vrot.slane %v879, 1
        %v882 = vsel %vm742, %v877, %v881
        %v883 = vshrl.u32 %v720, 16
        %v885 = vor.u32 %v883, %v881
        %v887 = vshll.u32 %v741, 16
        %v889 = vrot.slane %v887, 1
        %v890 = vsel %vm742, %v885, %v889
        %vm909 = vcmask 1046528
        %v910 = vrot.slane %v703, 1
        %v911 = vrot.slane %v704, 1
        %v912 = vsel %vm909, %v910, %v911
        %v913 = vrot.slane %v705, 1
        %v914 = vsel %vm909, %v911, %v913
        %v915 = vrot.slane %v706, 1
        %v916 = vsel %vm909, %v913, %v915
        %v917 = vrot.slane %v707, 1
        %v918 = vsel %vm909, %v915, %v917
        %v919 = vrot.slane %v708, 1
        %v920 = vsel %vm909, %v917, %v919
        %v921 = vrot.slane %v709, 1
        %v922 = vsel %vm909, %v919, %v921
        %v923 = vrot.slane %v710, 1
        %v924 = vsel %vm909, %v921, %v923
        %v925 = vrot.slane %v711, 1
        %v926 = vsel %vm909, %v923, %v925
        %v927 = vrot.slane %v712, 1
        %v928 = vsel %vm909, %v925, %v927
        %v929 = vrot.slane %v713, 1
        %v930 = vsel %vm909, %v927, %v929
        %v931 = vrot.slane %v714, 1
        %v932 = vsel %vm909, %v929, %v931
        %v933 = vrot.slane %v715, 1
        %v934 = vsel %vm909, %v931, %v933
        %v935 = vrot.slane %v716, 1
        %v936 = vsel %vm909, %v933, %v935
        %v937 = vrot.slane %v717, 1
        %v938 = vsel %vm909, %v935, %v937
        %v939 = vrot.slane %v718, 1
        %v940 = vsel %vm909, %v937, %v939
        %v941 = vrot.slane %v719, 1
        %v942 = vsel %vm909, %v939, %v941
        %v943 = vrot.slane %v720, 1
        %v944 = vsel %vm909, %v941, %v943
        %v945 = vrot.slane %v741, 1
        %v946 = vsel %vm909, %v943, %v945
        %v967 = vunpack.c.l.b16 %v627
        %v968 = vunpack.c.l.b16 %v628
        %v969 = vpack.c.b16 %v967, %v740
        %v970 = vpack.c.b16 %v968, %v968
        %v971 = vrot.slane %v969, 1
        %v972 = vsel %vm909, %v943, %v971
        %v973 = vrot.slane %v970, 1
        %v974 = vsel %vm909, %v971, %v973
        %vm977 = vsmask.f32 6400
        %v978 = vrot.slane %v755, 1
        %v979 = vrot.slane %v751, 2
        %v980 = vor.u32 %v978, %v979
        %v981 = vrot.slane %v763, 1
        %v982 = vrot.slane %v759, 2
        %v983 = vor.u32 %v981, %v982
        %v984 = vsel %vm977, %v980, %v983
        %v985 = vrot.slane %v771, 1
        %v986 = vrot.slane %v767, 2
        %v987 = vor.u32 %v985, %v986
        %v988 = vsel %vm977, %v983, %v987
        %v989 = vrot.slane %v779, 1
        %v990 = vrot.slane %v775, 2
        %v991 = vor.u32 %v989, %v990
        %v992 = vsel %vm977, %v987, %v991
        %v993 = vrot.slane %v787, 1
        %v994 = vrot.slane %v783, 2
        %v995 = vor.u32 %v993, %v994
        %v996 = vsel %vm977, %v991, %v995
        %v997 = vrot.slane %v795, 1
        %v998 = vrot.slane %v791, 2
        %v999 = vor.u32 %v997, %v998
        %v1000 = vsel %vm977, %v995, %v999
        %v1001 = vrot.slane %v803, 1
        %v1002 = vrot.slane %v799, 2
        %v1003 = vor.u32 %v1001, %v1002
        %v1004 = vsel %vm977, %v999, %v1003
        %v1005 = vrot.slane %v811, 1
        %v1006 = vrot.slane %v807, 2
        %v1007 = vor.u32 %v1005, %v1006
        %v1008 = vsel %vm977, %v1003, %v1007
        %v1009 = vrot.slane %v819, 1
        %v1010 = vrot.slane %v815, 2
        %v1011 = vor.u32 %v1009, %v1010
        %v1012 = vsel %vm977, %v1007, %v1011
        %v1013 = vrot.slane %v827, 1
        %v1014 = vrot.slane %v823, 2
        %v1015 = vor.u32 %v1013, %v1014
        %v1016 = vsel %vm977, %v1011, %v1015
        %v1017 = vrot.slane %v835, 1
        %v1018 = vrot.slane %v831, 2
        %v1019 = vor.u32 %v1017, %v1018
        %v1020 = vsel %vm977, %v1015, %v1019
        %v1021 = vrot.slane %v843, 1
        %v1022 = vrot.slane %v839, 2
        %v1023 = vor.u32 %v1021, %v1022
        %v1024 = vsel %vm977, %v1019, %v1023
        %v1025 = vrot.slane %v851, 1
        %v1026 = vrot.slane %v847, 2
        %v1027 = vor.u32 %v1025, %v1026
        %v1028 = vsel %vm977, %v1023, %v1027
        %v1029 = vrot.slane %v859, 1
        %v1030 = vrot.slane %v855, 2
        %v1031 = vor.u32 %v1029, %v1030
        %v1032 = vsel %vm977, %v1027, %v1031
        %v1033 = vrot.slane %v867, 1
        %v1034 = vrot.slane %v863, 2
        %v1035 = vor.u32 %v1033, %v1034
        %v1036 = vsel %vm977, %v1031, %v1035
        %v1037 = vrot.slane %v875, 1
        %v1038 = vrot.slane %v871, 2
        %v1039 = vor.u32 %v1037, %v1038
        %v1040 = vsel %vm977, %v1035, %v1039
        %v1041 = vrot.slane %v883, 1
        %v1042 = vrot.slane %v879, 2
        %v1043 = vor.u32 %v1041, %v1042
        %v1044 = vsel %vm977, %v1039, %v1043
        %v1046 = vshrl.u32 %v969, 16
        %v1048 = vrot.slane %v1046, 1
        %v1049 = vshll.u32 %v969, 16
        %v1051 = vrot.slane %v1049, 2
        %v1052 = vor.u32 %v1048, %v1051
        %v1053 = vsel %vm977, %v1043, %v1052
        %v1055 = vshrl.u32 %v970, 16
        %v1057 = vrot.slane %v1055, 1
        %v1058 = vshll.u32 %v970, 16
        %v1060 = vrot.slane %v1058, 2
        %v1061 = vor.u32 %v1057, %v1060
        %v1062 = vsel %vm977, %v1052, %v1061
        %vm1081 = vcmask 1045504
        %v1082 = vrot.slane %v704, 2
        %v1083 = vrot.slane %v705, 2
        %v1084 = vsel %vm1081, %v1082, %v1083
        %v1085 = vrot.slane %v706, 2
        %v1086 = vsel %vm1081, %v1083, %v1085
        %v1087 = vrot.slane %v707, 2
        %v1088 = vsel %vm1081, %v1085, %v1087
        %v1089 = vrot.slane %v708, 2
        %v1090 = vsel %vm1081, %v1087, %v1089
        %v1091 = vrot.slane %v709, 2
        %v1092 = vsel %vm1081, %v1089, %v1091
        %v1093 = vrot.slane %v710, 2
        %v1094 = vsel %vm1081, %v1091, %v1093
        %v1095 = vrot.slane %v711, 2
        %v1096 = vsel %vm1081, %v1093, %v1095
        %v1097 = vrot.slane %v712, 2
        %v1098 = vsel %vm1081, %v1095, %v1097
        %v1099 = vrot.slane %v713, 2
        %v1100 = vsel %vm1081, %v1097, %v1099
        %v1101 = vrot.slane %v714, 2
        %v1102 = vsel %vm1081, %v1099, %v1101
        %v1103 = vrot.slane %v715, 2
        %v1104 = vsel %vm1081, %v1101, %v1103
        %v1105 = vrot.slane %v716, 2
        %v1106 = vsel %vm1081, %v1103, %v1105
        %v1107 = vrot.slane %v717, 2
        %v1108 = vsel %vm1081, %v1105, %v1107
        %v1109 = vrot.slane %v718, 2
        %v1110 = vsel %vm1081, %v1107, %v1109
        %v1111 = vrot.slane %v719, 2
        %v1112 = vsel %vm1081, %v1109, %v1111
        %v1113 = vrot.slane %v720, 2
        %v1114 = vsel %vm1081, %v1111, %v1113
        %v1115 = vrot.slane %v969, 2
        %v1116 = vsel %vm1081, %v1113, %v1115
        %v1117 = vrot.slane %v970, 2
        %v1118 = vsel %vm1081, %v1115, %v1117
        %v1139 = vunpack.c.l.b16 %v629
        %v1140 = vunpack.c.l.b16 %v630
        %v1141 = vpack.c.b16 %v1139, %v968
        %v1142 = vpack.c.b16 %v1140, %v1140
        %v1143 = vrot.slane %v1141, 2
        %v1144 = vsel %vm1081, %v1115, %v1143
        %v1145 = vrot.slane %v1142, 2
        %v1146 = vsel %vm1081, %v1143, %v1145
        %vm1149 = vsmask.f32 5376
        %v1150 = vrot.slane %v763, 2
        %v1151 = vrot.slane %v759, 3
        %v1152 = vor.u32 %v1150, %v1151
        %v1153 = vrot.slane %v771, 2
        %v1154 = vrot.slane %v767, 3
        %v1155 = vor.u32 %v1153, %v1154
        %v1156 = vsel %vm1149, %v1152, %v1155
        %v1157 = vrot.slane %v779, 2
        %v1158 = vrot.slane %v775, 3
        %v1159 = vor.u32 %v1157, %v1158
        %v1160 = vsel %vm1149, %v1155, %v1159
        %v1161 = vrot.slane %v787, 2
        %v1162 = vrot.slane %v783, 3
        %v1163 = vor.u32 %v1161, %v1162
        %v1164 = vsel %vm1149, %v1159, %v1163
        %v1165 = vrot.slane %v795, 2
        %v1166 = vrot.slane %v791, 3
        %v1167 = vor.u32 %v1165, %v1166
        %v1168 = vsel %vm1149, %v1163, %v1167
        %v1169 = vrot.slane %v803, 2
        %v1170 = vrot.slane %v799, 3
        %v1171 = vor.u32 %v1169, %v1170
        %v1172 = vsel %vm1149, %v1167, %v1171
        %v1173 = vrot.slane %v811, 2
        %v1174 = vrot.slane %v807, 3
        %v1175 = vor.u32 %v1173, %v1174
        %v1176 = vsel %vm1149, %v1171, %v1175
        %v1177 = vrot.slane %v819, 2
        %v1178 = vrot.slane %v815, 3
        %v1179 = vor.u32 %v1177, %v1178
        %v1180 = vsel %vm1149, %v1175, %v1179
        %v1181 = vrot.slane %v827, 2
        %v1182 = vrot.slane %v823, 3
        %v1183 = vor.u32 %v1181, %v1182
        %v1184 = vsel %vm1149, %v1179, %v1183
        %v1185 = vrot.slane %v835, 2
        %v1186 = vrot.slane %v831, 3
        %v1187 = vor.u32 %v1185, %v1186
        %v1188 = vsel %vm1149, %v1183, %v1187
        %v1189 = vrot.slane %v843, 2
        %v1190 = vrot.slane %v839, 3
        %v1191 = vor.u32 %v1189, %v1190
        %v1192 = vsel %vm1149, %v1187, %v1191
        %v1193 = vrot.slane %v851, 2
        %v1194 = vrot.slane %v847, 3
        %v1195 = vor.u32 %v1193, %v1194
        %v1196 = vsel %vm1149, %v1191, %v1195
        %v1197 = vrot.slane %v859, 2
        %v1198 = vrot.slane %v855, 3
        %v1199 = vor.u32 %v1197, %v1198
        %v1200 = vsel %vm1149, %v1195, %v1199
        %v1201 = vrot.slane %v867, 2
        %v1202 = vrot.slane %v863, 3
        %v1203 = vor.u32 %v1201, %v1202
        %v1204 = vsel %vm1149, %v1199, %v1203
        %v1205 = vrot.slane %v875, 2
        %v1206 = vrot.slane %v871, 3
        %v1207 = vor.u32 %v1205, %v1206
        %v1208 = vsel %vm1149, %v1203, %v1207
        %v1209 = vrot.slane %v883, 2
        %v1210 = vrot.slane %v879, 3
        %v1211 = vor.u32 %v1209, %v1210
        %v1212 = vsel %vm1149, %v1207, %v1211
        %v1213 = vrot.slane %v1046, 2
        %v1214 = vrot.slane %v1049, 3
        %v1215 = vor.u32 %v1213, %v1214
        %v1216 = vsel %vm1149, %v1211, %v1215
        %v1218 = vshrl.u32 %v1141, 16
        %v1220 = vrot.slane %v1218, 2
        %v1221 = vshll.u32 %v1141, 16
        %v1223 = vrot.slane %v1221, 3
        %v1224 = vor.u32 %v1220, %v1223
        %v1225 = vsel %vm1149, %v1215, %v1224
        %v1227 = vshrl.u32 %v1142, 16
        %v1229 = vrot.slane %v1227, 2
        %v1230 = vshll.u32 %v1142, 16
        %v1232 = vrot.slane %v1230, 3
        %v1233 = vor.u32 %v1229, %v1232
        %v1234 = vsel %vm1149, %v1224, %v1233
        %vm1253 = vcmask 1044480
        %v1254 = vrot.slane %v705, 3
        %v1255 = vrot.slane %v706, 3
        %v1256 = vsel %vm1253, %v1254, %v1255
        %v1257 = vrot.slane %v707, 3
        %v1258 = vsel %vm1253, %v1255, %v1257
        %v1259 = vrot.slane %v708, 3
        %v1260 = vsel %vm1253, %v1257, %v1259
        %v1261 = vrot.slane %v709, 3
        %v1262 = vsel %vm1253, %v1259, %v1261
        %v1263 = vrot.slane %v710, 3
        %v1264 = vsel %vm1253, %v1261, %v1263
        %v1265 = vrot.slane %v711, 3
        %v1266 = vsel %vm1253, %v1263, %v1265
        %v1267 = vrot.slane %v712, 3
        %v1268 = vsel %vm1253, %v1265, %v1267
        %v1269 = vrot.slane %v713, 3
        %v1270 = vsel %vm1253, %v1267, %v1269
        %v1271 = vrot.slane %v714, 3
        %v1272 = vsel %vm1253, %v1269, %v1271
        %v1273 = vrot.slane %v715, 3
        %v1274 = vsel %vm1253, %v1271, %v1273
        %v1275 = vrot.slane %v716, 3
        %v1276 = vsel %vm1253, %v1273, %v1275
        %v1277 = vrot.slane %v717, 3
        %v1278 = vsel %vm1253, %v1275, %v1277
        %v1279 = vrot.slane %v718, 3
        %v1280 = vsel %vm1253, %v1277, %v1279
        %v1281 = vrot.slane %v719, 3
        %v1282 = vsel %vm1253, %v1279, %v1281
        %v1283 = vrot.slane %v720, 3
        %v1284 = vsel %vm1253, %v1281, %v1283
        %v1285 = vrot.slane %v969, 3
        %v1286 = vsel %vm1253, %v1283, %v1285
        %v1287 = vrot.slane %v1141, 3
        %v1288 = vsel %vm1253, %v1285, %v1287
        %v1289 = vrot.slane %v1142, 3
        %v1290 = vsel %vm1253, %v1287, %v1289
        %v1309 = vld [vmem:[%s1] sm:$0xf]
        %v1310 = vld [vmem:[%s1 + $0x4] sm:$0xf]
        %v1311 = vld [vmem:[%s1 + $0x8] sm:$0xf]
        %v1312 = vld [vmem:[%s1 + $0xc] sm:$0xf]
        %v1313 = vld [vmem:[%s1 + $0x10] sm:$0xf]
        %v1314 = vld [vmem:[%s1 + $0x14] sm:$0xf]
        %v1315 = vld [vmem:[%s1 + $0x18] sm:$0xf]
        %v1316 = vld [vmem:[%s1 + $0x1c] sm:$0xf]
        %v1317 = vld [vmem:[%s1 + $0x20] sm:$0xf]
        %v1318 = vld [vmem:[%s1 + $0x24] sm:$0xf]
        %v1319 = vld [vmem:[%s1 + $0x28] sm:$0xf]
        %v1320 = vld [vmem:[%s1 + $0x2c] sm:$0xf]
        %v1321 = vld [vmem:[%s1 + $0x30] sm:$0xf]
        %v1322 = vld [vmem:[%s1 + $0x34] sm:$0xf]
        %v1323 = vld [vmem:[%s1 + $0x38] sm:$0xf]
        %v1324 = vld [vmem:[%s1 + $0x3c] sm:$0xf]
        %v1325 = vld [vmem:[%s1 + $0x40] sm:$0xf]
        %v1326 = vld [vmem:[%s1 + $0x44] sm:$0xf]
        %v1327 = vld [vmem:[%s1 + $0x48] sm:$0xf]
        %v1328 = vld [vmem:[%s1 + $0x4c] sm:$0xf]
        %v1329 = vld [vmem:[%s1 + $0x50] sm:$0xf]
        %v1330 = vld [vmem:[%s1 + $0x54] sm:$0xf]
        %v1331 = vld [vmem:[%s1 + $0x58] sm:$0xf]
        %v1332 = vld [vmem:[%s1 + $0x5c] sm:$0xf]
        %v1333 = vld [vmem:[%s1 + $0x60] sm:$0xf]
        %v1334 = vld [vmem:[%s1 + $0x64] sm:$0xf]
        %v1335 = vld [vmem:[%s1 + $0x68] sm:$0xf]
        %v1336 = vld [vmem:[%s1 + $0x6c] sm:$0xf]
        %v1337 = vld [vmem:[%s1 + $0x70] sm:$0xf]
        %v1338 = vld [vmem:[%s1 + $0x74] sm:$0xf]
        %v1339 = vld [vmem:[%s1 + $0x78] sm:$0xf]
        %v1340 = vld [vmem:[%s1 + $0x7c] sm:$0xf]
        %v1341 = vld [vmem:[%s1 + $0x80] sm:$0xf]
        %v1342 = vld [vmem:[%s1 + $0x84] sm:$0xf]
        %v1343 = vld [vmem:[%s1 + $0x88] sm:$0xf]
        %v1344 = vld [vmem:[%s1 + $0x8c] sm:$0xf]
        %v1345 = vld [vmem:[%s1 + $0x90] sm:$0xf]
        %v1346 = vld [vmem:[%s1 + $0x94] sm:$0xf]
        %v1347 = vld [vmem:[%s1 + $0x98] sm:$0xf]
        %v1348 = vld [vmem:[%s1 + $0x9c] sm:$0xf]
        %v1349 = vld [vmem:[%s1 + $0xa0] sm:$0xf]
        %v1350 = vld [vmem:[%s1 + $0xa4] sm:$0xf]
        %v1351 = vld [vmem:[%s1 + $0xa8] sm:$0xf]
        %v1352 = vld [vmem:[%s1 + $0xac] sm:$0xf]
        %v1353 = vld [vmem:[%s1 + $0xb0] sm:$0xf]
        %v1354 = vld [vmem:[%s1 + $0xb4] sm:$0xf]
        %v1355 = vld [vmem:[%s1 + $0xb8] sm:$0xf]
        %v1356 = vld [vmem:[%s1 + $0xbc] sm:$0xf]
        %v1357 = vld [vmem:[%s1 + $0xc0] sm:$0xf]
        %v1358 = vld [vmem:[%s1 + $0xc4] sm:$0xf]
        %v1359 = vld [vmem:[%s1 + $0xc8] sm:$0xf]
        %v1360 = vld [vmem:[%s1 + $0xcc] sm:$0xf]
        %v1361 = vld [vmem:[%s1 + $0xd0] sm:$0xf]
        %v1362 = vld [vmem:[%s1 + $0xd4] sm:$0xf]
        %v1363 = vld [vmem:[%s1 + $0xd8] sm:$0xf]
        %v1364 = vld [vmem:[%s1 + $0xdc] sm:$0xf]
        %v1365 = vld [vmem:[%s1 + $0xe0] sm:$0xf]
        %v1366 = vld [vmem:[%s1 + $0xe4] sm:$0xf]
        %v1367 = vld [vmem:[%s1 + $0xe8] sm:$0xf]
        %v1368 = vld [vmem:[%s1 + $0xec] sm:$0xf]
        %v1369 = vld [vmem:[%s1 + $0xf0] sm:$0xf]
        %v1370 = vld [vmem:[%s1 + $0xf4] sm:$0xf]
        %v1371 = vld [vmem:[%s1 + $0xf8] sm:$0xf]
        %v1372 = vld [vmem:[%s1 + $0xfc] sm:$0xf]
        %v1373 = vld [vmem:[%s1 + $0x100] sm:$0xf]
        %v1374 = vld [vmem:[%s1 + $0x104] sm:$0xf]
        %v1375 = vld [vmem:[%s1 + $0x108] sm:$0xf]
        %v1376 = vld [vmem:[%s1 + $0x10c] sm:$0xf]
        %v1377 = vld [vmem:[%s1 + $0x110] sm:$0xf]
        %v1378 = vld [vmem:[%s1 + $0x114] sm:$0xf]
        %v1379 = vld [vmem:[%s1 + $0x118] sm:$0xf]
        %v1380 = vld [vmem:[%s1 + $0x11c] sm:$0xf]
        %v1381 = vld [vmem:[%s1 + $0x120] sm:$0xf]
        %v1382 = vld [vmem:[%s1 + $0x124] sm:$0xf]
        %v1383 = vld [vmem:[%s1 + $0x128] sm:$0xf]
        %v1384 = vld [vmem:[%s1 + $0x12c] sm:$0xf]
        %v1385 = vld [vmem:[%s1 + $0x130] sm:$0xf]
        %v1386 = vld [vmem:[%s1 + $0x134] sm:$0xf]
        %v1387 = vld [vmem:[%s1 + $0x138] sm:$0xf]
        %v1388 = vld [vmem:[%s1 + $0x13c] sm:$0xf]
        %v1389 = vld [vmem:[%s1 + $0x140] sm:$0xf]
        %v1390 = vld [vmem:[%s1 + $0x144] sm:$0xf]
        %v1391 = vld [vmem:[%s1 + $0x148] sm:$0xf]
        %v1392 = vld [vmem:[%s1 + $0x14c] sm:$0xf]
        %v1393 = vld [vmem:[%s1 + $0x150] sm:$0xf]
        %v1394 = vld [vmem:[%s1 + $0x154] sm:$0xf]
        %v1395 = vld [vmem:[%s1 + $0x158] sm:$0xf]
        %v1396 = vld [vmem:[%s1 + $0x15c] sm:$0xf]
        %v1397 = vld [vmem:[%s1 + $0x160] sm:$0xf]
        %v1398 = vld [vmem:[%s1 + $0x164] sm:$0xf]
        %v1399 = vld [vmem:[%s1 + $0x168] sm:$0xf]
        %v1400 = vld [vmem:[%s1 + $0x16c] sm:$0xf]
        %v1401 = vld [vmem:[%s1 + $0x170] sm:$0xf]
        %v1402 = vld [vmem:[%s1 + $0x174] sm:$0xf]
        %v1403 = vld [vmem:[%s1 + $0x178] sm:$0xf]
        %v1404 = vld [vmem:[%s1 + $0x17c] sm:$0xf]
        %v1405 = vld [vmem:[%s1 + $0x180] sm:$0xf]
        %v1406 = vld [vmem:[%s1 + $0x184] sm:$0xf]
        %v1407 = vld [vmem:[%s1 + $0x188] sm:$0xf]
        %v1408 = vld [vmem:[%s1 + $0x18c] sm:$0xf]
        %v1409 = vld [vmem:[%s1 + $0x190] sm:$0xf]
        %v1410 = vld [vmem:[%s1 + $0x194] sm:$0xf]
        %v1411 = vld [vmem:[%s1 + $0x198] sm:$0xf]
        %v1412 = vld [vmem:[%s1 + $0x19c] sm:$0xf]
        %v1413 = vld [vmem:[%s1 + $0x1a0] sm:$0xf]
        %v1414 = vld [vmem:[%s1 + $0x1a4] sm:$0xf]
        %v1415 = vld [vmem:[%s1 + $0x1a8] sm:$0xf]
        %v1416 = vld [vmem:[%s1 + $0x1ac] sm:$0xf]
        %v1417 = vld [vmem:[%s1 + $0x1b0] sm:$0xf]
        %v1418 = vld [vmem:[%s1 + $0x1b4] sm:$0xf]
        %v1419 = vld [vmem:[%s1 + $0x1b8] sm:$0xf]
        %v1420 = vld [vmem:[%s1 + $0x1bc] sm:$0xf]
        %v1421 = vld [vmem:[%s1 + $0x1c0] sm:$0xf]
        %v1422 = vld [vmem:[%s1 + $0x1c4] sm:$0xf]
        %v1423 = vld [vmem:[%s1 + $0x1c8] sm:$0xf]
        %v1424 = vld [vmem:[%s1 + $0x1cc] sm:$0xf]
        %v1425 = vld [vmem:[%s1 + $0x1d0] sm:$0xf]
        %v1426 = vld [vmem:[%s1 + $0x1d4] sm:$0xf]
        %v1427 = vld [vmem:[%s1 + $0x1d8] sm:$0xf]
        %v1428 = vld [vmem:[%s1 + $0x1dc] sm:$0xf]
        %v1429 = vld [vmem:[%s1 + $0x1e0] sm:$0xf]
        %v1430 = vld [vmem:[%s1 + $0x1e4] sm:$0xf]
        %v1431 = vld [vmem:[%s1 + $0x1e8] sm:$0xf]
        %v1432 = vld [vmem:[%s1 + $0x1ec] sm:$0xf]
        %v1433 = vld [vmem:[%s1 + $0x1f0] sm:$0xf]
        %v1434 = vld [vmem:[%s1 + $0x1f4] sm:$0xf]
        %v1435 = vld [vmem:[%s1 + $0x1f8] sm:$0xf]
        %v1436 = vld [vmem:[%s1 + $0x1fc] sm:$0xf]
        %v1437 = vld [vmem:[%s1 + $0x200] sm:$0xf]
        %v1438 = vld [vmem:[%s1 + $0x204] sm:$0xf]
        %v1439 = vld [vmem:[%s1 + $0x208] sm:$0xf]
        %v1440 = vld [vmem:[%s1 + $0x20c] sm:$0xf]
        %v1441 = vld [vmem:[%s1 + $0x210] sm:$0xf]
        %v1442 = vld [vmem:[%s1 + $0x214] sm:$0xf]
        %v1443 = vld [vmem:[%s1 + $0x218] sm:$0xf]
        %v1444 = vld [vmem:[%s1 + $0x21c] sm:$0xf]
        %v1445 = vld [vmem:[%s1 + $0x220] sm:$0xf]
        %v1446 = vld [vmem:[%s1 + $0x224] sm:$0xf]
        %v1447 = vld [vmem:[%s1 + $0x228] sm:$0xf]
        %v1448 = vld [vmem:[%s1 + $0x22c] sm:$0xf]
        %v1449 = vld [vmem:[%s1 + $0x230] sm:$0xf]
        %v1450 = vld [vmem:[%s1 + $0x234] sm:$0xf]
        %v1451 = vld [vmem:[%s1 + $0x238] sm:$0xf]
        %v1452 = vld [vmem:[%s1 + $0x23c] sm:$0xf]
        %v1453 = vld [vmem:[%s2] sm:$0x1]
        %v1455 = vlaneseq
        %v1456 = vshrl.u32 %v1455, 7
        %v1457 = vsub.s32 0, %v1456
        %v1458 = vrot.slane %v1453, %v1457
        %v1604 = vunpack.c.l.b16 %v1309
        %v1605 = vunpack.c.l.b16 %v1310
        %v1606 = vunpack.c.l.b16 %v1311
        %v1607 = vunpack.c.l.b16 %v1312
        %v1608 = vunpack.c.l.b16 %v1313
        %v1609 = vunpack.c.l.b16 %v1314
        %v1610 = vunpack.c.l.b16 %v1315
        %v1611 = vunpack.c.l.b16 %v1316
        %v1612 = vunpack.c.l.b16 %v1317
        %v1613 = vunpack.c.l.b16 %v1318
        %v1614 = vunpack.c.l.b16 %v1319
        %v1615 = vunpack.c.l.b16 %v1320
        %v1616 = vunpack.c.l.b16 %v1321
        %v1617 = vunpack.c.l.b16 %v1322
        %v1618 = vunpack.c.l.b16 %v1323
        %v1619 = vunpack.c.l.b16 %v1324
        %v1620 = vunpack.c.l.b16 %v1325
        %v1621 = vunpack.c.l.b16 %v1326
        %v1622 = vunpack.c.l.b16 %v1327
        %v1623 = vunpack.c.l.b16 %v1328
        %v1624 = vunpack.c.l.b16 %v1329
        %v1625 = vunpack.c.l.b16 %v1330
        %v1626 = vunpack.c.l.b16 %v1331
        %v1627 = vunpack.c.l.b16 %v1332
        %v1628 = vunpack.c.l.b16 %v1333
        %v1629 = vunpack.c.l.b16 %v1334
        %v1630 = vunpack.c.l.b16 %v1335
        %v1631 = vunpack.c.l.b16 %v1336
        %v1632 = vunpack.c.l.b16 %v1337
        %v1633 = vunpack.c.l.b16 %v1338
        %v1634 = vunpack.c.l.b16 %v1339
        %v1635 = vunpack.c.l.b16 %v1340
        %v1636 = vunpack.c.l.b16 %v1341
        %v1637 = vunpack.c.l.b16 %v1342
        %v1638 = vunpack.c.l.b16 %v1343
        %v1639 = vunpack.c.l.b16 %v1344
        %v1640 = vunpack.c.l.b16 %v1345
        %v1641 = vunpack.c.l.b16 %v1346
        %v1642 = vunpack.c.l.b16 %v1347
        %v1643 = vunpack.c.l.b16 %v1348
        %v1644 = vunpack.c.l.b16 %v1349
        %v1645 = vunpack.c.l.b16 %v1350
        %v1646 = vunpack.c.l.b16 %v1351
        %v1647 = vunpack.c.l.b16 %v1352
        %v1648 = vunpack.c.l.b16 %v1353
        %v1649 = vunpack.c.l.b16 %v1354
        %v1650 = vunpack.c.l.b16 %v1355
        %v1651 = vunpack.c.l.b16 %v1356
        %v1652 = vunpack.c.l.b16 %v1357
        %v1653 = vunpack.c.l.b16 %v1358
        %v1654 = vunpack.c.l.b16 %v1359
        %v1655 = vunpack.c.l.b16 %v1360
        %v1656 = vunpack.c.l.b16 %v1361
        %v1657 = vunpack.c.l.b16 %v1362
        %v1658 = vunpack.c.l.b16 %v1363
        %v1659 = vunpack.c.l.b16 %v1364
        %v1660 = vunpack.c.l.b16 %v1365
        %v1661 = vunpack.c.l.b16 %v1366
        %v1662 = vunpack.c.l.b16 %v1367
        %v1663 = vunpack.c.l.b16 %v1368
        %v1664 = vunpack.c.l.b16 %v1369
        %v1665 = vunpack.c.l.b16 %v1370
        %v1666 = vunpack.c.l.b16 %v1371
        %v1667 = vunpack.c.l.b16 %v1372
        %v1668 = vunpack.c.l.b16 %v1373
        %v1669 = vunpack.c.l.b16 %v1374
        %v1670 = vunpack.c.l.b16 %v1375
        %v1671 = vunpack.c.l.b16 %v1376
        %v1672 = vunpack.c.l.b16 %v1377
        %v1673 = vunpack.c.l.b16 %v1378
        %v1674 = vunpack.c.l.b16 %v1379
        %v1675 = vunpack.c.l.b16 %v1380
        %v1676 = vunpack.c.l.b16 %v1381
        %v1677 = vunpack.c.l.b16 %v1382
        %v1678 = vunpack.c.l.b16 %v1383
        %v1679 = vunpack.c.l.b16 %v1384
        %v1680 = vunpack.c.l.b16 %v1385
        %v1681 = vunpack.c.l.b16 %v1386
        %v1682 = vunpack.c.l.b16 %v1387
        %v1683 = vunpack.c.l.b16 %v1388
        %v1684 = vunpack.c.l.b16 %v1389
        %v1685 = vunpack.c.l.b16 %v1390
        %v1686 = vunpack.c.l.b16 %v1391
        %v1687 = vunpack.c.l.b16 %v1392
        %v1688 = vunpack.c.l.b16 %v1393
        %v1689 = vunpack.c.l.b16 %v1394
        %v1690 = vunpack.c.l.b16 %v1395
        %v1691 = vunpack.c.l.b16 %v1396
        %v1692 = vunpack.c.l.b16 %v1397
        %v1693 = vunpack.c.l.b16 %v1398
        %v1694 = vunpack.c.l.b16 %v1399
        %v1695 = vunpack.c.l.b16 %v1400
        %v1696 = vunpack.c.l.b16 %v1401
        %v1697 = vunpack.c.l.b16 %v1402
        %v1698 = vunpack.c.l.b16 %v1403
        %v1699 = vunpack.c.l.b16 %v1404
        %v1700 = vunpack.c.l.b16 %v1405
        %v1701 = vunpack.c.l.b16 %v1406
        %v1702 = vunpack.c.l.b16 %v1407
        %v1703 = vunpack.c.l.b16 %v1408
        %v1704 = vunpack.c.l.b16 %v1409
        %v1705 = vunpack.c.l.b16 %v1410
        %v1706 = vunpack.c.l.b16 %v1411
        %v1707 = vunpack.c.l.b16 %v1412
        %v1708 = vunpack.c.l.b16 %v1413
        %v1709 = vunpack.c.l.b16 %v1414
        %v1710 = vunpack.c.l.b16 %v1415
        %v1711 = vunpack.c.l.b16 %v1416
        %v1712 = vunpack.c.l.b16 %v1417
        %v1713 = vunpack.c.l.b16 %v1418
        %v1714 = vunpack.c.l.b16 %v1419
        %v1715 = vunpack.c.l.b16 %v1420
        %v1716 = vunpack.c.l.b16 %v1421
        %v1717 = vunpack.c.l.b16 %v1422
        %v1718 = vunpack.c.l.b16 %v1423
        %v1719 = vunpack.c.l.b16 %v1424
        %v1720 = vunpack.c.l.b16 %v1425
        %v1721 = vunpack.c.l.b16 %v1426
        %v1722 = vunpack.c.l.b16 %v1427
        %v1723 = vunpack.c.l.b16 %v1428
        %v1724 = vunpack.c.l.b16 %v1429
        %v1725 = vunpack.c.l.b16 %v1430
        %v1726 = vunpack.c.l.b16 %v1431
        %v1727 = vunpack.c.l.b16 %v1432
        %v1728 = vunpack.c.l.b16 %v1433
        %v1729 = vunpack.c.l.b16 %v1434
        %v1730 = vunpack.c.l.b16 %v1435
        %v1731 = vunpack.c.l.b16 %v1436
        %v1732 = vunpack.c.l.b16 %v1437
        %v1733 = vunpack.c.l.b16 %v1438
        %v1734 = vunpack.c.l.b16 %v1439
        %v1735 = vunpack.c.l.b16 %v1440
        %v1736 = vunpack.c.l.b16 %v1441
        %v1737 = vunpack.c.l.b16 %v1442
        %v1738 = vunpack.c.l.b16 %v1443
        %v1739 = vunpack.c.l.b16 %v1444
        %v1740 = vunpack.c.l.b16 %v1445
        %v1741 = vunpack.c.l.b16 %v1446
        %v1742 = vunpack.c.l.b16 %v1447
        %v1743 = vunpack.c.l.b16 %v1448
        %v1744 = vunpack.c.l.b16 %v1449
        %v1745 = vunpack.c.l.b16 %v1450
        %v1746 = vunpack.c.l.b16 %v1451
        %v1747 = vunpack.c.l.b16 %v1452
        %v1748 = vpack.c.b16 %v1605, %v1604
        %v1749 = vpack.c.b16 %v1607, %v1606
        %v1750 = vpack.c.b16 %v1609, %v1608
        %v1751 = vpack.c.b16 %v1611, %v1610
        %v1752 = vpack.c.b16 %v1613, %v1612
        %v1753 = vpack.c.b16 %v1615, %v1614
        %v1754 = vpack.c.b16 %v1617, %v1616
        %v1755 = vpack.c.b16 %v1619, %v1618
        %v1756 = vpack.c.b16 %v1621, %v1620
        %v1757 = vpack.c.b16 %v1623, %v1622
        %v1758 = vpack.c.b16 %v1625, %v1624
        %v1759 = vpack.c.b16 %v1627, %v1626
        %v1760 = vpack.c.b16 %v1629, %v1628
        %v1761 = vpack.c.b16 %v1631, %v1630
        %v1762 = vpack.c.b16 %v1633, %v1632
        %v1763 = vpack.c.b16 %v1635, %v1634
        %v1764 = vpack.c.b16 %v1637, %v1636
        %v1765 = vpack.c.b16 %v1639, %v1638
        %v1766 = vpack.c.b16 %v1641, %v1640
        %v1767 = vpack.c.b16 %v1643, %v1642
        %v1768 = vpack.c.b16 %v1645, %v1644
        %v1769 = vpack.c.b16 %v1647, %v1646
        %v1770 = vpack.c.b16 %v1649, %v1648
        %v1771 = vpack.c.b16 %v1651, %v1650
        %v1772 = vpack.c.b16 %v1653, %v1652
        %v1773 = vpack.c.b16 %v1655, %v1654
        %v1774 = vpack.c.b16 %v1657, %v1656
        %v1775 = vpack.c.b16 %v1659, %v1658
        %v1776 = vpack.c.b16 %v1661, %v1660
        %v1777 = vpack.c.b16 %v1663, %v1662
        %v1778 = vpack.c.b16 %v1665, %v1664
        %v1779 = vpack.c.b16 %v1667, %v1666
        %v1780 = vpack.c.b16 %v1669, %v1668
        %v1781 = vpack.c.b16 %v1671, %v1670
        %v1782 = vpack.c.b16 %v1673, %v1672
        %v1783 = vpack.c.b16 %v1675, %v1674
        %v1784 = vpack.c.b16 %v1677, %v1676
        %v1785 = vpack.c.b16 %v1679, %v1678
        %v1786 = vpack.c.b16 %v1681, %v1680
        %v1787 = vpack.c.b16 %v1683, %v1682
        %v1788 = vpack.c.b16 %v1685, %v1684
        %v1789 = vpack.c.b16 %v1687, %v1686
        %v1790 = vpack.c.b16 %v1689, %v1688
        %v1791 = vpack.c.b16 %v1691, %v1690
        %v1792 = vpack.c.b16 %v1693, %v1692
        %v1793 = vpack.c.b16 %v1695, %v1694
        %v1794 = vpack.c.b16 %v1697, %v1696
        %v1795 = vpack.c.b16 %v1699, %v1698
        %v1796 = vpack.c.b16 %v1701, %v1700
        %v1797 = vpack.c.b16 %v1703, %v1702
        %v1798 = vpack.c.b16 %v1705, %v1704
        %v1799 = vpack.c.b16 %v1707, %v1706
        %v1800 = vpack.c.b16 %v1709, %v1708
        %v1801 = vpack.c.b16 %v1711, %v1710
        %v1802 = vpack.c.b16 %v1713, %v1712
        %v1803 = vpack.c.b16 %v1715, %v1714
        %v1804 = vpack.c.b16 %v1717, %v1716
        %v1805 = vpack.c.b16 %v1719, %v1718
        %v1806 = vpack.c.b16 %v1721, %v1720
        %v1807 = vpack.c.b16 %v1723, %v1722
        %v1808 = vpack.c.b16 %v1725, %v1724
        %v1809 = vpack.c.b16 %v1727, %v1726
        %v1810 = vpack.c.b16 %v1729, %v1728
        %v1811 = vpack.c.b16 %v1731, %v1730
        %v1812 = vpack.c.b16 %v1733, %v1732
        %v1813 = vpack.c.b16 %v1735, %v1734
        %v1814 = vpack.c.b16 %v1737, %v1736
        %v1815 = vpack.c.b16 %v1739, %v1738
        %v1816 = vpack.c.b16 %v1741, %v1740
        %v1817 = vpack.c.b16 %v1743, %v1742
        %v1818 = vpack.c.b16 %v1745, %v1744
        %v1819 = vpack.c.b16 %v1747, %v1746
        %1892 = vmatprep.subr.bf16.mxu0 0
        %1893 = vmatpush1.bf16.msra.mxu0 %v1748
        %1894 = vmatprep.subr.bf16.mxu0 0
        %1895 = vmatpush1.bf16.msra.mxu0 %v1749
        %1896 = vmatprep.subr.bf16.mxu0 0
        %1897 = vmatpush1.bf16.msra.mxu0 %v1750
        %1898 = vmatprep.subr.bf16.mxu0 0
        %1899 = vmatpush1.bf16.msra.mxu0 %v1751
        %1900 = vmatprep.subr.bf16.mxu0 0
        %1901 = vmatpush1.bf16.msra.mxu0 %v1752
        %1902 = vmatprep.subr.bf16.mxu0 0
        %1903 = vmatpush1.bf16.msra.mxu0 %v1753
        %1904 = vmatprep.subr.bf16.mxu0 0
        %1905 = vmatpush1.bf16.msra.mxu0 %v1754
        %1906 = vmatprep.subr.bf16.mxu0 0
        %1907 = vmatpush1.bf16.msra.mxu0 %v1755
        %1908 = vmatprep.subr.bf16.mxu0 0
        %1909 = vmatpush1.bf16.msra.mxu0 %v1756
        %1910 = vmatprep.subr.bf16.mxu0 0
        %1911 = vmatpush1.bf16.msra.mxu0 %v1757
        %1912 = vmatprep.subr.bf16.mxu0 0
        %1913 = vmatpush1.bf16.msra.mxu0 %v1758
        %1914 = vmatprep.subr.bf16.mxu0 0
        %1915 = vmatpush1.bf16.msra.mxu0 %v1759
        %1916 = vmatprep.subr.bf16.mxu0 0
        %1917 = vmatpush1.bf16.msra.mxu0 %v1760
        %1918 = vmatprep.subr.bf16.mxu0 0
        %1919 = vmatpush1.bf16.msra.mxu0 %v1761
        %1920 = vmatprep.subr.bf16.mxu0 0
        %1921 = vmatpush1.bf16.msra.mxu0 %v1762
        %1922 = vmatprep.subr.bf16.mxu0 0
        %1923 = vmatpush1.bf16.msra.mxu0 %v1763
        %1924 = vmatprep.mubr.bf16.mxu0 %v754
        %1925 = vmatmul.mubr.bf16.gmra.mrb[0].mxu0 %v703
        %v1926 = vpop.f32.mrb[0].mxu0
        %v1927 = vadd.f32 %v1458, %v1926
        %v1928 = vpop.f32.mrb[0].mxu0
        %v1929 = vpop.f32.mrb[0].mxu0
        %v1930 = vadd.f32 %v1458, %v1929
        %v1931 = vpop.f32.mrb[0].mxu0
        %1932 = vmatprep.mubr.bf16.mxu0 %v762
        %1933 = vmatmul.mubr.bf16.gmra.mrb[0].mxu0 %v704
        %v1934 = vpop.f32.mrb[0].mxu0
        %v1935 = vadd.f32 %v1458, %v1934
        %v1936 = vpop.f32.mrb[0].mxu0
        %v1937 = vpop.f32.mrb[0].mxu0
        %v1938 = vadd.f32 %v1458, %v1937
        %v1939 = vpop.f32.mrb[0].mxu0
        %1940 = vmatprep.mubr.bf16.mxu0 %v770
        %1941 = vmatmul.mubr.bf16.gmra.mrb[0].mxu0 %v705
        %v1942 = vpop.f32.mrb[0].mxu0
        %v1943 = vadd.f32 %v1458, %v1942
        %v1944 = vpop.f32.mrb[0].mxu0
        %v1945 = vpop.f32.mrb[0].mxu0
        %v1946 = vadd.f32 %v1458, %v1945
        %v1947 = vpop.f32.mrb[0].mxu0
        %1948 = vmatprep.mubr.bf16.mxu0 %v778
        %1949 = vmatmul.mubr.bf16.gmra.mrb[0].mxu0 %v706
        %v1950 = vpop.f32.mrb[0].mxu0
        %v1951 = vadd.f32 %v1458, %v1950
        %v1952 = vpop.f32.mrb[0].mxu0
        %v1953 = vpop.f32.mrb[0].mxu0
        %v1954 = vadd.f32 %v1458, %v1953
        %v1955 = vpop.f32.mrb[0].mxu0
        %1956 = vmatprep.mubr.bf16.mxu0 %v786
        %1957 = vmatmul.mubr.bf16.gmra.mrb[0].mxu0 %v707
        %v1958 = vpop.f32.mrb[0].mxu0
        %v1959 = vadd.f32 %v1458, %v1958
        %v1960 = vpop.f32.mrb[0].mxu0
        %v1961 = vpop.f32.mrb[0].mxu0
        %v1962 = vadd.f32 %v1458, %v1961
        %v1963 = vpop.f32.mrb[0].mxu0
        %1964 = vmatprep.mubr.bf16.mxu0 %v794
        %1965 = vmatmul.mubr.bf16.gmra.mrb[0].mxu0 %v708
        %v1966 = vpop.f32.mrb[0].mxu0
        %v1967 = vadd.f32 %v1458, %v1966
        %v1968 = vpop.f32.mrb[0].mxu0
        %v1969 = vpop.f32.mrb[0].mxu0
        %v1970 = vadd.f32 %v1458, %v1969
        %v1971 = vpop.f32.mrb[0].mxu0
        %1972 = vmatprep.mubr.bf16.mxu0 %v802
        %1973 = vmatmul.mubr.bf16.gmra.mrb[0].mxu0 %v709
        %v1974 = vpop.f32.mrb[0].mxu0
        %v1975 = vadd.f32 %v1458, %v1974
        %v1976 = vpop.f32.mrb[0].mxu0
        %v1977 = vpop.f32.mrb[0].mxu0
        %v1978 = vadd.f32 %v1458, %v1977
        %v1979 = vpop.f32.mrb[0].mxu0
        %1980 = vmatprep.mubr.bf16.mxu0 %v810
        %1981 = vmatmul.mubr.bf16.gmra.mrb[0].mxu0 %v710
        %v1982 = vpop.f32.mrb[0].mxu0
        %v1983 = vadd.f32 %v1458, %v1982
        %v1984 = vpop.f32.mrb[0].mxu0
        %v1985 = vpop.f32.mrb[0].mxu0
        %v1986 = vadd.f32 %v1458, %v1985
        %v1987 = vpop.f32.mrb[0].mxu0
        %1988 = vmatprep.mubr.bf16.mxu0 %v818
        %1989 = vmatmul.mubr.bf16.gmra.mrb[0].mxu0 %v711
        %v1990 = vpop.f32.mrb[0].mxu0
        %v1991 = vadd.f32 %v1458, %v1990
        %v1992 = vpop.f32.mrb[0].mxu0
        %v1993 = vpop.f32.mrb[0].mxu0
        %v1994 = vadd.f32 %v1458, %v1993
        %v1995 = vpop.f32.mrb[0].mxu0
        %1996 = vmatprep.mubr.bf16.mxu0 %v826
        %1997 = vmatmul.mubr.bf16.gmra.mrb[0].mxu0 %v712
        %v1998 = vpop.f32.mrb[0].mxu0
        %v1999 = vadd.f32 %v1458, %v1998
        %v2000 = vpop.f32.mrb[0].mxu0
        %v2001 = vpop.f32.mrb[0].mxu0
        %v2002 = vadd.f32 %v1458, %v2001
        %v2003 = vpop.f32.mrb[0].mxu0
        %2004 = vmatprep.mubr.bf16.mxu0 %v834
        %2005 = vmatmul.mubr.bf16.gmra.mrb[0].mxu0 %v713
        %v2006 = vpop.f32.mrb[0].mxu0
        %v2007 = vadd.f32 %v1458, %v2006
        %v2008 = vpop.f32.mrb[0].mxu0
        %v2009 = vpop.f32.mrb[0].mxu0
        %v2010 = vadd.f32 %v1458, %v2009
        %v2011 = vpop.f32.mrb[0].mxu0
        %2012 = vmatprep.mubr.bf16.mxu0 %v842
        %2013 = vmatmul.mubr.bf16.gmra.mrb[0].mxu0 %v714
        %v2014 = vpop.f32.mrb[0].mxu0
        %v2015 = vadd.f32 %v1458, %v2014
        %v2016 = vpop.f32.mrb[0].mxu0
        %v2017 = vpop.f32.mrb[0].mxu0
        %v2018 = vadd.f32 %v1458, %v2017
        %v2019 = vpop.f32.mrb[0].mxu0
        %2020 = vmatprep.mubr.bf16.mxu0 %v850
        %2021 = vmatmul.mubr.bf16.gmra.mrb[0].mxu0 %v715
        %v2022 = vpop.f32.mrb[0].mxu0
        %v2023 = vadd.f32 %v1458, %v2022
        %v2024 = vpop.f32.mrb[0].mxu0
        %v2025 = vpop.f32.mrb[0].mxu0
        %v2026 = vadd.f32 %v1458, %v2025
        %v2027 = vpop.f32.mrb[0].mxu0
        %2028 = vmatprep.mubr.bf16.mxu0 %v858
        %2029 = vmatmul.mubr.bf16.gmra.mrb[0].mxu0 %v716
        %v2030 = vpop.f32.mrb[0].mxu0
        %v2031 = vadd.f32 %v1458, %v2030
        %v2032 = vpop.f32.mrb[0].mxu0
        %v2033 = vpop.f32.mrb[0].mxu0
        %v2034 = vadd.f32 %v1458, %v2033
        %v2035 = vpop.f32.mrb[0].mxu0
        %2036 = vmatprep.mubr.bf16.mxu0 %v866
        %2037 = vmatmul.mubr.bf16.gmra.mrb[0].mxu0 %v717
        %v2038 = vpop.f32.mrb[0].mxu0
        %v2039 = vadd.f32 %v1458, %v2038
        %v2040 = vpop.f32.mrb[0].mxu0
        %v2041 = vpop.f32.mrb[0].mxu0
        %v2042 = vadd.f32 %v1458, %v2041
        %v2043 = vpop.f32.mrb[0].mxu0
        %2044 = vmatprep.mubr.bf16.mxu0 %v874
        %2045 = vmatmul.mubr.bf16.gmra.mrb[0].mxu0 %v718
        %v2046 = vpop.f32.mrb[0].mxu0
        %v2047 = vadd.f32 %v1458, %v2046
        %v2048 = vpop.f32.mrb[0].mxu0
        %v2049 = vpop.f32.mrb[0].mxu0
        %v2050 = vadd.f32 %v1458, %v2049
        %v2051 = vpop.f32.mrb[0].mxu0
        %2052 = vmatprep.mubr.bf16.mxu0 %v882
        %2053 = vmatmul.mubr.bf16.gmra.mrb[0].mxu0 %v719
        %v2054 = vpop.f32.mrb[0].mxu0
        %v2055 = vadd.f32 %v1458, %v2054
        %v2056 = vpop.f32.mrb[0].mxu0
        %v2057 = vpop.f32.mrb[0].mxu0
        %v2058 = vadd.f32 %v1458, %v2057
        %v2059 = vpop.f32.mrb[0].mxu0
        %2060 = vmatprep.mubr.bf16.mxu0 %v890
        %2061 = vmatmul.mubr.bf16.gmra.mrb[0].mxu0 %v720
        %v2062 = vpop.f32.mrb[0].mxu0
        %v2063 = vadd.f32 %v1458, %v2062
        %v2064 = vpop.f32.mrb[0].mxu0
        %v2065 = vpop.f32.mrb[0].mxu0
        %v2066 = vadd.f32 %v1458, %v2065
        %v2067 = vpop.f32.mrb[0].mxu0
        %2068 = vdwg.mxu0
        %2069 = vmatprep.subr.bf16.mxu0 0
        %2070 = vmatpush1.bf16.msra.mxu0 %v1764
        %2071 = vmatprep.subr.bf16.mxu0 0
        %2072 = vmatpush1.bf16.msra.mxu0 %v1765
        %2073 = vmatprep.subr.bf16.mxu0 0
        %2074 = vmatpush1.bf16.msra.mxu0 %v1766
        %2075 = vmatprep.subr.bf16.mxu0 0
        %2076 = vmatpush1.bf16.msra.mxu0 %v1767
        %2077 = vmatprep.subr.bf16.mxu0 0
        %2078 = vmatpush1.bf16.msra.mxu0 %v1768
        %2079 = vmatprep.subr.bf16.mxu0 0
        %2080 = vmatpush1.bf16.msra.mxu0 %v1769
        %2081 = vmatprep.subr.bf16.mxu0 0
        %2082 = vmatpush1.bf16.msra.mxu0 %v1770
        %2083 = vmatprep.subr.bf16.mxu0 0
        %2084 = vmatpush1.bf16.msra.mxu0 %v1771
        %2085 = vmatprep.subr.bf16.mxu0 0
        %2086 = vmatpush1.bf16.msra.mxu0 %v1772
        %2087 = vmatprep.subr.bf16.mxu0 0
        %2088 = vmatpush1.bf16.msra.mxu0 %v1773
        %2089 = vmatprep.subr.bf16.mxu0 0
        %2090 = vmatpush1.bf16.msra.mxu0 %v1774
        %2091 = vmatprep.subr.bf16.mxu0 0
        %2092 = vmatpush1.bf16.msra.mxu0 %v1775
        %2093 = vmatprep.subr.bf16.mxu0 0
        %2094 = vmatpush1.bf16.msra.mxu0 %v1776
        %2095 = vmatprep.subr.bf16.mxu0 0
        %2096 = vmatpush1.bf16.msra.mxu0 %v1777
        %2097 = vmatprep.subr.bf16.mxu0 0
        %2098 = vmatpush1.bf16.msra.mxu0 %v1778
        %2099 = vmatprep.subr.bf16.mxu0 0
        %2100 = vmatpush1.bf16.msra.mxu0 %v1779
        %2101 = vmatprep.mubr.bf16.mxu0 %v914
        %2102 = vmatmul.mubr.bf16.gmra.mrb[0].mxu0 %v912
        %v2103 = vpop.f32.mrb[0].mxu0
        %v2104 = vadd.f32 %v1927, %v2103
        %v2105 = vpop.f32.mrb[0].mxu0
        %v2106 = vpop.f32.mrb[0].mxu0
        %v2107 = vadd.f32 %v1930, %v2106
        %v2108 = vpop.f32.mrb[0].mxu0
        %2109 = vmatprep.mubr.bf16.mxu0 %v916
        %2110 = vmatmul.mubr.bf16.gmra.mrb[0].mxu0 %v914
        %v2111 = vpop.f32.mrb[0].mxu0
        %v2112 = vadd.f32 %v1935, %v2111
        %v2113 = vpop.f32.mrb[0].mxu0
        %v2114 = vpop.f32.mrb[0].mxu0
        %v2115 = vadd.f32 %v1938, %v2114
        %v2116 = vpop.f32.mrb[0].mxu0
        %2117 = vmatprep.mubr.bf16.mxu0 %v918
        %2118 = vmatmul.mubr.bf16.gmra.mrb[0].mxu0 %v916
        %v2119 = vpop.f32.mrb[0].mxu0
        %v2120 = vadd.f32 %v1943, %v2119
        %v2121 = vpop.f32.mrb[0].mxu0
        %v2122 = vpop.f32.mrb[0].mxu0
        %v2123 = vadd.f32 %v1946, %v2122
        %v2124 = vpop.f32.mrb[0].mxu0
        %2125 = vmatprep.mubr.bf16.mxu0 %v920
        %2126 = vmatmul.mubr.bf16.gmra.mrb[0].mxu0 %v918
        %v2127 = vpop.f32.mrb[0].mxu0
        %v2128 = vadd.f32 %v1951, %v2127
        %v2129 = vpop.f32.mrb[0].mxu0
        %v2130 = vpop.f32.mrb[0].mxu0
        %v2131 = vadd.f32 %v1954, %v2130
        %v2132 = vpop.f32.mrb[0].mxu0
        %2133 = vmatprep.mubr.bf16.mxu0 %v922
        %2134 = vmatmul.mubr.bf16.gmra.mrb[0].mxu0 %v920
        %v2135 = vpop.f32.mrb[0].mxu0
        %v2136 = vadd.f32 %v1959, %v2135
        %v2137 = vpop.f32.mrb[0].mxu0
        %v2138 = vpop.f32.mrb[0].mxu0
        %v2139 = vadd.f32 %v1962, %v2138
        %v2140 = vpop.f32.mrb[0].mxu0
        %2141 = vmatprep.mubr.bf16.mxu0 %v924
        %2142 = vmatmul.mubr.bf16.gmra.mrb[0].mxu0 %v922
        %v2143 = vpop.f32.mrb[0].mxu0
        %v2144 = vadd.f32 %v1967, %v2143
        %v2145 = vpop.f32.mrb[0].mxu0
        %v2146 = vpop.f32.mrb[0].mxu0
        %v2147 = vadd.f32 %v1970, %v2146
        %v2148 = vpop.f32.mrb[0].mxu0
        %2149 = vmatprep.mubr.bf16.mxu0 %v926
        %2150 = vmatmul.mubr.bf16.gmra.mrb[0].mxu0 %v924
        %v2151 = vpop.f32.mrb[0].mxu0
        %v2152 = vadd.f32 %v1975, %v2151
        %v2153 = vpop.f32.mrb[0].mxu0
        %v2154 = vpop.f32.mrb[0].mxu0
        %v2155 = vadd.f32 %v1978, %v2154
        %v2156 = vpop.f32.mrb[0].mxu0
        %2157 = vmatprep.mubr.bf16.mxu0 %v928
        %2158 = vmatmul.mubr.bf16.gmra.mrb[0].mxu0 %v926
        %v2159 = vpop.f32.mrb[0].mxu0
        %v2160 = vadd.f32 %v1983, %v2159
        %v2161 = vpop.f32.mrb[0].mxu0
        %v2162 = vpop.f32.mrb[0].mxu0
        %v2163 = vadd.f32 %v1986, %v2162
        %v2164 = vpop.f32.mrb[0].mxu0
        %2165 = vmatprep.mubr.bf16.mxu0 %v930
        %2166 = vmatmul.mubr.bf16.gmra.mrb[0].mxu0 %v928
        %v2167 = vpop.f32.mrb[0].mxu0
        %v2168 = vadd.f32 %v1991, %v2167
        %v2169 = vpop.f32.mrb[0].mxu0
        %v2170 = vpop.f32.mrb[0].mxu0
        %v2171 = vadd.f32 %v1994, %v2170
        %v2172 = vpop.f32.mrb[0].mxu0
        %2173 = vmatprep.mubr.bf16.mxu0 %v932
        %2174 = vmatmul.mubr.bf16.gmra.mrb[0].mxu0 %v930
        %v2175 = vpop.f32.mrb[0].mxu0
        %v2176 = vadd.f32 %v1999, %v2175
        %v2177 = vpop.f32.mrb[0].mxu0
        %v2178 = vpop.f32.mrb[0].mxu0
        %v2179 = vadd.f32 %v2002, %v2178
        %v2180 = vpop.f32.mrb[0].mxu0
        %2181 = vmatprep.mubr.bf16.mxu0 %v934
        %2182 = vmatmul.mubr.bf16.gmra.mrb[0].mxu0 %v932
        %v2183 = vpop.f32.mrb[0].mxu0
        %v2184 = vadd.f32 %v2007, %v2183
        %v2185 = vpop.f32.mrb[0].mxu0
        %v2186 = vpop.f32.mrb[0].mxu0
        %v2187 = vadd.f32 %v2010, %v2186
        %v2188 = vpop.f32.mrb[0].mxu0
        %2189 = vmatprep.mubr.bf16.mxu0 %v936
        %2190 = vmatmul.mubr.bf16.gmra.mrb[0].mxu0 %v934
        %v2191 = vpop.f32.mrb[0].mxu0
        %v2192 = vadd.f32 %v2015, %v2191
        %v2193 = vpop.f32.mrb[0].mxu0
        %v2194 = vpop.f32.mrb[0].mxu0
        %v2195 = vadd.f32 %v2018, %v2194
        %v2196 = vpop.f32.mrb[0].mxu0
        %2197 = vmatprep.mubr.bf16.mxu0 %v938
        %2198 = vmatmul.mubr.bf16.gmra.mrb[0].mxu0 %v936
        %v2199 = vpop.f32.mrb[0].mxu0
        %v2200 = vadd.f32 %v2023, %v2199
        %v2201 = vpop.f32.mrb[0].mxu0
        %v2202 = vpop.f32.mrb[0].mxu0
        %v2203 = vadd.f32 %v2026, %v2202
        %v2204 = vpop.f32.mrb[0].mxu0
        %2205 = vmatprep.mubr.bf16.mxu0 %v940
        %2206 = vmatmul.mubr.bf16.gmra.mrb[0].mxu0 %v938
        %v2207 = vpop.f32.mrb[0].mxu0
        %v2208 = vadd.f32 %v2031, %v2207
        %v2209 = vpop.f32.mrb[0].mxu0
        %v2210 = vpop.f32.mrb[0].mxu0
        %v2211 = vadd.f32 %v2034, %v2210
        %v2212 = vpop.f32.mrb[0].mxu0
        %2213 = vmatprep.mubr.bf16.mxu0 %v942
        %2214 = vmatmul.mubr.bf16.gmra.mrb[0].mxu0 %v940
        %v2215 = vpop.f32.mrb[0].mxu0
        %v2216 = vadd.f32 %v2039, %v2215
        %v2217 = vpop.f32.mrb[0].mxu0
        %v2218 = vpop.f32.mrb[0].mxu0
        %v2219 = vadd.f32 %v2042, %v2218
        %v2220 = vpop.f32.mrb[0].mxu0
        %2221 = vmatprep.mubr.bf16.mxu0 %v944
        %2222 = vmatmul.mubr.bf16.gmra.mrb[0].mxu0 %v942
        %v2223 = vpop.f32.mrb[0].mxu0
        %v2224 = vadd.f32 %v2047, %v2223
        %v2225 = vpop.f32.mrb[0].mxu0
        %v2226 = vpop.f32.mrb[0].mxu0
        %v2227 = vadd.f32 %v2050, %v2226
        %v2228 = vpop.f32.mrb[0].mxu0
        %2229 = vmatprep.mubr.bf16.mxu0 %v972
        %2230 = vmatmul.mubr.bf16.gmra.mrb[0].mxu0 %v944
        %v2231 = vpop.f32.mrb[0].mxu0
        %v2232 = vadd.f32 %v2055, %v2231
        %v2233 = vpop.f32.mrb[0].mxu0
        %v2234 = vpop.f32.mrb[0].mxu0
        %v2235 = vadd.f32 %v2058, %v2234
        %v2236 = vpop.f32.mrb[0].mxu0
        %2237 = vmatprep.mubr.bf16.mxu0 %v974
        %2238 = vmatmul.mubr.bf16.gmra.mrb[0].mxu0 %v946
        %v2239 = vpop.f32.mrb[0].mxu0
        %v2240 = vadd.f32 %v2063, %v2239
        %v2241 = vpop.f32.mrb[0].mxu0
        %v2242 = vpop.f32.mrb[0].mxu0
        %v2243 = vadd.f32 %v2066, %v2242
        %v2244 = vpop.f32.mrb[0].mxu0
        %2245 = vdwg.mxu0
        %2246 = vmatprep.subr.bf16.mxu0 0
        %2247 = vmatpush1.bf16.msra.mxu0 %v1780
        %2248 = vmatprep.subr.bf16.mxu0 0
        %2249 = vmatpush1.bf16.msra.mxu0 %v1781
        %2250 = vmatprep.subr.bf16.mxu0 0
        %2251 = vmatpush1.bf16.msra.mxu0 %v1782
        %2252 = vmatprep.subr.bf16.mxu0 0
        %2253 = vmatpush1.bf16.msra.mxu0 %v1783
        %2254 = vmatprep.subr.bf16.mxu0 0
        %2255 = vmatpush1.bf16.msra.mxu0 %v1784
        %2256 = vmatprep.subr.bf16.mxu0 0
        %2257 = vmatpush1.bf16.msra.mxu0 %v1785
        %2258 = vmatprep.subr.bf16.mxu0 0
        %2259 = vmatpush1.bf16.msra.mxu0 %v1786
        %2260 = vmatprep.subr.bf16.mxu0 0
        %2261 = vmatpush1.bf16.msra.mxu0 %v1787
        %2262 = vmatprep.subr.bf16.mxu0 0
        %2263 = vmatpush1.bf16.msra.mxu0 %v1788
        %2264 = vmatprep.subr.bf16.mxu0 0
        %2265 = vmatpush1.bf16.msra.mxu0 %v1789
        %2266 = vmatprep.subr.bf16.mxu0 0
        %2267 = vmatpush1.bf16.msra.mxu0 %v1790
        %2268 = vmatprep.subr.bf16.mxu0 0
        %2269 = vmatpush1.bf16.msra.mxu0 %v1791
        %2270 = vmatprep.subr.bf16.mxu0 0
        %2271 = vmatpush1.bf16.msra.mxu0 %v1792
        %2272 = vmatprep.subr.bf16.mxu0 0
        %2273 = vmatpush1.bf16.msra.mxu0 %v1793
        %2274 = vmatprep.subr.bf16.mxu0 0
        %2275 = vmatpush1.bf16.msra.mxu0 %v1794
        %2276 = vmatprep.subr.bf16.mxu0 0
        %2277 = vmatpush1.bf16.msra.mxu0 %v1795
        %2278 = vmatprep.mubr.bf16.mxu0 %v1084
        %2279 = vmatmul.mubr.bf16.gmra.mrb[0].mxu0 %v984
        %v2280 = vpop.f32.mrb[0].mxu0
        %v2281 = vadd.f32 %v2104, %v2280
        %v2282 = vpop.f32.mrb[0].mxu0
        %v2283 = vpop.f32.mrb[0].mxu0
        %v2284 = vadd.f32 %v2107, %v2283
        %v2285 = vpop.f32.mrb[0].mxu0
        %2286 = vmatprep.mubr.bf16.mxu0 %v1086
        %2287 = vmatmul.mubr.bf16.gmra.mrb[0].mxu0 %v988
        %v2288 = vpop.f32.mrb[0].mxu0
        %v2289 = vadd.f32 %v2112, %v2288
        %v2290 = vpop.f32.mrb[0].mxu0
        %v2291 = vpop.f32.mrb[0].mxu0
        %v2292 = vadd.f32 %v2115, %v2291
        %v2293 = vpop.f32.mrb[0].mxu0
        %2294 = vmatprep.mubr.bf16.mxu0 %v1088
        %2295 = vmatmul.mubr.bf16.gmra.mrb[0].mxu0 %v992
        %v2296 = vpop.f32.mrb[0].mxu0
        %v2297 = vadd.f32 %v2120, %v2296
        %v2298 = vpop.f32.mrb[0].mxu0
        %v2299 = vpop.f32.mrb[0].mxu0
        %v2300 = vadd.f32 %v2123, %v2299
        %v2301 = vpop.f32.mrb[0].mxu0
        %2302 = vmatprep.mubr.bf16.mxu0 %v1090
        %2303 = vmatmul.mubr.bf16.gmra.mrb[0].mxu0 %v996
        %v2304 = vpop.f32.mrb[0].mxu0
        %v2305 = vadd.f32 %v2128, %v2304
        %v2306 = vpop.f32.mrb[0].mxu0
        %v2307 = vpop.f32.mrb[0].mxu0
        %v2308 = vadd.f32 %v2131, %v2307
        %v2309 = vpop.f32.mrb[0].mxu0
        %2310 = vmatprep.mubr.bf16.mxu0 %v1092
        %2311 = vmatmul.mubr.bf16.gmra.mrb[0].mxu0 %v1000
        %v2312 = vpop.f32.mrb[0].mxu0
        %v2313 = vadd.f32 %v2136, %v2312
        %v2314 = vpop.f32.mrb[0].mxu0
        %v2315 = vpop.f32.mrb[0].mxu0
        %v2316 = vadd.f32 %v2139, %v2315
        %v2317 = vpop.f32.mrb[0].mxu0
        %2318 = vmatprep.mubr.bf16.mxu0 %v1094
        %2319 = vmatmul.mubr.bf16.gmra.mrb[0].mxu0 %v1004
        %v2320 = vpop.f32.mrb[0].mxu0
        %v2321 = vadd.f32 %v2144, %v2320
        %v2322 = vpop.f32.mrb[0].mxu0
        %v2323 = vpop.f32.mrb[0].mxu0
        %v2324 = vadd.f32 %v2147, %v2323
        %v2325 = vpop.f32.mrb[0].mxu0
        %2326 = vmatprep.mubr.bf16.mxu0 %v1096
        %2327 = vmatmul.mubr.bf16.gmra.mrb[0].mxu0 %v1008
        %v2328 = vpop.f32.mrb[0].mxu0
        %v2329 = vadd.f32 %v2152, %v2328
        %v2330 = vpop.f32.mrb[0].mxu0
        %v2331 = vpop.f32.mrb[0].mxu0
        %v2332 = vadd.f32 %v2155, %v2331
        %v2333 = vpop.f32.mrb[0].mxu0
        %2334 = vmatprep.mubr.bf16.mxu0 %v1098
        %2335 = vmatmul.mubr.bf16.gmra.mrb[0].mxu0 %v1012
        %v2336 = vpop.f32.mrb[0].mxu0
        %v2337 = vadd.f32 %v2160, %v2336
        %v2338 = vpop.f32.mrb[0].mxu0
        %v2339 = vpop.f32.mrb[0].mxu0
        %v2340 = vadd.f32 %v2163, %v2339
        %v2341 = vpop.f32.mrb[0].mxu0
        %2342 = vmatprep.mubr.bf16.mxu0 %v1100
        %2343 = vmatmul.mubr.bf16.gmra.mrb[0].mxu0 %v1016
        %v2344 = vpop.f32.mrb[0].mxu0
        %v2345 = vadd.f32 %v2168, %v2344
        %v2346 = vpop.f32.mrb[0].mxu0
        %v2347 = vpop.f32.mrb[0].mxu0
        %v2348 = vadd.f32 %v2171, %v2347
        %v2349 = vpop.f32.mrb[0].mxu0
        %2350 = vmatprep.mubr.bf16.mxu0 %v1102
        %2351 = vmatmul.mubr.bf16.gmra.mrb[0].mxu0 %v1020
        %v2352 = vpop.f32.mrb[0].mxu0
        %v2353 = vadd.f32 %v2176, %v2352
        %v2354 = vpop.f32.mrb[0].mxu0
        %v2355 = vpop.f32.mrb[0].mxu0
        %v2356 = vadd.f32 %v2179, %v2355
        %v2357 = vpop.f32.mrb[0].mxu0
        %2358 = vmatprep.mubr.bf16.mxu0 %v1104
        %2359 = vmatmul.mubr.bf16.gmra.mrb[0].mxu0 %v1024
        %v2360 = vpop.f32.mrb[0].mxu0
        %v2361 = vadd.f32 %v2184, %v2360
        %v2362 = vpop.f32.mrb[0].mxu0
        %v2363 = vpop.f32.mrb[0].mxu0
        %v2364 = vadd.f32 %v2187, %v2363
        %v2365 = vpop.f32.mrb[0].mxu0
        %2366 = vmatprep.mubr.bf16.mxu0 %v1106
        %2367 = vmatmul.mubr.bf16.gmra.mrb[0].mxu0 %v1028
        %v2368 = vpop.f32.mrb[0].mxu0
        %v2369 = vadd.f32 %v2192, %v2368
        %v2370 = vpop.f32.mrb[0].mxu0
        %v2371 = vpop.f32.mrb[0].mxu0
        %v2372 = vadd.f32 %v2195, %v2371
        %v2373 = vpop.f32.mrb[0].mxu0
        %2374 = vmatprep.mubr.bf16.mxu0 %v1108
        %2375 = vmatmul.mubr.bf16.gmra.mrb[0].mxu0 %v1032
        %v2376 = vpop.f32.mrb[0].mxu0
        %v2377 = vadd.f32 %v2200, %v2376
        %v2378 = vpop.f32.mrb[0].mxu0
        %v2379 = vpop.f32.mrb[0].mxu0
        %v2380 = vadd.f32 %v2203, %v2379
        %v2381 = vpop.f32.mrb[0].mxu0
        %2382 = vmatprep.mubr.bf16.mxu0 %v1110
        %2383 = vmatmul.mubr.bf16.gmra.mrb[0].mxu0 %v1036
        %v2384 = vpop.f32.mrb[0].mxu0
        %v2385 = vadd.f32 %v2208, %v2384
        %v2386 = vpop.f32.mrb[0].mxu0
        %v2387 = vpop.f32.mrb[0].mxu0
        %v2388 = vadd.f32 %v2211, %v2387
        %v2389 = vpop.f32.mrb[0].mxu0
        %2390 = vmatprep.mubr.bf16.mxu0 %v1112
        %2391 = vmatmul.mubr.bf16.gmra.mrb[0].mxu0 %v1040
        %v2392 = vpop.f32.mrb[0].mxu0
        %v2393 = vadd.f32 %v2216, %v2392
        %v2394 = vpop.f32.mrb[0].mxu0
        %v2395 = vpop.f32.mrb[0].mxu0
        %v2396 = vadd.f32 %v2219, %v2395
        %v2397 = vpop.f32.mrb[0].mxu0
        %2398 = vmatprep.mubr.bf16.mxu0 %v1114
        %2399 = vmatmul.mubr.bf16.gmra.mrb[0].mxu0 %v1044
        %v2400 = vpop.f32.mrb[0].mxu0
        %v2401 = vadd.f32 %v2224, %v2400
        %v2402 = vpop.f32.mrb[0].mxu0
        %v2403 = vpop.f32.mrb[0].mxu0
        %v2404 = vadd.f32 %v2227, %v2403
        %v2405 = vpop.f32.mrb[0].mxu0
        %2406 = vmatprep.mubr.bf16.mxu0 %v1116
        %2407 = vmatmul.mubr.bf16.gmra.mrb[0].mxu0 %v1053
        %v2408 = vpop.f32.mrb[0].mxu0
        %v2409 = vadd.f32 %v2232, %v2408
        %v2410 = vpop.f32.mrb[0].mxu0
        %v2411 = vpop.f32.mrb[0].mxu0
        %v2412 = vadd.f32 %v2235, %v2411
        %v2413 = vpop.f32.mrb[0].mxu0
        %2414 = vmatprep.mubr.bf16.mxu0 %v1118
        %2415 = vmatmul.mubr.bf16.gmra.mrb[0].mxu0 %v1062
        %v2416 = vpop.f32.mrb[0].mxu0
        %v2417 = vadd.f32 %v2240, %v2416
        %v2418 = vpop.f32.mrb[0].mxu0
        %v2419 = vpop.f32.mrb[0].mxu0
        %v2420 = vadd.f32 %v2243, %v2419
        %v2421 = vpop.f32.mrb[0].mxu0
        %2422 = vdwg.mxu0
        %2423 = vmatprep.subr.bf16.mxu0 0
        %2424 = vmatpush1.bf16.msra.mxu0 %v1796
        %2425 = vmatprep.subr.bf16.mxu0 0
        %2426 = vmatpush1.bf16.msra.mxu0 %v1797
        %2427 = vmatprep.subr.bf16.mxu0 0
        %2428 = vmatpush1.bf16.msra.mxu0 %v1798
        %2429 = vmatprep.subr.bf16.mxu0 0
        %2430 = vmatpush1.bf16.msra.mxu0 %v1799
        %2431 = vmatprep.subr.bf16.mxu0 0
        %2432 = vmatpush1.bf16.msra.mxu0 %v1800
        %2433 = vmatprep.subr.bf16.mxu0 0
        %2434 = vmatpush1.bf16.msra.mxu0 %v1801
        %2435 = vmatprep.subr.bf16.mxu0 0
        %2436 = vmatpush1.bf16.msra.mxu0 %v1802
        %2437 = vmatprep.subr.bf16.mxu0 0
        %2438 = vmatpush1.bf16.msra.mxu0 %v1803
        %2439 = vmatprep.subr.bf16.mxu0 0
        %2440 = vmatpush1.bf16.msra.mxu0 %v1804
        %2441 = vmatprep.subr.bf16.mxu0 0
        %2442 = vmatpush1.bf16.msra.mxu0 %v1805
        %2443 = vmatprep.subr.bf16.mxu0 0
        %2444 = vmatpush1.bf16.msra.mxu0 %v1806
        %2445 = vmatprep.subr.bf16.mxu0 0
        %2446 = vmatpush1.bf16.msra.mxu0 %v1807
        %2447 = vmatprep.subr.bf16.mxu0 0
        %2448 = vmatpush1.bf16.msra.mxu0 %v1808
        %2449 = vmatprep.subr.bf16.mxu0 0
        %2450 = vmatpush1.bf16.msra.mxu0 %v1809
        %2451 = vmatprep.subr.bf16.mxu0 0
        %2452 = vmatpush1.bf16.msra.mxu0 %v1810
        %2453 = vmatprep.subr.bf16.mxu0 0
        %2454 = vmatpush1.bf16.msra.mxu0 %v1811
        %2455 = vmatprep.mubr.bf16.mxu0 %v1156
        %2456 = vmatmul.mubr.bf16.gmra.mrb[0].mxu0 %v1086
        %v2457 = vpop.f32.mrb[0].mxu0
        %v2458 = vadd.f32 %v2281, %v2457
        %v2459 = vpop.f32.mrb[0].mxu0
        %v2460 = vpop.f32.mrb[0].mxu0
        %v2461 = vadd.f32 %v2284, %v2460
        %v2462 = vpop.f32.mrb[0].mxu0
        %2463 = vmatprep.mubr.bf16.mxu0 %v1160
        %2464 = vmatmul.mubr.bf16.gmra.mrb[0].mxu0 %v1088
        %v2465 = vpop.f32.mrb[0].mxu0
        %v2466 = vadd.f32 %v2289, %v2465
        %v2467 = vpop.f32.mrb[0].mxu0
        %v2468 = vpop.f32.mrb[0].mxu0
        %v2469 = vadd.f32 %v2292, %v2468
        %v2470 = vpop.f32.mrb[0].mxu0
        %2471 = vmatprep.mubr.bf16.mxu0 %v1164
        %2472 = vmatmul.mubr.bf16.gmra.mrb[0].mxu0 %v1090
        %v2473 = vpop.f32.mrb[0].mxu0
        %v2474 = vadd.f32 %v2297, %v2473
        %v2475 = vpop.f32.mrb[0].mxu0
        %v2476 = vpop.f32.mrb[0].mxu0
        %v2477 = vadd.f32 %v2300, %v2476
        %v2478 = vpop.f32.mrb[0].mxu0
        %2479 = vmatprep.mubr.bf16.mxu0 %v1168
        %2480 = vmatmul.mubr.bf16.gmra.mrb[0].mxu0 %v1092
        %v2481 = vpop.f32.mrb[0].mxu0
        %v2482 = vadd.f32 %v2305, %v2481
        %v2483 = vpop.f32.mrb[0].mxu0
        %v2484 = vpop.f32.mrb[0].mxu0
        %v2485 = vadd.f32 %v2308, %v2484
        %v2486 = vpop.f32.mrb[0].mxu0
        %2487 = vmatprep.mubr.bf16.mxu0 %v1172
        %2488 = vmatmul.mubr.bf16.gmra.mrb[0].mxu0 %v1094
        %v2489 = vpop.f32.mrb[0].mxu0
        %v2490 = vadd.f32 %v2313, %v2489
        %v2491 = vpop.f32.mrb[0].mxu0
        %v2492 = vpop.f32.mrb[0].mxu0
        %v2493 = vadd.f32 %v2316, %v2492
        %v2494 = vpop.f32.mrb[0].mxu0
        %2495 = vmatprep.mubr.bf16.mxu0 %v1176
        %2496 = vmatmul.mubr.bf16.gmra.mrb[0].mxu0 %v1096
        %v2497 = vpop.f32.mrb[0].mxu0
        %v2498 = vadd.f32 %v2321, %v2497
        %v2499 = vpop.f32.mrb[0].mxu0
        %v2500 = vpop.f32.mrb[0].mxu0
        %v2501 = vadd.f32 %v2324, %v2500
        %v2502 = vpop.f32.mrb[0].mxu0
        %2503 = vmatprep.mubr.bf16.mxu0 %v1180
        %2504 = vmatmul.mubr.bf16.gmra.mrb[0].mxu0 %v1098
        %v2505 = vpop.f32.mrb[0].mxu0
        %v2506 = vadd.f32 %v2329, %v2505
        %v2507 = vpop.f32.mrb[0].mxu0
        %v2508 = vpop.f32.mrb[0].mxu0
        %v2509 = vadd.f32 %v2332, %v2508
        %v2510 = vpop.f32.mrb[0].mxu0
        %2511 = vmatprep.mubr.bf16.mxu0 %v1184
        %2512 = vmatmul.mubr.bf16.gmra.mrb[0].mxu0 %v1100
        %v2513 = vpop.f32.mrb[0].mxu0
        %v2514 = vadd.f32 %v2337, %v2513
        %v2515 = vpop.f32.mrb[0].mxu0
        %v2516 = vpop.f32.mrb[0].mxu0
        %v2517 = vadd.f32 %v2340, %v2516
        %v2518 = vpop.f32.mrb[0].mxu0
        %2519 = vmatprep.mubr.bf16.mxu0 %v1188
        %2520 = vmatmul.mubr.bf16.gmra.mrb[0].mxu0 %v1102
        %v2521 = vpop.f32.mrb[0].mxu0
        %v2522 = vadd.f32 %v2345, %v2521
        %v2523 = vpop.f32.mrb[0].mxu0
        %v2524 = vpop.f32.mrb[0].mxu0
        %v2525 = vadd.f32 %v2348, %v2524
        %v2526 = vpop.f32.mrb[0].mxu0
        %2527 = vmatprep.mubr.bf16.mxu0 %v1192
        %2528 = vmatmul.mubr.bf16.gmra.mrb[0].mxu0 %v1104
        %v2529 = vpop.f32.mrb[0].mxu0
        %v2530 = vadd.f32 %v2353, %v2529
        %v2531 = vpop.f32.mrb[0].mxu0
        %v2532 = vpop.f32.mrb[0].mxu0
        %v2533 = vadd.f32 %v2356, %v2532
        %v2534 = vpop.f32.mrb[0].mxu0
        %2535 = vmatprep.mubr.bf16.mxu0 %v1196
        %2536 = vmatmul.mubr.bf16.gmra.mrb[0].mxu0 %v1106
        %v2537 = vpop.f32.mrb[0].mxu0
        %v2538 = vadd.f32 %v2361, %v2537
        %v2539 = vpop.f32.mrb[0].mxu0
        %v2540 = vpop.f32.mrb[0].mxu0
        %v2541 = vadd.f32 %v2364, %v2540
        %v2542 = vpop.f32.mrb[0].mxu0
        %2543 = vmatprep.mubr.bf16.mxu0 %v1200
        %2544 = vmatmul.mubr.bf16.gmra.mrb[0].mxu0 %v1108
        %v2545 = vpop.f32.mrb[0].mxu0
        %v2546 = vadd.f32 %v2369, %v2545
        %v2547 = vpop.f32.mrb[0].mxu0
        %v2548 = vpop.f32.mrb[0].mxu0
        %v2549 = vadd.f32 %v2372, %v2548
        %v2550 = vpop.f32.mrb[0].mxu0
        %2551 = vmatprep.mubr.bf16.mxu0 %v1204
        %2552 = vmatmul.mubr.bf16.gmra.mrb[0].mxu0 %v1110
        %v2553 = vpop.f32.mrb[0].mxu0
        %v2554 = vadd.f32 %v2377, %v2553
        %v2555 = vpop.f32.mrb[0].mxu0
        %v2556 = vpop.f32.mrb[0].mxu0
        %v2557 = vadd.f32 %v2380, %v2556
        %v2558 = vpop.f32.mrb[0].mxu0
        %2559 = vmatprep.mubr.bf16.mxu0 %v1208
        %2560 = vmatmul.mubr.bf16.gmra.mrb[0].mxu0 %v1112
        %v2561 = vpop.f32.mrb[0].mxu0
        %v2562 = vadd.f32 %v2385, %v2561
        %v2563 = vpop.f32.mrb[0].mxu0
        %v2564 = vpop.f32.mrb[0].mxu0
        %v2565 = vadd.f32 %v2388, %v2564
        %v2566 = vpop.f32.mrb[0].mxu0
        %2567 = vmatprep.mubr.bf16.mxu0 %v1212
        %2568 = vmatmul.mubr.bf16.gmra.mrb[0].mxu0 %v1114
        %v2569 = vpop.f32.mrb[0].mxu0
        %v2570 = vadd.f32 %v2393, %v2569
        %v2571 = vpop.f32.mrb[0].mxu0
        %v2572 = vpop.f32.mrb[0].mxu0
        %v2573 = vadd.f32 %v2396, %v2572
        %v2574 = vpop.f32.mrb[0].mxu0
        %2575 = vmatprep.mubr.bf16.mxu0 %v1216
        %2576 = vmatmul.mubr.bf16.gmra.mrb[0].mxu0 %v1116
        %v2577 = vpop.f32.mrb[0].mxu0
        %v2578 = vadd.f32 %v2401, %v2577
        %v2579 = vpop.f32.mrb[0].mxu0
        %v2580 = vpop.f32.mrb[0].mxu0
        %v2581 = vadd.f32 %v2404, %v2580
        %v2582 = vpop.f32.mrb[0].mxu0
        %2583 = vmatprep.mubr.bf16.mxu0 %v1225
        %2584 = vmatmul.mubr.bf16.gmra.mrb[0].mxu0 %v1144
        %v2585 = vpop.f32.mrb[0].mxu0
        %v2586 = vadd.f32 %v2409, %v2585
        %v2587 = vpop.f32.mrb[0].mxu0
        %v2588 = vpop.f32.mrb[0].mxu0
        %v2589 = vadd.f32 %v2412, %v2588
        %v2590 = vpop.f32.mrb[0].mxu0
        %2591 = vmatprep.mubr.bf16.mxu0 %v1234
        %2592 = vmatmul.mubr.bf16.gmra.mrb[0].mxu0 %v1146
        %v2593 = vpop.f32.mrb[0].mxu0
        %v2594 = vadd.f32 %v2417, %v2593
        %v2595 = vpop.f32.mrb[0].mxu0
        %v2596 = vpop.f32.mrb[0].mxu0
        %v2597 = vadd.f32 %v2420, %v2596
        %v2598 = vpop.f32.mrb[0].mxu0
        %2599 = vdwg.mxu0
        %2600 = vmatprep.subr.bf16.mxu0 0
        %2601 = vmatpush1.bf16.msra.mxu0 %v1812
        %2602 = vmatprep.subr.bf16.mxu0 0
        %2603 = vmatpush1.bf16.msra.mxu0 %v1813
        %2604 = vmatprep.subr.bf16.mxu0 0
        %2605 = vmatpush1.bf16.msra.mxu0 %v1814
        %2606 = vmatprep.subr.bf16.mxu0 0
        %2607 = vmatpush1.bf16.msra.mxu0 %v1815
        %2608 = vmatprep.subr.bf16.mxu0 0
        %2609 = vmatpush1.bf16.msra.mxu0 %v1816
        %2610 = vmatprep.subr.bf16.mxu0 0
        %2611 = vmatpush1.bf16.msra.mxu0 %v1817
        %2612 = vmatprep.subr.bf16.mxu0 0
        %2613 = vmatpush1.bf16.msra.mxu0 %v1818
        %2614 = vmatprep.subr.bf16.mxu0 0
        %2615 = vmatpush1.bf16.msra.mxu0 %v1819
        %2616 = vmatprep.subr.bf16.mxu0 0
        %2617 = vmatpush1.bf16.msra.mxu0 0
        %2618 = vmatprep.subr.bf16.mxu0 0
        %2619 = vmatpush1.bf16.msra.mxu0 0
        %2620 = vmatprep.subr.bf16.mxu0 0
        %2621 = vmatpush1.bf16.msra.mxu0 0
        %2622 = vmatprep.subr.bf16.mxu0 0
        %2623 = vmatpush1.bf16.msra.mxu0 0
        %2624 = vmatprep.subr.bf16.mxu0 0
        %2625 = vmatpush1.bf16.msra.mxu0 0
        %2626 = vmatprep.subr.bf16.mxu0 0
        %2627 = vmatpush1.bf16.msra.mxu0 0
        %2628 = vmatprep.subr.bf16.mxu0 0
        %2629 = vmatpush1.bf16.msra.mxu0 0
        %2630 = vmatprep.subr.bf16.mxu0 0
        %2631 = vmatpush1.bf16.msra.mxu0 0
        %2632 = vmatprep.mubr.bf16.mxu0 0
        %2633 = vmatmul.mubr.bf16.gmra.mrb[0].mxu0 %v1256
        %v2634 = vpop.f32.mrb[0].mxu0
        %v2635 = vadd.f32 %v2458, %v2634
        %v2636 = vpop.f32.mrb[0].mxu0
        %v2637 = vpop.f32.mrb[0].mxu0
        %v2638 = vadd.f32 %v2461, %v2637
        %v2639 = vpop.f32.mrb[0].mxu0
        %2640 = vmatprep.mubr.bf16.mxu0 0
        %2641 = vmatmul.mubr.bf16.gmra.mrb[0].mxu0 %v1258
        %v2642 = vpop.f32.mrb[0].mxu0
        %v2643 = vadd.f32 %v2466, %v2642
        %v2644 = vpop.f32.mrb[0].mxu0
        %v2645 = vpop.f32.mrb[0].mxu0
        %v2646 = vadd.f32 %v2469, %v2645
        %v2647 = vpop.f32.mrb[0].mxu0
        %2648 = vmatprep.mubr.bf16.mxu0 0
        %2649 = vmatmul.mubr.bf16.gmra.mrb[0].mxu0 %v1260
        %v2650 = vpop.f32.mrb[0].mxu0
        %v2651 = vadd.f32 %v2474, %v2650
        %v2652 = vpop.f32.mrb[0].mxu0
        %v2653 = vpop.f32.mrb[0].mxu0
        %v2654 = vadd.f32 %v2477, %v2653
        %v2655 = vpop.f32.mrb[0].mxu0
        %2656 = vmatprep.mubr.bf16.mxu0 0
        %2657 = vmatmul.mubr.bf16.gmra.mrb[0].mxu0 %v1262
        %v2658 = vpop.f32.mrb[0].mxu0
        %v2659 = vadd.f32 %v2482, %v2658
        %v2660 = vpop.f32.mrb[0].mxu0
        %v2661 = vpop.f32.mrb[0].mxu0
        %v2662 = vadd.f32 %v2485, %v2661
        %v2663 = vpop.f32.mrb[0].mxu0
        %2664 = vmatprep.mubr.bf16.mxu0 0
        %2665 = vmatmul.mubr.bf16.gmra.mrb[0].mxu0 %v1264
        %v2666 = vpop.f32.mrb[0].mxu0
        %v2667 = vadd.f32 %v2490, %v2666
        %v2668 = vpop.f32.mrb[0].mxu0
        %v2669 = vpop.f32.mrb[0].mxu0
        %v2670 = vadd.f32 %v2493, %v2669
        %v2671 = vpop.f32.mrb[0].mxu0
        %2672 = vmatprep.mubr.bf16.mxu0 0
        %2673 = vmatmul.mubr.bf16.gmra.mrb[0].mxu0 %v1266
        %v2674 = vpop.f32.mrb[0].mxu0
        %v2675 = vadd.f32 %v2498, %v2674
        %v2676 = vpop.f32.mrb[0].mxu0
        %v2677 = vpop.f32.mrb[0].mxu0
        %v2678 = vadd.f32 %v2501, %v2677
        %v2679 = vpop.f32.mrb[0].mxu0
        %2680 = vmatprep.mubr.bf16.mxu0 0
        %2681 = vmatmul.mubr.bf16.gmra.mrb[0].mxu0 %v1268
        %v2682 = vpop.f32.mrb[0].mxu0
        %v2683 = vadd.f32 %v2506, %v2682
        %v2684 = vpop.f32.mrb[0].mxu0
        %v2685 = vpop.f32.mrb[0].mxu0
        %v2686 = vadd.f32 %v2509, %v2685
        %v2687 = vpop.f32.mrb[0].mxu0
        %2688 = vmatprep.mubr.bf16.mxu0 0
        %2689 = vmatmul.mubr.bf16.gmra.mrb[0].mxu0 %v1270
        %v2690 = vpop.f32.mrb[0].mxu0
        %v2691 = vadd.f32 %v2514, %v2690
        %v2692 = vpop.f32.mrb[0].mxu0
        %v2693 = vpop.f32.mrb[0].mxu0
        %v2694 = vadd.f32 %v2517, %v2693
        %v2695 = vpop.f32.mrb[0].mxu0
        %2696 = vmatprep.mubr.bf16.mxu0 0
        %2697 = vmatmul.mubr.bf16.gmra.mrb[0].mxu0 %v1272
        %v2698 = vpop.f32.mrb[0].mxu0
        %v2699 = vadd.f32 %v2522, %v2698
        %v2700 = vpop.f32.mrb[0].mxu0
        %v2701 = vpop.f32.mrb[0].mxu0
        %v2702 = vadd.f32 %v2525, %v2701
        %v2703 = vpop.f32.mrb[0].mxu0
        %2704 = vmatprep.mubr.bf16.mxu0 0
        %2705 = vmatmul.mubr.bf16.gmra.mrb[0].mxu0 %v1274
        %v2706 = vpop.f32.mrb[0].mxu0
        %v2707 = vadd.f32 %v2530, %v2706
        %v2708 = vpop.f32.mrb[0].mxu0
        %v2709 = vpop.f32.mrb[0].mxu0
        %v2710 = vadd.f32 %v2533, %v2709
        %v2711 = vpop.f32.mrb[0].mxu0
        %2712 = vmatprep.mubr.bf16.mxu0 0
        %2713 = vmatmul.mubr.bf16.gmra.mrb[0].mxu0 %v1276
        %v2714 = vpop.f32.mrb[0].mxu0
        %v2715 = vadd.f32 %v2538, %v2714
        %v2716 = vpop.f32.mrb[0].mxu0
        %v2717 = vpop.f32.mrb[0].mxu0
        %v2718 = vadd.f32 %v2541, %v2717
        %v2719 = vpop.f32.mrb[0].mxu0
        %2720 = vmatprep.mubr.bf16.mxu0 0
        %2721 = vmatmul.mubr.bf16.gmra.mrb[0].mxu0 %v1278
        %v2722 = vpop.f32.mrb[0].mxu0
        %v2723 = vadd.f32 %v2546, %v2722
        %v2724 = vpop.f32.mrb[0].mxu0
        %v2725 = vpop.f32.mrb[0].mxu0
        %v2726 = vadd.f32 %v2549, %v2725
        %v2727 = vpop.f32.mrb[0].mxu0
        %2728 = vmatprep.mubr.bf16.mxu0 0
        %2729 = vmatmul.mubr.bf16.gmra.mrb[0].mxu0 %v1280
        %v2730 = vpop.f32.mrb[0].mxu0
        %v2731 = vadd.f32 %v2554, %v2730
        %v2732 = vpop.f32.mrb[0].mxu0
        %v2733 = vpop.f32.mrb[0].mxu0
        %v2734 = vadd.f32 %v2557, %v2733
        %v2735 = vpop.f32.mrb[0].mxu0
        %2736 = vmatprep.mubr.bf16.mxu0 0
        %2737 = vmatmul.mubr.bf16.gmra.mrb[0].mxu0 %v1282
        %v2738 = vpop.f32.mrb[0].mxu0
        %v2739 = vadd.f32 %v2562, %v2738
        %v2740 = vpop.f32.mrb[0].mxu0
        %v2741 = vpop.f32.mrb[0].mxu0
        %v2742 = vadd.f32 %v2565, %v2741
        %v2743 = vpop.f32.mrb[0].mxu0
        %2744 = vmatprep.mubr.bf16.mxu0 0
        %2745 = vmatmul.mubr.bf16.gmra.mrb[0].mxu0 %v1284
        %v2746 = vpop.f32.mrb[0].mxu0
        %v2747 = vadd.f32 %v2570, %v2746
        %v2748 = vpop.f32.mrb[0].mxu0
        %v2749 = vpop.f32.mrb[0].mxu0
        %v2750 = vadd.f32 %v2573, %v2749
        %v2751 = vpop.f32.mrb[0].mxu0
        %2752 = vmatprep.mubr.bf16.mxu0 0
        %2753 = vmatmul.mubr.bf16.gmra.mrb[0].mxu0 %v1286
        %v2754 = vpop.f32.mrb[0].mxu0
        %v2755 = vadd.f32 %v2578, %v2754
        %v2756 = vpop.f32.mrb[0].mxu0
        %v2757 = vpop.f32.mrb[0].mxu0
        %v2758 = vadd.f32 %v2581, %v2757
        %v2759 = vpop.f32.mrb[0].mxu0
        %2760 = vmatprep.mubr.bf16.mxu0 0
        %2761 = vmatmul.mubr.bf16.gmra.mrb[0].mxu0 %v1288
        %v2762 = vpop.f32.mrb[0].mxu0
        %v2763 = vadd.f32 %v2586, %v2762
        %v2764 = vpop.f32.mrb[0].mxu0
        %v2765 = vpop.f32.mrb[0].mxu0
        %v2766 = vadd.f32 %v2589, %v2765
        %v2767 = vpop.f32.mrb[0].mxu0
        %2768 = vmatprep.mubr.bf16.mxu0 0
        %2769 = vmatmul.mubr.bf16.gmra.mrb[0].mxu0 %v1290
        %v2770 = vpop.f32.mrb[0].mxu0
        %v2771 = vadd.f32 %v2594, %v2770
        %v2772 = vpop.f32.mrb[0].mxu0
        %v2773 = vpop.f32.mrb[0].mxu0
        %v2774 = vadd.f32 %v2597, %v2773
        %v2775 = vpop.f32.mrb[0].mxu0
        %2776 = vdwg.mxu0
        %v2777 = vmul.f32 %v2635, 0.01
        %v2778 = vmul.f32 %v2638, 0.01
        %v2779 = vmul.f32 %v2643, 0.01
        %v2780 = vmul.f32 %v2646, 0.01
        %v2781 = vmul.f32 %v2651, 0.01
        %v2782 = vmul.f32 %v2654, 0.01
        %v2783 = vmul.f32 %v2659, 0.01
        %v2784 = vmul.f32 %v2662, 0.01
        %v2785 = vmul.f32 %v2667, 0.01
        %v2786 = vmul.f32 %v2670, 0.01
        %v2787 = vmul.f32 %v2675, 0.01
        %v2788 = vmul.f32 %v2678, 0.01
        %v2789 = vmul.f32 %v2683, 0.01
        %v2790 = vmul.f32 %v2686, 0.01
        %v2791 = vmul.f32 %v2691, 0.01
        %v2792 = vmul.f32 %v2694, 0.01
        %v2793 = vmul.f32 %v2699, 0.01
        %v2794 = vmul.f32 %v2702, 0.01
        %v2795 = vmul.f32 %v2707, 0.01
        %v2796 = vmul.f32 %v2710, 0.01
        %v2797 = vmul.f32 %v2715, 0.01
        %v2798 = vmul.f32 %v2718, 0.01
        %v2799 = vmul.f32 %v2723, 0.01
        %v2800 = vmul.f32 %v2726, 0.01
        %v2801 = vmul.f32 %v2731, 0.01
        %v2802 = vmul.f32 %v2734, 0.01
        %v2803 = vmul.f32 %v2739, 0.01
        %v2804 = vmul.f32 %v2742, 0.01
        %v2805 = vmul.f32 %v2747, 0.01
        %v2806 = vmul.f32 %v2750, 0.01
        %v2807 = vmul.f32 %v2755, 0.01
        %v2808 = vmul.f32 %v2758, 0.01
        %v2809 = vmul.f32 %v2763, 0.01
        %v2810 = vmul.f32 %v2766, 0.01
        %v2811 = vmul.f32 %v2771, 0.01
        %v2812 = vmul.f32 %v2774, 0.01
        %v2813 = vmax.f32 %v2635, %v2777
        %v2814 = vmax.f32 %v2638, %v2778
        %v2815 = vmax.f32 %v2643, %v2779
        %v2816 = vmax.f32 %v2646, %v2780
        %v2817 = vmax.f32 %v2651, %v2781
        %v2818 = vmax.f32 %v2654, %v2782
        %v2819 = vmax.f32 %v2659, %v2783
        %v2820 = vmax.f32 %v2662, %v2784
        %v2821 = vmax.f32 %v2667, %v2785
        %v2822 = vmax.f32 %v2670, %v2786
        %v2823 = vmax.f32 %v2675, %v2787
        %v2824 = vmax.f32 %v2678, %v2788
        %v2825 = vmax.f32 %v2683, %v2789
        %v2826 = vmax.f32 %v2686, %v2790
        %v2827 = vmax.f32 %v2691, %v2791
        %v2828 = vmax.f32 %v2694, %v2792
        %v2829 = vmax.f32 %v2699, %v2793
        %v2830 = vmax.f32 %v2702, %v2794
        %v2831 = vmax.f32 %v2707, %v2795
        %v2832 = vmax.f32 %v2710, %v2796
        %v2833 = vmax.f32 %v2715, %v2797
        %v2834 = vmax.f32 %v2718, %v2798
        %v2835 = vmax.f32 %v2723, %v2799
        %v2836 = vmax.f32 %v2726, %v2800
        %v2837 = vmax.f32 %v2731, %v2801
        %v2838 = vmax.f32 %v2734, %v2802
        %v2839 = vmax.f32 %v2739, %v2803
        %v2840 = vmax.f32 %v2742, %v2804
        %v2841 = vmax.f32 %v2747, %v2805
        %v2842 = vmax.f32 %v2750, %v2806
        %v2843 = vmax.f32 %v2755, %v2807
        %v2844 = vmax.f32 %v2758, %v2808
        %v2845 = vmax.f32 %v2763, %v2809
        %v2846 = vmax.f32 %v2766, %v2810
        %v2847 = vmax.f32 %v2771, %v2811
        %v2848 = vmax.f32 %v2774, %v2812
        %v2849 = vld [vmem:[%s3] sm:$0xff]
        %v2850 = vld [vmem:[%s3 + $0x8] sm:$0xf]
        %v2851 = vld [vmem:[%s3 + $0xc] sm:$0xff]
        %v2852 = vld [vmem:[%s3 + $0x14] sm:$0xf]
        %v2853 = vld [vmem:[%s3 + $0x18] sm:$0xff]
        %v2854 = vld [vmem:[%s3 + $0x20] sm:$0xf]
        %v2855 = vld [vmem:[%s3 + $0x24] sm:$0xff]
        %v2856 = vld [vmem:[%s3 + $0x2c] sm:$0xf]
        %v2857 = vld [vmem:[%s3 + $0x30] sm:$0xff]
        %v2858 = vld [vmem:[%s3 + $0x38] sm:$0xf]
        %v2859 = vld [vmem:[%s3 + $0x3c] sm:$0xff]
        %v2860 = vld [vmem:[%s3 + $0x44] sm:$0xf]
        %v2861 = vld [vmem:[%s3 + $0x48] sm:$0xff]
        %v2862 = vld [vmem:[%s3 + $0x50] sm:$0xf]
        %v2863 = vld [vmem:[%s3 + $0x54] sm:$0xff]
        %v2864 = vld [vmem:[%s3 + $0x5c] sm:$0xf]
        %v2865 = vld [vmem:[%s3 + $0x60] sm:$0xff]
        %v2866 = vld [vmem:[%s3 + $0x68] sm:$0xf]
        %v2867 = vld [vmem:[%s3 + $0x6c] sm:$0xff]
        %v2868 = vld [vmem:[%s3 + $0x74] sm:$0xf]
        %v2869 = vld [vmem:[%s3 + $0x78] sm:$0xff]
        %v2870 = vld [vmem:[%s3 + $0x80] sm:$0xf]
        %v2871 = vld [vmem:[%s3 + $0x84] sm:$0xff]
        %v2872 = vld [vmem:[%s3 + $0x8c] sm:$0xf]
        %v2873 = vld [vmem:[%s3 + $0x90] sm:$0x77]
        %v2874 = vld [vmem:[%s3 + $0x98] sm:$0x7]
        %v2875 = vpack.c.bf16 %v2814, %v2813
        %v2876 = vpack.c.bf16 %v2816, %v2815
        %v2877 = vpack.c.bf16 %v2818, %v2817
        %v2878 = vpack.c.bf16 %v2820, %v2819
        %v2879 = vpack.c.bf16 %v2822, %v2821
        %v2880 = vpack.c.bf16 %v2824, %v2823
        %v2881 = vpack.c.bf16 %v2826, %v2825
        %v2882 = vpack.c.bf16 %v2828, %v2827
        %v2883 = vpack.c.bf16 %v2830, %v2829
        %v2884 = vpack.c.bf16 %v2832, %v2831
        %v2885 = vpack.c.bf16 %v2834, %v2833
        %v2886 = vpack.c.bf16 %v2836, %v2835
        %v2887 = vpack.c.bf16 %v2838, %v2837
        %v2888 = vpack.c.bf16 %v2840, %v2839
        %v2889 = vpack.c.bf16 %v2842, %v2841
        %v2890 = vpack.c.bf16 %v2844, %v2843
        %v2891 = vpack.c.bf16 %v2846, %v2845
        %v2892 = vpack.c.bf16 %v2848, %v2847
        %v2919 = vunpack.c.l.b16 %v2849
        %v2920 = vunpack.c.h.b16 %v2849
        %v2921 = vunpack.c.l.b16 %v2850
        %v2922 = vunpack.c.l.b16 %v2851
        %v2923 = vunpack.c.h.b16 %v2851
        %v2924 = vunpack.c.l.b16 %v2852
        %v2925 = vunpack.c.l.b16 %v2853
        %v2926 = vunpack.c.h.b16 %v2853
        %v2927 = vunpack.c.l.b16 %v2854
        %v2928 = vunpack.c.l.b16 %v2855
        %v2929 = vunpack.c.h.b16 %v2855
        %v2930 = vunpack.c.l.b16 %v2856
        %v2931 = vunpack.c.l.b16 %v2857
        %v2932 = vunpack.c.h.b16 %v2857
        %v2933 = vunpack.c.l.b16 %v2858
        %v2934 = vunpack.c.l.b16 %v2859
        %v2935 = vunpack.c.h.b16 %v2859
        %v2936 = vunpack.c.l.b16 %v2860
        %v2937 = vunpack.c.l.b16 %v2861
        %v2938 = vunpack.c.h.b16 %v2861
        %v2939 = vunpack.c.l.b16 %v2862
        %v2940 = vunpack.c.l.b16 %v2863
        %v2941 = vunpack.c.h.b16 %v2863
        %v2942 = vunpack.c.l.b16 %v2864
        %v2943 = vunpack.c.l.b16 %v2865
        %v2944 = vunpack.c.h.b16 %v2865
        %v2945 = vunpack.c.l.b16 %v2866
        %v2946 = vunpack.c.l.b16 %v2867
        %v2947 = vunpack.c.h.b16 %v2867
        %v2948 = vunpack.c.l.b16 %v2868
        %v2949 = vunpack.c.l.b16 %v2869
        %v2950 = vunpack.c.h.b16 %v2869
        %v2951 = vunpack.c.l.b16 %v2870
        %v2952 = vunpack.c.l.b16 %v2871
        %v2953 = vunpack.c.h.b16 %v2871
        %v2954 = vunpack.c.l.b16 %v2872
        %v2955 = vunpack.c.l.b16 %v2873
        %v2956 = vunpack.c.h.b16 %v2873
        %v2957 = vunpack.c.l.b16 %v2874
        %v2958 = vpack.c.b16 %v2922, %v2919
        %v2959 = vpack.c.b16 %v2923, %v2920
        %v2960 = vpack.c.b16 %v2924, %v2921
        %v2961 = vpack.c.b16 %v2928, %v2925
        %v2962 = vpack.c.b16 %v2929, %v2926
        %v2963 = vpack.c.b16 %v2930, %v2927
        %v2964 = vpack.c.b16 %v2934, %v2931
        %v2965 = vpack.c.b16 %v2935, %v2932
        %v2966 = vpack.c.b16 %v2936, %v2933
        %v2967 = vpack.c.b16 %v2940, %v2937
        %v2968 = vpack.c.b16 %v2941, %v2938
        %v2969 = vpack.c.b16 %v2942, %v2939
        %v2970 = vpack.c.b16 %v2946, %v2943
        %v2971 = vpack.c.b16 %v2947, %v2944
        %v2972 = vpack.c.b16 %v2948, %v2945
        %v2973 = vpack.c.b16 %v2952, %v2949
        %v2974 = vpack.c.b16 %v2953, %v2950
        %v2975 = vpack.c.b16 %v2954, %v2951
        %v2976 = vpack.c.b16 %v2955, %v2955
        %v2977 = vpack.c.b16 %v2956, %v2956
        %v2978 = vpack.c.b16 %v2957, %v2957
        %vm2993 = vcmask 261120
        %v2995 = vsel %vm2993, %v2960, 0
        %v2998 = vsel %vm2993, %v2963, 0
        %v3001 = vsel %vm2993, %v2966, 0
        %v3004 = vsel %vm2993, %v2969, 0
        %v3007 = vsel %vm2993, %v2972, 0
        %v3010 = vsel %vm2993, %v2975, 0
        %v3013 = vsel %vm2993, %v2978, 0
        %3015 = vmatprep.subr.bf16.mxu0 0
        %3016 = vmatpush1.bf16.msra.mxu0 %v2875
        %3017 = vmatprep.subr.bf16.mxu0 0
        %3018 = vmatpush1.bf16.msra.mxu0 %v2876
        %3019 = vmatprep.subr.bf16.mxu0 0
        %3020 = vmatpush1.bf16.msra.mxu0 %v2877
        %3021 = vmatprep.subr.bf16.mxu0 0
        %3022 = vmatpush1.bf16.msra.mxu0 %v2878
        %3023 = vmatprep.subr.bf16.mxu0 0
        %3024 = vmatpush1.bf16.msra.mxu0 %v2879
        %3025 = vmatprep.subr.bf16.mxu0 0
        %3026 = vmatpush1.bf16.msra.mxu0 %v2880
        %3027 = vmatprep.subr.bf16.mxu0 0
        %3028 = vmatpush1.bf16.msra.mxu0 %v2881
        %3029 = vmatprep.subr.bf16.mxu0 0
        %3030 = vmatpush1.bf16.msra.mxu0 %v2882
        %3031 = vmatprep.subr.bf16.mxu0 0
        %3032 = vmatpush1.bf16.msra.mxu0 %v2883
        %3033 = vmatprep.subr.bf16.mxu0 0
        %3034 = vmatpush1.bf16.msra.mxu0 %v2884
        %3035 = vmatprep.subr.bf16.mxu0 0
        %3036 = vmatpush1.bf16.msra.mxu0 %v2885
        %3037 = vmatprep.subr.bf16.mxu0 0
        %3038 = vmatpush1.bf16.msra.mxu0 %v2886
        %3039 = vmatprep.subr.bf16.mxu0 0
        %3040 = vmatpush1.bf16.msra.mxu0 %v2887
        %3041 = vmatprep.subr.bf16.mxu0 0
        %3042 = vmatpush1.bf16.msra.mxu0 %v2888
        %3043 = vmatprep.subr.bf16.mxu0 0
        %3044 = vmatpush1.bf16.msra.mxu0 %v2889
        %3045 = vmatprep.subr.bf16.mxu0 0
        %3046 = vmatpush1.bf16.msra.mxu0 %v2890
        %3047 = vmatprep.mubr.bf16.mxu0 %v2959
        %3048 = vmatmul.mubr.bf16.gmra.mrb[0].mxu0 %v2958
        %v3049 = vpop.f32.mrb[0].mxu0
        %v3050 = vadd.f32 0.0, %v3049
        %v3051 = vpop.f32.mrb[0].mxu0
        %v3052 = vpop.f32.mrb[0].mxu0
        %v3053 = vadd.f32 0.0, %v3052
        %v3054 = vpop.f32.mrb[0].mxu0
        %3055 = vmatprep.mubr.bf16.mxu0 %v2962
        %3056 = vmatmul.mubr.bf16.gmra.mrb[0].mxu0 %v2961
        %v3057 = vpop.f32.mrb[0].mxu0
        %v3058 = vadd.f32 0.0, %v3057
        %v3059 = vpop.f32.mrb[0].mxu0
        %v3060 = vpop.f32.mrb[0].mxu0
        %v3061 = vadd.f32 0.0, %v3060
        %v3062 = vpop.f32.mrb[0].mxu0
        %3063 = vmatprep.mubr.bf16.mxu0 %v2965
        %3064 = vmatmul.mubr.bf16.gmra.mrb[0].mxu0 %v2964
        %v3065 = vpop.f32.mrb[0].mxu0
        %v3066 = vadd.f32 0.0, %v3065
        %v3067 = vpop.f32.mrb[0].mxu0
        %v3068 = vpop.f32.mrb[0].mxu0
        %v3069 = vadd.f32 0.0, %v3068
        %v3070 = vpop.f32.mrb[0].mxu0
        %3071 = vmatprep.mubr.bf16.mxu0 %v2968
        %3072 = vmatmul.mubr.bf16.gmra.mrb[0].mxu0 %v2967
        %v3073 = vpop.f32.mrb[0].mxu0
        %v3074 = vadd.f32 0.0, %v3073
        %v3075 = vpop.f32.mrb[0].mxu0
        %v3076 = vpop.f32.mrb[0].mxu0
        %v3077 = vadd.f32 0.0, %v3076
        %v3078 = vpop.f32.mrb[0].mxu0
        %3079 = vmatprep.mubr.bf16.mxu0 %v2971
        %3080 = vmatmul.mubr.bf16.gmra.mrb[0].mxu0 %v2970
        %v3081 = vpop.f32.mrb[0].mxu0
        %v3082 = vadd.f32 0.0, %v3081
        %v3083 = vpop.f32.mrb[0].mxu0
        %v3084 = vpop.f32.mrb[0].mxu0
        %v3085 = vadd.f32 0.0, %v3084
        %v3086 = vpop.f32.mrb[0].mxu0
        %3087 = vmatprep.mubr.bf16.mxu0 %v2974
        %3088 = vmatmul.mubr.bf16.gmra.mrb[0].mxu0 %v2973
        %v3089 = vpop.f32.mrb[0].mxu0
        %v3090 = vadd.f32 0.0, %v3089
        %v3091 = vpop.f32.mrb[0].mxu0
        %v3092 = vpop.f32.mrb[0].mxu0
        %v3093 = vadd.f32 0.0, %v3092
        %v3094 = vpop.f32.mrb[0].mxu0
        %3095 = vmatprep.mubr.bf16.mxu0 %v2977
        %3096 = vmatmul.mubr.bf16.gmra.mrb[0].mxu0 %v2976
        %v3097 = vpop.f32.mrb[0].mxu0
        %v3098 = vadd.f32 0.0, %v3097
        %v3099 = vpop.f32.mrb[0].mxu0
        %v3100 = vpop.f32.mrb[0].mxu0
        %v3101 = vpop.f32.mrb[0].mxu0
        %3102 = vdwg.mxu0
        %3103 = vmatprep.subr.bf16.mxu0 0
        %3104 = vmatpush1.bf16.msra.mxu0 %v2891
        %3105 = vmatprep.subr.bf16.mxu0 0
        %3106 = vmatpush1.bf16.msra.mxu0 %v2892
        %3107 = vmatprep.subr.bf16.mxu0 0
        %3108 = vmatpush1.bf16.msra.mxu0 0
        %3109 = vmatprep.subr.bf16.mxu0 0
        %3110 = vmatpush1.bf16.msra.mxu0 0
        %3111 = vmatprep.subr.bf16.mxu0 0
        %3112 = vmatpush1.bf16.msra.mxu0 0
        %3113 = vmatprep.subr.bf16.mxu0 0
        %3114 = vmatpush1.bf16.msra.mxu0 0
        %3115 = vmatprep.subr.bf16.mxu0 0
        %3116 = vmatpush1.bf16.msra.mxu0 0
        %3117 = vmatprep.subr.bf16.mxu0 0
        %3118 = vmatpush1.bf16.msra.mxu0 0
        %3119 = vmatprep.subr.bf16.mxu0 0
        %3120 = vmatpush1.bf16.msra.mxu0 0
        %3121 = vmatprep.subr.bf16.mxu0 0
        %3122 = vmatpush1.bf16.msra.mxu0 0
        %3123 = vmatprep.subr.bf16.mxu0 0
        %3124 = vmatpush1.bf16.msra.mxu0 0
        %3125 = vmatprep.subr.bf16.mxu0 0
        %3126 = vmatpush1.bf16.msra.mxu0 0
        %3127 = vmatprep.subr.bf16.mxu0 0
        %3128 = vmatpush1.bf16.msra.mxu0 0
        %3129 = vmatprep.subr.bf16.mxu0 0
        %3130 = vmatpush1.bf16.msra.mxu0 0
        %3131 = vmatprep.subr.bf16.mxu0 0
        %3132 = vmatpush1.bf16.msra.mxu0 0
        %3133 = vmatprep.subr.bf16.mxu0 0
        %3134 = vmatpush1.bf16.msra.mxu0 0
        %3135 = vmatprep.mubr.bf16.mxu0 0
        %3136 = vmatmul.mubr.bf16.gmra.mrb[0].mxu0 %v2995
        %v3137 = vpop.f32.mrb[0].mxu0
        %v3138 = vadd.f32 %v3050, %v3137
        %v3139 = vpop.f32.mrb[0].mxu0
        %v3140 = vpop.f32.mrb[0].mxu0
        %v3141 = vadd.f32 %v3053, %v3140
        %v3142 = vpop.f32.mrb[0].mxu0
        %3143 = vmatprep.mubr.bf16.mxu0 0
        %3144 = vmatmul.mubr.bf16.gmra.mrb[0].mxu0 %v2998
        %v3145 = vpop.f32.mrb[0].mxu0
        %v3146 = vadd.f32 %v3058, %v3145
        %v3147 = vpop.f32.mrb[0].mxu0
        %v3148 = vpop.f32.mrb[0].mxu0
        %v3149 = vadd.f32 %v3061, %v3148
        %v3150 = vpop.f32.mrb[0].mxu0
        %3151 = vmatprep.mubr.bf16.mxu0 0
        %3152 = vmatmul.mubr.bf16.gmra.mrb[0].mxu0 %v3001
        %v3153 = vpop.f32.mrb[0].mxu0
        %v3154 = vadd.f32 %v3066, %v3153
        %v3155 = vpop.f32.mrb[0].mxu0
        %v3156 = vpop.f32.mrb[0].mxu0
        %v3157 = vadd.f32 %v3069, %v3156
        %v3158 = vpop.f32.mrb[0].mxu0
        %3159 = vmatprep.mubr.bf16.mxu0 0
        %3160 = vmatmul.mubr.bf16.gmra.mrb[0].mxu0 %v3004
        %v3161 = vpop.f32.mrb[0].mxu0
        %v3162 = vadd.f32 %v3074, %v3161
        %v3163 = vpop.f32.mrb[0].mxu0
        %v3164 = vpop.f32.mrb[0].mxu0
        %v3165 = vadd.f32 %v3077, %v3164
        %v3166 = vpop.f32.mrb[0].mxu0
        %3167 = vmatprep.mubr.bf16.mxu0 0
        %3168 = vmatmul.mubr.bf16.gmra.mrb[0].mxu0 %v3007
        %v3169 = vpop.f32.mrb[0].mxu0
        %v3170 = vadd.f32 %v3082, %v3169
        %v3171 = vpop.f32.mrb[0].mxu0
        %v3172 = vpop.f32.mrb[0].mxu0
        %v3173 = vadd.f32 %v3085, %v3172
        %v3174 = vpop.f32.mrb[0].mxu0
        %3175 = vmatprep.mubr.bf16.mxu0 0
        %3176 = vmatmul.mubr.bf16.gmra.mrb[0].mxu0 %v3010
        %v3177 = vpop.f32.mrb[0].mxu0
        %v3178 = vadd.f32 %v3090, %v3177
        %v3179 = vpop.f32.mrb[0].mxu0
        %v3180 = vpop.f32.mrb[0].mxu0
        %v3181 = vadd.f32 %v3093, %v3180
        %v3182 = vpop.f32.mrb[0].mxu0
        %3183 = vmatprep.mubr.bf16.mxu0 0
        %3184 = vmatmul.mubr.bf16.gmra.mrb[0].mxu0 %v3013
        %v3185 = vpop.f32.mrb[0].mxu0
        %v3186 = vadd.f32 %v3098, %v3185
        %v3187 = vpop.f32.mrb[0].mxu0
        %v3188 = vpop.f32.mrb[0].mxu0
        %v3189 = vpop.f32.mrb[0].mxu0
        %3190 = vdwg.mxu0
        %v3191 = vpack.c.bf16 %v3141, %v3138
        %v3192 = vpack.c.bf16 %v3149, %v3146
        %v3193 = vpack.c.bf16 %v3157, %v3154
        %v3194 = vpack.c.bf16 %v3165, %v3162
        %v3195 = vpack.c.bf16 %v3173, %v3170
        %v3196 = vpack.c.bf16 %v3181, %v3178
        %v3197 = vpack.c.bf16 %v3186, %v3186
        %v3199 = vshrl.u32 %v3191, 16
        %v3201 = vshll.u32 %v3191, 16
        %v3203 = vrot.slane %v3201, 1
        %v3204 = vor.u32 %v3199, %v3203
        %v3206 = vshll.u32 %v3192, 16
        %v3208 = vrot.slane %v3206, 1
        %v3209 = vsel %vm742, %v3204, %v3208
        %v3210 = vshrl.u32 %v3192, 16
        %v3212 = vor.u32 %v3210, %v3208
        %v3214 = vshll.u32 %v3193, 16
        %v3216 = vrot.slane %v3214, 1
        %v3217 = vsel %vm742, %v3212, %v3216
        %v3218 = vshrl.u32 %v3193, 16
        %v3220 = vor.u32 %v3218, %v3216
        %v3222 = vshll.u32 %v3194, 16
        %v3224 = vrot.slane %v3222, 1
        %v3225 = vsel %vm742, %v3220, %v3224
        %v3226 = vshrl.u32 %v3194, 16
        %v3228 = vor.u32 %v3226, %v3224
        %v3230 = vshll.u32 %v3195, 16
        %v3232 = vrot.slane %v3230, 1
        %v3233 = vsel %vm742, %v3228, %v3232
        %v3234 = vshrl.u32 %v3195, 16
        %v3236 = vor.u32 %v3234, %v3232
        %v3238 = vshll.u32 %v3196, 16
        %v3240 = vrot.slane %v3238, 1
        %v3241 = vsel %vm742, %v3236, %v3240
        %v3253 = vrot.slane %v3191, 1
        %v3254 = vrot.slane %v3192, 1
        %v3255 = vsel %vm909, %v3253, %v3254
        %v3256 = vrot.slane %v3193, 1
        %v3257 = vsel %vm909, %v3254, %v3256
        %v3258 = vrot.slane %v3194, 1
        %v3259 = vsel %vm909, %v3256, %v3258
        %v3260 = vrot.slane %v3195, 1
        %v3261 = vsel %vm909, %v3258, %v3260
        %v3262 = vrot.slane %v3196, 1
        %v3263 = vsel %vm909, %v3260, %v3262
        %vm3269 = vcmask 1042432
        %v3270 = vrot.slane %v3191, 5
        %v3271 = vrot.slane %v3192, 5
        %v3272 = vsel %vm3269, %v3270, %v3271
        %v3273 = vrot.slane %v3193, 5
        %v3274 = vsel %vm3269, %v3271, %v3273
        %v3275 = vrot.slane %v3194, 5
        %v3276 = vsel %vm3269, %v3273, %v3275
        %v3277 = vrot.slane %v3195, 5
        %v3278 = vsel %vm3269, %v3275, %v3277
        %v3279 = vrot.slane %v3196, 5
        %v3280 = vsel %vm3269, %v3277, %v3279
        %vm3286 = vsmask.f32 2304
        %v3287 = vrot.slane %v3199, 5
        %v3288 = vrot.slane %v3201, 6
        %v3289 = vor.u32 %v3287, %v3288
        %v3290 = vrot.slane %v3210, 5
        %v3291 = vrot.slane %v3206, 6
        %v3292 = vor.u32 %v3290, %v3291
        %v3293 = vsel %vm3286, %v3289, %v3292
        %v3294 = vrot.slane %v3218, 5
        %v3295 = vrot.slane %v3214, 6
        %v3296 = vor.u32 %v3294, %v3295
        %v3297 = vsel %vm3286, %v3292, %v3296
        %v3298 = vrot.slane %v3226, 5
        %v3299 = vrot.slane %v3222, 6
        %v3300 = vor.u32 %v3298, %v3299
        %v3301 = vsel %vm3286, %v3296, %v3300
        %v3302 = vrot.slane %v3234, 5
        %v3303 = vrot.slane %v3230, 6
        %v3304 = vor.u32 %v3302, %v3303
        %v3305 = vsel %vm3286, %v3300, %v3304
        %v3306 = vshrl.u32 %v3196, 16
        %v3308 = vrot.slane %v3306, 5
        %v3309 = vrot.slane %v3238, 6
        %v3310 = vor.u32 %v3308, %v3309
        %v3311 = vsel %vm3286, %v3304, %v3310
        %vm3317 = vcmask 1041408
        %v3318 = vrot.slane %v3191, 6
        %v3319 = vrot.slane %v3192, 6
        %v3320 = vsel %vm3317, %v3318, %v3319
        %v3321 = vrot.slane %v3193, 6
        %v3322 = vsel %vm3317, %v3319, %v3321
        %v3323 = vrot.slane %v3194, 6
        %v3324 = vsel %vm3317, %v3321, %v3323
        %v3325 = vrot.slane %v3195, 6
        %v3326 = vsel %vm3317, %v3323, %v3325
        %v3327 = vrot.slane %v3196, 6
        %v3328 = vsel %vm3317, %v3325, %v3327
        %v3335 = vrot.slane %v3192, 2
        %v3336 = vrot.slane %v3193, 2
        %v3337 = vsel %vm1081, %v3335, %v3336
        %v3338 = vrot.slane %v3194, 2
        %v3339 = vsel %vm1081, %v3336, %v3338
        %v3340 = vrot.slane %v3195, 2
        %v3341 = vsel %vm1081, %v3338, %v3340
        %v3342 = vrot.slane %v3196, 2
        %v3343 = vsel %vm1081, %v3340, %v3342
        %v3344 = vrot.slane %v3197, 2
        %v3345 = vsel %vm1081, %v3342, %v3344
        %v3351 = vrot.slane %v3210, 2
        %v3352 = vrot.slane %v3206, 3
        %v3353 = vor.u32 %v3351, %v3352
        %v3354 = vrot.slane %v3218, 2
        %v3355 = vrot.slane %v3214, 3
        %v3356 = vor.u32 %v3354, %v3355
        %v3357 = vsel %vm1149, %v3353, %v3356
        %v3358 = vrot.slane %v3226, 2
        %v3359 = vrot.slane %v3222, 3
        %v3360 = vor.u32 %v3358, %v3359
        %v3361 = vsel %vm1149, %v3356, %v3360
        %v3362 = vrot.slane %v3234, 2
        %v3363 = vrot.slane %v3230, 3
        %v3364 = vor.u32 %v3362, %v3363
        %v3365 = vsel %vm1149, %v3360, %v3364
        %v3366 = vrot.slane %v3306, 2
        %v3367 = vrot.slane %v3238, 3
        %v3368 = vor.u32 %v3366, %v3367
        %v3369 = vsel %vm1149, %v3364, %v3368
        %v3371 = vshrl.u32 %v3197, 16
        %v3373 = vrot.slane %v3371, 2
        %v3374 = vshll.u32 %v3197, 16
        %v3376 = vrot.slane %v3374, 3
        %v3377 = vor.u32 %v3373, %v3376
        %v3378 = vsel %vm1149, %v3368, %v3377
        %v3384 = vrot.slane %v3192, 3
        %v3385 = vrot.slane %v3193, 3
        %v3386 = vsel %vm1253, %v3384, %v3385
        %v3387 = vrot.slane %v3194, 3
        %v3388 = vsel %vm1253, %v3385, %v3387
        %v3389 = vrot.slane %v3195, 3
        %v3390 = vsel %vm1253, %v3387, %v3389
        %v3391 = vrot.slane %v3196, 3
        %v3392 = vsel %vm1253, %v3389, %v3391
        %v3393 = vrot.slane %v3197, 3
        %v3394 = vsel %vm1253, %v3391, %v3393
        %v3400 = vld [vmem:[%s4] sm:$0xf]
        %v3401 = vld [vmem:[%s4 + $0x4] sm:$0xf]
        %v3402 = vld [vmem:[%s4 + $0x8] sm:$0xf]
        %v3403 = vld [vmem:[%s4 + $0xc] sm:$0xf]
        %v3404 = vld [vmem:[%s4 + $0x10] sm:$0xf]
        %v3405 = vld [vmem:[%s4 + $0x14] sm:$0xf]
        %v3406 = vld [vmem:[%s4 + $0x18] sm:$0xf]
        %v3407 = vld [vmem:[%s4 + $0x1c] sm:$0xf]
        %v3408 = vld [vmem:[%s4 + $0x20] sm:$0xf]
        %v3409 = vld [vmem:[%s4 + $0x24] sm:$0xf]
        %v3410 = vld [vmem:[%s4 + $0x28] sm:$0xf]
        %v3411 = vld [vmem:[%s4 + $0x2c] sm:$0xf]
        %v3412 = vld [vmem:[%s4 + $0x30] sm:$0xf]
        %v3413 = vld [vmem:[%s4 + $0x34] sm:$0xf]
        %v3414 = vld [vmem:[%s4 + $0x38] sm:$0xf]
        %v3415 = vld [vmem:[%s4 + $0x3c] sm:$0xf]
        %v3416 = vld [vmem:[%s4 + $0x40] sm:$0xf]
        %v3417 = vld [vmem:[%s4 + $0x44] sm:$0xf]
        %v3418 = vld [vmem:[%s4 + $0x48] sm:$0xf]
        %v3419 = vld [vmem:[%s4 + $0x4c] sm:$0xf]
        %v3420 = vld [vmem:[%s4 + $0x50] sm:$0xf]
        %v3421 = vld [vmem:[%s4 + $0x54] sm:$0xf]
        %v3422 = vld [vmem:[%s4 + $0x58] sm:$0xf]
        %v3423 = vld [vmem:[%s4 + $0x5c] sm:$0xf]
        %v3424 = vld [vmem:[%s4 + $0x60] sm:$0xf]
        %v3425 = vld [vmem:[%s4 + $0x64] sm:$0xf]
        %v3426 = vld [vmem:[%s4 + $0x68] sm:$0xf]
        %v3427 = vld [vmem:[%s4 + $0x6c] sm:$0xf]
        %v3428 = vld [vmem:[%s4 + $0x70] sm:$0xf]
        %v3429 = vld [vmem:[%s4 + $0x74] sm:$0xf]
        %v3430 = vld [vmem:[%s4 + $0x78] sm:$0xf]
        %v3431 = vld [vmem:[%s4 + $0x7c] sm:$0xf]
        %v3432 = vld [vmem:[%s4 + $0x80] sm:$0xf]
        %v3433 = vld [vmem:[%s4 + $0x84] sm:$0xf]
        %v3434 = vld [vmem:[%s4 + $0x88] sm:$0xf]
        %v3435 = vld [vmem:[%s4 + $0x8c] sm:$0xf]
        %v3436 = vld [vmem:[%s4 + $0x90] sm:$0xf]
        %v3437 = vld [vmem:[%s4 + $0x94] sm:$0xf]
        %v3438 = vld [vmem:[%s4 + $0x98] sm:$0xf]
        %v3439 = vld [vmem:[%s4 + $0x9c] sm:$0xf]
        %v3440 = vld [vmem:[%s4 + $0xa0] sm:$0xf]
        %v3441 = vld [vmem:[%s4 + $0xa4] sm:$0xf]
        %v3442 = vld [vmem:[%s4 + $0xa8] sm:$0xf]
        %v3443 = vld [vmem:[%s4 + $0xac] sm:$0xf]
        %v3444 = vld [vmem:[%s4 + $0xb0] sm:$0xf]
        %v3445 = vld [vmem:[%s4 + $0xb4] sm:$0xf]
        %v3446 = vld [vmem:[%s4 + $0xb8] sm:$0xf]
        %v3447 = vld [vmem:[%s4 + $0xbc] sm:$0xf]
        %v3448 = vld [vmem:[%s4 + $0xc0] sm:$0xf]
        %v3449 = vld [vmem:[%s4 + $0xc4] sm:$0xf]
        %v3450 = vld [vmem:[%s4 + $0xc8] sm:$0xf]
        %v3451 = vld [vmem:[%s4 + $0xcc] sm:$0xf]
        %v3452 = vld [vmem:[%s4 + $0xd0] sm:$0xf]
        %v3453 = vld [vmem:[%s4 + $0xd4] sm:$0xf]
        %v3454 = vld [vmem:[%s4 + $0xd8] sm:$0xf]
        %v3455 = vld [vmem:[%s4 + $0xdc] sm:$0xf]
        %v3456 = vld [vmem:[%s4 + $0xe0] sm:$0xf]
        %v3457 = vld [vmem:[%s4 + $0xe4] sm:$0xf]
        %v3458 = vld [vmem:[%s4 + $0xe8] sm:$0xf]
        %v3459 = vld [vmem:[%s4 + $0xec] sm:$0xf]
        %v3460 = vld [vmem:[%s4 + $0xf0] sm:$0xf]
        %v3461 = vld [vmem:[%s4 + $0xf4] sm:$0xf]
        %v3462 = vld [vmem:[%s4 + $0xf8] sm:$0xf]
        %v3463 = vld [vmem:[%s4 + $0xfc] sm:$0xf]
        %v3464 = vld [vmem:[%s4 + $0x100] sm:$0xf]
        %v3465 = vld [vmem:[%s4 + $0x104] sm:$0xf]
        %v3466 = vld [vmem:[%s4 + $0x108] sm:$0xf]
        %v3467 = vld [vmem:[%s4 + $0x10c] sm:$0xf]
        %v3468 = vld [vmem:[%s4 + $0x110] sm:$0xf]
        %v3469 = vld [vmem:[%s4 + $0x114] sm:$0xf]
        %v3470 = vld [vmem:[%s4 + $0x118] sm:$0xf]
        %v3471 = vld [vmem:[%s4 + $0x11c] sm:$0xf]
        %v3472 = vld [vmem:[%s4 + $0x120] sm:$0xf]
        %v3473 = vld [vmem:[%s4 + $0x124] sm:$0xf]
        %v3474 = vld [vmem:[%s4 + $0x128] sm:$0xf]
        %v3475 = vld [vmem:[%s4 + $0x12c] sm:$0xf]
        %v3476 = vld [vmem:[%s4 + $0x130] sm:$0xf]
        %v3477 = vld [vmem:[%s4 + $0x134] sm:$0xf]
        %v3478 = vld [vmem:[%s4 + $0x138] sm:$0xf]
        %v3479 = vld [vmem:[%s4 + $0x13c] sm:$0xf]
        %v3480 = vld [vmem:[%s4 + $0x140] sm:$0xf]
        %v3481 = vld [vmem:[%s4 + $0x144] sm:$0xf]
        %v3482 = vld [vmem:[%s4 + $0x148] sm:$0xf]
        %v3483 = vld [vmem:[%s4 + $0x14c] sm:$0xf]
        %v3484 = vld [vmem:[%s4 + $0x150] sm:$0xf]
        %v3485 = vld [vmem:[%s4 + $0x154] sm:$0xf]
        %v3486 = vld [vmem:[%s4 + $0x158] sm:$0xf]
        %v3487 = vld [vmem:[%s4 + $0x15c] sm:$0xf]
        %v3488 = vld [vmem:[%s4 + $0x160] sm:$0xf]
        %v3489 = vld [vmem:[%s4 + $0x164] sm:$0xf]
        %v3490 = vld [vmem:[%s4 + $0x168] sm:$0xf]
        %v3491 = vld [vmem:[%s4 + $0x16c] sm:$0xf]
        %v3492 = vld [vmem:[%s4 + $0x170] sm:$0xf]
        %v3493 = vld [vmem:[%s4 + $0x174] sm:$0xf]
        %v3494 = vld [vmem:[%s4 + $0x178] sm:$0xf]
        %v3495 = vld [vmem:[%s4 + $0x17c] sm:$0xf]
        %v3496 = vld [vmem:[%s4 + $0x180] sm:$0xf]
        %v3497 = vld [vmem:[%s4 + $0x184] sm:$0xf]
        %v3498 = vld [vmem:[%s4 + $0x188] sm:$0xf]
        %v3499 = vld [vmem:[%s4 + $0x18c] sm:$0xf]
        %v3500 = vld [vmem:[%s4 + $0x190] sm:$0xf]
        %v3501 = vld [vmem:[%s4 + $0x194] sm:$0xf]
        %v3502 = vld [vmem:[%s4 + $0x198] sm:$0xf]
        %v3503 = vld [vmem:[%s4 + $0x19c] sm:$0xf]
        %v3504 = vld [vmem:[%s4 + $0x1a0] sm:$0xf]
        %v3505 = vld [vmem:[%s4 + $0x1a4] sm:$0xf]
        %v3506 = vld [vmem:[%s4 + $0x1a8] sm:$0xf]
        %v3507 = vld [vmem:[%s4 + $0x1ac] sm:$0xf]
        %v3508 = vld [vmem:[%s4 + $0x1b0] sm:$0xf]
        %v3509 = vld [vmem:[%s4 + $0x1b4] sm:$0xf]
        %v3510 = vld [vmem:[%s4 + $0x1b8] sm:$0xf]
        %v3511 = vld [vmem:[%s4 + $0x1bc] sm:$0xf]
        %v3512 = vld [vmem:[%s4 + $0x1c0] sm:$0xf]
        %v3513 = vld [vmem:[%s4 + $0x1c4] sm:$0xf]
        %v3514 = vld [vmem:[%s4 + $0x1c8] sm:$0xf]
        %v3515 = vld [vmem:[%s4 + $0x1cc] sm:$0xf]
        %v3516 = vld [vmem:[%s4 + $0x1d0] sm:$0xf]
        %v3517 = vld [vmem:[%s4 + $0x1d4] sm:$0xf]
        %v3518 = vld [vmem:[%s4 + $0x1d8] sm:$0xf]
        %v3519 = vld [vmem:[%s4 + $0x1dc] sm:$0xf]
        %v3520 = vld [vmem:[%s4 + $0x1e0] sm:$0xf]
        %v3521 = vld [vmem:[%s4 + $0x1e4] sm:$0xf]
        %v3522 = vld [vmem:[%s4 + $0x1e8] sm:$0xf]
        %v3523 = vld [vmem:[%s4 + $0x1ec] sm:$0xf]
        %v3524 = vld [vmem:[%s4 + $0x1f0] sm:$0xf]
        %v3525 = vld [vmem:[%s4 + $0x1f4] sm:$0xf]
        %v3526 = vld [vmem:[%s4 + $0x1f8] sm:$0xf]
        %v3527 = vld [vmem:[%s4 + $0x1fc] sm:$0xf]
        %v3528 = vld [vmem:[%s4 + $0x200] sm:$0xf]
        %v3529 = vld [vmem:[%s4 + $0x204] sm:$0xf]
        %v3530 = vld [vmem:[%s4 + $0x208] sm:$0xf]
        %v3531 = vld [vmem:[%s4 + $0x20c] sm:$0xf]
        %v3532 = vld [vmem:[%s4 + $0x210] sm:$0xf]
        %v3533 = vld [vmem:[%s4 + $0x214] sm:$0xf]
        %v3534 = vld [vmem:[%s4 + $0x218] sm:$0xf]
        %v3535 = vld [vmem:[%s4 + $0x21c] sm:$0xf]
        %v3536 = vld [vmem:[%s4 + $0x220] sm:$0xf]
        %v3537 = vld [vmem:[%s4 + $0x224] sm:$0xf]
        %v3538 = vld [vmem:[%s4 + $0x228] sm:$0xf]
        %v3539 = vld [vmem:[%s4 + $0x22c] sm:$0xf]
        %v3540 = vld [vmem:[%s4 + $0x230] sm:$0xf]
        %v3541 = vld [vmem:[%s4 + $0x234] sm:$0xf]
        %v3542 = vld [vmem:[%s4 + $0x238] sm:$0xf]
        %v3543 = vld [vmem:[%s4 + $0x23c] sm:$0xf]
        %v3544 = vld [vmem:[%s5] sm:$0x1]
        %v3546 = vlaneseq
        %v3547 = vshrl.u32 %v3546, 7
        %v3548 = vsub.s32 0, %v3547
        %v3549 = vrot.slane %v3544, %v3548
        %v3695 = vunpack.c.l.b16 %v3400
        %v3696 = vunpack.c.l.b16 %v3401
        %v3697 = vunpack.c.l.b16 %v3402
        %v3698 = vunpack.c.l.b16 %v3403
        %v3699 = vunpack.c.l.b16 %v3404
        %v3700 = vunpack.c.l.b16 %v3405
        %v3701 = vunpack.c.l.b16 %v3406
        %v3702 = vunpack.c.l.b16 %v3407
        %v3703 = vunpack.c.l.b16 %v3408
        %v3704 = vunpack.c.l.b16 %v3409
        %v3705 = vunpack.c.l.b16 %v3410
        %v3706 = vunpack.c.l.b16 %v3411
        %v3707 = vunpack.c.l.b16 %v3412
        %v3708 = vunpack.c.l.b16 %v3413
        %v3709 = vunpack.c.l.b16 %v3414
        %v3710 = vunpack.c.l.b16 %v3415
        %v3711 = vunpack.c.l.b16 %v3416
        %v3712 = vunpack.c.l.b16 %v3417
        %v3713 = vunpack.c.l.b16 %v3418
        %v3714 = vunpack.c.l.b16 %v3419
        %v3715 = vunpack.c.l.b16 %v3420
        %v3716 = vunpack.c.l.b16 %v3421
        %v3717 = vunpack.c.l.b16 %v3422
        %v3718 = vunpack.c.l.b16 %v3423
        %v3719 = vunpack.c.l.b16 %v3424
        %v3720 = vunpack.c.l.b16 %v3425
        %v3721 = vunpack.c.l.b16 %v3426
        %v3722 = vunpack.c.l.b16 %v3427
        %v3723 = vunpack.c.l.b16 %v3428
        %v3724 = vunpack.c.l.b16 %v3429
        %v3725 = vunpack.c.l.b16 %v3430
        %v3726 = vunpack.c.l.b16 %v3431
        %v3727 = vunpack.c.l.b16 %v3432
        %v3728 = vunpack.c.l.b16 %v3433
        %v3729 = vunpack.c.l.b16 %v3434
        %v3730 = vunpack.c.l.b16 %v3435
        %v3731 = vunpack.c.l.b16 %v3436
        %v3732 = vunpack.c.l.b16 %v3437
        %v3733 = vunpack.c.l.b16 %v3438
        %v3734 = vunpack.c.l.b16 %v3439
        %v3735 = vunpack.c.l.b16 %v3440
        %v3736 = vunpack.c.l.b16 %v3441
        %v3737 = vunpack.c.l.b16 %v3442
        %v3738 = vunpack.c.l.b16 %v3443
        %v3739 = vunpack.c.l.b16 %v3444
        %v3740 = vunpack.c.l.b16 %v3445
        %v3741 = vunpack.c.l.b16 %v3446
        %v3742 = vunpack.c.l.b16 %v3447
        %v3743 = vunpack.c.l.b16 %v3448
        %v3744 = vunpack.c.l.b16 %v3449
        %v3745 = vunpack.c.l.b16 %v3450
        %v3746 = vunpack.c.l.b16 %v3451
        %v3747 = vunpack.c.l.b16 %v3452
        %v3748 = vunpack.c.l.b16 %v3453
        %v3749 = vunpack.c.l.b16 %v3454
        %v3750 = vunpack.c.l.b16 %v3455
        %v3751 = vunpack.c.l.b16 %v3456
        %v3752 = vunpack.c.l.b16 %v3457
        %v3753 = vunpack.c.l.b16 %v3458
        %v3754 = vunpack.c.l.b16 %v3459
        %v3755 = vunpack.c.l.b16 %v3460
        %v3756 = vunpack.c.l.b16 %v3461
        %v3757 = vunpack.c.l.b16 %v3462
        %v3758 = vunpack.c.l.b16 %v3463
        %v3759 = vunpack.c.l.b16 %v3464
        %v3760 = vunpack.c.l.b16 %v3465
        %v3761 = vunpack.c.l.b16 %v3466
        %v3762 = vunpack.c.l.b16 %v3467
        %v3763 = vunpack.c.l.b16 %v3468
        %v3764 = vunpack.c.l.b16 %v3469
        %v3765 = vunpack.c.l.b16 %v3470
        %v3766 = vunpack.c.l.b16 %v3471
        %v3767 = vunpack.c.l.b16 %v3472
        %v3768 = vunpack.c.l.b16 %v3473
        %v3769 = vunpack.c.l.b16 %v3474
        %v3770 = vunpack.c.l.b16 %v3475
        %v3771 = vunpack.c.l.b16 %v3476
        %v3772 = vunpack.c.l.b16 %v3477
        %v3773 = vunpack.c.l.b16 %v3478
        %v3774 = vunpack.c.l.b16 %v3479
        %v3775 = vunpack.c.l.b16 %v3480
        %v3776 = vunpack.c.l.b16 %v3481
        %v3777 = vunpack.c.l.b16 %v3482
        %v3778 = vunpack.c.l.b16 %v3483
        %v3779 = vunpack.c.l.b16 %v3484
        %v3780 = vunpack.c.l.b16 %v3485
        %v3781 = vunpack.c.l.b16 %v3486
        %v3782 = vunpack.c.l.b16 %v3487
        %v3783 = vunpack.c.l.b16 %v3488
        %v3784 = vunpack.c.l.b16 %v3489
        %v3785 = vunpack.c.l.b16 %v3490
        %v3786 = vunpack.c.l.b16 %v3491
        %v3787 = vunpack.c.l.b16 %v3492
        %v3788 = vunpack.c.l.b16 %v3493
        %v3789 = vunpack.c.l.b16 %v3494
        %v3790 = vunpack.c.l.b16 %v3495
        %v3791 = vunpack.c.l.b16 %v3496
        %v3792 = vunpack.c.l.b16 %v3497
        %v3793 = vunpack.c.l.b16 %v3498
        %v3794 = vunpack.c.l.b16 %v3499
        %v3795 = vunpack.c.l.b16 %v3500
        %v3796 = vunpack.c.l.b16 %v3501
        %v3797 = vunpack.c.l.b16 %v3502
        %v3798 = vunpack.c.l.b16 %v3503
        %v3799 = vunpack.c.l.b16 %v3504
        %v3800 = vunpack.c.l.b16 %v3505
        %v3801 = vunpack.c.l.b16 %v3506
        %v3802 = vunpack.c.l.b16 %v3507
        %v3803 = vunpack.c.l.b16 %v3508
        %v3804 = vunpack.c.l.b16 %v3509
        %v3805 = vunpack.c.l.b16 %v3510
        %v3806 = vunpack.c.l.b16 %v3511
        %v3807 = vunpack.c.l.b16 %v3512
        %v3808 = vunpack.c.l.b16 %v3513
        %v3809 = vunpack.c.l.b16 %v3514
        %v3810 = vunpack.c.l.b16 %v3515
        %v3811 = vunpack.c.l.b16 %v3516
        %v3812 = vunpack.c.l.b16 %v3517
        %v3813 = vunpack.c.l.b16 %v3518
        %v3814 = vunpack.c.l.b16 %v3519
        %v3815 = vunpack.c.l.b16 %v3520
        %v3816 = vunpack.c.l.b16 %v3521
        %v3817 = vunpack.c.l.b16 %v3522
        %v3818 = vunpack.c.l.b16 %v3523
        %v3819 = vunpack.c.l.b16 %v3524
        %v3820 = vunpack.c.l.b16 %v3525
        %v3821 = vunpack.c.l.b16 %v3526
        %v3822 = vunpack.c.l.b16 %v3527
        %v3823 = vunpack.c.l.b16 %v3528
        %v3824 = vunpack.c.l.b16 %v3529
        %v3825 = vunpack.c.l.b16 %v3530
        %v3826 = vunpack.c.l.b16 %v3531
        %v3827 = vunpack.c.l.b16 %v3532
        %v3828 = vunpack.c.l.b16 %v3533
        %v3829 = vunpack.c.l.b16 %v3534
        %v3830 = vunpack.c.l.b16 %v3535
        %v3831 = vunpack.c.l.b16 %v3536
        %v3832 = vunpack.c.l.b16 %v3537
        %v3833 = vunpack.c.l.b16 %v3538
        %v3834 = vunpack.c.l.b16 %v3539
        %v3835 = vunpack.c.l.b16 %v3540
        %v3836 = vunpack.c.l.b16 %v3541
        %v3837 = vunpack.c.l.b16 %v3542
        %v3838 = vunpack.c.l.b16 %v3543
        %v3839 = vpack.c.b16 %v3696, %v3695
        %v3840 = vpack.c.b16 %v3698, %v3697
        %v3841 = vpack.c.b16 %v3700, %v3699
        %v3842 = vpack.c.b16 %v3702, %v3701
        %v3843 = vpack.c.b16 %v3704, %v3703
        %v3844 = vpack.c.b16 %v3706, %v3705
        %v3845 = vpack.c.b16 %v3708, %v3707
        %v3846 = vpack.c.b16 %v3710, %v3709
        %v3847 = vpack.c.b16 %v3712, %v3711
        %v3848 = vpack.c.b16 %v3714, %v3713
        %v3849 = vpack.c.b16 %v3716, %v3715
        %v3850 = vpack.c.b16 %v3718, %v3717
        %v3851 = vpack.c.b16 %v3720, %v3719
        %v3852 = vpack.c.b16 %v3722, %v3721
        %v3853 = vpack.c.b16 %v3724, %v3723
        %v3854 = vpack.c.b16 %v3726, %v3725
        %v3855 = vpack.c.b16 %v3728, %v3727
        %v3856 = vpack.c.b16 %v3730, %v3729
        %v3857 = vpack.c.b16 %v3732, %v3731
        %v3858 = vpack.c.b16 %v3734, %v3733
        %v3859 = vpack.c.b16 %v3736, %v3735
        %v3860 = vpack.c.b16 %v3738, %v3737
        %v3861 = vpack.c.b16 %v3740, %v3739
        %v3862 = vpack.c.b16 %v3742, %v3741
        %v3863 = vpack.c.b16 %v3744, %v3743
        %v3864 = vpack.c.b16 %v3746, %v3745
        %v3865 = vpack.c.b16 %v3748, %v3747
        %v3866 = vpack.c.b16 %v3750, %v3749
        %v3867 = vpack.c.b16 %v3752, %v3751
        %v3868 = vpack.c.b16 %v3754, %v3753
        %v3869 = vpack.c.b16 %v3756, %v3755
        %v3870 = vpack.c.b16 %v3758, %v3757
        %v3871 = vpack.c.b16 %v3760, %v3759
        %v3872 = vpack.c.b16 %v3762, %v3761
        %v3873 = vpack.c.b16 %v3764, %v3763
        %v3874 = vpack.c.b16 %v3766, %v3765
        %v3875 = vpack.c.b16 %v3768, %v3767
        %v3876 = vpack.c.b16 %v3770, %v3769
        %v3877 = vpack.c.b16 %v3772, %v3771
        %v3878 = vpack.c.b16 %v3774, %v3773
        %v3879 = vpack.c.b16 %v3776, %v3775
        %v3880 = vpack.c.b16 %v3778, %v3777
        %v3881 = vpack.c.b16 %v3780, %v3779
        %v3882 = vpack.c.b16 %v3782, %v3781
        %v3883 = vpack.c.b16 %v3784, %v3783
        %v3884 = vpack.c.b16 %v3786, %v3785
        %v3885 = vpack.c.b16 %v3788, %v3787
        %v3886 = vpack.c.b16 %v3790, %v3789
        %v3887 = vpack.c.b16 %v3792, %v3791
        %v3888 = vpack.c.b16 %v3794, %v3793
        %v3889 = vpack.c.b16 %v3796, %v3795
        %v3890 = vpack.c.b16 %v3798, %v3797
        %v3891 = vpack.c.b16 %v3800, %v3799
        %v3892 = vpack.c.b16 %v3802, %v3801
        %v3893 = vpack.c.b16 %v3804, %v3803
        %v3894 = vpack.c.b16 %v3806, %v3805
        %v3895 = vpack.c.b16 %v3808, %v3807
        %v3896 = vpack.c.b16 %v3810, %v3809
        %v3897 = vpack.c.b16 %v3812, %v3811
        %v3898 = vpack.c.b16 %v3814, %v3813
        %v3899 = vpack.c.b16 %v3816, %v3815
        %v3900 = vpack.c.b16 %v3818, %v3817
        %v3901 = vpack.c.b16 %v3820, %v3819
        %v3902 = vpack.c.b16 %v3822, %v3821
        %v3903 = vpack.c.b16 %v3824, %v3823
        %v3904 = vpack.c.b16 %v3826, %v3825
        %v3905 = vpack.c.b16 %v3828, %v3827
        %v3906 = vpack.c.b16 %v3830, %v3829
        %v3907 = vpack.c.b16 %v3832, %v3831
        %v3908 = vpack.c.b16 %v3834, %v3833
        %v3909 = vpack.c.b16 %v3836, %v3835
        %v3910 = vpack.c.b16 %v3838, %v3837
        %3983 = vmatprep.subr.bf16.mxu0 0
        %3984 = vmatpush1.bf16.msra.mxu0 %v3839
        %3985 = vmatprep.subr.bf16.mxu0 0
        %3986 = vmatpush1.bf16.msra.mxu0 %v3840
        %3987 = vmatprep.subr.bf16.mxu0 0
        %3988 = vmatpush1.bf16.msra.mxu0 %v3841
        %3989 = vmatprep.subr.bf16.mxu0 0
        %3990 = vmatpush1.bf16.msra.mxu0 %v3842
        %3991 = vmatprep.subr.bf16.mxu0 0
        %3992 = vmatpush1.bf16.msra.mxu0 %v3843
        %3993 = vmatprep.subr.bf16.mxu0 0
        %3994 = vmatpush1.bf16.msra.mxu0 %v3844
        %3995 = vmatprep.subr.bf16.mxu0 0
        %3996 = vmatpush1.bf16.msra.mxu0 %v3845
        %3997 = vmatprep.subr.bf16.mxu0 0
        %3998 = vmatpush1.bf16.msra.mxu0 %v3846
        %3999 = vmatprep.subr.bf16.mxu0 0
        %4000 = vmatpush1.bf16.msra.mxu0 %v3847
        %4001 = vmatprep.subr.bf16.mxu0 0
        %4002 = vmatpush1.bf16.msra.mxu0 %v3848
        %4003 = vmatprep.subr.bf16.mxu0 0
        %4004 = vmatpush1.bf16.msra.mxu0 %v3849
        %4005 = vmatprep.subr.bf16.mxu0 0
        %4006 = vmatpush1.bf16.msra.mxu0 %v3850
        %4007 = vmatprep.subr.bf16.mxu0 0
        %4008 = vmatpush1.bf16.msra.mxu0 %v3851
        %4009 = vmatprep.subr.bf16.mxu0 0
        %4010 = vmatpush1.bf16.msra.mxu0 %v3852
        %4011 = vmatprep.subr.bf16.mxu0 0
        %4012 = vmatpush1.bf16.msra.mxu0 %v3853
        %4013 = vmatprep.subr.bf16.mxu0 0
        %4014 = vmatpush1.bf16.msra.mxu0 %v3854
        %4015 = vmatprep.mubr.bf16.mxu0 %v3209
        %4016 = vmatmul.mubr.bf16.gmra.mrb[0].mxu0 %v3191
        %v4017 = vpop.f32.mrb[0].mxu0
        %v4018 = vadd.f32 %v3549, %v4017
        %v4019 = vpop.f32.mrb[0].mxu0
        %v4020 = vpop.f32.mrb[0].mxu0
        %v4021 = vadd.f32 %v3549, %v4020
        %v4022 = vpop.f32.mrb[0].mxu0
        %4023 = vmatprep.mubr.bf16.mxu0 %v3217
        %4024 = vmatmul.mubr.bf16.gmra.mrb[0].mxu0 %v3192
        %v4025 = vpop.f32.mrb[0].mxu0
        %v4026 = vadd.f32 %v3549, %v4025
        %v4027 = vpop.f32.mrb[0].mxu0
        %v4028 = vpop.f32.mrb[0].mxu0
        %v4029 = vadd.f32 %v3549, %v4028
        %v4030 = vpop.f32.mrb[0].mxu0
        %4031 = vmatprep.mubr.bf16.mxu0 %v3225
        %4032 = vmatmul.mubr.bf16.gmra.mrb[0].mxu0 %v3193
        %v4033 = vpop.f32.mrb[0].mxu0
        %v4034 = vadd.f32 %v3549, %v4033
        %v4035 = vpop.f32.mrb[0].mxu0
        %v4036 = vpop.f32.mrb[0].mxu0
        %v4037 = vadd.f32 %v3549, %v4036
        %v4038 = vpop.f32.mrb[0].mxu0
        %4039 = vmatprep.mubr.bf16.mxu0 %v3233
        %4040 = vmatmul.mubr.bf16.gmra.mrb[0].mxu0 %v3194
        %v4041 = vpop.f32.mrb[0].mxu0
        %v4042 = vadd.f32 %v3549, %v4041
        %v4043 = vpop.f32.mrb[0].mxu0
        %v4044 = vpop.f32.mrb[0].mxu0
        %v4045 = vadd.f32 %v3549, %v4044
        %v4046 = vpop.f32.mrb[0].mxu0
        %4047 = vmatprep.mubr.bf16.mxu0 %v3241
        %4048 = vmatmul.mubr.bf16.gmra.mrb[0].mxu0 %v3195
        %v4049 = vpop.f32.mrb[0].mxu0
        %v4050 = vadd.f32 %v3549, %v4049
        %v4051 = vpop.f32.mrb[0].mxu0
        %v4052 = vpop.f32.mrb[0].mxu0
        %v4053 = vadd.f32 %v3549, %v4052
        %v4054 = vpop.f32.mrb[0].mxu0
        %4055 = vdwg.mxu0
        %4056 = vmatprep.subr.bf16.mxu0 0
        %4057 = vmatpush1.bf16.msra.mxu0 %v3855
        %4058 = vmatprep.subr.bf16.mxu0 0
        %4059 = vmatpush1.bf16.msra.mxu0 %v3856
        %4060 = vmatprep.subr.bf16.mxu0 0
        %4061 = vmatpush1.bf16.msra.mxu0 %v3857
        %4062 = vmatprep.subr.bf16.mxu0 0
        %4063 = vmatpush1.bf16.msra.mxu0 %v3858
        %4064 = vmatprep.subr.bf16.mxu0 0
        %4065 = vmatpush1.bf16.msra.mxu0 %v3859
        %4066 = vmatprep.subr.bf16.mxu0 0
        %4067 = vmatpush1.bf16.msra.mxu0 %v3860
        %4068 = vmatprep.subr.bf16.mxu0 0
        %4069 = vmatpush1.bf16.msra.mxu0 %v3861
        %4070 = vmatprep.subr.bf16.mxu0 0
        %4071 = vmatpush1.bf16.msra.mxu0 %v3862
        %4072 = vmatprep.subr.bf16.mxu0 0
        %4073 = vmatpush1.bf16.msra.mxu0 %v3863
        %4074 = vmatprep.subr.bf16.mxu0 0
        %4075 = vmatpush1.bf16.msra.mxu0 %v3864
        %4076 = vmatprep.subr.bf16.mxu0 0
        %4077 = vmatpush1.bf16.msra.mxu0 %v3865
        %4078 = vmatprep.subr.bf16.mxu0 0
        %4079 = vmatpush1.bf16.msra.mxu0 %v3866
        %4080 = vmatprep.subr.bf16.mxu0 0
        %4081 = vmatpush1.bf16.msra.mxu0 %v3867
        %4082 = vmatprep.subr.bf16.mxu0 0
        %4083 = vmatpush1.bf16.msra.mxu0 %v3868
        %4084 = vmatprep.subr.bf16.mxu0 0
        %4085 = vmatpush1.bf16.msra.mxu0 %v3869
        %4086 = vmatprep.subr.bf16.mxu0 0
        %4087 = vmatpush1.bf16.msra.mxu0 %v3870
        %4088 = vmatprep.mubr.bf16.mxu0 %v3272
        %4089 = vmatmul.mubr.bf16.gmra.mrb[0].mxu0 %v3255
        %v4090 = vpop.f32.mrb[0].mxu0
        %v4091 = vadd.f32 %v4018, %v4090
        %v4092 = vpop.f32.mrb[0].mxu0
        %v4093 = vpop.f32.mrb[0].mxu0
        %v4094 = vadd.f32 %v4021, %v4093
        %v4095 = vpop.f32.mrb[0].mxu0
        %4096 = vmatprep.mubr.bf16.mxu0 %v3274
        %4097 = vmatmul.mubr.bf16.gmra.mrb[0].mxu0 %v3257
        %v4098 = vpop.f32.mrb[0].mxu0
        %v4099 = vadd.f32 %v4026, %v4098
        %v4100 = vpop.f32.mrb[0].mxu0
        %v4101 = vpop.f32.mrb[0].mxu0
        %v4102 = vadd.f32 %v4029, %v4101
        %v4103 = vpop.f32.mrb[0].mxu0
        %4104 = vmatprep.mubr.bf16.mxu0 %v3276
        %4105 = vmatmul.mubr.bf16.gmra.mrb[0].mxu0 %v3259
        %v4106 = vpop.f32.mrb[0].mxu0
        %v4107 = vadd.f32 %v4034, %v4106
        %v4108 = vpop.f32.mrb[0].mxu0
        %v4109 = vpop.f32.mrb[0].mxu0
        %v4110 = vadd.f32 %v4037, %v4109
        %v4111 = vpop.f32.mrb[0].mxu0
        %4112 = vmatprep.mubr.bf16.mxu0 %v3278
        %4113 = vmatmul.mubr.bf16.gmra.mrb[0].mxu0 %v3261
        %v4114 = vpop.f32.mrb[0].mxu0
        %v4115 = vadd.f32 %v4042, %v4114
        %v4116 = vpop.f32.mrb[0].mxu0
        %v4117 = vpop.f32.mrb[0].mxu0
        %v4118 = vadd.f32 %v4045, %v4117
        %v4119 = vpop.f32.mrb[0].mxu0
        %4120 = vmatprep.mubr.bf16.mxu0 %v3280
        %4121 = vmatmul.mubr.bf16.gmra.mrb[0].mxu0 %v3263
        %v4122 = vpop.f32.mrb[0].mxu0
        %v4123 = vadd.f32 %v4050, %v4122
        %v4124 = vpop.f32.mrb[0].mxu0
        %v4125 = vpop.f32.mrb[0].mxu0
        %v4126 = vadd.f32 %v4053, %v4125
        %v4127 = vpop.f32.mrb[0].mxu0
        %4128 = vdwg.mxu0
        %4129 = vmatprep.subr.bf16.mxu0 0
        %4130 = vmatpush1.bf16.msra.mxu0 %v3871
        %4131 = vmatprep.subr.bf16.mxu0 0
        %4132 = vmatpush1.bf16.msra.mxu0 %v3872
        %4133 = vmatprep.subr.bf16.mxu0 0
        %4134 = vmatpush1.bf16.msra.mxu0 %v3873
        %4135 = vmatprep.subr.bf16.mxu0 0
        %4136 = vmatpush1.bf16.msra.mxu0 %v3874
        %4137 = vmatprep.subr.bf16.mxu0 0
        %4138 = vmatpush1.bf16.msra.mxu0 %v3875
        %4139 = vmatprep.subr.bf16.mxu0 0
        %4140 = vmatpush1.bf16.msra.mxu0 %v3876
        %4141 = vmatprep.subr.bf16.mxu0 0
        %4142 = vmatpush1.bf16.msra.mxu0 %v3877
        %4143 = vmatprep.subr.bf16.mxu0 0
        %4144 = vmatpush1.bf16.msra.mxu0 %v3878
        %4145 = vmatprep.subr.bf16.mxu0 0
        %4146 = vmatpush1.bf16.msra.mxu0 %v3879
        %4147 = vmatprep.subr.bf16.mxu0 0
        %4148 = vmatpush1.bf16.msra.mxu0 %v3880
        %4149 = vmatprep.subr.bf16.mxu0 0
        %4150 = vmatpush1.bf16.msra.mxu0 %v3881
        %4151 = vmatprep.subr.bf16.mxu0 0
        %4152 = vmatpush1.bf16.msra.mxu0 %v3882
        %4153 = vmatprep.subr.bf16.mxu0 0
        %4154 = vmatpush1.bf16.msra.mxu0 %v3883
        %4155 = vmatprep.subr.bf16.mxu0 0
        %4156 = vmatpush1.bf16.msra.mxu0 %v3884
        %4157 = vmatprep.subr.bf16.mxu0 0
        %4158 = vmatpush1.bf16.msra.mxu0 %v3885
        %4159 = vmatprep.subr.bf16.mxu0 0
        %4160 = vmatpush1.bf16.msra.mxu0 %v3886
        %4161 = vmatprep.mubr.bf16.mxu0 %v3320
        %4162 = vmatmul.mubr.bf16.gmra.mrb[0].mxu0 %v3293
        %v4163 = vpop.f32.mrb[0].mxu0
        %v4164 = vadd.f32 %v4091, %v4163
        %v4165 = vpop.f32.mrb[0].mxu0
        %v4166 = vpop.f32.mrb[0].mxu0
        %v4167 = vadd.f32 %v4094, %v4166
        %v4168 = vpop.f32.mrb[0].mxu0
        %4169 = vmatprep.mubr.bf16.mxu0 %v3322
        %4170 = vmatmul.mubr.bf16.gmra.mrb[0].mxu0 %v3297
        %v4171 = vpop.f32.mrb[0].mxu0
        %v4172 = vadd.f32 %v4099, %v4171
        %v4173 = vpop.f32.mrb[0].mxu0
        %v4174 = vpop.f32.mrb[0].mxu0
        %v4175 = vadd.f32 %v4102, %v4174
        %v4176 = vpop.f32.mrb[0].mxu0
        %4177 = vmatprep.mubr.bf16.mxu0 %v3324
        %4178 = vmatmul.mubr.bf16.gmra.mrb[0].mxu0 %v3301
        %v4179 = vpop.f32.mrb[0].mxu0
        %v4180 = vadd.f32 %v4107, %v4179
        %v4181 = vpop.f32.mrb[0].mxu0
        %v4182 = vpop.f32.mrb[0].mxu0
        %v4183 = vadd.f32 %v4110, %v4182
        %v4184 = vpop.f32.mrb[0].mxu0
        %4185 = vmatprep.mubr.bf16.mxu0 %v3326
        %4186 = vmatmul.mubr.bf16.gmra.mrb[0].mxu0 %v3305
        %v4187 = vpop.f32.mrb[0].mxu0
        %v4188 = vadd.f32 %v4115, %v4187
        %v4189 = vpop.f32.mrb[0].mxu0
        %v4190 = vpop.f32.mrb[0].mxu0
        %v4191 = vadd.f32 %v4118, %v4190
        %v4192 = vpop.f32.mrb[0].mxu0
        %4193 = vmatprep.mubr.bf16.mxu0 %v3328
        %4194 = vmatmul.mubr.bf16.gmra.mrb[0].mxu0 %v3311
        %v4195 = vpop.f32.mrb[0].mxu0
        %v4196 = vadd.f32 %v4123, %v4195
        %v4197 = vpop.f32.mrb[0].mxu0
        %v4198 = vpop.f32.mrb[0].mxu0
        %v4199 = vadd.f32 %v4126, %v4198
        %v4200 = vpop.f32.mrb[0].mxu0
        %4201 = vdwg.mxu0
        %4202 = vmatprep.subr.bf16.mxu0 0
        %4203 = vmatpush1.bf16.msra.mxu0 %v3887
        %4204 = vmatprep.subr.bf16.mxu0 0
        %4205 = vmatpush1.bf16.msra.mxu0 %v3888
        %4206 = vmatprep.subr.bf16.mxu0 0
        %4207 = vmatpush1.bf16.msra.mxu0 %v3889
        %4208 = vmatprep.subr.bf16.mxu0 0
        %4209 = vmatpush1.bf16.msra.mxu0 %v3890
        %4210 = vmatprep.subr.bf16.mxu0 0
        %4211 = vmatpush1.bf16.msra.mxu0 %v3891
        %4212 = vmatprep.subr.bf16.mxu0 0
        %4213 = vmatpush1.bf16.msra.mxu0 %v3892
        %4214 = vmatprep.subr.bf16.mxu0 0
        %4215 = vmatpush1.bf16.msra.mxu0 %v3893
        %4216 = vmatprep.subr.bf16.mxu0 0
        %4217 = vmatpush1.bf16.msra.mxu0 %v3894
        %4218 = vmatprep.subr.bf16.mxu0 0
        %4219 = vmatpush1.bf16.msra.mxu0 %v3895
        %4220 = vmatprep.subr.bf16.mxu0 0
        %4221 = vmatpush1.bf16.msra.mxu0 %v3896
        %4222 = vmatprep.subr.bf16.mxu0 0
        %4223 = vmatpush1.bf16.msra.mxu0 %v3897
        %4224 = vmatprep.subr.bf16.mxu0 0
        %4225 = vmatpush1.bf16.msra.mxu0 %v3898
        %4226 = vmatprep.subr.bf16.mxu0 0
        %4227 = vmatpush1.bf16.msra.mxu0 %v3899
        %4228 = vmatprep.subr.bf16.mxu0 0
        %4229 = vmatpush1.bf16.msra.mxu0 %v3900
        %4230 = vmatprep.subr.bf16.mxu0 0
        %4231 = vmatpush1.bf16.msra.mxu0 %v3901
        %4232 = vmatprep.subr.bf16.mxu0 0
        %4233 = vmatpush1.bf16.msra.mxu0 %v3902
        %4234 = vmatprep.mubr.bf16.mxu0 %v3357
        %4235 = vmatmul.mubr.bf16.gmra.mrb[0].mxu0 %v3337
        %v4236 = vpop.f32.mrb[0].mxu0
        %v4237 = vadd.f32 %v4164, %v4236
        %v4238 = vpop.f32.mrb[0].mxu0
        %v4239 = vpop.f32.mrb[0].mxu0
        %v4240 = vadd.f32 %v4167, %v4239
        %v4241 = vpop.f32.mrb[0].mxu0
        %4242 = vmatprep.mubr.bf16.mxu0 %v3361
        %4243 = vmatmul.mubr.bf16.gmra.mrb[0].mxu0 %v3339
        %v4244 = vpop.f32.mrb[0].mxu0
        %v4245 = vadd.f32 %v4172, %v4244
        %v4246 = vpop.f32.mrb[0].mxu0
        %v4247 = vpop.f32.mrb[0].mxu0
        %v4248 = vadd.f32 %v4175, %v4247
        %v4249 = vpop.f32.mrb[0].mxu0
        %4250 = vmatprep.mubr.bf16.mxu0 %v3365
        %4251 = vmatmul.mubr.bf16.gmra.mrb[0].mxu0 %v3341
        %v4252 = vpop.f32.mrb[0].mxu0
        %v4253 = vadd.f32 %v4180, %v4252
        %v4254 = vpop.f32.mrb[0].mxu0
        %v4255 = vpop.f32.mrb[0].mxu0
        %v4256 = vadd.f32 %v4183, %v4255
        %v4257 = vpop.f32.mrb[0].mxu0
        %4258 = vmatprep.mubr.bf16.mxu0 %v3369
        %4259 = vmatmul.mubr.bf16.gmra.mrb[0].mxu0 %v3343
        %v4260 = vpop.f32.mrb[0].mxu0
        %v4261 = vadd.f32 %v4188, %v4260
        %v4262 = vpop.f32.mrb[0].mxu0
        %v4263 = vpop.f32.mrb[0].mxu0
        %v4264 = vadd.f32 %v4191, %v4263
        %v4265 = vpop.f32.mrb[0].mxu0
        %4266 = vmatprep.mubr.bf16.mxu0 %v3378
        %4267 = vmatmul.mubr.bf16.gmra.mrb[0].mxu0 %v3345
        %v4268 = vpop.f32.mrb[0].mxu0
        %v4269 = vadd.f32 %v4196, %v4268
        %v4270 = vpop.f32.mrb[0].mxu0
        %v4271 = vpop.f32.mrb[0].mxu0
        %v4272 = vadd.f32 %v4199, %v4271
        %v4273 = vpop.f32.mrb[0].mxu0
        %4274 = vdwg.mxu0
        %4275 = vmatprep.subr.bf16.mxu0 0
        %4276 = vmatpush1.bf16.msra.mxu0 %v3903
        %4277 = vmatprep.subr.bf16.mxu0 0
        %4278 = vmatpush1.bf16.msra.mxu0 %v3904
        %4279 = vmatprep.subr.bf16.mxu0 0
        %4280 = vmatpush1.bf16.msra.mxu0 %v3905
        %4281 = vmatprep.subr.bf16.mxu0 0
        %4282 = vmatpush1.bf16.msra.mxu0 %v3906
        %4283 = vmatprep.subr.bf16.mxu0 0
        %4284 = vmatpush1.bf16.msra.mxu0 %v3907
        %4285 = vmatprep.subr.bf16.mxu0 0
        %4286 = vmatpush1.bf16.msra.mxu0 %v3908
        %4287 = vmatprep.subr.bf16.mxu0 0
        %4288 = vmatpush1.bf16.msra.mxu0 %v3909
        %4289 = vmatprep.subr.bf16.mxu0 0
        %4290 = vmatpush1.bf16.msra.mxu0 %v3910
        %4291 = vmatprep.subr.bf16.mxu0 0
        %4292 = vmatpush1.bf16.msra.mxu0 0
        %4293 = vmatprep.subr.bf16.mxu0 0
        %4294 = vmatpush1.bf16.msra.mxu0 0
        %4295 = vmatprep.subr.bf16.mxu0 0
        %4296 = vmatpush1.bf16.msra.mxu0 0
        %4297 = vmatprep.subr.bf16.mxu0 0
        %4298 = vmatpush1.bf16.msra.mxu0 0
        %4299 = vmatprep.subr.bf16.mxu0 0
        %4300 = vmatpush1.bf16.msra.mxu0 0
        %4301 = vmatprep.subr.bf16.mxu0 0
        %4302 = vmatpush1.bf16.msra.mxu0 0
        %4303 = vmatprep.subr.bf16.mxu0 0
        %4304 = vmatpush1.bf16.msra.mxu0 0
        %4305 = vmatprep.subr.bf16.mxu0 0
        %4306 = vmatpush1.bf16.msra.mxu0 0
        %4307 = vmatprep.mubr.bf16.mxu0 0
        %4308 = vmatmul.mubr.bf16.gmra.mrb[0].mxu0 %v3386
        %v4309 = vpop.f32.mrb[0].mxu0
        %v4310 = vadd.f32 %v4237, %v4309
        %v4311 = vpop.f32.mrb[0].mxu0
        %v4312 = vpop.f32.mrb[0].mxu0
        %v4313 = vadd.f32 %v4240, %v4312
        %v4314 = vpop.f32.mrb[0].mxu0
        %4315 = vmatprep.mubr.bf16.mxu0 0
        %4316 = vmatmul.mubr.bf16.gmra.mrb[0].mxu0 %v3388
        %v4317 = vpop.f32.mrb[0].mxu0
        %v4318 = vadd.f32 %v4245, %v4317
        %v4319 = vpop.f32.mrb[0].mxu0
        %v4320 = vpop.f32.mrb[0].mxu0
        %v4321 = vadd.f32 %v4248, %v4320
        %v4322 = vpop.f32.mrb[0].mxu0
        %4323 = vmatprep.mubr.bf16.mxu0 0
        %4324 = vmatmul.mubr.bf16.gmra.mrb[0].mxu0 %v3390
        %v4325 = vpop.f32.mrb[0].mxu0
        %v4326 = vadd.f32 %v4253, %v4325
        %v4327 = vpop.f32.mrb[0].mxu0
        %v4328 = vpop.f32.mrb[0].mxu0
        %v4329 = vadd.f32 %v4256, %v4328
        %v4330 = vpop.f32.mrb[0].mxu0
        %4331 = vmatprep.mubr.bf16.mxu0 0
        %4332 = vmatmul.mubr.bf16.gmra.mrb[0].mxu0 %v3392
        %v4333 = vpop.f32.mrb[0].mxu0
        %v4334 = vadd.f32 %v4261, %v4333
        %v4335 = vpop.f32.mrb[0].mxu0
        %v4336 = vpop.f32.mrb[0].mxu0
        %v4337 = vadd.f32 %v4264, %v4336
        %v4338 = vpop.f32.mrb[0].mxu0
        %4339 = vmatprep.mubr.bf16.mxu0 0
        %4340 = vmatmul.mubr.bf16.gmra.mrb[0].mxu0 %v3394
        %v4341 = vpop.f32.mrb[0].mxu0
        %v4342 = vadd.f32 %v4269, %v4341
        %v4343 = vpop.f32.mrb[0].mxu0
        %v4344 = vpop.f32.mrb[0].mxu0
        %v4345 = vadd.f32 %v4272, %v4344
        %v4346 = vpop.f32.mrb[0].mxu0
        %4347 = vdwg.mxu0
        %v4348 = vmul.f32 %v4310, 0.01
        %v4349 = vmul.f32 %v4313, 0.01
        %v4350 = vmul.f32 %v4318, 0.01
        %v4351 = vmul.f32 %v4321, 0.01
        %v4352 = vmul.f32 %v4326, 0.01
        %v4353 = vmul.f32 %v4329, 0.01
        %v4354 = vmul.f32 %v4334, 0.01
        %v4355 = vmul.f32 %v4337, 0.01
        %v4356 = vmul.f32 %v4342, 0.01
        %v4357 = vmul.f32 %v4345, 0.01
        %v4358 = vmax.f32 %v4310, %v4348
        %v4359 = vmax.f32 %v4313, %v4349
        %v4360 = vmax.f32 %v4318, %v4350
        %v4361 = vmax.f32 %v4321, %v4351
        %v4362 = vmax.f32 %v4326, %v4352
        %v4363 = vmax.f32 %v4329, %v4353
        %v4364 = vmax.f32 %v4334, %v4354
        %v4365 = vmax.f32 %v4337, %v4355
        %v4366 = vmax.f32 %v4342, %v4356
        %v4367 = vmax.f32 %v4345, %v4357
        %v4368 = vld [vmem:[%s6] sm:$0xf]
        %v4369 = vld [vmem:[%s6 + $0x4] sm:$0xf]
        %v4370 = vld [vmem:[%s6 + $0x8] sm:$0xf]
        %v4371 = vld [vmem:[%s6 + $0xc] sm:$0xf]
        %v4372 = vld [vmem:[%s6 + $0x10] sm:$0x7]
        %v4373 = vpack.c.bf16 %v4359, %v4358
        %v4374 = vpack.c.bf16 %v4361, %v4360
        %v4375 = vpack.c.bf16 %v4363, %v4362
        %v4376 = vpack.c.bf16 %v4365, %v4364
        %v4377 = vpack.c.bf16 %v4367, %v4366
        %v4383 = vunpack.c.l.b16 %v4368
        %v4384 = vunpack.c.l.b16 %v4369
        %v4385 = vunpack.c.l.b16 %v4370
        %v4386 = vunpack.c.l.b16 %v4371
        %v4387 = vunpack.c.l.b16 %v4372
        %v4388 = vpack.c.b16 %v4384, %v4383
        %v4389 = vpack.c.b16 %v4386, %v4385
        %v4390 = vpack.c.b16 %v4387, %v4387
        %vm4391 = vcmask 654336
        %v4393 = vsel %vm4391, %v4388, 0
        %v4396 = vsel %vm4391, %v4389, 0
        %v4399 = vsel %vm4391, %v4390, 0
        %4401 = vmatprep.subr.bf16.mxu0 0
        %4402 = vmatpush1.bf16.msra.mxu0 %v4373
        %4403 = vmatprep.subr.bf16.mxu0 0
        %4404 = vmatpush1.bf16.msra.mxu0 %v4374
        %4405 = vmatprep.subr.bf16.mxu0 0
        %4406 = vmatpush1.bf16.msra.mxu0 %v4375
        %4407 = vmatprep.subr.bf16.mxu0 0
        %4408 = vmatpush1.bf16.msra.mxu0 %v4376
        %4409 = vmatprep.subr.bf16.mxu0 0
        %4410 = vmatpush1.bf16.msra.mxu0 %v4377
        %4411 = vmatprep.subr.bf16.mxu0 0
        %4412 = vmatpush1.bf16.msra.mxu0 0
        %4413 = vmatprep.subr.bf16.mxu0 0
        %4414 = vmatpush1.bf16.msra.mxu0 0
        %4415 = vmatprep.subr.bf16.mxu0 0
        %4416 = vmatpush1.bf16.msra.mxu0 0
        %4417 = vmatprep.subr.bf16.mxu0 0
        %4418 = vmatpush1.bf16.msra.mxu0 0
        %4419 = vmatprep.subr.bf16.mxu0 0
        %4420 = vmatpush1.bf16.msra.mxu0 0
        %4421 = vmatprep.subr.bf16.mxu0 0
        %4422 = vmatpush1.bf16.msra.mxu0 0
        %4423 = vmatprep.subr.bf16.mxu0 0
        %4424 = vmatpush1.bf16.msra.mxu0 0
        %4425 = vmatprep.subr.bf16.mxu0 0
        %4426 = vmatpush1.bf16.msra.mxu0 0
        %4427 = vmatprep.subr.bf16.mxu0 0
        %4428 = vmatpush1.bf16.msra.mxu0 0
        %4429 = vmatprep.subr.bf16.mxu0 0
        %4430 = vmatpush1.bf16.msra.mxu0 0
        %4431 = vmatprep.subr.bf16.mxu0 0
        %4432 = vmatpush1.bf16.msra.mxu0 0
        %4433 = vmatprep.mubr.bf16.mxu0 0
        %4434 = vmatmul.mubr.bf16.gmra.mrb[0].mxu0 %v4393
        %v4435 = vpop.f32.mrb[0].mxu0
        %v4436 = vadd.f32 0.0, %v4435
        %v4437 = vpop.f32.mrb[0].mxu0
        %v4438 = vpop.f32.mrb[0].mxu0
        %v4439 = vadd.f32 0.0, %v4438
        %v4440 = vpop.f32.mrb[0].mxu0
        %4441 = vmatprep.mubr.bf16.mxu0 0
        %4442 = vmatmul.mubr.bf16.gmra.mrb[0].mxu0 %v4396
        %v4443 = vpop.f32.mrb[0].mxu0
        %v4444 = vadd.f32 0.0, %v4443
        %v4445 = vpop.f32.mrb[0].mxu0
        %v4446 = vpop.f32.mrb[0].mxu0
        %v4447 = vadd.f32 0.0, %v4446
        %v4448 = vpop.f32.mrb[0].mxu0
        %4449 = vmatprep.mubr.bf16.mxu0 0
        %4450 = vmatmul.mubr.bf16.gmra.mrb[0].mxu0 %v4399
        %v4451 = vpop.f32.mrb[0].mxu0
        %v4452 = vadd.f32 0.0, %v4451
        %v4453 = vpop.f32.mrb[0].mxu0
        %v4454 = vpop.f32.mrb[0].mxu0
        %v4455 = vpop.f32.mrb[0].mxu0
        %4456 = vdwg.mxu0
        %v4457 = vpack.c.bf16 %v4439, %v4436
        %v4458 = vpack.c.bf16 %v4447, %v4444
        %v4459 = vpack.c.bf16 %v4452, %v4452
        %v4461 = vshrl.u32 %v4457, 16
        %v4463 = vshll.u32 %v4457, 16
        %v4465 = vrot.slane %v4463, 1
        %v4466 = vor.u32 %v4461, %v4465
        %v4468 = vshll.u32 %v4458, 16
        %v4470 = vrot.slane %v4468, 1
        %v4471 = vsel %vm742, %v4466, %v4470
        %v4472 = vshrl.u32 %v4458, 16
        %v4474 = vor.u32 %v4472, %v4470
        %v4479 = vrot.slane %v4457, 1
        %v4480 = vrot.slane %v4458, 1
        %v4481 = vsel %vm909, %v4479, %v4480
        %v4484 = vrot.slane %v4457, 3
        %v4485 = vrot.slane %v4458, 3
        %v4486 = vsel %vm1253, %v4484, %v4485
        %vm4489 = vsmask.f32 4352
        %v4490 = vrot.slane %v4461, 3
        %v4491 = vrot.slane %v4463, 4
        %v4492 = vor.u32 %v4490, %v4491
        %v4493 = vrot.slane %v4472, 3
        %v4494 = vrot.slane %v4468, 4
        %v4495 = vor.u32 %v4493, %v4494
        %v4496 = vsel %vm4489, %v4492, %v4495
        %vm4499 = vcmask 1043456
        %v4500 = vrot.slane %v4457, 4
        %v4501 = vrot.slane %v4458, 4
        %v4502 = vsel %vm4499, %v4500, %v4501
        %v4506 = vrot.slane %v4457, 6
        %v4507 = vrot.slane %v4458, 6
        %v4508 = vsel %vm3317, %v4506, %v4507
        %v4509 = vrot.slane %v4459, 6
        %v4510 = vsel %vm3317, %v4507, %v4509
        %vm4513 = vsmask.f32 1280
        %v4514 = vrot.slane %v4461, 6
        %v4515 = vrot.slane %v4463, 7
        %v4516 = vor.u32 %v4514, %v4515
        %v4517 = vrot.slane %v4472, 6
        %v4518 = vrot.slane %v4468, 7
        %v4519 = vor.u32 %v4517, %v4518
        %v4520 = vsel %vm4513, %v4516, %v4519
        %v4522 = vshrl.u32 %v4459, 16
        %v4524 = vrot.slane %v4522, 6
        %v4525 = vshll.u32 %v4459, 16
        %v4527 = vrot.slane %v4525, 7
        %v4528 = vor.u32 %v4524, %v4527
        %v4529 = vsel %vm4513, %v4519, %v4528
        %vm4532 = vcmask 1040384
        %v4533 = vrot.slane %v4457, 7
        %v4534 = vrot.slane %v4458, 7
        %v4535 = vsel %vm4532, %v4533, %v4534
        %v4536 = vrot.slane %v4459, 7
        %v4537 = vsel %vm4532, %v4534, %v4536
        %v4540 = vld [vmem:[%s7] sm:$0xf]
        %v4541 = vld [vmem:[%s7 + $0x4] sm:$0xf]
        %v4542 = vld [vmem:[%s7 + $0x8] sm:$0xf]
        %v4543 = vld [vmem:[%s7 + $0xc] sm:$0xf]
        %v4544 = vld [vmem:[%s7 + $0x10] sm:$0xf]
        %v4545 = vld [vmem:[%s7 + $0x14] sm:$0xf]
        %v4546 = vld [vmem:[%s7 + $0x18] sm:$0xf]
        %v4547 = vld [vmem:[%s7 + $0x1c] sm:$0xf]
        %v4548 = vld [vmem:[%s7 + $0x20] sm:$0xf]
        %v4549 = vld [vmem:[%s7 + $0x24] sm:$0xf]
        %v4550 = vld [vmem:[%s7 + $0x28] sm:$0xf]
        %v4551 = vld [vmem:[%s7 + $0x2c] sm:$0xf]
        %v4552 = vld [vmem:[%s7 + $0x30] sm:$0xf]
        %v4553 = vld [vmem:[%s7 + $0x34] sm:$0xf]
        %v4554 = vld [vmem:[%s7 + $0x38] sm:$0xf]
        %v4555 = vld [vmem:[%s7 + $0x3c] sm:$0xf]
        %v4556 = vld [vmem:[%s7 + $0x40] sm:$0xf]
        %v4557 = vld [vmem:[%s7 + $0x44] sm:$0xf]
        %v4558 = vld [vmem:[%s7 + $0x48] sm:$0xf]
        %v4559 = vld [vmem:[%s7 + $0x4c] sm:$0xf]
        %v4560 = vld [vmem:[%s7 + $0x50] sm:$0xf]
        %v4561 = vld [vmem:[%s7 + $0x54] sm:$0xf]
        %v4562 = vld [vmem:[%s7 + $0x58] sm:$0xf]
        %v4563 = vld [vmem:[%s7 + $0x5c] sm:$0xf]
        %v4564 = vld [vmem:[%s7 + $0x60] sm:$0xf]
        %v4565 = vld [vmem:[%s7 + $0x64] sm:$0xf]
        %v4566 = vld [vmem:[%s7 + $0x68] sm:$0xf]
        %v4567 = vld [vmem:[%s7 + $0x6c] sm:$0xf]
        %v4568 = vld [vmem:[%s7 + $0x70] sm:$0xf]
        %v4569 = vld [vmem:[%s7 + $0x74] sm:$0xf]
        %v4570 = vld [vmem:[%s7 + $0x78] sm:$0xf]
        %v4571 = vld [vmem:[%s7 + $0x7c] sm:$0xf]
        %v4572 = vld [vmem:[%s7 + $0x80] sm:$0xf]
        %v4573 = vld [vmem:[%s7 + $0x84] sm:$0xf]
        %v4574 = vld [vmem:[%s7 + $0x88] sm:$0xf]
        %v4575 = vld [vmem:[%s7 + $0x8c] sm:$0xf]
        %v4576 = vld [vmem:[%s7 + $0x90] sm:$0xf]
        %v4577 = vld [vmem:[%s7 + $0x94] sm:$0xf]
        %v4578 = vld [vmem:[%s7 + $0x98] sm:$0xf]
        %v4579 = vld [vmem:[%s7 + $0x9c] sm:$0xf]
        %v4580 = vld [vmem:[%s7 + $0xa0] sm:$0xf]
        %v4581 = vld [vmem:[%s7 + $0xa4] sm:$0xf]
        %v4582 = vld [vmem:[%s7 + $0xa8] sm:$0xf]
        %v4583 = vld [vmem:[%s7 + $0xac] sm:$0xf]
        %v4584 = vld [vmem:[%s7 + $0xb0] sm:$0xf]
        %v4585 = vld [vmem:[%s7 + $0xb4] sm:$0xf]
        %v4586 = vld [vmem:[%s7 + $0xb8] sm:$0xf]
        %v4587 = vld [vmem:[%s7 + $0xbc] sm:$0xf]
        %v4588 = vld [vmem:[%s7 + $0xc0] sm:$0xf]
        %v4589 = vld [vmem:[%s7 + $0xc4] sm:$0xf]
        %v4590 = vld [vmem:[%s7 + $0xc8] sm:$0xf]
        %v4591 = vld [vmem:[%s7 + $0xcc] sm:$0xf]
        %v4592 = vld [vmem:[%s7 + $0xd0] sm:$0xf]
        %v4593 = vld [vmem:[%s7 + $0xd4] sm:$0xf]
        %v4594 = vld [vmem:[%s7 + $0xd8] sm:$0xf]
        %v4595 = vld [vmem:[%s7 + $0xdc] sm:$0xf]
        %v4596 = vld [vmem:[%s7 + $0xe0] sm:$0xf]
        %v4597 = vld [vmem:[%s7 + $0xe4] sm:$0xf]
        %v4598 = vld [vmem:[%s7 + $0xe8] sm:$0xf]
        %v4599 = vld [vmem:[%s7 + $0xec] sm:$0xf]
        %v4600 = vld [vmem:[%s7 + $0xf0] sm:$0xf]
        %v4601 = vld [vmem:[%s7 + $0xf4] sm:$0xf]
        %v4602 = vld [vmem:[%s7 + $0xf8] sm:$0xf]
        %v4603 = vld [vmem:[%s7 + $0xfc] sm:$0xf]
        %v4604 = vld [vmem:[%s7 + $0x100] sm:$0xf]
        %v4605 = vld [vmem:[%s7 + $0x104] sm:$0xf]
        %v4606 = vld [vmem:[%s7 + $0x108] sm:$0xf]
        %v4607 = vld [vmem:[%s7 + $0x10c] sm:$0xf]
        %v4608 = vld [vmem:[%s7 + $0x110] sm:$0xf]
        %v4609 = vld [vmem:[%s7 + $0x114] sm:$0xf]
        %v4610 = vld [vmem:[%s7 + $0x118] sm:$0xf]
        %v4611 = vld [vmem:[%s7 + $0x11c] sm:$0xf]
        %v4612 = vld [vmem:[%s7 + $0x120] sm:$0xf]
        %v4613 = vld [vmem:[%s7 + $0x124] sm:$0xf]
        %v4614 = vld [vmem:[%s7 + $0x128] sm:$0xf]
        %v4615 = vld [vmem:[%s7 + $0x12c] sm:$0xf]
        %v4616 = vld [vmem:[%s7 + $0x130] sm:$0xf]
        %v4617 = vld [vmem:[%s7 + $0x134] sm:$0xf]
        %v4618 = vld [vmem:[%s7 + $0x138] sm:$0xf]
        %v4619 = vld [vmem:[%s7 + $0x13c] sm:$0xf]
        %v4620 = vld [vmem:[%s7 + $0x140] sm:$0xf]
        %v4621 = vld [vmem:[%s7 + $0x144] sm:$0xf]
        %v4622 = vld [vmem:[%s7 + $0x148] sm:$0xf]
        %v4623 = vld [vmem:[%s7 + $0x14c] sm:$0xf]
        %v4624 = vld [vmem:[%s7 + $0x150] sm:$0xf]
        %v4625 = vld [vmem:[%s7 + $0x154] sm:$0xf]
        %v4626 = vld [vmem:[%s7 + $0x158] sm:$0xf]
        %v4627 = vld [vmem:[%s7 + $0x15c] sm:$0xf]
        %v4628 = vld [vmem:[%s7 + $0x160] sm:$0xf]
        %v4629 = vld [vmem:[%s7 + $0x164] sm:$0xf]
        %v4630 = vld [vmem:[%s7 + $0x168] sm:$0xf]
        %v4631 = vld [vmem:[%s7 + $0x16c] sm:$0xf]
        %v4632 = vld [vmem:[%s7 + $0x170] sm:$0xf]
        %v4633 = vld [vmem:[%s7 + $0x174] sm:$0xf]
        %v4634 = vld [vmem:[%s7 + $0x178] sm:$0xf]
        %v4635 = vld [vmem:[%s7 + $0x17c] sm:$0xf]
        %v4636 = vld [vmem:[%s7 + $0x180] sm:$0xf]
        %v4637 = vld [vmem:[%s7 + $0x184] sm:$0xf]
        %v4638 = vld [vmem:[%s7 + $0x188] sm:$0xf]
        %v4639 = vld [vmem:[%s7 + $0x18c] sm:$0xf]
        %v4640 = vld [vmem:[%s7 + $0x190] sm:$0xf]
        %v4641 = vld [vmem:[%s7 + $0x194] sm:$0xf]
        %v4642 = vld [vmem:[%s7 + $0x198] sm:$0xf]
        %v4643 = vld [vmem:[%s7 + $0x19c] sm:$0xf]
        %v4644 = vld [vmem:[%s7 + $0x1a0] sm:$0xf]
        %v4645 = vld [vmem:[%s7 + $0x1a4] sm:$0xf]
        %v4646 = vld [vmem:[%s7 + $0x1a8] sm:$0xf]
        %v4647 = vld [vmem:[%s7 + $0x1ac] sm:$0xf]
        %v4648 = vld [vmem:[%s7 + $0x1b0] sm:$0xf]
        %v4649 = vld [vmem:[%s7 + $0x1b4] sm:$0xf]
        %v4650 = vld [vmem:[%s7 + $0x1b8] sm:$0xf]
        %v4651 = vld [vmem:[%s7 + $0x1bc] sm:$0xf]
        %v4652 = vld [vmem:[%s7 + $0x1c0] sm:$0xf]
        %v4653 = vld [vmem:[%s7 + $0x1c4] sm:$0xf]
        %v4654 = vld [vmem:[%s7 + $0x1c8] sm:$0xf]
        %v4655 = vld [vmem:[%s7 + $0x1cc] sm:$0xf]
        %v4656 = vld [vmem:[%s7 + $0x1d0] sm:$0xf]
        %v4657 = vld [vmem:[%s7 + $0x1d4] sm:$0xf]
        %v4658 = vld [vmem:[%s7 + $0x1d8] sm:$0xf]
        %v4659 = vld [vmem:[%s7 + $0x1dc] sm:$0xf]
        %v4660 = vld [vmem:[%s7 + $0x1e0] sm:$0xf]
        %v4661 = vld [vmem:[%s7 + $0x1e4] sm:$0xf]
        %v4662 = vld [vmem:[%s7 + $0x1e8] sm:$0xf]
        %v4663 = vld [vmem:[%s7 + $0x1ec] sm:$0xf]
        %v4664 = vld [vmem:[%s7 + $0x1f0] sm:$0xf]
        %v4665 = vld [vmem:[%s7 + $0x1f4] sm:$0xf]
        %v4666 = vld [vmem:[%s7 + $0x1f8] sm:$0xf]
        %v4667 = vld [vmem:[%s7 + $0x1fc] sm:$0xf]
        %v4668 = vld [vmem:[%s7 + $0x200] sm:$0xf]
        %v4669 = vld [vmem:[%s7 + $0x204] sm:$0xf]
        %v4670 = vld [vmem:[%s7 + $0x208] sm:$0xf]
        %v4671 = vld [vmem:[%s7 + $0x20c] sm:$0xf]
        %v4672 = vld [vmem:[%s7 + $0x210] sm:$0xf]
        %v4673 = vld [vmem:[%s7 + $0x214] sm:$0xf]
        %v4674 = vld [vmem:[%s7 + $0x218] sm:$0xf]
        %v4675 = vld [vmem:[%s7 + $0x21c] sm:$0xf]
        %v4676 = vld [vmem:[%s7 + $0x220] sm:$0xf]
        %v4677 = vld [vmem:[%s7 + $0x224] sm:$0xf]
        %v4678 = vld [vmem:[%s7 + $0x228] sm:$0xf]
        %v4679 = vld [vmem:[%s7 + $0x22c] sm:$0xf]
        %v4680 = vld [vmem:[%s7 + $0x230] sm:$0xf]
        %v4681 = vld [vmem:[%s7 + $0x234] sm:$0xf]
        %v4682 = vld [vmem:[%s7 + $0x238] sm:$0xf]
        %v4683 = vld [vmem:[%s7 + $0x23c] sm:$0xf]
        %v4684 = vld [vmem:[%s8] sm:$0x1]
        %v4686 = vlaneseq
        %v4687 = vshrl.u32 %v4686, 7
        %v4688 = vsub.s32 0, %v4687
        %v4689 = vrot.slane %v4684, %v4688
        %v4835 = vunpack.c.l.b16 %v4540
        %v4836 = vunpack.c.l.b16 %v4541
        %v4837 = vunpack.c.l.b16 %v4542
        %v4838 = vunpack.c.l.b16 %v4543
        %v4839 = vunpack.c.l.b16 %v4544
        %v4840 = vunpack.c.l.b16 %v4545
        %v4841 = vunpack.c.l.b16 %v4546
        %v4842 = vunpack.c.l.b16 %v4547
        %v4843 = vunpack.c.l.b16 %v4548
        %v4844 = vunpack.c.l.b16 %v4549
        %v4845 = vunpack.c.l.b16 %v4550
        %v4846 = vunpack.c.l.b16 %v4551
        %v4847 = vunpack.c.l.b16 %v4552
        %v4848 = vunpack.c.l.b16 %v4553
        %v4849 = vunpack.c.l.b16 %v4554
        %v4850 = vunpack.c.l.b16 %v4555
        %v4851 = vunpack.c.l.b16 %v4556
        %v4852 = vunpack.c.l.b16 %v4557
        %v4853 = vunpack.c.l.b16 %v4558
        %v4854 = vunpack.c.l.b16 %v4559
        %v4855 = vunpack.c.l.b16 %v4560
        %v4856 = vunpack.c.l.b16 %v4561
        %v4857 = vunpack.c.l.b16 %v4562
        %v4858 = vunpack.c.l.b16 %v4563
        %v4859 = vunpack.c.l.b16 %v4564
        %v4860 = vunpack.c.l.b16 %v4565
        %v4861 = vunpack.c.l.b16 %v4566
        %v4862 = vunpack.c.l.b16 %v4567
        %v4863 = vunpack.c.l.b16 %v4568
        %v4864 = vunpack.c.l.b16 %v4569
        %v4865 = vunpack.c.l.b16 %v4570
        %v4866 = vunpack.c.l.b16 %v4571
        %v4867 = vunpack.c.l.b16 %v4572
        %v4868 = vunpack.c.l.b16 %v4573
        %v4869 = vunpack.c.l.b16 %v4574
        %v4870 = vunpack.c.l.b16 %v4575
        %v4871 = vunpack.c.l.b16 %v4576
        %v4872 = vunpack.c.l.b16 %v4577
        %v4873 = vunpack.c.l.b16 %v4578
        %v4874 = vunpack.c.l.b16 %v4579
        %v4875 = vunpack.c.l.b16 %v4580
        %v4876 = vunpack.c.l.b16 %v4581
        %v4877 = vunpack.c.l.b16 %v4582
        %v4878 = vunpack.c.l.b16 %v4583
        %v4879 = vunpack.c.l.b16 %v4584
        %v4880 = vunpack.c.l.b16 %v4585
        %v4881 = vunpack.c.l.b16 %v4586
        %v4882 = vunpack.c.l.b16 %v4587
        %v4883 = vunpack.c.l.b16 %v4588
        %v4884 = vunpack.c.l.b16 %v4589
        %v4885 = vunpack.c.l.b16 %v4590
        %v4886 = vunpack.c.l.b16 %v4591
        %v4887 = vunpack.c.l.b16 %v4592
        %v4888 = vunpack.c.l.b16 %v4593
        %v4889 = vunpack.c.l.b16 %v4594
        %v4890 = vunpack.c.l.b16 %v4595
        %v4891 = vunpack.c.l.b16 %v4596
        %v4892 = vunpack.c.l.b16 %v4597
        %v4893 = vunpack.c.l.b16 %v4598
        %v4894 = vunpack.c.l.b16 %v4599
        %v4895 = vunpack.c.l.b16 %v4600
        %v4896 = vunpack.c.l.b16 %v4601
        %v4897 = vunpack.c.l.b16 %v4602
        %v4898 = vunpack.c.l.b16 %v4603
        %v4899 = vunpack.c.l.b16 %v4604
        %v4900 = vunpack.c.l.b16 %v4605
        %v4901 = vunpack.c.l.b16 %v4606
        %v4902 = vunpack.c.l.b16 %v4607
        %v4903 = vunpack.c.l.b16 %v4608
        %v4904 = vunpack.c.l.b16 %v4609
        %v4905 = vunpack.c.l.b16 %v4610
        %v4906 = vunpack.c.l.b16 %v4611
        %v4907 = vunpack.c.l.b16 %v4612
        %v4908 = vunpack.c.l.b16 %v4613
        %v4909 = vunpack.c.l.b16 %v4614
        %v4910 = vunpack.c.l.b16 %v4615
        %v4911 = vunpack.c.l.b16 %v4616
        %v4912 = vunpack.c.l.b16 %v4617
        %v4913 = vunpack.c.l.b16 %v4618
        %v4914 = vunpack.c.l.b16 %v4619
        %v4915 = vunpack.c.l.b16 %v4620
        %v4916 = vunpack.c.l.b16 %v4621
        %v4917 = vunpack.c.l.b16 %v4622
        %v4918 = vunpack.c.l.b16 %v4623
        %v4919 = vunpack.c.l.b16 %v4624
        %v4920 = vunpack.c.l.b16 %v4625
        %v4921 = vunpack.c.l.b16 %v4626
        %v4922 = vunpack.c.l.b16 %v4627
        %v4923 = vunpack.c.l.b16 %v4628
        %v4924 = vunpack.c.l.b16 %v4629
        %v4925 = vunpack.c.l.b16 %v4630
        %v4926 = vunpack.c.l.b16 %v4631
        %v4927 = vunpack.c.l.b16 %v4632
        %v4928 = vunpack.c.l.b16 %v4633
        %v4929 = vunpack.c.l.b16 %v4634
        %v4930 = vunpack.c.l.b16 %v4635
        %v4931 = vunpack.c.l.b16 %v4636
        %v4932 = vunpack.c.l.b16 %v4637
        %v4933 = vunpack.c.l.b16 %v4638
        %v4934 = vunpack.c.l.b16 %v4639
        %v4935 = vunpack.c.l.b16 %v4640
        %v4936 = vunpack.c.l.b16 %v4641
        %v4937 = vunpack.c.l.b16 %v4642
        %v4938 = vunpack.c.l.b16 %v4643
        %v4939 = vunpack.c.l.b16 %v4644
        %v4940 = vunpack.c.l.b16 %v4645
        %v4941 = vunpack.c.l.b16 %v4646
        %v4942 = vunpack.c.l.b16 %v4647
        %v4943 = vunpack.c.l.b16 %v4648
        %v4944 = vunpack.c.l.b16 %v4649
        %v4945 = vunpack.c.l.b16 %v4650
        %v4946 = vunpack.c.l.b16 %v4651
        %v4947 = vunpack.c.l.b16 %v4652
        %v4948 = vunpack.c.l.b16 %v4653
        %v4949 = vunpack.c.l.b16 %v4654
        %v4950 = vunpack.c.l.b16 %v4655
        %v4951 = vunpack.c.l.b16 %v4656
        %v4952 = vunpack.c.l.b16 %v4657
        %v4953 = vunpack.c.l.b16 %v4658
        %v4954 = vunpack.c.l.b16 %v4659
        %v4955 = vunpack.c.l.b16 %v4660
        %v4956 = vunpack.c.l.b16 %v4661
        %v4957 = vunpack.c.l.b16 %v4662
        %v4958 = vunpack.c.l.b16 %v4663
        %v4959 = vunpack.c.l.b16 %v4664
        %v4960 = vunpack.c.l.b16 %v4665
        %v4961 = vunpack.c.l.b16 %v4666
        %v4962 = vunpack.c.l.b16 %v4667
        %v4963 = vunpack.c.l.b16 %v4668
        %v4964 = vunpack.c.l.b16 %v4669
        %v4965 = vunpack.c.l.b16 %v4670
        %v4966 = vunpack.c.l.b16 %v4671
        %v4967 = vunpack.c.l.b16 %v4672
        %v4968 = vunpack.c.l.b16 %v4673
        %v4969 = vunpack.c.l.b16 %v4674
        %v4970 = vunpack.c.l.b16 %v4675
        %v4971 = vunpack.c.l.b16 %v4676
        %v4972 = vunpack.c.l.b16 %v4677
        %v4973 = vunpack.c.l.b16 %v4678
        %v4974 = vunpack.c.l.b16 %v4679
        %v4975 = vunpack.c.l.b16 %v4680
        %v4976 = vunpack.c.l.b16 %v4681
        %v4977 = vunpack.c.l.b16 %v4682
        %v4978 = vunpack.c.l.b16 %v4683
        %v4979 = vpack.c.b16 %v4836, %v4835
        %v4980 = vpack.c.b16 %v4838, %v4837
        %v4981 = vpack.c.b16 %v4840, %v4839
        %v4982 = vpack.c.b16 %v4842, %v4841
        %v4983 = vpack.c.b16 %v4844, %v4843
        %v4984 = vpack.c.b16 %v4846, %v4845
        %v4985 = vpack.c.b16 %v4848, %v4847
        %v4986 = vpack.c.b16 %v4850, %v4849
        %v4987 = vpack.c.b16 %v4852, %v4851
        %v4988 = vpack.c.b16 %v4854, %v4853
        %v4989 = vpack.c.b16 %v4856, %v4855
        %v4990 = vpack.c.b16 %v4858, %v4857
        %v4991 = vpack.c.b16 %v4860, %v4859
        %v4992 = vpack.c.b16 %v4862, %v4861
        %v4993 = vpack.c.b16 %v4864, %v4863
        %v4994 = vpack.c.b16 %v4866, %v4865
        %v4995 = vpack.c.b16 %v4868, %v4867
        %v4996 = vpack.c.b16 %v4870, %v4869
        %v4997 = vpack.c.b16 %v4872, %v4871
        %v4998 = vpack.c.b16 %v4874, %v4873
        %v4999 = vpack.c.b16 %v4876, %v4875
        %v5000 = vpack.c.b16 %v4878, %v4877
        %v5001 = vpack.c.b16 %v4880, %v4879
        %v5002 = vpack.c.b16 %v4882, %v4881
        %v5003 = vpack.c.b16 %v4884, %v4883
        %v5004 = vpack.c.b16 %v4886, %v4885
        %v5005 = vpack.c.b16 %v4888, %v4887
        %v5006 = vpack.c.b16 %v4890, %v4889
        %v5007 = vpack.c.b16 %v4892, %v4891
        %v5008 = vpack.c.b16 %v4894, %v4893
        %v5009 = vpack.c.b16 %v4896, %v4895
        %v5010 = vpack.c.b16 %v4898, %v4897
        %v5011 = vpack.c.b16 %v4900, %v4899
        %v5012 = vpack.c.b16 %v4902, %v4901
        %v5013 = vpack.c.b16 %v4904, %v4903
        %v5014 = vpack.c.b16 %v4906, %v4905
        %v5015 = vpack.c.b16 %v4908, %v4907
        %v5016 = vpack.c.b16 %v4910, %v4909
        %v5017 = vpack.c.b16 %v4912, %v4911
        %v5018 = vpack.c.b16 %v4914, %v4913
        %v5019 = vpack.c.b16 %v4916, %v4915
        %v5020 = vpack.c.b16 %v4918, %v4917
        %v5021 = vpack.c.b16 %v4920, %v4919
        %v5022 = vpack.c.b16 %v4922, %v4921
        %v5023 = vpack.c.b16 %v4924, %v4923
        %v5024 = vpack.c.b16 %v4926, %v4925
        %v5025 = vpack.c.b16 %v4928, %v4927
        %v5026 = vpack.c.b16 %v4930, %v4929
        %v5027 = vpack.c.b16 %v4932, %v4931
        %v5028 = vpack.c.b16 %v4934, %v4933
        %v5029 = vpack.c.b16 %v4936, %v4935
        %v5030 = vpack.c.b16 %v4938, %v4937
        %v5031 = vpack.c.b16 %v4940, %v4939
        %v5032 = vpack.c.b16 %v4942, %v4941
        %v5033 = vpack.c.b16 %v4944, %v4943
        %v5034 = vpack.c.b16 %v4946, %v4945
        %v5035 = vpack.c.b16 %v4948, %v4947
        %v5036 = vpack.c.b16 %v4950, %v4949
        %v5037 = vpack.c.b16 %v4952, %v4951
        %v5038 = vpack.c.b16 %v4954, %v4953
        %v5039 = vpack.c.b16 %v4956, %v4955
        %v5040 = vpack.c.b16 %v4958, %v4957
        %v5041 = vpack.c.b16 %v4960, %v4959
        %v5042 = vpack.c.b16 %v4962, %v4961
        %v5043 = vpack.c.b16 %v4964, %v4963
        %v5044 = vpack.c.b16 %v4966, %v4965
        %v5045 = vpack.c.b16 %v4968, %v4967
        %v5046 = vpack.c.b16 %v4970, %v4969
        %v5047 = vpack.c.b16 %v4972, %v4971
        %v5048 = vpack.c.b16 %v4974, %v4973
        %v5049 = vpack.c.b16 %v4976, %v4975
        %v5050 = vpack.c.b16 %v4978, %v4977
        %5123 = vmatprep.subr.bf16.mxu0 0
        %5124 = vmatpush1.bf16.msra.mxu0 %v4979
        %5125 = vmatprep.subr.bf16.mxu0 0
        %5126 = vmatpush1.bf16.msra.mxu0 %v4980
        %5127 = vmatprep.subr.bf16.mxu0 0
        %5128 = vmatpush1.bf16.msra.mxu0 %v4981
        %5129 = vmatprep.subr.bf16.mxu0 0
        %5130 = vmatpush1.bf16.msra.mxu0 %v4982
        %5131 = vmatprep.subr.bf16.mxu0 0
        %5132 = vmatpush1.bf16.msra.mxu0 %v4983
        %5133 = vmatprep.subr.bf16.mxu0 0
        %5134 = vmatpush1.bf16.msra.mxu0 %v4984
        %5135 = vmatprep.subr.bf16.mxu0 0
        %5136 = vmatpush1.bf16.msra.mxu0 %v4985
        %5137 = vmatprep.subr.bf16.mxu0 0
        %5138 = vmatpush1.bf16.msra.mxu0 %v4986
        %5139 = vmatprep.subr.bf16.mxu0 0
        %5140 = vmatpush1.bf16.msra.mxu0 %v4987
        %5141 = vmatprep.subr.bf16.mxu0 0
        %5142 = vmatpush1.bf16.msra.mxu0 %v4988
        %5143 = vmatprep.subr.bf16.mxu0 0
        %5144 = vmatpush1.bf16.msra.mxu0 %v4989
        %5145 = vmatprep.subr.bf16.mxu0 0
        %5146 = vmatpush1.bf16.msra.mxu0 %v4990
        %5147 = vmatprep.subr.bf16.mxu0 0
        %5148 = vmatpush1.bf16.msra.mxu0 %v4991
        %5149 = vmatprep.subr.bf16.mxu0 0
        %5150 = vmatpush1.bf16.msra.mxu0 %v4992
        %5151 = vmatprep.subr.bf16.mxu0 0
        %5152 = vmatpush1.bf16.msra.mxu0 %v4993
        %5153 = vmatprep.subr.bf16.mxu0 0
        %5154 = vmatpush1.bf16.msra.mxu0 %v4994
        %5155 = vmatprep.mubr.bf16.mxu0 %v4471
        %5156 = vmatmul.mubr.bf16.gmra.mrb[0].mxu0 %v4457
        %v5157 = vpop.f32.mrb[0].mxu0
        %v5158 = vadd.f32 %v4689, %v5157
        %v5159 = vpop.f32.mrb[0].mxu0
        %v5160 = vpop.f32.mrb[0].mxu0
        %v5161 = vadd.f32 %v4689, %v5160
        %v5162 = vpop.f32.mrb[0].mxu0
        %5163 = vmatprep.mubr.bf16.mxu0 %v4474
        %5164 = vmatmul.mubr.bf16.gmra.mrb[0].mxu0 %v4458
        %v5165 = vpop.f32.mrb[0].mxu0
        %v5166 = vadd.f32 %v4689, %v5165
        %v5167 = vpop.f32.mrb[0].mxu0
        %v5168 = vpop.f32.mrb[0].mxu0
        %v5169 = vpop.f32.mrb[0].mxu0
        %5170 = vdwg.mxu0
        %5171 = vmatprep.subr.bf16.mxu0 0
        %5172 = vmatpush1.bf16.msra.mxu0 %v4995
        %5173 = vmatprep.subr.bf16.mxu0 0
        %5174 = vmatpush1.bf16.msra.mxu0 %v4996
        %5175 = vmatprep.subr.bf16.mxu0 0
        %5176 = vmatpush1.bf16.msra.mxu0 %v4997
        %5177 = vmatprep.subr.bf16.mxu0 0
        %5178 = vmatpush1.bf16.msra.mxu0 %v4998
        %5179 = vmatprep.subr.bf16.mxu0 0
        %5180 = vmatpush1.bf16.msra.mxu0 %v4999
        %5181 = vmatprep.subr.bf16.mxu0 0
        %5182 = vmatpush1.bf16.msra.mxu0 %v5000
        %5183 = vmatprep.subr.bf16.mxu0 0
        %5184 = vmatpush1.bf16.msra.mxu0 %v5001
        %5185 = vmatprep.subr.bf16.mxu0 0
        %5186 = vmatpush1.bf16.msra.mxu0 %v5002
        %5187 = vmatprep.subr.bf16.mxu0 0
        %5188 = vmatpush1.bf16.msra.mxu0 %v5003
        %5189 = vmatprep.subr.bf16.mxu0 0
        %5190 = vmatpush1.bf16.msra.mxu0 %v5004
        %5191 = vmatprep.subr.bf16.mxu0 0
        %5192 = vmatpush1.bf16.msra.mxu0 %v5005
        %5193 = vmatprep.subr.bf16.mxu0 0
        %5194 = vmatpush1.bf16.msra.mxu0 %v5006
        %5195 = vmatprep.subr.bf16.mxu0 0
        %5196 = vmatpush1.bf16.msra.mxu0 %v5007
        %5197 = vmatprep.subr.bf16.mxu0 0
        %5198 = vmatpush1.bf16.msra.mxu0 %v5008
        %5199 = vmatprep.subr.bf16.mxu0 0
        %5200 = vmatpush1.bf16.msra.mxu0 %v5009
        %5201 = vmatprep.subr.bf16.mxu0 0
        %5202 = vmatpush1.bf16.msra.mxu0 %v5010
        %5203 = vmatprep.mubr.bf16.mxu0 %v4486
        %5204 = vmatmul.mubr.bf16.gmra.mrb[0].mxu0 %v4481
        %v5205 = vpop.f32.mrb[0].mxu0
        %v5206 = vadd.f32 %v5158, %v5205
        %v5207 = vpop.f32.mrb[0].mxu0
        %v5208 = vpop.f32.mrb[0].mxu0
        %v5209 = vadd.f32 %v5161, %v5208
        %v5210 = vpop.f32.mrb[0].mxu0
        %5211 = vmatprep.mubr.bf16.mxu0 %v4485
        %5212 = vmatmul.mubr.bf16.gmra.mrb[0].mxu0 %v4480
        %v5213 = vpop.f32.mrb[0].mxu0
        %v5214 = vadd.f32 %v5166, %v5213
        %v5215 = vpop.f32.mrb[0].mxu0
        %v5216 = vpop.f32.mrb[0].mxu0
        %v5217 = vpop.f32.mrb[0].mxu0
        %5218 = vdwg.mxu0
        %5219 = vmatprep.subr.bf16.mxu0 0
        %5220 = vmatpush1.bf16.msra.mxu0 %v5011
        %5221 = vmatprep.subr.bf16.mxu0 0
        %5222 = vmatpush1.bf16.msra.mxu0 %v5012
        %5223 = vmatprep.subr.bf16.mxu0 0
        %5224 = vmatpush1.bf16.msra.mxu0 %v5013
        %5225 = vmatprep.subr.bf16.mxu0 0
        %5226 = vmatpush1.bf16.msra.mxu0 %v5014
        %5227 = vmatprep.subr.bf16.mxu0 0
        %5228 = vmatpush1.bf16.msra.mxu0 %v5015
        %5229 = vmatprep.subr.bf16.mxu0 0
        %5230 = vmatpush1.bf16.msra.mxu0 %v5016
        %5231 = vmatprep.subr.bf16.mxu0 0
        %5232 = vmatpush1.bf16.msra.mxu0 %v5017
        %5233 = vmatprep.subr.bf16.mxu0 0
        %5234 = vmatpush1.bf16.msra.mxu0 %v5018
        %5235 = vmatprep.subr.bf16.mxu0 0
        %5236 = vmatpush1.bf16.msra.mxu0 %v5019
        %5237 = vmatprep.subr.bf16.mxu0 0
        %5238 = vmatpush1.bf16.msra.mxu0 %v5020
        %5239 = vmatprep.subr.bf16.mxu0 0
        %5240 = vmatpush1.bf16.msra.mxu0 %v5021
        %5241 = vmatprep.subr.bf16.mxu0 0
        %5242 = vmatpush1.bf16.msra.mxu0 %v5022
        %5243 = vmatprep.subr.bf16.mxu0 0
        %5244 = vmatpush1.bf16.msra.mxu0 %v5023
        %5245 = vmatprep.subr.bf16.mxu0 0
        %5246 = vmatpush1.bf16.msra.mxu0 %v5024
        %5247 = vmatprep.subr.bf16.mxu0 0
        %5248 = vmatpush1.bf16.msra.mxu0 %v5025
        %5249 = vmatprep.subr.bf16.mxu0 0
        %5250 = vmatpush1.bf16.msra.mxu0 %v5026
        %5251 = vmatprep.mubr.bf16.mxu0 %v4502
        %5252 = vmatmul.mubr.bf16.gmra.mrb[0].mxu0 %v4496
        %v5253 = vpop.f32.mrb[0].mxu0
        %v5254 = vadd.f32 %v5206, %v5253
        %v5255 = vpop.f32.mrb[0].mxu0
        %v5256 = vpop.f32.mrb[0].mxu0
        %v5257 = vadd.f32 %v5209, %v5256
        %v5258 = vpop.f32.mrb[0].mxu0
        %5259 = vmatprep.mubr.bf16.mxu0 %v4501
        %5260 = vmatmul.mubr.bf16.gmra.mrb[0].mxu0 %v4495
        %v5261 = vpop.f32.mrb[0].mxu0
        %v5262 = vadd.f32 %v5214, %v5261
        %v5263 = vpop.f32.mrb[0].mxu0
        %v5264 = vpop.f32.mrb[0].mxu0
        %v5265 = vpop.f32.mrb[0].mxu0
        %5266 = vdwg.mxu0
        %5267 = vmatprep.subr.bf16.mxu0 0
        %5268 = vmatpush1.bf16.msra.mxu0 %v5027
        %5269 = vmatprep.subr.bf16.mxu0 0
        %5270 = vmatpush1.bf16.msra.mxu0 %v5028
        %5271 = vmatprep.subr.bf16.mxu0 0
        %5272 = vmatpush1.bf16.msra.mxu0 %v5029
        %5273 = vmatprep.subr.bf16.mxu0 0
        %5274 = vmatpush1.bf16.msra.mxu0 %v5030
        %5275 = vmatprep.subr.bf16.mxu0 0
        %5276 = vmatpush1.bf16.msra.mxu0 %v5031
        %5277 = vmatprep.subr.bf16.mxu0 0
        %5278 = vmatpush1.bf16.msra.mxu0 %v5032
        %5279 = vmatprep.subr.bf16.mxu0 0
        %5280 = vmatpush1.bf16.msra.mxu0 %v5033
        %5281 = vmatprep.subr.bf16.mxu0 0
        %5282 = vmatpush1.bf16.msra.mxu0 %v5034
        %5283 = vmatprep.subr.bf16.mxu0 0
        %5284 = vmatpush1.bf16.msra.mxu0 %v5035
        %5285 = vmatprep.subr.bf16.mxu0 0
        %5286 = vmatpush1.bf16.msra.mxu0 %v5036
        %5287 = vmatprep.subr.bf16.mxu0 0
        %5288 = vmatpush1.bf16.msra.mxu0 %v5037
        %5289 = vmatprep.subr.bf16.mxu0 0
        %5290 = vmatpush1.bf16.msra.mxu0 %v5038
        %5291 = vmatprep.subr.bf16.mxu0 0
        %5292 = vmatpush1.bf16.msra.mxu0 %v5039
        %5293 = vmatprep.subr.bf16.mxu0 0
        %5294 = vmatpush1.bf16.msra.mxu0 %v5040
        %5295 = vmatprep.subr.bf16.mxu0 0
        %5296 = vmatpush1.bf16.msra.mxu0 %v5041
        %5297 = vmatprep.subr.bf16.mxu0 0
        %5298 = vmatpush1.bf16.msra.mxu0 %v5042
        %5299 = vmatprep.mubr.bf16.mxu0 %v4520
        %5300 = vmatmul.mubr.bf16.gmra.mrb[0].mxu0 %v4508
        %v5301 = vpop.f32.mrb[0].mxu0
        %v5302 = vadd.f32 %v5254, %v5301
        %v5303 = vpop.f32.mrb[0].mxu0
        %v5304 = vpop.f32.mrb[0].mxu0
        %v5305 = vadd.f32 %v5257, %v5304
        %v5306 = vpop.f32.mrb[0].mxu0
        %5307 = vmatprep.mubr.bf16.mxu0 %v4529
        %5308 = vmatmul.mubr.bf16.gmra.mrb[0].mxu0 %v4510
        %v5309 = vpop.f32.mrb[0].mxu0
        %v5310 = vadd.f32 %v5262, %v5309
        %v5311 = vpop.f32.mrb[0].mxu0
        %v5312 = vpop.f32.mrb[0].mxu0
        %v5313 = vpop.f32.mrb[0].mxu0
        %5314 = vdwg.mxu0
        %5315 = vmatprep.subr.bf16.mxu0 0
        %5316 = vmatpush1.bf16.msra.mxu0 %v5043
        %5317 = vmatprep.subr.bf16.mxu0 0
        %5318 = vmatpush1.bf16.msra.mxu0 %v5044
        %5319 = vmatprep.subr.bf16.mxu0 0
        %5320 = vmatpush1.bf16.msra.mxu0 %v5045
        %5321 = vmatprep.subr.bf16.mxu0 0
        %5322 = vmatpush1.bf16.msra.mxu0 %v5046
        %5323 = vmatprep.subr.bf16.mxu0 0
        %5324 = vmatpush1.bf16.msra.mxu0 %v5047
        %5325 = vmatprep.subr.bf16.mxu0 0
        %5326 = vmatpush1.bf16.msra.mxu0 %v5048
        %5327 = vmatprep.subr.bf16.mxu0 0
        %5328 = vmatpush1.bf16.msra.mxu0 %v5049
        %5329 = vmatprep.subr.bf16.mxu0 0
        %5330 = vmatpush1.bf16.msra.mxu0 %v5050
        %5331 = vmatprep.subr.bf16.mxu0 0
        %5332 = vmatpush1.bf16.msra.mxu0 0
        %5333 = vmatprep.subr.bf16.mxu0 0
        %5334 = vmatpush1.bf16.msra.mxu0 0
        %5335 = vmatprep.subr.bf16.mxu0 0
        %5336 = vmatpush1.bf16.msra.mxu0 0
        %5337 = vmatprep.subr.bf16.mxu0 0
        %5338 = vmatpush1.bf16.msra.mxu0 0
        %5339 = vmatprep.subr.bf16.mxu0 0
        %5340 = vmatpush1.bf16.msra.mxu0 0
        %5341 = vmatprep.subr.bf16.mxu0 0
        %5342 = vmatpush1.bf16.msra.mxu0 0
        %5343 = vmatprep.subr.bf16.mxu0 0
        %5344 = vmatpush1.bf16.msra.mxu0 0
        %5345 = vmatprep.subr.bf16.mxu0 0
        %5346 = vmatpush1.bf16.msra.mxu0 0
        %5347 = vmatprep.mubr.bf16.mxu0 0
        %5348 = vmatmul.mubr.bf16.gmra.mrb[0].mxu0 %v4535
        %v5349 = vpop.f32.mrb[0].mxu0
        %v5350 = vadd.f32 %v5302, %v5349
        %v5351 = vpop.f32.mrb[0].mxu0
        %v5352 = vpop.f32.mrb[0].mxu0
        %v5353 = vadd.f32 %v5305, %v5352
        %v5354 = vpop.f32.mrb[0].mxu0
        %5355 = vmatprep.mubr.bf16.mxu0 0
        %5356 = vmatmul.mubr.bf16.gmra.mrb[0].mxu0 %v4537
        %v5357 = vpop.f32.mrb[0].mxu0
        %v5358 = vadd.f32 %v5310, %v5357
        %v5359 = vpop.f32.mrb[0].mxu0
        %v5360 = vpop.f32.mrb[0].mxu0
        %v5361 = vpop.f32.mrb[0].mxu0
        %5362 = vdwg.mxu0
        %v5363 = vmul.f32 %v5350, 0.01
        %v5364 = vmul.f32 %v5353, 0.01
        %v5365 = vmul.f32 %v5358, 0.01
        %v5366 = vmax.f32 %v5350, %v5363
        %v5367 = vmax.f32 %v5353, %v5364
        %v5368 = vmax.f32 %v5358, %v5365
        %v5369 = vld [vmem:[%s9] sm:$0xf]
        %v5370 = vld [vmem:[%s9 + $0x4] sm:$0xf]
        %v5371 = vld [vmem:[%s9 + $0x8] sm:$0xf]
        %v5372 = vld [vmem:[%s9 + $0xc] sm:$0xf]
        %v5373 = vld [vmem:[%s9 + $0x10] sm:$0x7]
        %v5374 = vpack.c.bf16 %v5367, %v5366
        %v5375 = vpack.c.bf16 %v5368, %v5368
        %v5381 = vunpack.c.l.b16 %v5369
        %v5382 = vunpack.c.l.b16 %v5370
        %v5383 = vunpack.c.l.b16 %v5371
        %v5384 = vunpack.c.l.b16 %v5372
        %v5385 = vunpack.c.l.b16 %v5373
        %v5386 = vpack.c.b16 %v5382, %v5381
        %v5387 = vpack.c.b16 %v5384, %v5383
        %v5388 = vpack.c.b16 %v5385, %v5385
        %vm5389 = vcmask 195584
        %v5391 = vsel %vm5389, %v5386, 0
        %v5394 = vsel %vm5389, %v5387, 0
        %v5397 = vsel %vm5389, %v5388, 0
        %vm5399 = vcmask 1043456
        %v5401 = vsel %vm5399, %v5375, 0
        %5403 = vmatprep.subr.bf16.mxu0 0
        %5404 = vmatpush1.bf16.msra.mxu0 %v5374
        %5405 = vmatprep.subr.bf16.mxu0 0
        %5406 = vmatpush1.bf16.msra.mxu0 %v5401
        %5407 = vmatprep.subr.bf16.mxu0 0
        %5408 = vmatpush1.bf16.msra.mxu0 0
        %5409 = vmatprep.subr.bf16.mxu0 0
        %5410 = vmatpush1.bf16.msra.mxu0 0
        %5411 = vmatprep.subr.bf16.mxu0 0
        %5412 = vmatpush1.bf16.msra.mxu0 0
        %5413 = vmatprep.subr.bf16.mxu0 0
        %5414 = vmatpush1.bf16.msra.mxu0 0
        %5415 = vmatprep.subr.bf16.mxu0 0
        %5416 = vmatpush1.bf16.msra.mxu0 0
        %5417 = vmatprep.subr.bf16.mxu0 0
        %5418 = vmatpush1.bf16.msra.mxu0 0
        %5419 = vmatprep.subr.bf16.mxu0 0
        %5420 = vmatpush1.bf16.msra.mxu0 0
        %5421 = vmatprep.subr.bf16.mxu0 0
        %5422 = vmatpush1.bf16.msra.mxu0 0
        %5423 = vmatprep.subr.bf16.mxu0 0
        %5424 = vmatpush1.bf16.msra.mxu0 0
        %5425 = vmatprep.subr.bf16.mxu0 0
        %5426 = vmatpush1.bf16.msra.mxu0 0
        %5427 = vmatprep.subr.bf16.mxu0 0
        %5428 = vmatpush1.bf16.msra.mxu0 0
        %5429 = vmatprep.subr.bf16.mxu0 0
        %5430 = vmatpush1.bf16.msra.mxu0 0
        %5431 = vmatprep.subr.bf16.mxu0 0
        %5432 = vmatpush1.bf16.msra.mxu0 0
        %5433 = vmatprep.subr.bf16.mxu0 0
        %5434 = vmatpush1.bf16.msra.mxu0 0
        %5435 = vmatprep.mubr.bf16.mxu0 0
        %5436 = vmatmul.mubr.bf16.gmra.mrb[0].mxu0 %v5391
        %v5437 = vpop.f32.mrb[0].mxu0
        %v5438 = vadd.f32 0.0, %v5437
        %v5439 = vpop.f32.mrb[0].mxu0
        %v5440 = vpop.f32.mrb[0].mxu0
        %v5441 = vadd.f32 0.0, %v5440
        %v5442 = vpop.f32.mrb[0].mxu0
        %5443 = vmatprep.mubr.bf16.mxu0 0
        %5444 = vmatmul.mubr.bf16.gmra.mrb[0].mxu0 %v5394
        %v5445 = vpop.f32.mrb[0].mxu0
        %v5446 = vadd.f32 0.0, %v5445
        %v5447 = vpop.f32.mrb[0].mxu0
        %v5448 = vpop.f32.mrb[0].mxu0
        %v5449 = vadd.f32 0.0, %v5448
        %v5450 = vpop.f32.mrb[0].mxu0
        %5451 = vmatprep.mubr.bf16.mxu0 0
        %5452 = vmatmul.mubr.bf16.gmra.mrb[0].mxu0 %v5397
        %v5453 = vpop.f32.mrb[0].mxu0
        %v5454 = vadd.f32 0.0, %v5453
        %v5455 = vpop.f32.mrb[0].mxu0
        %v5456 = vpop.f32.mrb[0].mxu0
        %v5457 = vpop.f32.mrb[0].mxu0
        %5458 = vdwg.mxu0
        %v5459 = vpack.c.bf16 %v5441, %v5438
        %v5460 = vpack.c.bf16 %v5449, %v5446
        %v5461 = vpack.c.bf16 %v5454, %v5454
        %v5463 = vshrl.u32 %v5459, 16
        %v5465 = vshll.u32 %v5459, 16
        %v5467 = vrot.slane %v5465, 1
        %v5468 = vor.u32 %v5463, %v5467
        %v5470 = vshll.u32 %v5460, 16
        %v5472 = vrot.slane %v5470, 1
        %v5473 = vsel %vm742, %v5468, %v5472
        %v5474 = vshrl.u32 %v5460, 16
        %v5476 = vor.u32 %v5474, %v5472
        %v5481 = vrot.slane %v5459, 1
        %v5482 = vrot.slane %v5460, 1
        %v5483 = vsel %vm909, %v5481, %v5482
        %v5486 = vrot.slane %v5459, 3
        %v5487 = vrot.slane %v5460, 3
        %v5488 = vsel %vm1253, %v5486, %v5487
        %v5491 = vrot.slane %v5463, 3
        %v5492 = vrot.slane %v5465, 4
        %v5493 = vor.u32 %v5491, %v5492
        %v5494 = vrot.slane %v5474, 3
        %v5495 = vrot.slane %v5470, 4
        %v5496 = vor.u32 %v5494, %v5495
        %v5497 = vsel %vm4489, %v5493, %v5496
        %v5500 = vrot.slane %v5459, 4
        %v5501 = vrot.slane %v5460, 4
        %v5502 = vsel %vm4499, %v5500, %v5501
        %v5506 = vrot.slane %v5459, 6
        %v5507 = vrot.slane %v5460, 6
        %v5508 = vsel %vm3317, %v5506, %v5507
        %v5509 = vrot.slane %v5461, 6
        %v5510 = vsel %vm3317, %v5507, %v5509
        %v5513 = vrot.slane %v5463, 6
        %v5514 = vrot.slane %v5465, 7
        %v5515 = vor.u32 %v5513, %v5514
        %v5516 = vrot.slane %v5474, 6
        %v5517 = vrot.slane %v5470, 7
        %v5518 = vor.u32 %v5516, %v5517
        %v5519 = vsel %vm4513, %v5515, %v5518
        %v5521 = vshrl.u32 %v5461, 16
        %v5523 = vrot.slane %v5521, 6
        %v5524 = vshll.u32 %v5461, 16
        %v5526 = vrot.slane %v5524, 7
        %v5527 = vor.u32 %v5523, %v5526
        %v5528 = vsel %vm4513, %v5518, %v5527
        %v5531 = vrot.slane %v5459, 7
        %v5532 = vrot.slane %v5460, 7
        %v5533 = vsel %vm4532, %v5531, %v5532
        %v5534 = vrot.slane %v5461, 7
        %v5535 = vsel %vm4532, %v5532, %v5534
        %v5538 = vld [vmem:[%s10] sm:$0xf]
        %v5539 = vld [vmem:[%s10 + $0x4] sm:$0xf]
        %v5540 = vld [vmem:[%s10 + $0x8] sm:$0xf]
        %v5541 = vld [vmem:[%s10 + $0xc] sm:$0xf]
        %v5542 = vld [vmem:[%s10 + $0x10] sm:$0xf]
        %v5543 = vld [vmem:[%s10 + $0x14] sm:$0xf]
        %v5544 = vld [vmem:[%s10 + $0x18] sm:$0xf]
        %v5545 = vld [vmem:[%s10 + $0x1c] sm:$0xf]
        %v5546 = vld [vmem:[%s10 + $0x20] sm:$0xf]
        %v5547 = vld [vmem:[%s10 + $0x24] sm:$0xf]
        %v5548 = vld [vmem:[%s10 + $0x28] sm:$0xf]
        %v5549 = vld [vmem:[%s10 + $0x2c] sm:$0xf]
        %v5550 = vld [vmem:[%s10 + $0x30] sm:$0xf]
        %v5551 = vld [vmem:[%s10 + $0x34] sm:$0xf]
        %v5552 = vld [vmem:[%s10 + $0x38] sm:$0xf]
        %v5553 = vld [vmem:[%s10 + $0x3c] sm:$0xf]
        %v5554 = vld [vmem:[%s10 + $0x40] sm:$0xf]
        %v5555 = vld [vmem:[%s10 + $0x44] sm:$0xf]
        %v5556 = vld [vmem:[%s10 + $0x48] sm:$0xf]
        %v5557 = vld [vmem:[%s10 + $0x4c] sm:$0xf]
        %v5558 = vld [vmem:[%s10 + $0x50] sm:$0xf]
        %v5559 = vld [vmem:[%s10 + $0x54] sm:$0xf]
        %v5560 = vld [vmem:[%s10 + $0x58] sm:$0xf]
        %v5561 = vld [vmem:[%s10 + $0x5c] sm:$0xf]
        %v5562 = vld [vmem:[%s10 + $0x60] sm:$0xf]
        %v5563 = vld [vmem:[%s10 + $0x64] sm:$0xf]
        %v5564 = vld [vmem:[%s10 + $0x68] sm:$0xf]
        %v5565 = vld [vmem:[%s10 + $0x6c] sm:$0xf]
        %v5566 = vld [vmem:[%s10 + $0x70] sm:$0xf]
        %v5567 = vld [vmem:[%s10 + $0x74] sm:$0xf]
        %v5568 = vld [vmem:[%s10 + $0x78] sm:$0xf]
        %v5569 = vld [vmem:[%s10 + $0x7c] sm:$0xf]
        %v5570 = vld [vmem:[%s10 + $0x80] sm:$0xf]
        %v5571 = vld [vmem:[%s10 + $0x84] sm:$0xf]
        %v5572 = vld [vmem:[%s10 + $0x88] sm:$0xf]
        %v5573 = vld [vmem:[%s10 + $0x8c] sm:$0xf]
        %v5574 = vld [vmem:[%s10 + $0x90] sm:$0xf]
        %v5575 = vld [vmem:[%s10 + $0x94] sm:$0xf]
        %v5576 = vld [vmem:[%s10 + $0x98] sm:$0xf]
        %v5577 = vld [vmem:[%s10 + $0x9c] sm:$0xf]
        %v5578 = vld [vmem:[%s10 + $0xa0] sm:$0xf]
        %v5579 = vld [vmem:[%s10 + $0xa4] sm:$0xf]
        %v5580 = vld [vmem:[%s10 + $0xa8] sm:$0xf]
        %v5581 = vld [vmem:[%s10 + $0xac] sm:$0xf]
        %v5582 = vld [vmem:[%s10 + $0xb0] sm:$0xf]
        %v5583 = vld [vmem:[%s10 + $0xb4] sm:$0xf]
        %v5584 = vld [vmem:[%s10 + $0xb8] sm:$0xf]
        %v5585 = vld [vmem:[%s10 + $0xbc] sm:$0xf]
        %v5586 = vld [vmem:[%s10 + $0xc0] sm:$0xf]
        %v5587 = vld [vmem:[%s10 + $0xc4] sm:$0xf]
        %v5588 = vld [vmem:[%s10 + $0xc8] sm:$0xf]
        %v5589 = vld [vmem:[%s10 + $0xcc] sm:$0xf]
        %v5590 = vld [vmem:[%s10 + $0xd0] sm:$0xf]
        %v5591 = vld [vmem:[%s10 + $0xd4] sm:$0xf]
        %v5592 = vld [vmem:[%s10 + $0xd8] sm:$0xf]
        %v5593 = vld [vmem:[%s10 + $0xdc] sm:$0xf]
        %v5594 = vld [vmem:[%s10 + $0xe0] sm:$0xf]
        %v5595 = vld [vmem:[%s10 + $0xe4] sm:$0xf]
        %v5596 = vld [vmem:[%s10 + $0xe8] sm:$0xf]
        %v5597 = vld [vmem:[%s10 + $0xec] sm:$0xf]
        %v5598 = vld [vmem:[%s10 + $0xf0] sm:$0xf]
        %v5599 = vld [vmem:[%s10 + $0xf4] sm:$0xf]
        %v5600 = vld [vmem:[%s10 + $0xf8] sm:$0xf]
        %v5601 = vld [vmem:[%s10 + $0xfc] sm:$0xf]
        %v5602 = vld [vmem:[%s10 + $0x100] sm:$0xf]
        %v5603 = vld [vmem:[%s10 + $0x104] sm:$0xf]
        %v5604 = vld [vmem:[%s10 + $0x108] sm:$0xf]
        %v5605 = vld [vmem:[%s10 + $0x10c] sm:$0xf]
        %v5606 = vld [vmem:[%s10 + $0x110] sm:$0xf]
        %v5607 = vld [vmem:[%s10 + $0x114] sm:$0xf]
        %v5608 = vld [vmem:[%s10 + $0x118] sm:$0xf]
        %v5609 = vld [vmem:[%s10 + $0x11c] sm:$0xf]
        %v5610 = vld [vmem:[%s10 + $0x120] sm:$0xf]
        %v5611 = vld [vmem:[%s10 + $0x124] sm:$0xf]
        %v5612 = vld [vmem:[%s10 + $0x128] sm:$0xf]
        %v5613 = vld [vmem:[%s10 + $0x12c] sm:$0xf]
        %v5614 = vld [vmem:[%s10 + $0x130] sm:$0xf]
        %v5615 = vld [vmem:[%s10 + $0x134] sm:$0xf]
        %v5616 = vld [vmem:[%s10 + $0x138] sm:$0xf]
        %v5617 = vld [vmem:[%s10 + $0x13c] sm:$0xf]
        %v5618 = vld [vmem:[%s10 + $0x140] sm:$0xf]
        %v5619 = vld [vmem:[%s10 + $0x144] sm:$0xf]
        %v5620 = vld [vmem:[%s10 + $0x148] sm:$0xf]
        %v5621 = vld [vmem:[%s10 + $0x14c] sm:$0xf]
        %v5622 = vld [vmem:[%s10 + $0x150] sm:$0xf]
        %v5623 = vld [vmem:[%s10 + $0x154] sm:$0xf]
        %v5624 = vld [vmem:[%s10 + $0x158] sm:$0xf]
        %v5625 = vld [vmem:[%s10 + $0x15c] sm:$0xf]
        %v5626 = vld [vmem:[%s10 + $0x160] sm:$0xf]
        %v5627 = vld [vmem:[%s10 + $0x164] sm:$0xf]
        %v5628 = vld [vmem:[%s10 + $0x168] sm:$0xf]
        %v5629 = vld [vmem:[%s10 + $0x16c] sm:$0xf]
        %v5630 = vld [vmem:[%s10 + $0x170] sm:$0xf]
        %v5631 = vld [vmem:[%s10 + $0x174] sm:$0xf]
        %v5632 = vld [vmem:[%s10 + $0x178] sm:$0xf]
        %v5633 = vld [vmem:[%s10 + $0x17c] sm:$0xf]
        %v5634 = vld [vmem:[%s10 + $0x180] sm:$0xf]
        %v5635 = vld [vmem:[%s10 + $0x184] sm:$0xf]
        %v5636 = vld [vmem:[%s10 + $0x188] sm:$0xf]
        %v5637 = vld [vmem:[%s10 + $0x18c] sm:$0xf]
        %v5638 = vld [vmem:[%s10 + $0x190] sm:$0xf]
        %v5639 = vld [vmem:[%s10 + $0x194] sm:$0xf]
        %v5640 = vld [vmem:[%s10 + $0x198] sm:$0xf]
        %v5641 = vld [vmem:[%s10 + $0x19c] sm:$0xf]
        %v5642 = vld [vmem:[%s10 + $0x1a0] sm:$0xf]
        %v5643 = vld [vmem:[%s10 + $0x1a4] sm:$0xf]
        %v5644 = vld [vmem:[%s10 + $0x1a8] sm:$0xf]
        %v5645 = vld [vmem:[%s10 + $0x1ac] sm:$0xf]
        %v5646 = vld [vmem:[%s10 + $0x1b0] sm:$0xf]
        %v5647 = vld [vmem:[%s10 + $0x1b4] sm:$0xf]
        %v5648 = vld [vmem:[%s10 + $0x1b8] sm:$0xf]
        %v5649 = vld [vmem:[%s10 + $0x1bc] sm:$0xf]
        %v5650 = vld [vmem:[%s10 + $0x1c0] sm:$0xf]
        %v5651 = vld [vmem:[%s10 + $0x1c4] sm:$0xf]
        %v5652 = vld [vmem:[%s10 + $0x1c8] sm:$0xf]
        %v5653 = vld [vmem:[%s10 + $0x1cc] sm:$0xf]
        %v5654 = vld [vmem:[%s10 + $0x1d0] sm:$0xf]
        %v5655 = vld [vmem:[%s10 + $0x1d4] sm:$0xf]
        %v5656 = vld [vmem:[%s10 + $0x1d8] sm:$0xf]
        %v5657 = vld [vmem:[%s10 + $0x1dc] sm:$0xf]
        %v5658 = vld [vmem:[%s10 + $0x1e0] sm:$0xf]
        %v5659 = vld [vmem:[%s10 + $0x1e4] sm:$0xf]
        %v5660 = vld [vmem:[%s10 + $0x1e8] sm:$0xf]
        %v5661 = vld [vmem:[%s10 + $0x1ec] sm:$0xf]
        %v5662 = vld [vmem:[%s10 + $0x1f0] sm:$0xf]
        %v5663 = vld [vmem:[%s10 + $0x1f4] sm:$0xf]
        %v5664 = vld [vmem:[%s10 + $0x1f8] sm:$0xf]
        %v5665 = vld [vmem:[%s10 + $0x1fc] sm:$0xf]
        %v5666 = vld [vmem:[%s10 + $0x200] sm:$0xf]
        %v5667 = vld [vmem:[%s10 + $0x204] sm:$0xf]
        %v5668 = vld [vmem:[%s10 + $0x208] sm:$0xf]
        %v5669 = vld [vmem:[%s10 + $0x20c] sm:$0xf]
        %v5670 = vld [vmem:[%s10 + $0x210] sm:$0xf]
        %v5671 = vld [vmem:[%s10 + $0x214] sm:$0xf]
        %v5672 = vld [vmem:[%s10 + $0x218] sm:$0xf]
        %v5673 = vld [vmem:[%s10 + $0x21c] sm:$0xf]
        %v5674 = vld [vmem:[%s10 + $0x220] sm:$0xf]
        %v5675 = vld [vmem:[%s10 + $0x224] sm:$0xf]
        %v5676 = vld [vmem:[%s10 + $0x228] sm:$0xf]
        %v5677 = vld [vmem:[%s10 + $0x22c] sm:$0xf]
        %v5678 = vld [vmem:[%s10 + $0x230] sm:$0xf]
        %v5679 = vld [vmem:[%s10 + $0x234] sm:$0xf]
        %v5680 = vld [vmem:[%s10 + $0x238] sm:$0xf]
        %v5681 = vld [vmem:[%s10 + $0x23c] sm:$0xf]
        %v5682 = vld [vmem:[%s11] sm:$0x1]
        %v5684 = vlaneseq
        %v5685 = vshrl.u32 %v5684, 7
        %v5686 = vsub.s32 0, %v5685
        %v5687 = vrot.slane %v5682, %v5686
        %v5833 = vunpack.c.l.b16 %v5538
        %v5834 = vunpack.c.l.b16 %v5539
        %v5835 = vunpack.c.l.b16 %v5540
        %v5836 = vunpack.c.l.b16 %v5541
        %v5837 = vunpack.c.l.b16 %v5542
        %v5838 = vunpack.c.l.b16 %v5543
        %v5839 = vunpack.c.l.b16 %v5544
        %v5840 = vunpack.c.l.b16 %v5545
        %v5841 = vunpack.c.l.b16 %v5546
        %v5842 = vunpack.c.l.b16 %v5547
        %v5843 = vunpack.c.l.b16 %v5548
        %v5844 = vunpack.c.l.b16 %v5549
        %v5845 = vunpack.c.l.b16 %v5550
        %v5846 = vunpack.c.l.b16 %v5551
        %v5847 = vunpack.c.l.b16 %v5552
        %v5848 = vunpack.c.l.b16 %v5553
        %v5849 = vunpack.c.l.b16 %v5554
        %v5850 = vunpack.c.l.b16 %v5555
        %v5851 = vunpack.c.l.b16 %v5556
        %v5852 = vunpack.c.l.b16 %v5557
        %v5853 = vunpack.c.l.b16 %v5558
        %v5854 = vunpack.c.l.b16 %v5559
        %v5855 = vunpack.c.l.b16 %v5560
        %v5856 = vunpack.c.l.b16 %v5561
        %v5857 = vunpack.c.l.b16 %v5562
        %v5858 = vunpack.c.l.b16 %v5563
        %v5859 = vunpack.c.l.b16 %v5564
        %v5860 = vunpack.c.l.b16 %v5565
        %v5861 = vunpack.c.l.b16 %v5566
        %v5862 = vunpack.c.l.b16 %v5567
        %v5863 = vunpack.c.l.b16 %v5568
        %v5864 = vunpack.c.l.b16 %v5569
        %v5865 = vunpack.c.l.b16 %v5570
        %v5866 = vunpack.c.l.b16 %v5571
        %v5867 = vunpack.c.l.b16 %v5572
        %v5868 = vunpack.c.l.b16 %v5573
        %v5869 = vunpack.c.l.b16 %v5574
        %v5870 = vunpack.c.l.b16 %v5575
        %v5871 = vunpack.c.l.b16 %v5576
        %v5872 = vunpack.c.l.b16 %v5577
        %v5873 = vunpack.c.l.b16 %v5578
        %v5874 = vunpack.c.l.b16 %v5579
        %v5875 = vunpack.c.l.b16 %v5580
        %v5876 = vunpack.c.l.b16 %v5581
        %v5877 = vunpack.c.l.b16 %v5582
        %v5878 = vunpack.c.l.b16 %v5583
        %v5879 = vunpack.c.l.b16 %v5584
        %v5880 = vunpack.c.l.b16 %v5585
        %v5881 = vunpack.c.l.b16 %v5586
        %v5882 = vunpack.c.l.b16 %v5587
        %v5883 = vunpack.c.l.b16 %v5588
        %v5884 = vunpack.c.l.b16 %v5589
        %v5885 = vunpack.c.l.b16 %v5590
        %v5886 = vunpack.c.l.b16 %v5591
        %v5887 = vunpack.c.l.b16 %v5592
        %v5888 = vunpack.c.l.b16 %v5593
        %v5889 = vunpack.c.l.b16 %v5594
        %v5890 = vunpack.c.l.b16 %v5595
        %v5891 = vunpack.c.l.b16 %v5596
        %v5892 = vunpack.c.l.b16 %v5597
        %v5893 = vunpack.c.l.b16 %v5598
        %v5894 = vunpack.c.l.b16 %v5599
        %v5895 = vunpack.c.l.b16 %v5600
        %v5896 = vunpack.c.l.b16 %v5601
        %v5897 = vunpack.c.l.b16 %v5602
        %v5898 = vunpack.c.l.b16 %v5603
        %v5899 = vunpack.c.l.b16 %v5604
        %v5900 = vunpack.c.l.b16 %v5605
        %v5901 = vunpack.c.l.b16 %v5606
        %v5902 = vunpack.c.l.b16 %v5607
        %v5903 = vunpack.c.l.b16 %v5608
        %v5904 = vunpack.c.l.b16 %v5609
        %v5905 = vunpack.c.l.b16 %v5610
        %v5906 = vunpack.c.l.b16 %v5611
        %v5907 = vunpack.c.l.b16 %v5612
        %v5908 = vunpack.c.l.b16 %v5613
        %v5909 = vunpack.c.l.b16 %v5614
        %v5910 = vunpack.c.l.b16 %v5615
        %v5911 = vunpack.c.l.b16 %v5616
        %v5912 = vunpack.c.l.b16 %v5617
        %v5913 = vunpack.c.l.b16 %v5618
        %v5914 = vunpack.c.l.b16 %v5619
        %v5915 = vunpack.c.l.b16 %v5620
        %v5916 = vunpack.c.l.b16 %v5621
        %v5917 = vunpack.c.l.b16 %v5622
        %v5918 = vunpack.c.l.b16 %v5623
        %v5919 = vunpack.c.l.b16 %v5624
        %v5920 = vunpack.c.l.b16 %v5625
        %v5921 = vunpack.c.l.b16 %v5626
        %v5922 = vunpack.c.l.b16 %v5627
        %v5923 = vunpack.c.l.b16 %v5628
        %v5924 = vunpack.c.l.b16 %v5629
        %v5925 = vunpack.c.l.b16 %v5630
        %v5926 = vunpack.c.l.b16 %v5631
        %v5927 = vunpack.c.l.b16 %v5632
        %v5928 = vunpack.c.l.b16 %v5633
        %v5929 = vunpack.c.l.b16 %v5634
        %v5930 = vunpack.c.l.b16 %v5635
        %v5931 = vunpack.c.l.b16 %v5636
        %v5932 = vunpack.c.l.b16 %v5637
        %v5933 = vunpack.c.l.b16 %v5638
        %v5934 = vunpack.c.l.b16 %v5639
        %v5935 = vunpack.c.l.b16 %v5640
        %v5936 = vunpack.c.l.b16 %v5641
        %v5937 = vunpack.c.l.b16 %v5642
        %v5938 = vunpack.c.l.b16 %v5643
        %v5939 = vunpack.c.l.b16 %v5644
        %v5940 = vunpack.c.l.b16 %v5645
        %v5941 = vunpack.c.l.b16 %v5646
        %v5942 = vunpack.c.l.b16 %v5647
        %v5943 = vunpack.c.l.b16 %v5648
        %v5944 = vunpack.c.l.b16 %v5649
        %v5945 = vunpack.c.l.b16 %v5650
        %v5946 = vunpack.c.l.b16 %v5651
        %v5947 = vunpack.c.l.b16 %v5652
        %v5948 = vunpack.c.l.b16 %v5653
        %v5949 = vunpack.c.l.b16 %v5654
        %v5950 = vunpack.c.l.b16 %v5655
        %v5951 = vunpack.c.l.b16 %v5656
        %v5952 = vunpack.c.l.b16 %v5657
        %v5953 = vunpack.c.l.b16 %v5658
        %v5954 = vunpack.c.l.b16 %v5659
        %v5955 = vunpack.c.l.b16 %v5660
        %v5956 = vunpack.c.l.b16 %v5661
        %v5957 = vunpack.c.l.b16 %v5662
        %v5958 = vunpack.c.l.b16 %v5663
        %v5959 = vunpack.c.l.b16 %v5664
        %v5960 = vunpack.c.l.b16 %v5665
        %v5961 = vunpack.c.l.b16 %v5666
        %v5962 = vunpack.c.l.b16 %v5667
        %v5963 = vunpack.c.l.b16 %v5668
        %v5964 = vunpack.c.l.b16 %v5669
        %v5965 = vunpack.c.l.b16 %v5670
        %v5966 = vunpack.c.l.b16 %v5671
        %v5967 = vunpack.c.l.b16 %v5672
        %v5968 = vunpack.c.l.b16 %v5673
        %v5969 = vunpack.c.l.b16 %v5674
        %v5970 = vunpack.c.l.b16 %v5675
        %v5971 = vunpack.c.l.b16 %v5676
        %v5972 = vunpack.c.l.b16 %v5677
        %v5973 = vunpack.c.l.b16 %v5678
        %v5974 = vunpack.c.l.b16 %v5679
        %v5975 = vunpack.c.l.b16 %v5680
        %v5976 = vunpack.c.l.b16 %v5681
        %v5977 = vpack.c.b16 %v5834, %v5833
        %v5978 = vpack.c.b16 %v5836, %v5835
        %v5979 = vpack.c.b16 %v5838, %v5837
        %v5980 = vpack.c.b16 %v5840, %v5839
        %v5981 = vpack.c.b16 %v5842, %v5841
        %v5982 = vpack.c.b16 %v5844, %v5843
        %v5983 = vpack.c.b16 %v5846, %v5845
        %v5984 = vpack.c.b16 %v5848, %v5847
        %v5985 = vpack.c.b16 %v5850, %v5849
        %v5986 = vpack.c.b16 %v5852, %v5851
        %v5987 = vpack.c.b16 %v5854, %v5853
        %v5988 = vpack.c.b16 %v5856, %v5855
        %v5989 = vpack.c.b16 %v5858, %v5857
        %v5990 = vpack.c.b16 %v5860, %v5859
        %v5991 = vpack.c.b16 %v5862, %v5861
        %v5992 = vpack.c.b16 %v5864, %v5863
        %v5993 = vpack.c.b16 %v5866, %v5865
        %v5994 = vpack.c.b16 %v5868, %v5867
        %v5995 = vpack.c.b16 %v5870, %v5869
        %v5996 = vpack.c.b16 %v5872, %v5871
        %v5997 = vpack.c.b16 %v5874, %v5873
        %v5998 = vpack.c.b16 %v5876, %v5875
        %v5999 = vpack.c.b16 %v5878, %v5877
        %v6000 = vpack.c.b16 %v5880, %v5879
        %v6001 = vpack.c.b16 %v5882, %v5881
        %v6002 = vpack.c.b16 %v5884, %v5883
        %v6003 = vpack.c.b16 %v5886, %v5885
        %v6004 = vpack.c.b16 %v5888, %v5887
        %v6005 = vpack.c.b16 %v5890, %v5889
        %v6006 = vpack.c.b16 %v5892, %v5891
        %v6007 = vpack.c.b16 %v5894, %v5893
        %v6008 = vpack.c.b16 %v5896, %v5895
        %v6009 = vpack.c.b16 %v5898, %v5897
        %v6010 = vpack.c.b16 %v5900, %v5899
        %v6011 = vpack.c.b16 %v5902, %v5901
        %v6012 = vpack.c.b16 %v5904, %v5903
        %v6013 = vpack.c.b16 %v5906, %v5905
        %v6014 = vpack.c.b16 %v5908, %v5907
        %v6015 = vpack.c.b16 %v5910, %v5909
        %v6016 = vpack.c.b16 %v5912, %v5911
        %v6017 = vpack.c.b16 %v5914, %v5913
        %v6018 = vpack.c.b16 %v5916, %v5915
        %v6019 = vpack.c.b16 %v5918, %v5917
        %v6020 = vpack.c.b16 %v5920, %v5919
        %v6021 = vpack.c.b16 %v5922, %v5921
        %v6022 = vpack.c.b16 %v5924, %v5923
        %v6023 = vpack.c.b16 %v5926, %v5925
        %v6024 = vpack.c.b16 %v5928, %v5927
        %v6025 = vpack.c.b16 %v5930, %v5929
        %v6026 = vpack.c.b16 %v5932, %v5931
        %v6027 = vpack.c.b16 %v5934, %v5933
        %v6028 = vpack.c.b16 %v5936, %v5935
        %v6029 = vpack.c.b16 %v5938, %v5937
        %v6030 = vpack.c.b16 %v5940, %v5939
        %v6031 = vpack.c.b16 %v5942, %v5941
        %v6032 = vpack.c.b16 %v5944, %v5943
        %v6033 = vpack.c.b16 %v5946, %v5945
        %v6034 = vpack.c.b16 %v5948, %v5947
        %v6035 = vpack.c.b16 %v5950, %v5949
        %v6036 = vpack.c.b16 %v5952, %v5951
        %v6037 = vpack.c.b16 %v5954, %v5953
        %v6038 = vpack.c.b16 %v5956, %v5955
        %v6039 = vpack.c.b16 %v5958, %v5957
        %v6040 = vpack.c.b16 %v5960, %v5959
        %v6041 = vpack.c.b16 %v5962, %v5961
        %v6042 = vpack.c.b16 %v5964, %v5963
        %v6043 = vpack.c.b16 %v5966, %v5965
        %v6044 = vpack.c.b16 %v5968, %v5967
        %v6045 = vpack.c.b16 %v5970, %v5969
        %v6046 = vpack.c.b16 %v5972, %v5971
        %v6047 = vpack.c.b16 %v5974, %v5973
        %v6048 = vpack.c.b16 %v5976, %v5975
        %6121 = vmatprep.subr.bf16.mxu0 0
        %6122 = vmatpush1.bf16.msra.mxu0 %v5977
        %6123 = vmatprep.subr.bf16.mxu0 0
        %6124 = vmatpush1.bf16.msra.mxu0 %v5978
        %6125 = vmatprep.subr.bf16.mxu0 0
        %6126 = vmatpush1.bf16.msra.mxu0 %v5979
        %6127 = vmatprep.subr.bf16.mxu0 0
        %6128 = vmatpush1.bf16.msra.mxu0 %v5980
        %6129 = vmatprep.subr.bf16.mxu0 0
        %6130 = vmatpush1.bf16.msra.mxu0 %v5981
        %6131 = vmatprep.subr.bf16.mxu0 0
        %6132 = vmatpush1.bf16.msra.mxu0 %v5982
        %6133 = vmatprep.subr.bf16.mxu0 0
        %6134 = vmatpush1.bf16.msra.mxu0 %v5983
        %6135 = vmatprep.subr.bf16.mxu0 0
        %6136 = vmatpush1.bf16.msra.mxu0 %v5984
        %6137 = vmatprep.subr.bf16.mxu0 0
        %6138 = vmatpush1.bf16.msra.mxu0 %v5985
        %6139 = vmatprep.subr.bf16.mxu0 0
        %6140 = vmatpush1.bf16.msra.mxu0 %v5986
        %6141 = vmatprep.subr.bf16.mxu0 0
        %6142 = vmatpush1.bf16.msra.mxu0 %v5987
        %6143 = vmatprep.subr.bf16.mxu0 0
        %6144 = vmatpush1.bf16.msra.mxu0 %v5988
        %6145 = vmatprep.subr.bf16.mxu0 0
        %6146 = vmatpush1.bf16.msra.mxu0 %v5989
        %6147 = vmatprep.subr.bf16.mxu0 0
        %6148 = vmatpush1.bf16.msra.mxu0 %v5990
        %6149 = vmatprep.subr.bf16.mxu0 0
        %6150 = vmatpush1.bf16.msra.mxu0 %v5991
        %6151 = vmatprep.subr.bf16.mxu0 0
        %6152 = vmatpush1.bf16.msra.mxu0 %v5992
        %6153 = vmatprep.mubr.bf16.mxu0 %v5473
        %6154 = vmatmul.mubr.bf16.gmra.mrb[0].mxu0 %v5459
        %v6155 = vpop.f32.mrb[0].mxu0
        %v6156 = vadd.f32 %v5687, %v6155
        %v6157 = vpop.f32.mrb[0].mxu0
        %v6158 = vpop.f32.mrb[0].mxu0
        %v6159 = vadd.f32 %v5687, %v6158
        %v6160 = vpop.f32.mrb[0].mxu0
        %6161 = vmatprep.mubr.bf16.mxu0 %v5476
        %6162 = vmatmul.mubr.bf16.gmra.mrb[0].mxu0 %v5460
        %v6163 = vpop.f32.mrb[0].mxu0
        %v6164 = vadd.f32 %v5687, %v6163
        %v6165 = vpop.f32.mrb[0].mxu0
        %v6166 = vpop.f32.mrb[0].mxu0
        %v6167 = vpop.f32.mrb[0].mxu0
        %6168 = vdwg.mxu0
        %6169 = vmatprep.subr.bf16.mxu0 0
        %6170 = vmatpush1.bf16.msra.mxu0 %v5993
        %6171 = vmatprep.subr.bf16.mxu0 0
        %6172 = vmatpush1.bf16.msra.mxu0 %v5994
        %6173 = vmatprep.subr.bf16.mxu0 0
        %6174 = vmatpush1.bf16.msra.mxu0 %v5995
        %6175 = vmatprep.subr.bf16.mxu0 0
        %6176 = vmatpush1.bf16.msra.mxu0 %v5996
        %6177 = vmatprep.subr.bf16.mxu0 0
        %6178 = vmatpush1.bf16.msra.mxu0 %v5997
        %6179 = vmatprep.subr.bf16.mxu0 0
        %6180 = vmatpush1.bf16.msra.mxu0 %v5998
        %6181 = vmatprep.subr.bf16.mxu0 0
        %6182 = vmatpush1.bf16.msra.mxu0 %v5999
        %6183 = vmatprep.subr.bf16.mxu0 0
        %6184 = vmatpush1.bf16.msra.mxu0 %v6000
        %6185 = vmatprep.subr.bf16.mxu0 0
        %6186 = vmatpush1.bf16.msra.mxu0 %v6001
        %6187 = vmatprep.subr.bf16.mxu0 0
        %6188 = vmatpush1.bf16.msra.mxu0 %v6002
        %6189 = vmatprep.subr.bf16.mxu0 0
        %6190 = vmatpush1.bf16.msra.mxu0 %v6003
        %6191 = vmatprep.subr.bf16.mxu0 0
        %6192 = vmatpush1.bf16.msra.mxu0 %v6004
        %6193 = vmatprep.subr.bf16.mxu0 0
        %6194 = vmatpush1.bf16.msra.mxu0 %v6005
        %6195 = vmatprep.subr.bf16.mxu0 0
        %6196 = vmatpush1.bf16.msra.mxu0 %v6006
        %6197 = vmatprep.subr.bf16.mxu0 0
        %6198 = vmatpush1.bf16.msra.mxu0 %v6007
        %6199 = vmatprep.subr.bf16.mxu0 0
        %6200 = vmatpush1.bf16.msra.mxu0 %v6008
        %6201 = vmatprep.mubr.bf16.mxu0 %v5488
        %6202 = vmatmul.mubr.bf16.gmra.mrb[0].mxu0 %v5483
        %v6203 = vpop.f32.mrb[0].mxu0
        %v6204 = vadd.f32 %v6156, %v6203
        %v6205 = vpop.f32.mrb[0].mxu0
        %v6206 = vpop.f32.mrb[0].mxu0
        %v6207 = vadd.f32 %v6159, %v6206
        %v6208 = vpop.f32.mrb[0].mxu0
        %6209 = vmatprep.mubr.bf16.mxu0 %v5487
        %6210 = vmatmul.mubr.bf16.gmra.mrb[0].mxu0 %v5482
        %v6211 = vpop.f32.mrb[0].mxu0
        %v6212 = vadd.f32 %v6164, %v6211
        %v6213 = vpop.f32.mrb[0].mxu0
        %v6214 = vpop.f32.mrb[0].mxu0
        %v6215 = vpop.f32.mrb[0].mxu0
        %6216 = vdwg.mxu0
        %6217 = vmatprep.subr.bf16.mxu0 0
        %6218 = vmatpush1.bf16.msra.mxu0 %v6009
        %6219 = vmatprep.subr.bf16.mxu0 0
        %6220 = vmatpush1.bf16.msra.mxu0 %v6010
        %6221 = vmatprep.subr.bf16.mxu0 0
        %6222 = vmatpush1.bf16.msra.mxu0 %v6011
        %6223 = vmatprep.subr.bf16.mxu0 0
        %6224 = vmatpush1.bf16.msra.mxu0 %v6012
        %6225 = vmatprep.subr.bf16.mxu0 0
        %6226 = vmatpush1.bf16.msra.mxu0 %v6013
        %6227 = vmatprep.subr.bf16.mxu0 0
        %6228 = vmatpush1.bf16.msra.mxu0 %v6014
        %6229 = vmatprep.subr.bf16.mxu0 0
        %6230 = vmatpush1.bf16.msra.mxu0 %v6015
        %6231 = vmatprep.subr.bf16.mxu0 0
        %6232 = vmatpush1.bf16.msra.mxu0 %v6016
        %6233 = vmatprep.subr.bf16.mxu0 0
        %6234 = vmatpush1.bf16.msra.mxu0 %v6017
        %6235 = vmatprep.subr.bf16.mxu0 0
        %6236 = vmatpush1.bf16.msra.mxu0 %v6018
        %6237 = vmatprep.subr.bf16.mxu0 0
        %6238 = vmatpush1.bf16.msra.mxu0 %v6019
        %6239 = vmatprep.subr.bf16.mxu0 0
        %6240 = vmatpush1.bf16.msra.mxu0 %v6020
        %6241 = vmatprep.subr.bf16.mxu0 0
        %6242 = vmatpush1.bf16.msra.mxu0 %v6021
        %6243 = vmatprep.subr.bf16.mxu0 0
        %6244 = vmatpush1.bf16.msra.mxu0 %v6022
        %6245 = vmatprep.subr.bf16.mxu0 0
        %6246 = vmatpush1.bf16.msra.mxu0 %v6023
        %6247 = vmatprep.subr.bf16.mxu0 0
        %6248 = vmatpush1.bf16.msra.mxu0 %v6024
        %6249 = vmatprep.mubr.bf16.mxu0 %v5502
        %6250 = vmatmul.mubr.bf16.gmra.mrb[0].mxu0 %v5497
        %v6251 = vpop.f32.mrb[0].mxu0
        %v6252 = vadd.f32 %v6204, %v6251
        %v6253 = vpop.f32.mrb[0].mxu0
        %v6254 = vpop.f32.mrb[0].mxu0
        %v6255 = vadd.f32 %v6207, %v6254
        %v6256 = vpop.f32.mrb[0].mxu0
        %6257 = vmatprep.mubr.bf16.mxu0 %v5501
        %6258 = vmatmul.mubr.bf16.gmra.mrb[0].mxu0 %v5496
        %v6259 = vpop.f32.mrb[0].mxu0
        %v6260 = vadd.f32 %v6212, %v6259
        %v6261 = vpop.f32.mrb[0].mxu0
        %v6262 = vpop.f32.mrb[0].mxu0
        %v6263 = vpop.f32.mrb[0].mxu0
        %6264 = vdwg.mxu0
        %6265 = vmatprep.subr.bf16.mxu0 0
        %6266 = vmatpush1.bf16.msra.mxu0 %v6025
        %6267 = vmatprep.subr.bf16.mxu0 0
        %6268 = vmatpush1.bf16.msra.mxu0 %v6026
        %6269 = vmatprep.subr.bf16.mxu0 0
        %6270 = vmatpush1.bf16.msra.mxu0 %v6027
        %6271 = vmatprep.subr.bf16.mxu0 0
        %6272 = vmatpush1.bf16.msra.mxu0 %v6028
        %6273 = vmatprep.subr.bf16.mxu0 0
        %6274 = vmatpush1.bf16.msra.mxu0 %v6029
        %6275 = vmatprep.subr.bf16.mxu0 0
        %6276 = vmatpush1.bf16.msra.mxu0 %v6030
        %6277 = vmatprep.subr.bf16.mxu0 0
        %6278 = vmatpush1.bf16.msra.mxu0 %v6031
        %6279 = vmatprep.subr.bf16.mxu0 0
        %6280 = vmatpush1.bf16.msra.mxu0 %v6032
        %6281 = vmatprep.subr.bf16.mxu0 0
        %6282 = vmatpush1.bf16.msra.mxu0 %v6033
        %6283 = vmatprep.subr.bf16.mxu0 0
        %6284 = vmatpush1.bf16.msra.mxu0 %v6034
        %6285 = vmatprep.subr.bf16.mxu0 0
        %6286 = vmatpush1.bf16.msra.mxu0 %v6035
        %6287 = vmatprep.subr.bf16.mxu0 0
        %6288 = vmatpush1.bf16.msra.mxu0 %v6036
        %6289 = vmatprep.subr.bf16.mxu0 0
        %6290 = vmatpush1.bf16.msra.mxu0 %v6037
        %6291 = vmatprep.subr.bf16.mxu0 0
        %6292 = vmatpush1.bf16.msra.mxu0 %v6038
        %6293 = vmatprep.subr.bf16.mxu0 0
        %6294 = vmatpush1.bf16.msra.mxu0 %v6039
        %6295 = vmatprep.subr.bf16.mxu0 0
        %6296 = vmatpush1.bf16.msra.mxu0 %v6040
        %6297 = vmatprep.mubr.bf16.mxu0 %v5519
        %6298 = vmatmul.mubr.bf16.gmra.mrb[0].mxu0 %v5508
        %v6299 = vpop.f32.mrb[0].mxu0
        %v6300 = vadd.f32 %v6252, %v6299
        %v6301 = vpop.f32.mrb[0].mxu0
        %v6302 = vpop.f32.mrb[0].mxu0
        %v6303 = vadd.f32 %v6255, %v6302
        %v6304 = vpop.f32.mrb[0].mxu0
        %6305 = vmatprep.mubr.bf16.mxu0 %v5528
        %6306 = vmatmul.mubr.bf16.gmra.mrb[0].mxu0 %v5510
        %v6307 = vpop.f32.mrb[0].mxu0
        %v6308 = vadd.f32 %v6260, %v6307
        %v6309 = vpop.f32.mrb[0].mxu0
        %v6310 = vpop.f32.mrb[0].mxu0
        %v6311 = vpop.f32.mrb[0].mxu0
        %6312 = vdwg.mxu0
        %6313 = vmatprep.subr.bf16.mxu0 0
        %6314 = vmatpush1.bf16.msra.mxu0 %v6041
        %6315 = vmatprep.subr.bf16.mxu0 0
        %6316 = vmatpush1.bf16.msra.mxu0 %v6042
        %6317 = vmatprep.subr.bf16.mxu0 0
        %6318 = vmatpush1.bf16.msra.mxu0 %v6043
        %6319 = vmatprep.subr.bf16.mxu0 0
        %6320 = vmatpush1.bf16.msra.mxu0 %v6044
        %6321 = vmatprep.subr.bf16.mxu0 0
        %6322 = vmatpush1.bf16.msra.mxu0 %v6045
        %6323 = vmatprep.subr.bf16.mxu0 0
        %6324 = vmatpush1.bf16.msra.mxu0 %v6046
        %6325 = vmatprep.subr.bf16.mxu0 0
        %6326 = vmatpush1.bf16.msra.mxu0 %v6047
        %6327 = vmatprep.subr.bf16.mxu0 0
        %6328 = vmatpush1.bf16.msra.mxu0 %v6048
        %6329 = vmatprep.subr.bf16.mxu0 0
        %6330 = vmatpush1.bf16.msra.mxu0 0
        %6331 = vmatprep.subr.bf16.mxu0 0
        %6332 = vmatpush1.bf16.msra.mxu0 0
        %6333 = vmatprep.subr.bf16.mxu0 0
        %6334 = vmatpush1.bf16.msra.mxu0 0
        %6335 = vmatprep.subr.bf16.mxu0 0
        %6336 = vmatpush1.bf16.msra.mxu0 0
        %6337 = vmatprep.subr.bf16.mxu0 0
        %6338 = vmatpush1.bf16.msra.mxu0 0
        %6339 = vmatprep.subr.bf16.mxu0 0
        %6340 = vmatpush1.bf16.msra.mxu0 0
        %6341 = vmatprep.subr.bf16.mxu0 0
        %6342 = vmatpush1.bf16.msra.mxu0 0
        %6343 = vmatprep.subr.bf16.mxu0 0
        %6344 = vmatpush1.bf16.msra.mxu0 0
        %6345 = vmatprep.mubr.bf16.mxu0 0
        %6346 = vmatmul.mubr.bf16.gmra.mrb[0].mxu0 %v5533
        %v6347 = vpop.f32.mrb[0].mxu0
        %v6348 = vadd.f32 %v6300, %v6347
        %v6349 = vpop.f32.mrb[0].mxu0
        %v6350 = vpop.f32.mrb[0].mxu0
        %v6351 = vadd.f32 %v6303, %v6350
        %v6352 = vpop.f32.mrb[0].mxu0
        %6353 = vmatprep.mubr.bf16.mxu0 0
        %6354 = vmatmul.mubr.bf16.gmra.mrb[0].mxu0 %v5535
        %v6355 = vpop.f32.mrb[0].mxu0
        %v6356 = vadd.f32 %v6308, %v6355
        %v6357 = vpop.f32.mrb[0].mxu0
        %v6358 = vpop.f32.mrb[0].mxu0
        %v6359 = vpop.f32.mrb[0].mxu0
        %6360 = vdwg.mxu0
        %v6361 = vmul.f32 %v6348, 0.01
        %v6362 = vmul.f32 %v6351, 0.01
        %v6363 = vmul.f32 %v6356, 0.01
        %v6364 = vmax.f32 %v6348, %v6361
        %v6365 = vmax.f32 %v6351, %v6362
        %v6366 = vmax.f32 %v6356, %v6363
        %v6367 = vld [vmem:[%s12] sm:$0xf]
        %v6368 = vld [vmem:[%s12 + $0x4] sm:$0xf]
        %v6369 = vld [vmem:[%s12 + $0x8] sm:$0xf]
        %v6370 = vld [vmem:[%s12 + $0xc] sm:$0xf]
        %v6371 = vld [vmem:[%s12 + $0x10] sm:$0x7]
        %v6372 = vpack.c.bf16 %v6365, %v6364
        %v6373 = vpack.c.bf16 %v6366, %v6366
        %v6379 = vunpack.c.l.b16 %v6367
        %v6380 = vunpack.c.l.b16 %v6368
        %v6381 = vunpack.c.l.b16 %v6369
        %v6382 = vunpack.c.l.b16 %v6370
        %v6383 = vunpack.c.l.b16 %v6371
        %v6384 = vpack.c.b16 %v6380, %v6379
        %v6385 = vpack.c.b16 %v6382, %v6381
        %v6386 = vpack.c.b16 %v6383, %v6383
        %v6388 = vsel %vm5389, %v6384, 0
        %v6391 = vsel %vm5389, %v6385, 0
        %v6394 = vsel %vm5389, %v6386, 0
        %v6397 = vsel %vm5399, %v6373, 0
        %6399 = vmatprep.subr.bf16.mxu0 0
        %6400 = vmatpush1.bf16.msra.mxu0 %v6372
        %6401 = vmatprep.subr.bf16.mxu0 0
        %6402 = vmatpush1.bf16.msra.mxu0 %v6397
        %6403 = vmatprep.subr.bf16.mxu0 0
        %6404 = vmatpush1.bf16.msra.mxu0 0
        %6405 = vmatprep.subr.bf16.mxu0 0
        %6406 = vmatpush1.bf16.msra.mxu0 0
        %6407 = vmatprep.subr.bf16.mxu0 0
        %6408 = vmatpush1.bf16.msra.mxu0 0
        %6409 = vmatprep.subr.bf16.mxu0 0
        %6410 = vmatpush1.bf16.msra.mxu0 0
        %6411 = vmatprep.subr.bf16.mxu0 0
        %6412 = vmatpush1.bf16.msra.mxu0 0
        %6413 = vmatprep.subr.bf16.mxu0 0
        %6414 = vmatpush1.bf16.msra.mxu0 0
        %6415 = vmatprep.subr.bf16.mxu0 0
        %6416 = vmatpush1.bf16.msra.mxu0 0
        %6417 = vmatprep.subr.bf16.mxu0 0
        %6418 = vmatpush1.bf16.msra.mxu0 0
        %6419 = vmatprep.subr.bf16.mxu0 0
        %6420 = vmatpush1.bf16.msra.mxu0 0
        %6421 = vmatprep.subr.bf16.mxu0 0
        %6422 = vmatpush1.bf16.msra.mxu0 0
        %6423 = vmatprep.subr.bf16.mxu0 0
        %6424 = vmatpush1.bf16.msra.mxu0 0
        %6425 = vmatprep.subr.bf16.mxu0 0
        %6426 = vmatpush1.bf16.msra.mxu0 0
        %6427 = vmatprep.subr.bf16.mxu0 0
        %6428 = vmatpush1.bf16.msra.mxu0 0
        %6429 = vmatprep.subr.bf16.mxu0 0
        %6430 = vmatpush1.bf16.msra.mxu0 0
        %6431 = vmatprep.mubr.bf16.mxu0 0
        %6432 = vmatmul.mubr.bf16.gmra.mrb[0].mxu0 %v6388
        %v6433 = vpop.f32.mrb[0].mxu0
        %v6434 = vadd.f32 0.0, %v6433
        %v6435 = vpop.f32.mrb[0].mxu0
        %v6436 = vpop.f32.mrb[0].mxu0
        %v6437 = vadd.f32 0.0, %v6436
        %v6438 = vpop.f32.mrb[0].mxu0
        %6439 = vmatprep.mubr.bf16.mxu0 0
        %6440 = vmatmul.mubr.bf16.gmra.mrb[0].mxu0 %v6391
        %v6441 = vpop.f32.mrb[0].mxu0
        %v6442 = vadd.f32 0.0, %v6441
        %v6443 = vpop.f32.mrb[0].mxu0
        %v6444 = vpop.f32.mrb[0].mxu0
        %v6445 = vadd.f32 0.0, %v6444
        %v6446 = vpop.f32.mrb[0].mxu0
        %6447 = vmatprep.mubr.bf16.mxu0 0
        %6448 = vmatmul.mubr.bf16.gmra.mrb[0].mxu0 %v6394
        %v6449 = vpop.f32.mrb[0].mxu0
        %v6450 = vadd.f32 0.0, %v6449
        %v6451 = vpop.f32.mrb[0].mxu0
        %v6452 = vpop.f32.mrb[0].mxu0
        %v6453 = vpop.f32.mrb[0].mxu0
        %6454 = vdwg.mxu0
        %v6455 = vpack.c.bf16 %v6437, %v6434
        %v6456 = vpack.c.bf16 %v6445, %v6442
        %v6457 = vpack.c.bf16 %v6450, %v6450
        %v6459 = vshrl.u32 %v6455, 16
        %v6461 = vshll.u32 %v6455, 16
        %v6463 = vrot.slane %v6461, 1
        %v6464 = vor.u32 %v6459, %v6463
        %v6466 = vshll.u32 %v6456, 16
        %v6468 = vrot.slane %v6466, 1
        %v6469 = vsel %vm742, %v6464, %v6468
        %v6470 = vshrl.u32 %v6456, 16
        %v6472 = vor.u32 %v6470, %v6468
        %v6477 = vrot.slane %v6455, 1
        %v6478 = vrot.slane %v6456, 1
        %v6479 = vsel %vm909, %v6477, %v6478
        %v6482 = vrot.slane %v6455, 3
        %v6483 = vrot.slane %v6456, 3
        %v6484 = vsel %vm1253, %v6482, %v6483
        %v6487 = vrot.slane %v6459, 3
        %v6488 = vrot.slane %v6461, 4
        %v6489 = vor.u32 %v6487, %v6488
        %v6490 = vrot.slane %v6470, 3
        %v6491 = vrot.slane %v6466, 4
        %v6492 = vor.u32 %v6490, %v6491
        %v6493 = vsel %vm4489, %v6489, %v6492
        %v6496 = vrot.slane %v6455, 4
        %v6497 = vrot.slane %v6456, 4
        %v6498 = vsel %vm4499, %v6496, %v6497
        %v6502 = vrot.slane %v6455, 6
        %v6503 = vrot.slane %v6456, 6
        %v6504 = vsel %vm3317, %v6502, %v6503
        %v6505 = vrot.slane %v6457, 6
        %v6506 = vsel %vm3317, %v6503, %v6505
        %v6509 = vrot.slane %v6459, 6
        %v6510 = vrot.slane %v6461, 7
        %v6511 = vor.u32 %v6509, %v6510
        %v6512 = vrot.slane %v6470, 6
        %v6513 = vrot.slane %v6466, 7
        %v6514 = vor.u32 %v6512, %v6513
        %v6515 = vsel %vm4513, %v6511, %v6514
        %v6517 = vshrl.u32 %v6457, 16
        %v6519 = vrot.slane %v6517, 6
        %v6520 = vshll.u32 %v6457, 16
        %v6522 = vrot.slane %v6520, 7
        %v6523 = vor.u32 %v6519, %v6522
        %v6524 = vsel %vm4513, %v6514, %v6523
        %v6527 = vrot.slane %v6455, 7
        %v6528 = vrot.slane %v6456, 7
        %v6529 = vsel %vm4532, %v6527, %v6528
        %v6530 = vrot.slane %v6457, 7
        %v6531 = vsel %vm4532, %v6528, %v6530
        %v6534 = vld [vmem:[#allocation2] sm:$0xf]
        %v6535 = vld [vmem:[#allocation2 + $0x4] sm:$0xf]
        %v6536 = vld [vmem:[#allocation2 + $0x8] sm:$0xf]
        %v6537 = vld [vmem:[#allocation2 + $0xc] sm:$0xf]
        %v6538 = vld [vmem:[#allocation2 + $0x10] sm:$0xf]
        %v6539 = vld [vmem:[#allocation2 + $0x14] sm:$0xf]
        %v6540 = vld [vmem:[#allocation2 + $0x18] sm:$0xf]
        %v6541 = vld [vmem:[#allocation2 + $0x1c] sm:$0xf]
        %v6542 = vld [vmem:[#allocation2 + $0x20] sm:$0xf]
        %v6543 = vld [vmem:[#allocation2 + $0x24] sm:$0xf]
        %v6544 = vld [vmem:[#allocation2 + $0x28] sm:$0xf]
        %v6545 = vld [vmem:[#allocation2 + $0x2c] sm:$0xf]
        %v6546 = vld [vmem:[#allocation2 + $0x30] sm:$0xf]
        %v6547 = vld [vmem:[#allocation2 + $0x34] sm:$0xf]
        %v6548 = vld [vmem:[#allocation2 + $0x38] sm:$0xf]
        %v6549 = vld [vmem:[#allocation2 + $0x3c] sm:$0xf]
        %v6550 = vld [vmem:[#allocation2 + $0x40] sm:$0xf]
        %v6551 = vld [vmem:[#allocation2 + $0x44] sm:$0xf]
        %v6552 = vld [vmem:[#allocation2 + $0x48] sm:$0xf]
        %v6553 = vld [vmem:[#allocation2 + $0x4c] sm:$0xf]
        %v6554 = vld [vmem:[#allocation2 + $0x50] sm:$0xf]
        %v6555 = vld [vmem:[#allocation2 + $0x54] sm:$0xf]
        %v6556 = vld [vmem:[#allocation2 + $0x58] sm:$0xf]
        %v6557 = vld [vmem:[#allocation2 + $0x5c] sm:$0xf]
        %v6558 = vld [vmem:[#allocation2 + $0x60] sm:$0xf]
        %v6559 = vld [vmem:[#allocation2 + $0x64] sm:$0xf]
        %v6560 = vld [vmem:[#allocation2 + $0x68] sm:$0xf]
        %v6561 = vld [vmem:[#allocation2 + $0x6c] sm:$0xf]
        %v6562 = vld [vmem:[#allocation2 + $0x70] sm:$0xf]
        %v6563 = vld [vmem:[#allocation2 + $0x74] sm:$0xf]
        %v6564 = vld [vmem:[#allocation2 + $0x78] sm:$0xf]
        %v6565 = vld [vmem:[#allocation2 + $0x7c] sm:$0xf]
        %v6566 = vld [vmem:[#allocation2 + $0x80] sm:$0xf]
        %v6567 = vld [vmem:[#allocation2 + $0x84] sm:$0xf]
        %v6568 = vld [vmem:[#allocation2 + $0x88] sm:$0xf]
        %v6569 = vld [vmem:[#allocation2 + $0x8c] sm:$0xf]
        %v6570 = vld [vmem:[#allocation2 + $0x90] sm:$0xf]
        %v6571 = vld [vmem:[#allocation2 + $0x94] sm:$0xf]
        %v6572 = vld [vmem:[#allocation2 + $0x98] sm:$0xf]
        %v6573 = vld [vmem:[#allocation2 + $0x9c] sm:$0xf]
        %v6574 = vld [vmem:[#allocation2 + $0xa0] sm:$0xf]
        %v6575 = vld [vmem:[#allocation2 + $0xa4] sm:$0xf]
        %v6576 = vld [vmem:[#allocation2 + $0xa8] sm:$0xf]
        %v6577 = vld [vmem:[#allocation2 + $0xac] sm:$0xf]
        %v6578 = vld [vmem:[#allocation2 + $0xb0] sm:$0xf]
        %v6579 = vld [vmem:[#allocation2 + $0xb4] sm:$0xf]
        %v6580 = vld [vmem:[#allocation2 + $0xb8] sm:$0xf]
        %v6581 = vld [vmem:[#allocation2 + $0xbc] sm:$0xf]
        %v6582 = vld [vmem:[#allocation2 + $0xc0] sm:$0xf]
        %v6583 = vld [vmem:[#allocation2 + $0xc4] sm:$0xf]
        %v6584 = vld [vmem:[#allocation2 + $0xc8] sm:$0xf]
        %v6585 = vld [vmem:[#allocation2 + $0xcc] sm:$0xf]
        %v6586 = vld [vmem:[#allocation2 + $0xd0] sm:$0xf]
        %v6587 = vld [vmem:[#allocation2 + $0xd4] sm:$0xf]
        %v6588 = vld [vmem:[#allocation2 + $0xd8] sm:$0xf]
        %v6589 = vld [vmem:[#allocation2 + $0xdc] sm:$0xf]
        %v6590 = vld [vmem:[#allocation2 + $0xe0] sm:$0xf]
        %v6591 = vld [vmem:[#allocation2 + $0xe4] sm:$0xf]
        %v6592 = vld [vmem:[#allocation2 + $0xe8] sm:$0xf]
        %v6593 = vld [vmem:[#allocation2 + $0xec] sm:$0xf]
        %v6594 = vld [vmem:[#allocation2 + $0xf0] sm:$0xf]
        %v6595 = vld [vmem:[#allocation2 + $0xf4] sm:$0xf]
        %v6596 = vld [vmem:[#allocation2 + $0xf8] sm:$0xf]
        %v6597 = vld [vmem:[#allocation2 + $0xfc] sm:$0xf]
        %v6598 = vld [vmem:[#allocation2 + $0x100] sm:$0xf]
        %v6599 = vld [vmem:[#allocation2 + $0x104] sm:$0xf]
        %v6600 = vld [vmem:[#allocation2 + $0x108] sm:$0xf]
        %v6601 = vld [vmem:[#allocation2 + $0x10c] sm:$0xf]
        %v6602 = vld [vmem:[#allocation2 + $0x110] sm:$0xf]
        %v6603 = vld [vmem:[#allocation2 + $0x114] sm:$0xf]
        %v6604 = vld [vmem:[#allocation2 + $0x118] sm:$0xf]
        %v6605 = vld [vmem:[#allocation2 + $0x11c] sm:$0xf]
        %v6606 = vld [vmem:[#allocation2 + $0x120] sm:$0xf]
        %v6607 = vld [vmem:[#allocation2 + $0x124] sm:$0xf]
        %v6608 = vld [vmem:[#allocation2 + $0x128] sm:$0xf]
        %v6609 = vld [vmem:[#allocation2 + $0x12c] sm:$0xf]
        %v6610 = vld [vmem:[#allocation2 + $0x130] sm:$0xf]
        %v6611 = vld [vmem:[#allocation2 + $0x134] sm:$0xf]
        %v6612 = vld [vmem:[#allocation2 + $0x138] sm:$0xf]
        %v6613 = vld [vmem:[#allocation2 + $0x13c] sm:$0xf]
        %v6614 = vld [vmem:[#allocation2 + $0x140] sm:$0xf]
        %v6615 = vld [vmem:[#allocation2 + $0x144] sm:$0xf]
        %v6616 = vld [vmem:[#allocation2 + $0x148] sm:$0xf]
        %v6617 = vld [vmem:[#allocation2 + $0x14c] sm:$0xf]
        %v6618 = vld [vmem:[#allocation2 + $0x150] sm:$0xf]
        %v6619 = vld [vmem:[#allocation2 + $0x154] sm:$0xf]
        %v6620 = vld [vmem:[#allocation2 + $0x158] sm:$0xf]
        %v6621 = vld [vmem:[#allocation2 + $0x15c] sm:$0xf]
        %v6622 = vld [vmem:[#allocation2 + $0x160] sm:$0xf]
        %v6623 = vld [vmem:[#allocation2 + $0x164] sm:$0xf]
        %v6624 = vld [vmem:[#allocation2 + $0x168] sm:$0xf]
        %v6625 = vld [vmem:[#allocation2 + $0x16c] sm:$0xf]
        %v6626 = vld [vmem:[#allocation2 + $0x170] sm:$0xf]
        %v6627 = vld [vmem:[#allocation2 + $0x174] sm:$0xf]
        %v6628 = vld [vmem:[#allocation2 + $0x178] sm:$0xf]
        %v6629 = vld [vmem:[#allocation2 + $0x17c] sm:$0xf]
        %v6630 = vld [vmem:[#allocation2 + $0x180] sm:$0xf]
        %v6631 = vld [vmem:[#allocation2 + $0x184] sm:$0xf]
        %v6632 = vld [vmem:[#allocation2 + $0x188] sm:$0xf]
        %v6633 = vld [vmem:[#allocation2 + $0x18c] sm:$0xf]
        %v6634 = vld [vmem:[#allocation2 + $0x190] sm:$0xf]
        %v6635 = vld [vmem:[#allocation2 + $0x194] sm:$0xf]
        %v6636 = vld [vmem:[#allocation2 + $0x198] sm:$0xf]
        %v6637 = vld [vmem:[#allocation2 + $0x19c] sm:$0xf]
        %v6638 = vld [vmem:[#allocation2 + $0x1a0] sm:$0xf]
        %v6639 = vld [vmem:[#allocation2 + $0x1a4] sm:$0xf]
        %v6640 = vld [vmem:[#allocation2 + $0x1a8] sm:$0xf]
        %v6641 = vld [vmem:[#allocation2 + $0x1ac] sm:$0xf]
        %v6642 = vld [vmem:[#allocation2 + $0x1b0] sm:$0xf]
        %v6643 = vld [vmem:[#allocation2 + $0x1b4] sm:$0xf]
        %v6644 = vld [vmem:[#allocation2 + $0x1b8] sm:$0xf]
        %v6645 = vld [vmem:[#allocation2 + $0x1bc] sm:$0xf]
        %v6646 = vld [vmem:[#allocation2 + $0x1c0] sm:$0xf]
        %v6647 = vld [vmem:[#allocation2 + $0x1c4] sm:$0xf]
        %v6648 = vld [vmem:[#allocation2 + $0x1c8] sm:$0xf]
        %v6649 = vld [vmem:[#allocation2 + $0x1cc] sm:$0xf]
        %v6650 = vld [vmem:[#allocation2 + $0x1d0] sm:$0xf]
        %v6651 = vld [vmem:[#allocation2 + $0x1d4] sm:$0xf]
        %v6652 = vld [vmem:[#allocation2 + $0x1d8] sm:$0xf]
        %v6653 = vld [vmem:[#allocation2 + $0x1dc] sm:$0xf]
        %v6654 = vld [vmem:[#allocation2 + $0x1e0] sm:$0xf]
        %v6655 = vld [vmem:[#allocation2 + $0x1e4] sm:$0xf]
        %v6656 = vld [vmem:[#allocation2 + $0x1e8] sm:$0xf]
        %v6657 = vld [vmem:[#allocation2 + $0x1ec] sm:$0xf]
        %v6658 = vld [vmem:[#allocation2 + $0x1f0] sm:$0xf]
        %v6659 = vld [vmem:[#allocation2 + $0x1f4] sm:$0xf]
        %v6660 = vld [vmem:[#allocation2 + $0x1f8] sm:$0xf]
        %v6661 = vld [vmem:[#allocation2 + $0x1fc] sm:$0xf]
        %v6662 = vld [vmem:[#allocation2 + $0x200] sm:$0xf]
        %v6663 = vld [vmem:[#allocation2 + $0x204] sm:$0xf]
        %v6664 = vld [vmem:[#allocation2 + $0x208] sm:$0xf]
        %v6665 = vld [vmem:[#allocation2 + $0x20c] sm:$0xf]
        %v6666 = vld [vmem:[#allocation2 + $0x210] sm:$0xf]
        %v6667 = vld [vmem:[#allocation2 + $0x214] sm:$0xf]
        %v6668 = vld [vmem:[#allocation2 + $0x218] sm:$0xf]
        %v6669 = vld [vmem:[#allocation2 + $0x21c] sm:$0xf]
        %v6670 = vld [vmem:[#allocation2 + $0x220] sm:$0xf]
        %v6671 = vld [vmem:[#allocation2 + $0x224] sm:$0xf]
        %v6672 = vld [vmem:[#allocation2 + $0x228] sm:$0xf]
        %v6673 = vld [vmem:[#allocation2 + $0x22c] sm:$0xf]
        %v6674 = vld [vmem:[#allocation2 + $0x230] sm:$0xf]
        %v6675 = vld [vmem:[#allocation2 + $0x234] sm:$0xf]
        %v6676 = vld [vmem:[#allocation2 + $0x238] sm:$0xf]
        %v6677 = vld [vmem:[#allocation2 + $0x23c] sm:$0xf]
        %v6678 = vld [vmem:[%s14] sm:$0x1]
        %v6680 = vlaneseq
        %v6681 = vshrl.u32 %v6680, 7
        %v6682 = vsub.s32 0, %v6681
        %v6683 = vrot.slane %v6678, %v6682
        %v6829 = vunpack.c.l.b16 %v6534
        %v6830 = vunpack.c.l.b16 %v6535
        %v6831 = vunpack.c.l.b16 %v6536
        %v6832 = vunpack.c.l.b16 %v6537
        %v6833 = vunpack.c.l.b16 %v6538
        %v6834 = vunpack.c.l.b16 %v6539
        %v6835 = vunpack.c.l.b16 %v6540
        %v6836 = vunpack.c.l.b16 %v6541
        %v6837 = vunpack.c.l.b16 %v6542
        %v6838 = vunpack.c.l.b16 %v6543
        %v6839 = vunpack.c.l.b16 %v6544
        %v6840 = vunpack.c.l.b16 %v6545
        %v6841 = vunpack.c.l.b16 %v6546
        %v6842 = vunpack.c.l.b16 %v6547
        %v6843 = vunpack.c.l.b16 %v6548
        %v6844 = vunpack.c.l.b16 %v6549
        %v6845 = vunpack.c.l.b16 %v6550
        %v6846 = vunpack.c.l.b16 %v6551
        %v6847 = vunpack.c.l.b16 %v6552
        %v6848 = vunpack.c.l.b16 %v6553
        %v6849 = vunpack.c.l.b16 %v6554
        %v6850 = vunpack.c.l.b16 %v6555
        %v6851 = vunpack.c.l.b16 %v6556
        %v6852 = vunpack.c.l.b16 %v6557
        %v6853 = vunpack.c.l.b16 %v6558
        %v6854 = vunpack.c.l.b16 %v6559
        %v6855 = vunpack.c.l.b16 %v6560
        %v6856 = vunpack.c.l.b16 %v6561
        %v6857 = vunpack.c.l.b16 %v6562
        %v6858 = vunpack.c.l.b16 %v6563
        %v6859 = vunpack.c.l.b16 %v6564
        %v6860 = vunpack.c.l.b16 %v6565
        %v6861 = vunpack.c.l.b16 %v6566
        %v6862 = vunpack.c.l.b16 %v6567
        %v6863 = vunpack.c.l.b16 %v6568
        %v6864 = vunpack.c.l.b16 %v6569
        %v6865 = vunpack.c.l.b16 %v6570
        %v6866 = vunpack.c.l.b16 %v6571
        %v6867 = vunpack.c.l.b16 %v6572
        %v6868 = vunpack.c.l.b16 %v6573
        %v6869 = vunpack.c.l.b16 %v6574
        %v6870 = vunpack.c.l.b16 %v6575
        %v6871 = vunpack.c.l.b16 %v6576
        %v6872 = vunpack.c.l.b16 %v6577
        %v6873 = vunpack.c.l.b16 %v6578
        %v6874 = vunpack.c.l.b16 %v6579
        %v6875 = vunpack.c.l.b16 %v6580
        %v6876 = vunpack.c.l.b16 %v6581
        %v6877 = vunpack.c.l.b16 %v6582
        %v6878 = vunpack.c.l.b16 %v6583
        %v6879 = vunpack.c.l.b16 %v6584
        %v6880 = vunpack.c.l.b16 %v6585
        %v6881 = vunpack.c.l.b16 %v6586
        %v6882 = vunpack.c.l.b16 %v6587
        %v6883 = vunpack.c.l.b16 %v6588
        %v6884 = vunpack.c.l.b16 %v6589
        %v6885 = vunpack.c.l.b16 %v6590
        %v6886 = vunpack.c.l.b16 %v6591
        %v6887 = vunpack.c.l.b16 %v6592
        %v6888 = vunpack.c.l.b16 %v6593
        %v6889 = vunpack.c.l.b16 %v6594
        %v6890 = vunpack.c.l.b16 %v6595
        %v6891 = vunpack.c.l.b16 %v6596
        %v6892 = vunpack.c.l.b16 %v6597
        %v6893 = vunpack.c.l.b16 %v6598
        %v6894 = vunpack.c.l.b16 %v6599
        %v6895 = vunpack.c.l.b16 %v6600
        %v6896 = vunpack.c.l.b16 %v6601
        %v6897 = vunpack.c.l.b16 %v6602
        %v6898 = vunpack.c.l.b16 %v6603
        %v6899 = vunpack.c.l.b16 %v6604
        %v6900 = vunpack.c.l.b16 %v6605
        %v6901 = vunpack.c.l.b16 %v6606
        %v6902 = vunpack.c.l.b16 %v6607
        %v6903 = vunpack.c.l.b16 %v6608
        %v6904 = vunpack.c.l.b16 %v6609
        %v6905 = vunpack.c.l.b16 %v6610
        %v6906 = vunpack.c.l.b16 %v6611
        %v6907 = vunpack.c.l.b16 %v6612
        %v6908 = vunpack.c.l.b16 %v6613
        %v6909 = vunpack.c.l.b16 %v6614
        %v6910 = vunpack.c.l.b16 %v6615
        %v6911 = vunpack.c.l.b16 %v6616
        %v6912 = vunpack.c.l.b16 %v6617
        %v6913 = vunpack.c.l.b16 %v6618
        %v6914 = vunpack.c.l.b16 %v6619
        %v6915 = vunpack.c.l.b16 %v6620
        %v6916 = vunpack.c.l.b16 %v6621
        %v6917 = vunpack.c.l.b16 %v6622
        %v6918 = vunpack.c.l.b16 %v6623
        %v6919 = vunpack.c.l.b16 %v6624
        %v6920 = vunpack.c.l.b16 %v6625
        %v6921 = vunpack.c.l.b16 %v6626
        %v6922 = vunpack.c.l.b16 %v6627
        %v6923 = vunpack.c.l.b16 %v6628
        %v6924 = vunpack.c.l.b16 %v6629
        %v6925 = vunpack.c.l.b16 %v6630
        %v6926 = vunpack.c.l.b16 %v6631
        %v6927 = vunpack.c.l.b16 %v6632
        %v6928 = vunpack.c.l.b16 %v6633
        %v6929 = vunpack.c.l.b16 %v6634
        %v6930 = vunpack.c.l.b16 %v6635
        %v6931 = vunpack.c.l.b16 %v6636
        %v6932 = vunpack.c.l.b16 %v6637
        %v6933 = vunpack.c.l.b16 %v6638
        %v6934 = vunpack.c.l.b16 %v6639
        %v6935 = vunpack.c.l.b16 %v6640
        %v6936 = vunpack.c.l.b16 %v6641
        %v6937 = vunpack.c.l.b16 %v6642
        %v6938 = vunpack.c.l.b16 %v6643
        %v6939 = vunpack.c.l.b16 %v6644
        %v6940 = vunpack.c.l.b16 %v6645
        %v6941 = vunpack.c.l.b16 %v6646
        %v6942 = vunpack.c.l.b16 %v6647
        %v6943 = vunpack.c.l.b16 %v6648
        %v6944 = vunpack.c.l.b16 %v6649
        %v6945 = vunpack.c.l.b16 %v6650
        %v6946 = vunpack.c.l.b16 %v6651
        %v6947 = vunpack.c.l.b16 %v6652
        %v6948 = vunpack.c.l.b16 %v6653
        %v6949 = vunpack.c.l.b16 %v6654
        %v6950 = vunpack.c.l.b16 %v6655
        %v6951 = vunpack.c.l.b16 %v6656
        %v6952 = vunpack.c.l.b16 %v6657
        %v6953 = vunpack.c.l.b16 %v6658
        %v6954 = vunpack.c.l.b16 %v6659
        %v6955 = vunpack.c.l.b16 %v6660
        %v6956 = vunpack.c.l.b16 %v6661
        %v6957 = vunpack.c.l.b16 %v6662
        %v6958 = vunpack.c.l.b16 %v6663
        %v6959 = vunpack.c.l.b16 %v6664
        %v6960 = vunpack.c.l.b16 %v6665
        %v6961 = vunpack.c.l.b16 %v6666
        %v6962 = vunpack.c.l.b16 %v6667
        %v6963 = vunpack.c.l.b16 %v6668
        %v6964 = vunpack.c.l.b16 %v6669
        %v6965 = vunpack.c.l.b16 %v6670
        %v6966 = vunpack.c.l.b16 %v6671
        %v6967 = vunpack.c.l.b16 %v6672
        %v6968 = vunpack.c.l.b16 %v6673
        %v6969 = vunpack.c.l.b16 %v6674
        %v6970 = vunpack.c.l.b16 %v6675
        %v6971 = vunpack.c.l.b16 %v6676
        %v6972 = vunpack.c.l.b16 %v6677
        %v6973 = vpack.c.b16 %v6830, %v6829
        %v6974 = vpack.c.b16 %v6832, %v6831
        %v6975 = vpack.c.b16 %v6834, %v6833
        %v6976 = vpack.c.b16 %v6836, %v6835
        %v6977 = vpack.c.b16 %v6838, %v6837
        %v6978 = vpack.c.b16 %v6840, %v6839
        %v6979 = vpack.c.b16 %v6842, %v6841
        %v6980 = vpack.c.b16 %v6844, %v6843
        %v6981 = vpack.c.b16 %v6846, %v6845
        %v6982 = vpack.c.b16 %v6848, %v6847
        %v6983 = vpack.c.b16 %v6850, %v6849
        %v6984 = vpack.c.b16 %v6852, %v6851
        %v6985 = vpack.c.b16 %v6854, %v6853
        %v6986 = vpack.c.b16 %v6856, %v6855
        %v6987 = vpack.c.b16 %v6858, %v6857
        %v6988 = vpack.c.b16 %v6860, %v6859
        %v6989 = vpack.c.b16 %v6862, %v6861
        %v6990 = vpack.c.b16 %v6864, %v6863
        %v6991 = vpack.c.b16 %v6866, %v6865
        %v6992 = vpack.c.b16 %v6868, %v6867
        %v6993 = vpack.c.b16 %v6870, %v6869
        %v6994 = vpack.c.b16 %v6872, %v6871
        %v6995 = vpack.c.b16 %v6874, %v6873
        %v6996 = vpack.c.b16 %v6876, %v6875
        %v6997 = vpack.c.b16 %v6878, %v6877
        %v6998 = vpack.c.b16 %v6880, %v6879
        %v6999 = vpack.c.b16 %v6882, %v6881
        %v7000 = vpack.c.b16 %v6884, %v6883
        %v7001 = vpack.c.b16 %v6886, %v6885
        %v7002 = vpack.c.b16 %v6888, %v6887
        %v7003 = vpack.c.b16 %v6890, %v6889
        %v7004 = vpack.c.b16 %v6892, %v6891
        %v7005 = vpack.c.b16 %v6894, %v6893
        %v7006 = vpack.c.b16 %v6896, %v6895
        %v7007 = vpack.c.b16 %v6898, %v6897
        %v7008 = vpack.c.b16 %v6900, %v6899
        %v7009 = vpack.c.b16 %v6902, %v6901
        %v7010 = vpack.c.b16 %v6904, %v6903
        %v7011 = vpack.c.b16 %v6906, %v6905
        %v7012 = vpack.c.b16 %v6908, %v6907
        %v7013 = vpack.c.b16 %v6910, %v6909
        %v7014 = vpack.c.b16 %v6912, %v6911
        %v7015 = vpack.c.b16 %v6914, %v6913
        %v7016 = vpack.c.b16 %v6916, %v6915
        %v7017 = vpack.c.b16 %v6918, %v6917
        %v7018 = vpack.c.b16 %v6920, %v6919
        %v7019 = vpack.c.b16 %v6922, %v6921
        %v7020 = vpack.c.b16 %v6924, %v6923
        %v7021 = vpack.c.b16 %v6926, %v6925
        %v7022 = vpack.c.b16 %v6928, %v6927
        %v7023 = vpack.c.b16 %v6930, %v6929
        %v7024 = vpack.c.b16 %v6932, %v6931
        %v7025 = vpack.c.b16 %v6934, %v6933
        %v7026 = vpack.c.b16 %v6936, %v6935
        %v7027 = vpack.c.b16 %v6938, %v6937
        %v7028 = vpack.c.b16 %v6940, %v6939
        %v7029 = vpack.c.b16 %v6942, %v6941
        %v7030 = vpack.c.b16 %v6944, %v6943
        %v7031 = vpack.c.b16 %v6946, %v6945
        %v7032 = vpack.c.b16 %v6948, %v6947
        %v7033 = vpack.c.b16 %v6950, %v6949
        %v7034 = vpack.c.b16 %v6952, %v6951
        %v7035 = vpack.c.b16 %v6954, %v6953
        %v7036 = vpack.c.b16 %v6956, %v6955
        %v7037 = vpack.c.b16 %v6958, %v6957
        %v7038 = vpack.c.b16 %v6960, %v6959
        %v7039 = vpack.c.b16 %v6962, %v6961
        %v7040 = vpack.c.b16 %v6964, %v6963
        %v7041 = vpack.c.b16 %v6966, %v6965
        %v7042 = vpack.c.b16 %v6968, %v6967
        %v7043 = vpack.c.b16 %v6970, %v6969
        %v7044 = vpack.c.b16 %v6972, %v6971
        %7117 = vmatprep.subr.bf16.mxu0 0
        %7118 = vmatpush1.bf16.msra.mxu0 %v6973
        %7119 = vmatprep.subr.bf16.mxu0 0
        %7120 = vmatpush1.bf16.msra.mxu0 %v6974
        %7121 = vmatprep.subr.bf16.mxu0 0
        %7122 = vmatpush1.bf16.msra.mxu0 %v6975
        %7123 = vmatprep.subr.bf16.mxu0 0
        %7124 = vmatpush1.bf16.msra.mxu0 %v6976
        %7125 = vmatprep.subr.bf16.mxu0 0
        %7126 = vmatpush1.bf16.msra.mxu0 %v6977
        %7127 = vmatprep.subr.bf16.mxu0 0
        %7128 = vmatpush1.bf16.msra.mxu0 %v6978
        %7129 = vmatprep.subr.bf16.mxu0 0
        %7130 = vmatpush1.bf16.msra.mxu0 %v6979
        %7131 = vmatprep.subr.bf16.mxu0 0
        %7132 = vmatpush1.bf16.msra.mxu0 %v6980
        %7133 = vmatprep.subr.bf16.mxu0 0
        %7134 = vmatpush1.bf16.msra.mxu0 %v6981
        %7135 = vmatprep.subr.bf16.mxu0 0
        %7136 = vmatpush1.bf16.msra.mxu0 %v6982
        %7137 = vmatprep.subr.bf16.mxu0 0
        %7138 = vmatpush1.bf16.msra.mxu0 %v6983
        %7139 = vmatprep.subr.bf16.mxu0 0
        %7140 = vmatpush1.bf16.msra.mxu0 %v6984
        %7141 = vmatprep.subr.bf16.mxu0 0
        %7142 = vmatpush1.bf16.msra.mxu0 %v6985
        %7143 = vmatprep.subr.bf16.mxu0 0
        %7144 = vmatpush1.bf16.msra.mxu0 %v6986
        %7145 = vmatprep.subr.bf16.mxu0 0
        %7146 = vmatpush1.bf16.msra.mxu0 %v6987
        %7147 = vmatprep.subr.bf16.mxu0 0
        %7148 = vmatpush1.bf16.msra.mxu0 %v6988
        %7149 = vmatprep.mubr.bf16.mxu0 %v6469
        %7150 = vmatmul.mubr.bf16.gmra.mrb[0].mxu0 %v6455
        %v7151 = vpop.f32.mrb[0].mxu0
        %v7152 = vadd.f32 %v6683, %v7151
        %v7153 = vpop.f32.mrb[0].mxu0
        %v7154 = vpop.f32.mrb[0].mxu0
        %v7155 = vadd.f32 %v6683, %v7154
        %v7156 = vpop.f32.mrb[0].mxu0
        %7157 = vmatprep.mubr.bf16.mxu0 %v6472
        %7158 = vmatmul.mubr.bf16.gmra.mrb[0].mxu0 %v6456
        %v7159 = vpop.f32.mrb[0].mxu0
        %v7160 = vadd.f32 %v6683, %v7159
        %v7161 = vpop.f32.mrb[0].mxu0
        %v7162 = vpop.f32.mrb[0].mxu0
        %v7163 = vpop.f32.mrb[0].mxu0
        %7164 = vdwg.mxu0
        %7165 = vmatprep.subr.bf16.mxu0 0
        %7166 = vmatpush1.bf16.msra.mxu0 %v6989
        %7167 = vmatprep.subr.bf16.mxu0 0
        %7168 = vmatpush1.bf16.msra.mxu0 %v6990
        %7169 = vmatprep.subr.bf16.mxu0 0
        %7170 = vmatpush1.bf16.msra.mxu0 %v6991
        %7171 = vmatprep.subr.bf16.mxu0 0
        %7172 = vmatpush1.bf16.msra.mxu0 %v6992
        %7173 = vmatprep.subr.bf16.mxu0 0
        %7174 = vmatpush1.bf16.msra.mxu0 %v6993
        %7175 = vmatprep.subr.bf16.mxu0 0
        %7176 = vmatpush1.bf16.msra.mxu0 %v6994
        %7177 = vmatprep.subr.bf16.mxu0 0
        %7178 = vmatpush1.bf16.msra.mxu0 %v6995
        %7179 = vmatprep.subr.bf16.mxu0 0
        %7180 = vmatpush1.bf16.msra.mxu0 %v6996
        %7181 = vmatprep.subr.bf16.mxu0 0
        %7182 = vmatpush1.bf16.msra.mxu0 %v6997
        %7183 = vmatprep.subr.bf16.mxu0 0
        %7184 = vmatpush1.bf16.msra.mxu0 %v6998
        %7185 = vmatprep.subr.bf16.mxu0 0
        %7186 = vmatpush1.bf16.msra.mxu0 %v6999
        %7187 = vmatprep.subr.bf16.mxu0 0
        %7188 = vmatpush1.bf16.msra.mxu0 %v7000
        %7189 = vmatprep.subr.bf16.mxu0 0
        %7190 = vmatpush1.bf16.msra.mxu0 %v7001
        %7191 = vmatprep.subr.bf16.mxu0 0
        %7192 = vmatpush1.bf16.msra.mxu0 %v7002
        %7193 = vmatprep.subr.bf16.mxu0 0
        %7194 = vmatpush1.bf16.msra.mxu0 %v7003
        %7195 = vmatprep.subr.bf16.mxu0 0
        %7196 = vmatpush1.bf16.msra.mxu0 %v7004
        %7197 = vmatprep.mubr.bf16.mxu0 %v6484
        %7198 = vmatmul.mubr.bf16.gmra.mrb[0].mxu0 %v6479
        %v7199 = vpop.f32.mrb[0].mxu0
        %v7200 = vadd.f32 %v7152, %v7199
        %v7201 = vpop.f32.mrb[0].mxu0
        %v7202 = vpop.f32.mrb[0].mxu0
        %v7203 = vadd.f32 %v7155, %v7202
        %v7204 = vpop.f32.mrb[0].mxu0
        %7205 = vmatprep.mubr.bf16.mxu0 %v6483
        %7206 = vmatmul.mubr.bf16.gmra.mrb[0].mxu0 %v6478
        %v7207 = vpop.f32.mrb[0].mxu0
        %v7208 = vadd.f32 %v7160, %v7207
        %v7209 = vpop.f32.mrb[0].mxu0
        %v7210 = vpop.f32.mrb[0].mxu0
        %v7211 = vpop.f32.mrb[0].mxu0
        %7212 = vdwg.mxu0
        %7213 = vmatprep.subr.bf16.mxu0 0
        %7214 = vmatpush1.bf16.msra.mxu0 %v7005
        %7215 = vmatprep.subr.bf16.mxu0 0
        %7216 = vmatpush1.bf16.msra.mxu0 %v7006
        %7217 = vmatprep.subr.bf16.mxu0 0
        %7218 = vmatpush1.bf16.msra.mxu0 %v7007
        %7219 = vmatprep.subr.bf16.mxu0 0
        %7220 = vmatpush1.bf16.msra.mxu0 %v7008
        %7221 = vmatprep.subr.bf16.mxu0 0
        %7222 = vmatpush1.bf16.msra.mxu0 %v7009
        %7223 = vmatprep.subr.bf16.mxu0 0
        %7224 = vmatpush1.bf16.msra.mxu0 %v7010
        %7225 = vmatprep.subr.bf16.mxu0 0
        %7226 = vmatpush1.bf16.msra.mxu0 %v7011
        %7227 = vmatprep.subr.bf16.mxu0 0
        %7228 = vmatpush1.bf16.msra.mxu0 %v7012
        %7229 = vmatprep.subr.bf16.mxu0 0
        %7230 = vmatpush1.bf16.msra.mxu0 %v7013
        %7231 = vmatprep.subr.bf16.mxu0 0
        %7232 = vmatpush1.bf16.msra.mxu0 %v7014
        %7233 = vmatprep.subr.bf16.mxu0 0
        %7234 = vmatpush1.bf16.msra.mxu0 %v7015
        %7235 = vmatprep.subr.bf16.mxu0 0
        %7236 = vmatpush1.bf16.msra.mxu0 %v7016
        %7237 = vmatprep.subr.bf16.mxu0 0
        %7238 = vmatpush1.bf16.msra.mxu0 %v7017
        %7239 = vmatprep.subr.bf16.mxu0 0
        %7240 = vmatpush1.bf16.msra.mxu0 %v7018
        %7241 = vmatprep.subr.bf16.mxu0 0
        %7242 = vmatpush1.bf16.msra.mxu0 %v7019
        %7243 = vmatprep.subr.bf16.mxu0 0
        %7244 = vmatpush1.bf16.msra.mxu0 %v7020
        %7245 = vmatprep.mubr.bf16.mxu0 %v6498
        %7246 = vmatmul.mubr.bf16.gmra.mrb[0].mxu0 %v6493
        %v7247 = vpop.f32.mrb[0].mxu0
        %v7248 = vadd.f32 %v7200, %v7247
        %v7249 = vpop.f32.mrb[0].mxu0
        %v7250 = vpop.f32.mrb[0].mxu0
        %v7251 = vadd.f32 %v7203, %v7250
        %v7252 = vpop.f32.mrb[0].mxu0
        %7253 = vmatprep.mubr.bf16.mxu0 %v6497
        %7254 = vmatmul.mubr.bf16.gmra.mrb[0].mxu0 %v6492
        %v7255 = vpop.f32.mrb[0].mxu0
        %v7256 = vadd.f32 %v7208, %v7255
        %v7257 = vpop.f32.mrb[0].mxu0
        %v7258 = vpop.f32.mrb[0].mxu0
        %v7259 = vpop.f32.mrb[0].mxu0
        %7260 = vdwg.mxu0
        %7261 = vmatprep.subr.bf16.mxu0 0
        %7262 = vmatpush1.bf16.msra.mxu0 %v7021
        %7263 = vmatprep.subr.bf16.mxu0 0
        %7264 = vmatpush1.bf16.msra.mxu0 %v7022
        %7265 = vmatprep.subr.bf16.mxu0 0
        %7266 = vmatpush1.bf16.msra.mxu0 %v7023
        %7267 = vmatprep.subr.bf16.mxu0 0
        %7268 = vmatpush1.bf16.msra.mxu0 %v7024
        %7269 = vmatprep.subr.bf16.mxu0 0
        %7270 = vmatpush1.bf16.msra.mxu0 %v7025
        %7271 = vmatprep.subr.bf16.mxu0 0
        %7272 = vmatpush1.bf16.msra.mxu0 %v7026
        %7273 = vmatprep.subr.bf16.mxu0 0
        %7274 = vmatpush1.bf16.msra.mxu0 %v7027
        %7275 = vmatprep.subr.bf16.mxu0 0
        %7276 = vmatpush1.bf16.msra.mxu0 %v7028
        %7277 = vmatprep.subr.bf16.mxu0 0
        %7278 = vmatpush1.bf16.msra.mxu0 %v7029
        %7279 = vmatprep.subr.bf16.mxu0 0
        %7280 = vmatpush1.bf16.msra.mxu0 %v7030
        %7281 = vmatprep.subr.bf16.mxu0 0
        %7282 = vmatpush1.bf16.msra.mxu0 %v7031
        %7283 = vmatprep.subr.bf16.mxu0 0
        %7284 = vmatpush1.bf16.msra.mxu0 %v7032
        %7285 = vmatprep.subr.bf16.mxu0 0
        %7286 = vmatpush1.bf16.msra.mxu0 %v7033
        %7287 = vmatprep.subr.bf16.mxu0 0
        %7288 = vmatpush1.bf16.msra.mxu0 %v7034
        %7289 = vmatprep.subr.bf16.mxu0 0
        %7290 = vmatpush1.bf16.msra.mxu0 %v7035
        %7291 = vmatprep.subr.bf16.mxu0 0
        %7292 = vmatpush1.bf16.msra.mxu0 %v7036
        %7293 = vmatprep.mubr.bf16.mxu0 %v6515
        %7294 = vmatmul.mubr.bf16.gmra.mrb[0].mxu0 %v6504
        %v7295 = vpop.f32.mrb[0].mxu0
        %v7296 = vadd.f32 %v7248, %v7295
        %v7297 = vpop.f32.mrb[0].mxu0
        %v7298 = vpop.f32.mrb[0].mxu0
        %v7299 = vadd.f32 %v7251, %v7298
        %v7300 = vpop.f32.mrb[0].mxu0
        %7301 = vmatprep.mubr.bf16.mxu0 %v6524
        %7302 = vmatmul.mubr.bf16.gmra.mrb[0].mxu0 %v6506
        %v7303 = vpop.f32.mrb[0].mxu0
        %v7304 = vadd.f32 %v7256, %v7303
        %v7305 = vpop.f32.mrb[0].mxu0
        %v7306 = vpop.f32.mrb[0].mxu0
        %v7307 = vpop.f32.mrb[0].mxu0
        %7308 = vdwg.mxu0
        %7309 = vmatprep.subr.bf16.mxu0 0
        %7310 = vmatpush1.bf16.msra.mxu0 %v7037
        %7311 = vmatprep.subr.bf16.mxu0 0
        %7312 = vmatpush1.bf16.msra.mxu0 %v7038
        %7313 = vmatprep.subr.bf16.mxu0 0
        %7314 = vmatpush1.bf16.msra.mxu0 %v7039
        %7315 = vmatprep.subr.bf16.mxu0 0
        %7316 = vmatpush1.bf16.msra.mxu0 %v7040
        %7317 = vmatprep.subr.bf16.mxu0 0
        %7318 = vmatpush1.bf16.msra.mxu0 %v7041
        %7319 = vmatprep.subr.bf16.mxu0 0
        %7320 = vmatpush1.bf16.msra.mxu0 %v7042
        %7321 = vmatprep.subr.bf16.mxu0 0
        %7322 = vmatpush1.bf16.msra.mxu0 %v7043
        %7323 = vmatprep.subr.bf16.mxu0 0
        %7324 = vmatpush1.bf16.msra.mxu0 %v7044
        %7325 = vmatprep.subr.bf16.mxu0 0
        %7326 = vmatpush1.bf16.msra.mxu0 0
        %7327 = vmatprep.subr.bf16.mxu0 0
        %7328 = vmatpush1.bf16.msra.mxu0 0
        %7329 = vmatprep.subr.bf16.mxu0 0
        %7330 = vmatpush1.bf16.msra.mxu0 0
        %7331 = vmatprep.subr.bf16.mxu0 0
        %7332 = vmatpush1.bf16.msra.mxu0 0
        %7333 = vmatprep.subr.bf16.mxu0 0
        %7334 = vmatpush1.bf16.msra.mxu0 0
        %7335 = vmatprep.subr.bf16.mxu0 0
        %7336 = vmatpush1.bf16.msra.mxu0 0
        %7337 = vmatprep.subr.bf16.mxu0 0
        %7338 = vmatpush1.bf16.msra.mxu0 0
        %7339 = vmatprep.subr.bf16.mxu0 0
        %7340 = vmatpush1.bf16.msra.mxu0 0
        %7341 = vmatprep.mubr.bf16.mxu0 0
        %7342 = vmatmul.mubr.bf16.gmra.mrb[0].mxu0 %v6529
        %v7343 = vpop.f32.mrb[0].mxu0
        %v7344 = vadd.f32 %v7296, %v7343
        %v7345 = vpop.f32.mrb[0].mxu0
        %v7346 = vpop.f32.mrb[0].mxu0
        %v7347 = vadd.f32 %v7299, %v7346
        %v7348 = vpop.f32.mrb[0].mxu0
        %7349 = vmatprep.mubr.bf16.mxu0 0
        %7350 = vmatmul.mubr.bf16.gmra.mrb[0].mxu0 %v6531
        %v7351 = vpop.f32.mrb[0].mxu0
        %v7352 = vadd.f32 %v7304, %v7351
        %v7353 = vpop.f32.mrb[0].mxu0
        %v7354 = vpop.f32.mrb[0].mxu0
        %v7355 = vpop.f32.mrb[0].mxu0
        %7356 = vdwg.mxu0
        %v7357 = vmul.f32 %v7344, 0.01
        %v7358 = vmul.f32 %v7347, 0.01
        %v7359 = vmul.f32 %v7352, 0.01
        %v7360 = vmax.f32 %v7344, %v7357
        %v7361 = vmax.f32 %v7347, %v7358
        %v7362 = vmax.f32 %v7352, %v7359
        %v7363 = vld [vmem:[%s15] sm:$0xf]
        %v7364 = vld [vmem:[%s15 + $0x4] sm:$0xf]
        %v7365 = vpack.c.bf16 %v7361, %v7360
        %v7366 = vpack.c.bf16 %v7362, %v7362
        %v7369 = vunpack.c.l.b16 %v7363
        %v7370 = vunpack.c.l.b16 %v7364
        %v7371 = vpack.c.b16 %v7370, %v7369
        %v7373 = vsel %vm5389, %v7371, 0
        %v7376 = vsel %vm5399, %v7366, 0
        %7378 = vmatprep.subr.bf16.mxu0 0
        %7379 = vmatpush1.bf16.msra.mxu0 %v7365
        %7380 = vmatprep.subr.bf16.mxu0 0
        %7381 = vmatpush1.bf16.msra.mxu0 %v7376
        %7382 = vmatprep.subr.bf16.mxu0 0
        %7383 = vmatpush1.bf16.msra.mxu0 0
        %7384 = vmatprep.subr.bf16.mxu0 0
        %7385 = vmatpush1.bf16.msra.mxu0 0
        %7386 = vmatprep.subr.bf16.mxu0 0
        %7387 = vmatpush1.bf16.msra.mxu0 0
        %7388 = vmatprep.subr.bf16.mxu0 0
        %7389 = vmatpush1.bf16.msra.mxu0 0
        %7390 = vmatprep.subr.bf16.mxu0 0
        %7391 = vmatpush1.bf16.msra.mxu0 0
        %7392 = vmatprep.subr.bf16.mxu0 0
        %7393 = vmatpush1.bf16.msra.mxu0 0
        %7394 = vmatprep.subr.bf16.mxu0 0
        %7395 = vmatpush1.bf16.msra.mxu0 0
        %7396 = vmatprep.subr.bf16.mxu0 0
        %7397 = vmatpush1.bf16.msra.mxu0 0
        %7398 = vmatprep.subr.bf16.mxu0 0
        %7399 = vmatpush1.bf16.msra.mxu0 0
        %7400 = vmatprep.subr.bf16.mxu0 0
        %7401 = vmatpush1.bf16.msra.mxu0 0
        %7402 = vmatprep.subr.bf16.mxu0 0
        %7403 = vmatpush1.bf16.msra.mxu0 0
        %7404 = vmatprep.subr.bf16.mxu0 0
        %7405 = vmatpush1.bf16.msra.mxu0 0
        %7406 = vmatprep.subr.bf16.mxu0 0
        %7407 = vmatpush1.bf16.msra.mxu0 0
        %7408 = vmatprep.subr.bf16.mxu0 0
        %7409 = vmatpush1.bf16.msra.mxu0 0
        %7410 = vmatprep.mubr.bf16.mxu0 0
        %7411 = vmatmul.mubr.bf16.gmra.mrb[0].mxu0 %v7373
        %v7412 = vpop.f32.mrb[0].mxu0
        %v7413 = vadd.f32 0.0, %v7412
        %v7414 = vpop.f32.mrb[0].mxu0
        %v7415 = vpop.f32.mrb[0].mxu0
        %v7416 = vadd.f32 0.0, %v7415
        %v7417 = vpop.f32.mrb[0].mxu0
        %7418 = vdwg.mxu0
        %v7419 = vpack.c.bf16 %v7416, %v7413
        %v7420 = vld [vmem:[%s16] sm:$0xf]
        %v7421 = vld [vmem:[%s16 + $0x4] sm:$0xf]
        %v7422 = vld [vmem:[%s16 + $0x8] sm:$0xf]
        %v7423 = vld [vmem:[%s16 + $0xc] sm:$0xf]
        %v7424 = vld [vmem:[%s16 + $0x10] sm:$0xf]
        %v7425 = vld [vmem:[%s16 + $0x14] sm:$0xf]
        %v7426 = vld [vmem:[%s16 + $0x18] sm:$0xf]
        %v7427 = vld [vmem:[%s16 + $0x1c] sm:$0xf]
        %v7428 = vld [vmem:[%s16 + $0x20] sm:$0xf]
        %v7429 = vld [vmem:[%s16 + $0x24] sm:$0xf]
        %v7430 = vld [vmem:[%s16 + $0x28] sm:$0xf]
        %v7431 = vld [vmem:[%s16 + $0x2c] sm:$0xf]
        %v7432 = vld [vmem:[%s16 + $0x30] sm:$0xf]
        %v7433 = vld [vmem:[%s16 + $0x34] sm:$0xf]
        %v7434 = vld [vmem:[%s16 + $0x38] sm:$0xf]
        %v7435 = vld [vmem:[%s16 + $0x3c] sm:$0xf]
        %v7436 = vld [vmem:[%s17] sm:$0x1]
        %v7438 = vlaneseq
        %v7439 = vshrl.u32 %v7438, 7
        %v7440 = vsub.s32 0, %v7439
        %v7441 = vrot.slane %v7436, %v7440
        %v7459 = vunpack.c.l.b16 %v7420
        %v7460 = vunpack.c.l.b16 %v7421
        %v7461 = vunpack.c.l.b16 %v7422
        %v7462 = vunpack.c.l.b16 %v7423
        %v7463 = vunpack.c.l.b16 %v7424
        %v7464 = vunpack.c.l.b16 %v7425
        %v7465 = vunpack.c.l.b16 %v7426
        %v7466 = vunpack.c.l.b16 %v7427
        %v7467 = vunpack.c.l.b16 %v7428
        %v7468 = vunpack.c.l.b16 %v7429
        %v7469 = vunpack.c.l.b16 %v7430
        %v7470 = vunpack.c.l.b16 %v7431
        %v7471 = vunpack.c.l.b16 %v7432
        %v7472 = vunpack.c.l.b16 %v7433
        %v7473 = vunpack.c.l.b16 %v7434
        %v7474 = vunpack.c.l.b16 %v7435
        %v7475 = vpack.c.b16 %v7460, %v7459
        %v7476 = vpack.c.b16 %v7462, %v7461
        %v7477 = vpack.c.b16 %v7464, %v7463
        %v7478 = vpack.c.b16 %v7466, %v7465
        %v7479 = vpack.c.b16 %v7468, %v7467
        %v7480 = vpack.c.b16 %v7470, %v7469
        %v7481 = vpack.c.b16 %v7472, %v7471
        %v7482 = vpack.c.b16 %v7474, %v7473
        %7491 = vmatprep.subr.bf16.mxu0 0
        %7492 = vmatpush1.bf16.msra.mxu0 %v7475
        %7493 = vmatprep.subr.bf16.mxu0 0
        %7494 = vmatpush1.bf16.msra.mxu0 %v7476
        %7495 = vmatprep.subr.bf16.mxu0 0
        %7496 = vmatpush1.bf16.msra.mxu0 %v7477
        %7497 = vmatprep.subr.bf16.mxu0 0
        %7498 = vmatpush1.bf16.msra.mxu0 %v7478
        %7499 = vmatprep.subr.bf16.mxu0 0
        %7500 = vmatpush1.bf16.msra.mxu0 %v7479
        %7501 = vmatprep.subr.bf16.mxu0 0
        %7502 = vmatpush1.bf16.msra.mxu0 %v7480
        %7503 = vmatprep.subr.bf16.mxu0 0
        %7504 = vmatpush1.bf16.msra.mxu0 %v7481
        %7505 = vmatprep.subr.bf16.mxu0 0
        %7506 = vmatpush1.bf16.msra.mxu0 %v7482
        %7507 = vmatprep.subr.bf16.mxu0 0
        %7508 = vmatpush1.bf16.msra.mxu0 0
        %7509 = vmatprep.subr.bf16.mxu0 0
        %7510 = vmatpush1.bf16.msra.mxu0 0
        %7511 = vmatprep.subr.bf16.mxu0 0
        %7512 = vmatpush1.bf16.msra.mxu0 0
        %7513 = vmatprep.subr.bf16.mxu0 0
        %7514 = vmatpush1.bf16.msra.mxu0 0
        %7515 = vmatprep.subr.bf16.mxu0 0
        %7516 = vmatpush1.bf16.msra.mxu0 0
        %7517 = vmatprep.subr.bf16.mxu0 0
        %7518 = vmatpush1.bf16.msra.mxu0 0
        %7519 = vmatprep.subr.bf16.mxu0 0
        %7520 = vmatpush1.bf16.msra.mxu0 0
        %7521 = vmatprep.subr.bf16.mxu0 0
        %7522 = vmatpush1.bf16.msra.mxu0 0
        %7523 = vmatprep.mubr.bf16.mxu0 0
        %7524 = vmatmul.mubr.bf16.gmra.mrb[0].mxu0 %v7419
        %v7525 = vpop.f32.mrb[0].mxu0
        %v7526 = vadd.f32 %v7441, %v7525
        %v7527 = vpop.f32.mrb[0].mxu0
        %v7528 = vpop.f32.mrb[0].mxu0
        %v7529 = vadd.f32 %v7441, %v7528
        %v7530 = vpop.f32.mrb[0].mxu0
        %7531 = vdwg.mxu0
        %7532 = vst [vmem:[%s583] sm:$0xff] %v7526
        %7533 = vst [vmem:[%s583 + $0x8] sm:$0xff] %v7529
        %s7534 = sand.u32 %s424, 1
        %s7535 = scalar_lea.sflag [#allocation4], %s7534
        %s7536 = sand.u32 %s424, 1
        %s7537 = smul.addr %s7536, 16
        %s7538 = scalar_lea.vmem [#allocation5], %s7537
        // Predicated region
        $region97: #{gen_model_forward.1} parent=91 // pred_check
          %p7539 = pneg %p434
        $region98: #{gen_model_forward.1} parent=91 // pred_check_branch
          %7541 = sbr.rel (%p7539) target = $region100
        $region99: #{gen_model_forward.1} parent=91 // pred_region
          %s7543 = ssub.s32 256, 256
          %7544 = vsyncadd %s7535, %s7543
          %s7545 = smul.addr %s33, 2
          %s7546 = smul.addr %s7545, 128
          %s7547 = scalar_lea.hbm %s18, %s7546
          %s7548 = sshll.u32 %s7538, 4
          %s7549 = int_to_ptr.vmem [resolvable:$true] %s7548
          %7554 = dma.vmem_to_hbm [thread:$0]  %s7549, 256, %s7547, %s7535, 128, 128, 8
        $region100: #{gen_model_forward.1} parent=91 // pred_fallthru
          _
      $region92: #{gen_model_forward.1} parent=5 // pred_fallthru
        _
      %p7555 = scmp.le.s32.totalorder 2, %s28
      // Predicated region
      $region101: #{gen_model_forward.1} parent=5 // pred_check
        %p7556 = pneg %p7555
      $region102: #{gen_model_forward.1} parent=5 // pred_check_branch
        %7558 = sbr.rel (%p7556) target = $region104
      $region103: #{gen_model_forward.1} parent=5 // pred_region
        %s7559 = ssub.s32 %s28, 2
        // Predicated region
        $region105: #{gen_model_forward.1} parent=103 // pred_check
          %p7560 = pneg %p440
        $region106: #{gen_model_forward.1} parent=103 // pred_check_branch
          %7562 = sbr.rel (%p7560) target = $region108
        $region107: #{gen_model_forward.1} parent=103 // pred_region
          %s7563 = sand.u32 %s425, 1
          %s7564 = scalar_lea.sflag [#allocation4], %s7563
          %s7565 = sand.u32 %s425, 1
          %s7566 = smul.addr %s7565, 16
          %s7567 = scalar_lea.vmem [#allocation5], %s7566
          %7568 = dma.done %s7564, 256
        $region108: #{gen_model_forward.1} parent=103 // pred_fallthru
          _
      $region104: #{gen_model_forward.1} parent=5 // pred_fallthru
        _
    $region6: #{gen_model_forward.1} parent=1 // loop_footer
      %s32 = sadd.s32 1, %s28
    $region7: #{gen_model_forward.1} parent=1 // loop_footer_branch
      %27 = sbr.rel target = $region3
    $region8: #{gen_model_forward.1} parent=1 // loop_exit
      _
    %7569 = vsyncpa [#allocation3], 1
    %s7570 = scalar_lea.sflag [#allocation3], 1
    %7571 = vsyncpa %s7570, 1
    %7572 = vsyncpa [#allocation4], 1
    %s7573 = scalar_lea.sflag [#allocation4], 1
    %7574 = vsyncpa %s7573, 1

</llo_original>
